<compile_context>
chip_gen: v7x
topology: tpu7x:2x2x1
jax: 0.10.0
libtpu: 0.0.40
codegen_flags: <defaults>
</compile_context>

<pallas_src>
import math
import functools

import jax
import jax.numpy as jnp
from jax import lax
from jax.experimental import pallas as pl
from jax.experimental.pallas import tpu as pltpu


def _gru_chunk_kernel(
    # inputs (refs)
    xproj_ref,   # (T, BT, 5Hp) compute-dtype: x @ [wmx|wsx|wx_r|wx_i|wx_n] + folded biases
    eps_ref,     # (T, BT, Hp)  compute-dtype reparameterization noise (iteration order)
    h0_ref,      # (BT, Hp) f32 initial hidden state for this batch tile
    wh_ref,      # (Hp, 5Hp)    fused [wmh | wsh | wh_r | wh_i | wh_n]
    wz_ref,      # (Hp, 3Hp)    z2h weight (bias folded into xproj)
    bhn_ref,     # (1, Hp) f32  newgate part of bh2h (multiplied by resetgate)
    # outputs
    o_ref,       # (T, BT, Hp) f32 hidden states (iteration order)
    # scratch
    h_scratch,   # (BT, Hp) f32 hidden state carried across time chunks
    *, reverse_time,
):
    Hp = h_scratch.shape[-1]
    T = o_ref.shape[0]
    cdtype = wh_ref.dtype

    # Initialize carried hidden state on the first time chunk of this batch tile.
    @pl.when(pl.program_id(1) == 0)
    def _():
        h_scratch[...] = h0_ref[...]

    bhn = bhn_ref[...].astype(jnp.float32)   # (1, Hp) row, broadcast on use

    def step(t, h):
        # In-chunk time index: reversed when iterating the sequence backwards;
        # eps / outputs stay in iteration (loop) order, matching PyTorch.
        tt = (T - 1 - t) if reverse_time else t

        # Single fused h-projection: [h_mean | h_sigma | gh_r | gh_i | gh_n].
        hp = jnp.dot(h.astype(cdtype), wh_ref[...],
                     preferred_element_type=jnp.float32)

        # Encoder + reparameterization (lazy lane-aligned slices of xproj).
        mean_ = xproj_ref[tt, :, 0:Hp].astype(jnp.float32) + hp[:, 0:Hp]
        logvar_ = xproj_ref[tt, :, Hp:2 * Hp].astype(jnp.float32) + hp[:, Hp:2 * Hp]
        sigma = jnp.exp(0.5 * logvar_)                       # EUP slot
        z = mean_ + eps_ref[t].astype(jnp.float32) * sigma

        # z-dependent gate projection (true per-step data dependency).
        gz = jnp.dot(z.astype(cdtype), wz_ref[...],
                     preferred_element_type=jnp.float32)

        # Gates.  sigmoid(x) == 0.5*(tanh(0.5*x)+1): one EUP op instead of two.
        r_pre = (xproj_ref[tt, :, 2 * Hp:3 * Hp].astype(jnp.float32)
                 + hp[:, 2 * Hp:3 * Hp] + gz[:, 0:Hp])
        i_pre = (xproj_ref[tt, :, 3 * Hp:4 * Hp].astype(jnp.float32)
                 + hp[:, 3 * Hp:4 * Hp] + gz[:, Hp:2 * Hp])
        resetgate = 0.5 * (jnp.tanh(0.5 * r_pre) + 1.0)
        inputgate = 0.5 * (jnp.tanh(0.5 * i_pre) + 1.0)
        newgate = jnp.tanh(xproj_ref[tt, :, 4 * Hp:5 * Hp].astype(jnp.float32)
                           + gz[:, 2 * Hp:3 * Hp]
                           + resetgate * (hp[:, 4 * Hp:5 * Hp] + bhn))
        h_new = newgate + inputgate * (h - newgate)

        o_ref[t] = h_new.astype(o_ref.dtype)
        return h_new

    # Fully unroll small chunks (LLO visibility); keep the loop visible for
    # larger T so live ranges stay bounded.
    h_final = lax.fori_loop(0, T, step, h_scratch[...], unroll=(T <= 8))
    h_scratch[...] = h_final


def _round_up(n, m):
    return ((n + m - 1) // m) * m


def _pick_chunk(n, max_chunk):
    for c in range(min(n, max_chunk), 0, -1):
        if n % c == 0:
            return c
    return 1


def _pad2(w, rows, cols):
    return jnp.pad(w, ((0, rows - w.shape[0]), (0, cols - w.shape[1])))


@functools.partial(jax.jit, static_argnames=("go_backwards", "time_chunk",
                                             "batch_tile", "compute_dtype"))
def stochastic_gru_forward(x_seq, eps_seq, h0, params, go_backwards=False,
                           time_chunk=None, batch_tile=None,
                           compute_dtype=jnp.bfloat16):
    """x_seq: (nseq, B, I); eps_seq: (nseq, B, H) indexed by loop iteration;
    h0: (B, H).  Returns hidden_seq: (nseq, B, H) in PyTorch append order
    (reverse-time order when go_backwards=True)."""
    nseq, B, I = x_seq.shape
    H = h0.shape[-1]
    Hp = _round_up(H, 128)          # lane-aligned hidden width

    (wmx, wmh, bm, wsx, wsh, bs,
     wx2h, bx2h, wh2h, bh2h, wz2h, bz2h) = params

    # Split gate weights/biases (r, i, n) so they can be padded independently.
    wx_r, wx_i, wx_n = wx2h[:, :H], wx2h[:, H:2 * H], wx2h[:, 2 * H:]
    wh_r, wh_i, wh_n = wh2h[:, :H], wh2h[:, H:2 * H], wh2h[:, 2 * H:]
    wz_r, wz_i, wz_n = wz2h[:, :H], wz2h[:, H:2 * H], wz2h[:, 2 * H:]
    bx_r, bx_i, bx_n = bx2h[:, :H], bx2h[:, H:2 * H], bx2h[:, 2 * H:]
    bh_r, bh_i, bh_n = bh2h[:, :H], bh2h[:, H:2 * H], bh2h[:, 2 * H:]
    bz_r, bz_i, bz_n = bz2h[:, :H], bz2h[:, H:2 * H], bz2h[:, 2 * H:]

    # ---- Hoisted x projection (plain XLA, whole sequence, one matmul) ------
    w_x_all = jnp.concatenate(
        [_pad2(wmx, I, Hp), _pad2(wsx, I, Hp),
         _pad2(wx_r, I, Hp), _pad2(wx_i, I, Hp), _pad2(wx_n, I, Hp)], axis=1)
    # Bias folding: bz2h fully and the reset/input parts of bh2h are additive
    # in the gate pre-activations -> fold them into the x projection.
    b_x_all = jnp.concatenate(
        [_pad2(bm, 1, Hp), _pad2(bs, 1, Hp),
         _pad2(bx_r + bh_r + bz_r, 1, Hp),
         _pad2(bx_i + bh_i + bz_i, 1, Hp),
         _pad2(bx_n + bz_n, 1, Hp)], axis=1)
    xproj = (x_seq.reshape(nseq * B, I).astype(jnp.float32) @ w_x_all + b_x_all)
    xproj = xproj.reshape(nseq, B, 5 * Hp).astype(compute_dtype)

    # ---- Fused, padded, compute-dtype h / z weights -------------------------
    w_h_all = jnp.concatenate(
        [_pad2(wmh, Hp, Hp), _pad2(wsh, Hp, Hp),
         _pad2(wh_r, Hp, Hp), _pad2(wh_i, Hp, Hp), _pad2(wh_n, Hp, Hp)],
        axis=1).astype(compute_dtype)                      # (Hp, 5Hp)
    w_z_all = jnp.concatenate(
        [_pad2(wz_r, Hp, Hp), _pad2(wz_i, Hp, Hp), _pad2(wz_n, Hp, Hp)],
        axis=1).astype(compute_dtype)                      # (Hp, 3Hp)
    b_h_n = _pad2(bh_n, 1, Hp).astype(jnp.float32)         # (1, Hp)

    eps_p = jnp.pad(eps_seq, ((0, 0), (0, 0), (0, Hp - H))).astype(compute_dtype)
    h0_p = jnp.pad(h0, ((0, 0), (0, Hp - H))).astype(jnp.float32)

    # ---- Tiling --------------------------------------------------------------
    T = time_chunk if time_chunk is not None else _pick_chunk(nseq, 8)
    # Default BT = B: the serial recurrence wants the widest possible per-step
    # MXU matmul.  On v7x pass batch_tile=B//2 so the 2 TensorCores each take
    # one independent shard of the recurrence.
    BT = batch_tile if batch_tile is not None else B
    assert nseq % T == 0, "time_chunk must divide nseq"
    assert B % BT == 0, "batch_tile must divide batch"
    assert BT == B or BT % 8 == 0, "batch_tile must equal B or be a multiple of 8"
    num_chunks = nseq // T
    grid = (B // BT, num_chunks)    # (parallel batch tiles, sequential time chunks)

    if go_backwards:
        # xproj stays in natural time order; the index map walks it backwards
        # (and the in-kernel loop reverses within the chunk).  eps and the
        # output stay in iteration order, matching the PyTorch append order.
        xproj_map = lambda b, s: (num_chunks - 1 - s, b, 0)
    else:
        xproj_map = lambda b, s: (s, b, 0)

    # Grid-invariant weights/biases: single-buffered (never re-DMA'd).
    def const_spec(shape):
        return pl.BlockSpec(shape, lambda b, s: (0, 0), pipeline_mode=pl.Buffered(1))

    out_p = pl.pallas_call(
        functools.partial(_gru_chunk_kernel, reverse_time=go_backwards),
        out_shape=jax.ShapeDtypeStruct((nseq, B, Hp), jnp.float32),
        grid_spec=pltpu.PrefetchScalarGridSpec(
            num_scalar_prefetch=0,
            grid=grid,
            in_specs=[
                pl.BlockSpec((T, BT, 5 * Hp), xproj_map),                # xproj
                pl.BlockSpec((T, BT, Hp), lambda b, s: (s, b, 0)),       # eps
                pl.BlockSpec((BT, Hp), lambda b, s: (b, 0)),             # h0
                const_spec((Hp, 5 * Hp)),                                # fused h weight
                const_spec((Hp, 3 * Hp)),                                # z2h weight
                const_spec((1, Hp)),                                     # newgate h-bias
            ],
            out_specs=pl.BlockSpec((T, BT, Hp), lambda b, s: (s, b, 0)),
            scratch_shapes=[pltpu.VMEM((BT, Hp), jnp.float32)],
        ),
        compiler_params=pltpu.CompilerParams(
            # Batch tiles are independent (megacore); time is a serial
            # recurrence carried through h_scratch (must stay innermost).
            dimension_semantics=("parallel", "arbitrary"),
            # Re-derive per generation when scaling tiles: <=48 MiB on v7x
            # (64 MiB physical/TC), up to ~96 MiB usable on v5e/v6e.
            vmem_limit_bytes=48 * 1024 * 1024,
        ),
    )(xproj, eps_p, h0_p, w_h_all, w_z_all, b_h_n)

    return out_p[:, :, :H]


def init_params(key, input_size, hidden_size):
    """Deterministic init mirroring reset_parameters: uniform(-std, std)."""
    std = 1.0 / math.sqrt(hidden_size)
    I, H = input_size, hidden_size
    keys = jax.random.split(key, 10)
    u = lambda k, shape: jax.random.uniform(
        k, shape, dtype=jnp.float32, minval=-std, maxval=std)
    # encoder_mlp_mean / _sigma: Linear(I+H, H) -> split into x-part and h-part
    wm = u(keys[0], (I + H, H))
    bm = u(keys[1], (1, H))
    ws = u(keys[2], (I + H, H))
    bs = u(keys[3], (1, H))
    wx2h = u(keys[4], (I, 3 * H))
    bx2h = u(keys[5], (1, 3 * H))
    wh2h = u(keys[6], (H, 3 * H))
    bh2h = u(keys[7], (1, 3 * H))
    wz2h = u(keys[8], (H, 3 * H))
    bz2h = u(keys[9], (1, 3 * H))
    return (wm[:I], wm[I:], bm, ws[:I], ws[I:], bs,
            wx2h, bx2h, wh2h, bh2h, wz2h, bz2h)


def reference_forward(x_seq, eps_seq, h0, params, go_backwards=False):
    """Pure-JAX f32 reference matching the PyTorch loop, for verification."""
    (wmx, wmh, bm, wsx, wsh, bs,
     wx2h, bx2h, wh2h, bh2h, wz2h, bz2h) = params
    H = h0.shape[-1]

    if go_backwards:
        x_seq = x_seq[::-1]

    def step(h, inputs):
        x, eps = inputs
        mean_ = x @ wmx + h @ wmh + bm
        logvar_ = x @ wsx + h @ wsh + bs
        z = mean_ + eps * jnp.exp(0.5 * logvar_)
        gx = x @ wx2h + bx2h
        gh = h @ wh2h + bh2h
        gz = z @ wz2h + bz2h
        i_r, i_i, i_n = gx[:, :H], gx[:, H:2 * H], gx[:, 2 * H:]
        h_r, h_i, h_n = gh[:, :H], gh[:, H:2 * H], gh[:, 2 * H:]
        z_r, z_i, z_n = gz[:, :H], gz[:, H:2 * H], gz[:, 2 * H:]
        resetgate = jax.nn.sigmoid(i_r + h_r + z_r)
        inputgate = jax.nn.sigmoid(i_i + h_i + z_i)
        newgate = jnp.tanh(i_n + z_n + resetgate * h_n)
        h_new = newgate + inputgate * (h - newgate)
        return h_new, h_new

    _, hs = jax.lax.scan(step, h0, (x_seq, eps_seq))
    return hs


if __name__ == "__main__":
    # Small demo shapes (H is padded to 128 inside the wrapper).
    nseq, batch, input_size, hidden_size = 16, 16, 16, 32

    key = jax.random.PRNGKey(0)
    k_param, k_x, k_h0, k_eps = jax.random.split(key, 4)

    params = init_params(k_param, input_size, hidden_size)
    x_seq = jax.random.normal(k_x, (nseq, batch, input_size), dtype=jnp.float32)
    # Stochastic bits of the module (torch.randn): deterministic external RNG.
    # TODO(synk): eps/h0 could be drawn on-chip with pltpu.prng_random_bits, but
    # exact torch.randn semantics are kept host-side here.
    h0 = jax.random.normal(k_h0, (batch, hidden_size), dtype=jnp.float32)
    eps_seq = jax.random.normal(k_eps, (nseq, batch, hidden_size), dtype=jnp.float32)

    ref_f = jax.block_until_ready(reference_forward(x_seq, eps_seq, h0, params))
    ref_b = jax.block_until_ready(
        reference_forward(x_seq, eps_seq, h0, params, go_backwards=True))

    # f32 compute path: tight check, both directions.
    out_f = stochastic_gru_forward(x_seq, eps_seq, h0, params,
                                   compute_dtype=jnp.float32)
    out_b = stochastic_gru_forward(x_seq, eps_seq, h0, params, go_backwards=True,
                                   compute_dtype=jnp.float32)
    out_f, out_b = jax.block_until_ready((out_f, out_b))
    assert out_f.shape == (nseq, batch, hidden_size)
    assert bool(jnp.allclose(out_f, ref_f, atol=1e-4, rtol=1e-4)), "fwd mismatch"
    assert bool(jnp.allclose(out_b, ref_b, atol=1e-4, rtol=1e-4)), "bwd mismatch"

    # Default bf16-stream path (f32 carry/accumulation): loose check.
    out_bf = jax.block_until_ready(
        stochastic_gru_forward(x_seq, eps_seq, h0, params))
    err = jnp.abs(out_bf.astype(jnp.float32) - ref_f)
    assert float(jnp.max(err)) < 1e-1, "bf16 path max error too large"
    assert float(jnp.mean(err)) < 1e-2, "bf16 path mean error too large"

    print("KERNEL_OK")
</pallas_src>

<mosaic_0001>
module attributes {stable_mosaic.version = 11 : i64} {
  func.func @_gru_chunk_kernel(%arg0: i32, %arg1: i32, %arg2: memref<8x16x640xf32, #tpu.memory_space<vmem>>, %arg3: memref<8x16x128xf32, #tpu.memory_space<vmem>>, %arg4: memref<16x128xf32, #tpu.memory_space<vmem>>, %arg5: memref<128x640xf32, #tpu.memory_space<vmem>>, %arg6: memref<128x384xf32, #tpu.memory_space<vmem>>, %arg7: memref<1x128xf32, #tpu.memory_space<vmem>>, %arg8: memref<8x16x128xf32, #tpu.memory_space<vmem>>, %arg9: memref<16x128xf32, #tpu.memory_space<vmem>>) attributes {dimension_semantics = [#tpu.dimension_semantics<parallel>, #tpu.dimension_semantics<arbitrary>], iteration_bounds = array<i64: 1, 2>, scalar_prefetch = 0 : i64, scratch_operands = 1 : i64, tpu.core_type = #tpu.core_type<tc>, window_params = [{transform_indices = @transform_0, window_bounds = array<i64: 8, 16, 640>}, {transform_indices = @transform_1, window_bounds = array<i64: 8, 16, 128>}, {transform_indices = @transform_2, window_bounds = array<i64: 16, 128>}, {pipeline_mode = #tpu.pipeline_mode<synchronous>, transform_indices = @transform_3, window_bounds = array<i64: 128, 640>}, {pipeline_mode = #tpu.pipeline_mode<synchronous>, transform_indices = @transform_4, window_bounds = array<i64: 128, 384>}, {pipeline_mode = #tpu.pipeline_mode<synchronous>, transform_indices = @transform_5, window_bounds = array<i64: 1, 128>}, {transform_indices = @transform_6, window_bounds = array<i64: 8, 16, 128>}]} {
    %c0_i32 = arith.constant 0 : i32
    %0 = arith.cmpi eq, %arg1, %c0_i32 : i32
    %1 = arith.extui %0 : i1 to i32
    %c0_i32_0 = arith.constant 0 : i32
    %2 = arith.cmpi ne, %1, %c0_i32_0 : i32
    scf.if %2 {
      %c0_218 = arith.constant 0 : index
      %c0_219 = arith.constant 0 : index
      %550 = vector.load %arg4[%c0_218, %c0_219] : memref<16x128xf32, #tpu.memory_space<vmem>>, vector<16x128xf32>
      %c0_220 = arith.constant 0 : index
      %c0_221 = arith.constant 0 : index
      %551 = vector.load %arg9[%c0_220, %c0_221] : memref<16x128xf32, #tpu.memory_space<vmem>>, vector<16x128xf32>
      tpu.vector_store %arg9[%c0_220, %c0_221], %550 {strides = array<i32>} : memref<16x128xf32, #tpu.memory_space<vmem>>, vector<16x128xf32>,
    } else {
    }
    %c0 = arith.constant 0 : index
    %c0_1 = arith.constant 0 : index
    %3 = vector.load %arg7[%c0, %c0_1] : memref<1x128xf32, #tpu.memory_space<vmem>>, vector<1x128xf32>
    %c0_2 = arith.constant 0 : index
    %c0_3 = arith.constant 0 : index
    %4 = vector.load %arg9[%c0_2, %c0_3] : memref<16x128xf32, #tpu.memory_space<vmem>>, vector<16x128xf32>
    %c0_i32_4 = arith.constant 0 : i32
    %c0_5 = arith.constant 0 : index
    %c0_6 = arith.constant 0 : index
    %5 = vector.load %arg5[%c0_5, %c0_6] : memref<128x640xf32, #tpu.memory_space<vmem>>, vector<128x640xf32>
    %cst = arith.constant dense<0.000000e+00> : vector<16x640xf32>
    %6 = tpu.matmul %4, %5, %cst {dimension_numbers = #tpu.dot_dimension_numbers<[1], [0], [0], [1], [0, 0, 1, 1], [], []>} : vector<16x128xf32>, vector<128x640xf32>, vector<16x640xf32> -> vector<16x640xf32>
    %7 = arith.index_cast %c0_i32_4 : i32 to index
    %c0_7 = arith.constant 0 : index
    %c0_8 = arith.constant 0 : index
    %8 = vector.load %arg2[%7, %c0_7, %c0_8] : memref<8x16x640xf32, #tpu.memory_space<vmem>>, vector<1x16x128xf32>
    %9 = vector.shape_cast %8 : vector<1x16x128xf32> to vector<16x128xf32>
    %10 = vector.extract_strided_slice %6 {offsets = [0, 0], sizes = [16, 128], strides = [1, 1]} : vector<16x640xf32> to vector<16x128xf32>
    %11 = arith.addf %9, %10 : vector<16x128xf32>
    %12 = arith.index_cast %c0_i32_4 : i32 to index
    %c0_9 = arith.constant 0 : index
    %c128 = arith.constant 128 : index
    %13 = vector.load %arg2[%12, %c0_9, %c128] : memref<8x16x640xf32, #tpu.memory_space<vmem>>, vector<1x16x128xf32>
    %14 = vector.shape_cast %13 : vector<1x16x128xf32> to vector<16x128xf32>
    %15 = vector.extract_strided_slice %6 {offsets = [0, 128], sizes = [16, 128], strides = [1, 1]} : vector<16x640xf32> to vector<16x128xf32>
    %16 = arith.addf %14, %15 : vector<16x128xf32>
    %cst_10 = arith.constant 5.000000e-01 : f32
    %17 = vector.broadcast %cst_10 : f32 to vector<16x128xf32>
    %18 = arith.mulf %17, %16 : vector<16x128xf32>
    %19 = math.exp %18 : vector<16x128xf32>
    %20 = arith.index_cast %c0_i32_4 : i32 to index
    %c0_11 = arith.constant 0 : index
    %c0_12 = arith.constant 0 : index
    %21 = vector.load %arg3[%20, %c0_11, %c0_12] : memref<8x16x128xf32, #tpu.memory_space<vmem>>, vector<1x16x128xf32>
    %22 = vector.shape_cast %21 : vector<1x16x128xf32> to vector<16x128xf32>
    %23 = arith.mulf %22, %19 : vector<16x128xf32>
    %24 = arith.addf %11, %23 : vector<16x128xf32>
    %c0_13 = arith.constant 0 : index
    %c0_14 = arith.constant 0 : index
    %25 = vector.load %arg6[%c0_13, %c0_14] : memref<128x384xf32, #tpu.memory_space<vmem>>, vector<128x384xf32>
    %cst_15 = arith.constant dense<0.000000e+00> : vector<16x384xf32>
    %26 = tpu.matmul %24, %25, %cst_15 {dimension_numbers = #tpu.dot_dimension_numbers<[1], [0], [0], [1], [0, 0, 1, 1], [], []>} : vector<16x128xf32>, vector<128x384xf32>, vector<16x384xf32> -> vector<16x384xf32>
    %27 = arith.index_cast %c0_i32_4 : i32 to index
    %c0_16 = arith.constant 0 : index
    %c256 = arith.constant 256 : index
    %28 = vector.load %arg2[%27, %c0_16, %c256] : memref<8x16x640xf32, #tpu.memory_space<vmem>>, vector<1x16x128xf32>
    %29 = vector.shape_cast %28 : vector<1x16x128xf32> to vector<16x128xf32>
    %30 = vector.extract_strided_slice %6 {offsets = [0, 256], sizes = [16, 128], strides = [1, 1]} : vector<16x640xf32> to vector<16x128xf32>
    %31 = arith.addf %29, %30 : vector<16x128xf32>
    %32 = vector.extract_strided_slice %26 {offsets = [0, 0], sizes = [16, 128], strides = [1, 1]} : vector<16x384xf32> to vector<16x128xf32>
    %33 = arith.addf %31, %32 : vector<16x128xf32>
    %34 = arith.index_cast %c0_i32_4 : i32 to index
    %c0_17 = arith.constant 0 : index
    %c384 = arith.constant 384 : index
    %35 = vector.load %arg2[%34, %c0_17, %c384] : memref<8x16x640xf32, #tpu.memory_space<vmem>>, vector<1x16x128xf32>
    %36 = vector.shape_cast %35 : vector<1x16x128xf32> to vector<16x128xf32>
    %37 = vector.extract_strided_slice %6 {offsets = [0, 384], sizes = [16, 128], strides = [1, 1]} : vector<16x640xf32> to vector<16x128xf32>
    %38 = arith.addf %36, %37 : vector<16x128xf32>
    %39 = vector.extract_strided_slice %26 {offsets = [0, 128], sizes = [16, 128], strides = [1, 1]} : vector<16x384xf32> to vector<16x128xf32>
    %40 = arith.addf %38, %39 : vector<16x128xf32>
    %cst_18 = arith.constant 5.000000e-01 : f32
    %41 = vector.broadcast %cst_18 : f32 to vector<16x128xf32>
    %42 = arith.mulf %41, %33 : vector<16x128xf32>
    %43 = math.tanh %42 : vector<16x128xf32>
    %cst_19 = arith.constant 1.000000e+00 : f32
    %44 = vector.broadcast %cst_19 : f32 to vector<16x128xf32>
    %45 = arith.addf %43, %44 : vector<16x128xf32>
    %cst_20 = arith.constant 5.000000e-01 : f32
    %46 = vector.broadcast %cst_20 : f32 to vector<16x128xf32>
    %47 = arith.mulf %46, %45 : vector<16x128xf32>
    %cst_21 = arith.constant 5.000000e-01 : f32
    %48 = vector.broadcast %cst_21 : f32 to vector<16x128xf32>
    %49 = arith.mulf %48, %40 : vector<16x128xf32>
    %50 = math.tanh %49 : vector<16x128xf32>
    %cst_22 = arith.constant 1.000000e+00 : f32
    %51 = vector.broadcast %cst_22 : f32 to vector<16x128xf32>
    %52 = arith.addf %50, %51 : vector<16x128xf32>
    %cst_23 = arith.constant 5.000000e-01 : f32
    %53 = vector.broadcast %cst_23 : f32 to vector<16x128xf32>
    %54 = arith.mulf %53, %52 : vector<16x128xf32>
    %55 = arith.index_cast %c0_i32_4 : i32 to index
    %c0_24 = arith.constant 0 : index
    %c512 = arith.constant 512 : index
    %56 = vector.load %arg2[%55, %c0_24, %c512] : memref<8x16x640xf32, #tpu.memory_space<vmem>>, vector<1x16x128xf32>
    %57 = vector.shape_cast %56 : vector<1x16x128xf32> to vector<16x128xf32>
    %58 = vector.extract_strided_slice %26 {offsets = [0, 256], sizes = [16, 128], strides = [1, 1]} : vector<16x384xf32> to vector<16x128xf32>
    %59 = arith.addf %57, %58 : vector<16x128xf32>
    %60 = vector.extract_strided_slice %6 {offsets = [0, 512], sizes = [16, 128], strides = [1, 1]} : vector<16x640xf32> to vector<16x128xf32>
    %61 = vector.broadcast %3 : vector<1x128xf32> to vector<16x128xf32>
    %62 = arith.addf %60, %61 : vector<16x128xf32>
    %63 = arith.mulf %47, %62 : vector<16x128xf32>
    %64 = arith.addf %59, %63 : vector<16x128xf32>
    %65 = math.tanh %64 : vector<16x128xf32>
    %66 = arith.subf %4, %65 : vector<16x128xf32>
    %67 = arith.mulf %54, %66 : vector<16x128xf32>
    %68 = arith.addf %65, %67 : vector<16x128xf32>
    %69 = arith.index_cast %c0_i32_4 : i32 to index
    %c0_25 = arith.constant 0 : index
    %c0_26 = arith.constant 0 : index
    %70 = vector.load %arg8[%69, %c0_25, %c0_26] : memref<8x16x128xf32, #tpu.memory_space<vmem>>, vector<1x16x128xf32>
    %71 = vector.shape_cast %70 : vector<1x16x128xf32> to vector<16x128xf32>
    %72 = vector.shape_cast %68 : vector<16x128xf32> to vector<1x16x128xf32>
    tpu.vector_store %arg8[%69, %c0_25, %c0_26], %72 {strides = array<i32>} : memref<8x16x128xf32, #tpu.memory_space<vmem>>, vector<1x16x128xf32>,
    %c1_i32 = arith.constant 1 : i32
    %c0_27 = arith.constant 0 : index
    %c0_28 = arith.constant 0 : index
    %73 = vector.load %arg5[%c0_27, %c0_28] : memref<128x640xf32, #tpu.memory_space<vmem>>, vector<128x640xf32>
    %cst_29 = arith.constant dense<0.000000e+00> : vector<16x640xf32>
    %74 = tpu.matmul %68, %73, %cst_29 {dimension_numbers = #tpu.dot_dimension_numbers<[1], [0], [0], [1], [0, 0, 1, 1], [], []>} : vector<16x128xf32>, vector<128x640xf32>, vector<16x640xf32> -> vector<16x640xf32>
    %75 = arith.index_cast %c1_i32 : i32 to index
    %c0_30 = arith.constant 0 : index
    %c0_31 = arith.constant 0 : index
    %76 = vector.load %arg2[%75, %c0_30, %c0_31] : memref<8x16x640xf32, #tpu.memory_space<vmem>>, vector<1x16x128xf32>
    %77 = vector.shape_cast %76 : vector<1x16x128xf32> to vector<16x128xf32>
    %78 = vector.extract_strided_slice %74 {offsets = [0, 0], sizes = [16, 128], strides = [1, 1]} : vector<16x640xf32> to vector<16x128xf32>
    %79 = arith.addf %77, %78 : vector<16x128xf32>
    %80 = arith.index_cast %c1_i32 : i32 to index
    %c0_32 = arith.constant 0 : index
    %c128_33 = arith.constant 128 : index
    %81 = vector.load %arg2[%80, %c0_32, %c128_33] : memref<8x16x640xf32, #tpu.memory_space<vmem>>, vector<1x16x128xf32>
    %82 = vector.shape_cast %81 : vector<1x16x128xf32> to vector<16x128xf32>
    %83 = vector.extract_strided_slice %74 {offsets = [0, 128], sizes = [16, 128], strides = [1, 1]} : vector<16x640xf32> to vector<16x128xf32>
    %84 = arith.addf %82, %83 : vector<16x128xf32>
    %cst_34 = arith.constant 5.000000e-01 : f32
    %85 = vector.broadcast %cst_34 : f32 to vector<16x128xf32>
    %86 = arith.mulf %85, %84 : vector<16x128xf32>
    %87 = math.exp %86 : vector<16x128xf32>
    %88 = arith.index_cast %c1_i32 : i32 to index
    %c0_35 = arith.constant 0 : index
    %c0_36 = arith.constant 0 : index
    %89 = vector.load %arg3[%88, %c0_35, %c0_36] : memref<8x16x128xf32, #tpu.memory_space<vmem>>, vector<1x16x128xf32>
    %90 = vector.shape_cast %89 : vector<1x16x128xf32> to vector<16x128xf32>
    %91 = arith.mulf %90, %87 : vector<16x128xf32>
    %92 = arith.addf %79, %91 : vector<16x128xf32>
    %c0_37 = arith.constant 0 : index
    %c0_38 = arith.constant 0 : index
    %93 = vector.load %arg6[%c0_37, %c0_38] : memref<128x384xf32, #tpu.memory_space<vmem>>, vector<128x384xf32>
    %cst_39 = arith.constant dense<0.000000e+00> : vector<16x384xf32>
    %94 = tpu.matmul %92, %93, %cst_39 {dimension_numbers = #tpu.dot_dimension_numbers<[1], [0], [0], [1], [0, 0, 1, 1], [], []>} : vector<16x128xf32>, vector<128x384xf32>, vector<16x384xf32> -> vector<16x384xf32>
    %95 = arith.index_cast %c1_i32 : i32 to index
    %c0_40 = arith.constant 0 : index
    %c256_41 = arith.constant 256 : index
    %96 = vector.load %arg2[%95, %c0_40, %c256_41] : memref<8x16x640xf32, #tpu.memory_space<vmem>>, vector<1x16x128xf32>
    %97 = vector.shape_cast %96 : vector<1x16x128xf32> to vector<16x128xf32>
    %98 = vector.extract_strided_slice %74 {offsets = [0, 256], sizes = [16, 128], strides = [1, 1]} : vector<16x640xf32> to vector<16x128xf32>
    %99 = arith.addf %97, %98 : vector<16x128xf32>
    %100 = vector.extract_strided_slice %94 {offsets = [0, 0], sizes = [16, 128], strides = [1, 1]} : vector<16x384xf32> to vector<16x128xf32>
    %101 = arith.addf %99, %100 : vector<16x128xf32>
    %102 = arith.index_cast %c1_i32 : i32 to index
    %c0_42 = arith.constant 0 : index
    %c384_43 = arith.constant 384 : index
    %103 = vector.load %arg2[%102, %c0_42, %c384_43] : memref<8x16x640xf32, #tpu.memory_space<vmem>>, vector<1x16x128xf32>
    %104 = vector.shape_cast %103 : vector<1x16x128xf32> to vector<16x128xf32>
    %105 = vector.extract_strided_slice %74 {offsets = [0, 384], sizes = [16, 128], strides = [1, 1]} : vector<16x640xf32> to vector<16x128xf32>
    %106 = arith.addf %104, %105 : vector<16x128xf32>
    %107 = vector.extract_strided_slice %94 {offsets = [0, 128], sizes = [16, 128], strides = [1, 1]} : vector<16x384xf32> to vector<16x128xf32>
    %108 = arith.addf %106, %107 : vector<16x128xf32>
    %cst_44 = arith.constant 5.000000e-01 : f32
    %109 = vector.broadcast %cst_44 : f32 to vector<16x128xf32>
    %110 = arith.mulf %109, %101 : vector<16x128xf32>
    %111 = math.tanh %110 : vector<16x128xf32>
    %cst_45 = arith.constant 1.000000e+00 : f32
    %112 = vector.broadcast %cst_45 : f32 to vector<16x128xf32>
    %113 = arith.addf %111, %112 : vector<16x128xf32>
    %cst_46 = arith.constant 5.000000e-01 : f32
    %114 = vector.broadcast %cst_46 : f32 to vector<16x128xf32>
    %115 = arith.mulf %114, %113 : vector<16x128xf32>
    %cst_47 = arith.constant 5.000000e-01 : f32
    %116 = vector.broadcast %cst_47 : f32 to vector<16x128xf32>
    %117 = arith.mulf %116, %108 : vector<16x128xf32>
    %118 = math.tanh %117 : vector<16x128xf32>
    %cst_48 = arith.constant 1.000000e+00 : f32
    %119 = vector.broadcast %cst_48 : f32 to vector<16x128xf32>
    %120 = arith.addf %118, %119 : vector<16x128xf32>
    %cst_49 = arith.constant 5.000000e-01 : f32
    %121 = vector.broadcast %cst_49 : f32 to vector<16x128xf32>
    %122 = arith.mulf %121, %120 : vector<16x128xf32>
    %123 = arith.index_cast %c1_i32 : i32 to index
    %c0_50 = arith.constant 0 : index
    %c512_51 = arith.constant 512 : index
    %124 = vector.load %arg2[%123, %c0_50, %c512_51] : memref<8x16x640xf32, #tpu.memory_space<vmem>>, vector<1x16x128xf32>
    %125 = vector.shape_cast %124 : vector<1x16x128xf32> to vector<16x128xf32>
    %126 = vector.extract_strided_slice %94 {offsets = [0, 256], sizes = [16, 128], strides = [1, 1]} : vector<16x384xf32> to vector<16x128xf32>
    %127 = arith.addf %125, %126 : vector<16x128xf32>
    %128 = vector.extract_strided_slice %74 {offsets = [0, 512], sizes = [16, 128], strides = [1, 1]} : vector<16x640xf32> to vector<16x128xf32>
    %129 = vector.broadcast %3 : vector<1x128xf32> to vector<16x128xf32>
    %130 = arith.addf %128, %129 : vector<16x128xf32>
    %131 = arith.mulf %115, %130 : vector<16x128xf32>
    %132 = arith.addf %127, %131 : vector<16x128xf32>
    %133 = math.tanh %132 : vector<16x128xf32>
    %134 = arith.subf %68, %133 : vector<16x128xf32>
    %135 = arith.mulf %122, %134 : vector<16x128xf32>
    %136 = arith.addf %133, %135 : vector<16x128xf32>
    %137 = arith.index_cast %c1_i32 : i32 to index
    %c0_52 = arith.constant 0 : index
    %c0_53 = arith.constant 0 : index
    %138 = vector.load %arg8[%137, %c0_52, %c0_53] : memref<8x16x128xf32, #tpu.memory_space<vmem>>, vector<1x16x128xf32>
    %139 = vector.shape_cast %138 : vector<1x16x128xf32> to vector<16x128xf32>
    %140 = vector.shape_cast %136 : vector<16x128xf32> to vector<1x16x128xf32>
    tpu.vector_store %arg8[%137, %c0_52, %c0_53], %140 {strides = array<i32>} : memref<8x16x128xf32, #tpu.memory_space<vmem>>, vector<1x16x128xf32>,
    %c2_i32 = arith.constant 2 : i32
    %c0_54 = arith.constant 0 : index
    %c0_55 = arith.constant 0 : index
    %141 = vector.load %arg5[%c0_54, %c0_55] : memref<128x640xf32, #tpu.memory_space<vmem>>, vector<128x640xf32>
    %cst_56 = arith.constant dense<0.000000e+00> : vector<16x640xf32>
    %142 = tpu.matmul %136, %141, %cst_56 {dimension_numbers = #tpu.dot_dimension_numbers<[1], [0], [0], [1], [0, 0, 1, 1], [], []>} : vector<16x128xf32>, vector<128x640xf32>, vector<16x640xf32> -> vector<16x640xf32>
    %143 = arith.index_cast %c2_i32 : i32 to index
    %c0_57 = arith.constant 0 : index
    %c0_58 = arith.constant 0 : index
    %144 = vector.load %arg2[%143, %c0_57, %c0_58] : memref<8x16x640xf32, #tpu.memory_space<vmem>>, vector<1x16x128xf32>
    %145 = vector.shape_cast %144 : vector<1x16x128xf32> to vector<16x128xf32>
    %146 = vector.extract_strided_slice %142 {offsets = [0, 0], sizes = [16, 128], strides = [1, 1]} : vector<16x640xf32> to vector<16x128xf32>
    %147 = arith.addf %145, %146 : vector<16x128xf32>
    %148 = arith.index_cast %c2_i32 : i32 to index
    %c0_59 = arith.constant 0 : index
    %c128_60 = arith.constant 128 : index
    %149 = vector.load %arg2[%148, %c0_59, %c128_60] : memref<8x16x640xf32, #tpu.memory_space<vmem>>, vector<1x16x128xf32>
    %150 = vector.shape_cast %149 : vector<1x16x128xf32> to vector<16x128xf32>
    %151 = vector.extract_strided_slice %142 {offsets = [0, 128], sizes = [16, 128], strides = [1, 1]} : vector<16x640xf32> to vector<16x128xf32>
    %152 = arith.addf %150, %151 : vector<16x128xf32>
    %cst_61 = arith.constant 5.000000e-01 : f32
    %153 = vector.broadcast %cst_61 : f32 to vector<16x128xf32>
    %154 = arith.mulf %153, %152 : vector<16x128xf32>
    %155 = math.exp %154 : vector<16x128xf32>
    %156 = arith.index_cast %c2_i32 : i32 to index
    %c0_62 = arith.constant 0 : index
    %c0_63 = arith.constant 0 : index
    %157 = vector.load %arg3[%156, %c0_62, %c0_63] : memref<8x16x128xf32, #tpu.memory_space<vmem>>, vector<1x16x128xf32>
    %158 = vector.shape_cast %157 : vector<1x16x128xf32> to vector<16x128xf32>
    %159 = arith.mulf %158, %155 : vector<16x128xf32>
    %160 = arith.addf %147, %159 : vector<16x128xf32>
    %c0_64 = arith.constant 0 : index
    %c0_65 = arith.constant 0 : index
    %161 = vector.load %arg6[%c0_64, %c0_65] : memref<128x384xf32, #tpu.memory_space<vmem>>, vector<128x384xf32>
    %cst_66 = arith.constant dense<0.000000e+00> : vector<16x384xf32>
    %162 = tpu.matmul %160, %161, %cst_66 {dimension_numbers = #tpu.dot_dimension_numbers<[1], [0], [0], [1], [0, 0, 1, 1], [], []>} : vector<16x128xf32>, vector<128x384xf32>, vector<16x384xf32> -> vector<16x384xf32>
    %163 = arith.index_cast %c2_i32 : i32 to index
    %c0_67 = arith.constant 0 : index
    %c256_68 = arith.constant 256 : index
    %164 = vector.load %arg2[%163, %c0_67, %c256_68] : memref<8x16x640xf32, #tpu.memory_space<vmem>>, vector<1x16x128xf32>
    %165 = vector.shape_cast %164 : vector<1x16x128xf32> to vector<16x128xf32>
    %166 = vector.extract_strided_slice %142 {offsets = [0, 256], sizes = [16, 128], strides = [1, 1]} : vector<16x640xf32> to vector<16x128xf32>
    %167 = arith.addf %165, %166 : vector<16x128xf32>
    %168 = vector.extract_strided_slice %162 {offsets = [0, 0], sizes = [16, 128], strides = [1, 1]} : vector<16x384xf32> to vector<16x128xf32>
    %169 = arith.addf %167, %168 : vector<16x128xf32>
    %170 = arith.index_cast %c2_i32 : i32 to index
    %c0_69 = arith.constant 0 : index
    %c384_70 = arith.constant 384 : index
    %171 = vector.load %arg2[%170, %c0_69, %c384_70] : memref<8x16x640xf32, #tpu.memory_space<vmem>>, vector<1x16x128xf32>
    %172 = vector.shape_cast %171 : vector<1x16x128xf32> to vector<16x128xf32>
    %173 = vector.extract_strided_slice %142 {offsets = [0, 384], sizes = [16, 128], strides = [1, 1]} : vector<16x640xf32> to vector<16x128xf32>
    %174 = arith.addf %172, %173 : vector<16x128xf32>
    %175 = vector.extract_strided_slice %162 {offsets = [0, 128], sizes = [16, 128], strides = [1, 1]} : vector<16x384xf32> to vector<16x128xf32>
    %176 = arith.addf %174, %175 : vector<16x128xf32>
    %cst_71 = arith.constant 5.000000e-01 : f32
    %177 = vector.broadcast %cst_71 : f32 to vector<16x128xf32>
    %178 = arith.mulf %177, %169 : vector<16x128xf32>
    %179 = math.tanh %178 : vector<16x128xf32>
    %cst_72 = arith.constant 1.000000e+00 : f32
    %180 = vector.broadcast %cst_72 : f32 to vector<16x128xf32>
    %181 = arith.addf %179, %180 : vector<16x128xf32>
    %cst_73 = arith.constant 5.000000e-01 : f32
    %182 = vector.broadcast %cst_73 : f32 to vector<16x128xf32>
    %183 = arith.mulf %182, %181 : vector<16x128xf32>
    %cst_74 = arith.constant 5.000000e-01 : f32
    %184 = vector.broadcast %cst_74 : f32 to vector<16x128xf32>
    %185 = arith.mulf %184, %176 : vector<16x128xf32>
    %186 = math.tanh %185 : vector<16x128xf32>
    %cst_75 = arith.constant 1.000000e+00 : f32
    %187 = vector.broadcast %cst_75 : f32 to vector<16x128xf32>
    %188 = arith.addf %186, %187 : vector<16x128xf32>
    %cst_76 = arith.constant 5.000000e-01 : f32
    %189 = vector.broadcast %cst_76 : f32 to vector<16x128xf32>
    %190 = arith.mulf %189, %188 : vector<16x128xf32>
    %191 = arith.index_cast %c2_i32 : i32 to index
    %c0_77 = arith.constant 0 : index
    %c512_78 = arith.constant 512 : index
    %192 = vector.load %arg2[%191, %c0_77, %c512_78] : memref<8x16x640xf32, #tpu.memory_space<vmem>>, vector<1x16x128xf32>
    %193 = vector.shape_cast %192 : vector<1x16x128xf32> to vector<16x128xf32>
    %194 = vector.extract_strided_slice %162 {offsets = [0, 256], sizes = [16, 128], strides = [1, 1]} : vector<16x384xf32> to vector<16x128xf32>
    %195 = arith.addf %193, %194 : vector<16x128xf32>
    %196 = vector.extract_strided_slice %142 {offsets = [0, 512], sizes = [16, 128], strides = [1, 1]} : vector<16x640xf32> to vector<16x128xf32>
    %197 = vector.broadcast %3 : vector<1x128xf32> to vector<16x128xf32>
    %198 = arith.addf %196, %197 : vector<16x128xf32>
    %199 = arith.mulf %183, %198 : vector<16x128xf32>
    %200 = arith.addf %195, %199 : vector<16x128xf32>
    %201 = math.tanh %200 : vector<16x128xf32>
    %202 = arith.subf %136, %201 : vector<16x128xf32>
    %203 = arith.mulf %190, %202 : vector<16x128xf32>
    %204 = arith.addf %201, %203 : vector<16x128xf32>
    %205 = arith.index_cast %c2_i32 : i32 to index
    %c0_79 = arith.constant 0 : index
    %c0_80 = arith.constant 0 : index
    %206 = vector.load %arg8[%205, %c0_79, %c0_80] : memref<8x16x128xf32, #tpu.memory_space<vmem>>, vector<1x16x128xf32>
    %207 = vector.shape_cast %206 : vector<1x16x128xf32> to vector<16x128xf32>
    %208 = vector.shape_cast %204 : vector<16x128xf32> to vector<1x16x128xf32>
    tpu.vector_store %arg8[%205, %c0_79, %c0_80], %208 {strides = array<i32>} : memref<8x16x128xf32, #tpu.memory_space<vmem>>, vector<1x16x128xf32>,
    %c3_i32 = arith.constant 3 : i32
    %c0_81 = arith.constant 0 : index
    %c0_82 = arith.constant 0 : index
    %209 = vector.load %arg5[%c0_81, %c0_82] : memref<128x640xf32, #tpu.memory_space<vmem>>, vector<128x640xf32>
    %cst_83 = arith.constant dense<0.000000e+00> : vector<16x640xf32>
    %210 = tpu.matmul %204, %209, %cst_83 {dimension_numbers = #tpu.dot_dimension_numbers<[1], [0], [0], [1], [0, 0, 1, 1], [], []>} : vector<16x128xf32>, vector<128x640xf32>, vector<16x640xf32> -> vector<16x640xf32>
    %211 = arith.index_cast %c3_i32 : i32 to index
    %c0_84 = arith.constant 0 : index
    %c0_85 = arith.constant 0 : index
    %212 = vector.load %arg2[%211, %c0_84, %c0_85] : memref<8x16x640xf32, #tpu.memory_space<vmem>>, vector<1x16x128xf32>
    %213 = vector.shape_cast %212 : vector<1x16x128xf32> to vector<16x128xf32>
    %214 = vector.extract_strided_slice %210 {offsets = [0, 0], sizes = [16, 128], strides = [1, 1]} : vector<16x640xf32> to vector<16x128xf32>
    %215 = arith.addf %213, %214 : vector<16x128xf32>
    %216 = arith.index_cast %c3_i32 : i32 to index
    %c0_86 = arith.constant 0 : index
    %c128_87 = arith.constant 128 : index
    %217 = vector.load %arg2[%216, %c0_86, %c128_87] : memref<8x16x640xf32, #tpu.memory_space<vmem>>, vector<1x16x128xf32>
    %218 = vector.shape_cast %217 : vector<1x16x128xf32> to vector<16x128xf32>
    %219 = vector.extract_strided_slice %210 {offsets = [0, 128], sizes = [16, 128], strides = [1, 1]} : vector<16x640xf32> to vector<16x128xf32>
    %220 = arith.addf %218, %219 : vector<16x128xf32>
    %cst_88 = arith.constant 5.000000e-01 : f32
    %221 = vector.broadcast %cst_88 : f32 to vector<16x128xf32>
    %222 = arith.mulf %221, %220 : vector<16x128xf32>
    %223 = math.exp %222 : vector<16x128xf32>
    %224 = arith.index_cast %c3_i32 : i32 to index
    %c0_89 = arith.constant 0 : index
    %c0_90 = arith.constant 0 : index
    %225 = vector.load %arg3[%224, %c0_89, %c0_90] : memref<8x16x128xf32, #tpu.memory_space<vmem>>, vector<1x16x128xf32>
    %226 = vector.shape_cast %225 : vector<1x16x128xf32> to vector<16x128xf32>
    %227 = arith.mulf %226, %223 : vector<16x128xf32>
    %228 = arith.addf %215, %227 : vector<16x128xf32>
    %c0_91 = arith.constant 0 : index
    %c0_92 = arith.constant 0 : index
    %229 = vector.load %arg6[%c0_91, %c0_92] : memref<128x384xf32, #tpu.memory_space<vmem>>, vector<128x384xf32>
    %cst_93 = arith.constant dense<0.000000e+00> : vector<16x384xf32>
    %230 = tpu.matmul %228, %229, %cst_93 {dimension_numbers = #tpu.dot_dimension_numbers<[1], [0], [0], [1], [0, 0, 1, 1], [], []>} : vector<16x128xf32>, vector<128x384xf32>, vector<16x384xf32> -> vector<16x384xf32>
    %231 = arith.index_cast %c3_i32 : i32 to index
    %c0_94 = arith.constant 0 : index
    %c256_95 = arith.constant 256 : index
    %232 = vector.load %arg2[%231, %c0_94, %c256_95] : memref<8x16x640xf32, #tpu.memory_space<vmem>>, vector<1x16x128xf32>
    %233 = vector.shape_cast %232 : vector<1x16x128xf32> to vector<16x128xf32>
    %234 = vector.extract_strided_slice %210 {offsets = [0, 256], sizes = [16, 128], strides = [1, 1]} : vector<16x640xf32> to vector<16x128xf32>
    %235 = arith.addf %233, %234 : vector<16x128xf32>
    %236 = vector.extract_strided_slice %230 {offsets = [0, 0], sizes = [16, 128], strides = [1, 1]} : vector<16x384xf32> to vector<16x128xf32>
    %237 = arith.addf %235, %236 : vector<16x128xf32>
    %238 = arith.index_cast %c3_i32 : i32 to index
    %c0_96 = arith.constant 0 : index
    %c384_97 = arith.constant 384 : index
    %239 = vector.load %arg2[%238, %c0_96, %c384_97] : memref<8x16x640xf32, #tpu.memory_space<vmem>>, vector<1x16x128xf32>
    %240 = vector.shape_cast %239 : vector<1x16x128xf32> to vector<16x128xf32>
    %241 = vector.extract_strided_slice %210 {offsets = [0, 384], sizes = [16, 128], strides = [1, 1]} : vector<16x640xf32> to vector<16x128xf32>
    %242 = arith.addf %240, %241 : vector<16x128xf32>
    %243 = vector.extract_strided_slice %230 {offsets = [0, 128], sizes = [16, 128], strides = [1, 1]} : vector<16x384xf32> to vector<16x128xf32>
    %244 = arith.addf %242, %243 : vector<16x128xf32>
    %cst_98 = arith.constant 5.000000e-01 : f32
    %245 = vector.broadcast %cst_98 : f32 to vector<16x128xf32>
    %246 = arith.mulf %245, %237 : vector<16x128xf32>
    %247 = math.tanh %246 : vector<16x128xf32>
    %cst_99 = arith.constant 1.000000e+00 : f32
    %248 = vector.broadcast %cst_99 : f32 to vector<16x128xf32>
    %249 = arith.addf %247, %248 : vector<16x128xf32>
    %cst_100 = arith.constant 5.000000e-01 : f32
    %250 = vector.broadcast %cst_100 : f32 to vector<16x128xf32>
    %251 = arith.mulf %250, %249 : vector<16x128xf32>
    %cst_101 = arith.constant 5.000000e-01 : f32
    %252 = vector.broadcast %cst_101 : f32 to vector<16x128xf32>
    %253 = arith.mulf %252, %244 : vector<16x128xf32>
    %254 = math.tanh %253 : vector<16x128xf32>
    %cst_102 = arith.constant 1.000000e+00 : f32
    %255 = vector.broadcast %cst_102 : f32 to vector<16x128xf32>
    %256 = arith.addf %254, %255 : vector<16x128xf32>
    %cst_103 = arith.constant 5.000000e-01 : f32
    %257 = vector.broadcast %cst_103 : f32 to vector<16x128xf32>
    %258 = arith.mulf %257, %256 : vector<16x128xf32>
    %259 = arith.index_cast %c3_i32 : i32 to index
    %c0_104 = arith.constant 0 : index
    %c512_105 = arith.constant 512 : index
    %260 = vector.load %arg2[%259, %c0_104, %c512_105] : memref<8x16x640xf32, #tpu.memory_space<vmem>>, vector<1x16x128xf32>
    %261 = vector.shape_cast %260 : vector<1x16x128xf32> to vector<16x128xf32>
    %262 = vector.extract_strided_slice %230 {offsets = [0, 256], sizes = [16, 128], strides = [1, 1]} : vector<16x384xf32> to vector<16x128xf32>
    %263 = arith.addf %261, %262 : vector<16x128xf32>
    %264 = vector.extract_strided_slice %210 {offsets = [0, 512], sizes = [16, 128], strides = [1, 1]} : vector<16x640xf32> to vector<16x128xf32>
    %265 = vector.broadcast %3 : vector<1x128xf32> to vector<16x128xf32>
    %266 = arith.addf %264, %265 : vector<16x128xf32>
    %267 = arith.mulf %251, %266 : vector<16x128xf32>
    %268 = arith.addf %263, %267 : vector<16x128xf32>
    %269 = math.tanh %268 : vector<16x128xf32>
    %270 = arith.subf %204, %269 : vector<16x128xf32>
    %271 = arith.mulf %258, %270 : vector<16x128xf32>
    %272 = arith.addf %269, %271 : vector<16x128xf32>
    %273 = arith.index_cast %c3_i32 : i32 to index
    %c0_106 = arith.constant 0 : index
    %c0_107 = arith.constant 0 : index
    %274 = vector.load %arg8[%273, %c0_106, %c0_107] : memref<8x16x128xf32, #tpu.memory_space<vmem>>, vector<1x16x128xf32>
    %275 = vector.shape_cast %274 : vector<1x16x128xf32> to vector<16x128xf32>
    %276 = vector.shape_cast %272 : vector<16x128xf32> to vector<1x16x128xf32>
    tpu.vector_store %arg8[%273, %c0_106, %c0_107], %276 {strides = array<i32>} : memref<8x16x128xf32, #tpu.memory_space<vmem>>, vector<1x16x128xf32>,
    %c4_i32 = arith.constant 4 : i32
    %c0_108 = arith.constant 0 : index
    %c0_109 = arith.constant 0 : index
    %277 = vector.load %arg5[%c0_108, %c0_109] : memref<128x640xf32, #tpu.memory_space<vmem>>, vector<128x640xf32>
    %cst_110 = arith.constant dense<0.000000e+00> : vector<16x640xf32>
    %278 = tpu.matmul %272, %277, %cst_110 {dimension_numbers = #tpu.dot_dimension_numbers<[1], [0], [0], [1], [0, 0, 1, 1], [], []>} : vector<16x128xf32>, vector<128x640xf32>, vector<16x640xf32> -> vector<16x640xf32>
    %279 = arith.index_cast %c4_i32 : i32 to index
    %c0_111 = arith.constant 0 : index
    %c0_112 = arith.constant 0 : index
    %280 = vector.load %arg2[%279, %c0_111, %c0_112] : memref<8x16x640xf32, #tpu.memory_space<vmem>>, vector<1x16x128xf32>
    %281 = vector.shape_cast %280 : vector<1x16x128xf32> to vector<16x128xf32>
    %282 = vector.extract_strided_slice %278 {offsets = [0, 0], sizes = [16, 128], strides = [1, 1]} : vector<16x640xf32> to vector<16x128xf32>
    %283 = arith.addf %281, %282 : vector<16x128xf32>
    %284 = arith.index_cast %c4_i32 : i32 to index
    %c0_113 = arith.constant 0 : index
    %c128_114 = arith.constant 128 : index
    %285 = vector.load %arg2[%284, %c0_113, %c128_114] : memref<8x16x640xf32, #tpu.memory_space<vmem>>, vector<1x16x128xf32>
    %286 = vector.shape_cast %285 : vector<1x16x128xf32> to vector<16x128xf32>
    %287 = vector.extract_strided_slice %278 {offsets = [0, 128], sizes = [16, 128], strides = [1, 1]} : vector<16x640xf32> to vector<16x128xf32>
    %288 = arith.addf %286, %287 : vector<16x128xf32>
    %cst_115 = arith.constant 5.000000e-01 : f32
    %289 = vector.broadcast %cst_115 : f32 to vector<16x128xf32>
    %290 = arith.mulf %289, %288 : vector<16x128xf32>
    %291 = math.exp %290 : vector<16x128xf32>
    %292 = arith.index_cast %c4_i32 : i32 to index
    %c0_116 = arith.constant 0 : index
    %c0_117 = arith.constant 0 : index
    %293 = vector.load %arg3[%292, %c0_116, %c0_117] : memref<8x16x128xf32, #tpu.memory_space<vmem>>, vector<1x16x128xf32>
    %294 = vector.shape_cast %293 : vector<1x16x128xf32> to vector<16x128xf32>
    %295 = arith.mulf %294, %291 : vector<16x128xf32>
    %296 = arith.addf %283, %295 : vector<16x128xf32>
    %c0_118 = arith.constant 0 : index
    %c0_119 = arith.constant 0 : index
    %297 = vector.load %arg6[%c0_118, %c0_119] : memref<128x384xf32, #tpu.memory_space<vmem>>, vector<128x384xf32>
    %cst_120 = arith.constant dense<0.000000e+00> : vector<16x384xf32>
    %298 = tpu.matmul %296, %297, %cst_120 {dimension_numbers = #tpu.dot_dimension_numbers<[1], [0], [0], [1], [0, 0, 1, 1], [], []>} : vector<16x128xf32>, vector<128x384xf32>, vector<16x384xf32> -> vector<16x384xf32>
    %299 = arith.index_cast %c4_i32 : i32 to index
    %c0_121 = arith.constant 0 : index
    %c256_122 = arith.constant 256 : index
    %300 = vector.load %arg2[%299, %c0_121, %c256_122] : memref<8x16x640xf32, #tpu.memory_space<vmem>>, vector<1x16x128xf32>
    %301 = vector.shape_cast %300 : vector<1x16x128xf32> to vector<16x128xf32>
    %302 = vector.extract_strided_slice %278 {offsets = [0, 256], sizes = [16, 128], strides = [1, 1]} : vector<16x640xf32> to vector<16x128xf32>
    %303 = arith.addf %301, %302 : vector<16x128xf32>
    %304 = vector.extract_strided_slice %298 {offsets = [0, 0], sizes = [16, 128], strides = [1, 1]} : vector<16x384xf32> to vector<16x128xf32>
    %305 = arith.addf %303, %304 : vector<16x128xf32>
    %306 = arith.index_cast %c4_i32 : i32 to index
    %c0_123 = arith.constant 0 : index
    %c384_124 = arith.constant 384 : index
    %307 = vector.load %arg2[%306, %c0_123, %c384_124] : memref<8x16x640xf32, #tpu.memory_space<vmem>>, vector<1x16x128xf32>
    %308 = vector.shape_cast %307 : vector<1x16x128xf32> to vector<16x128xf32>
    %309 = vector.extract_strided_slice %278 {offsets = [0, 384], sizes = [16, 128], strides = [1, 1]} : vector<16x640xf32> to vector<16x128xf32>
    %310 = arith.addf %308, %309 : vector<16x128xf32>
    %311 = vector.extract_strided_slice %298 {offsets = [0, 128], sizes = [16, 128], strides = [1, 1]} : vector<16x384xf32> to vector<16x128xf32>
    %312 = arith.addf %310, %311 : vector<16x128xf32>
    %cst_125 = arith.constant 5.000000e-01 : f32
    %313 = vector.broadcast %cst_125 : f32 to vector<16x128xf32>
    %314 = arith.mulf %313, %305 : vector<16x128xf32>
    %315 = math.tanh %314 : vector<16x128xf32>
    %cst_126 = arith.constant 1.000000e+00 : f32
    %316 = vector.broadcast %cst_126 : f32 to vector<16x128xf32>
    %317 = arith.addf %315, %316 : vector<16x128xf32>
    %cst_127 = arith.constant 5.000000e-01 : f32
    %318 = vector.broadcast %cst_127 : f32 to vector<16x128xf32>
    %319 = arith.mulf %318, %317 : vector<16x128xf32>
    %cst_128 = arith.constant 5.000000e-01 : f32
    %320 = vector.broadcast %cst_128 : f32 to vector<16x128xf32>
    %321 = arith.mulf %320, %312 : vector<16x128xf32>
    %322 = math.tanh %321 : vector<16x128xf32>
    %cst_129 = arith.constant 1.000000e+00 : f32
    %323 = vector.broadcast %cst_129 : f32 to vector<16x128xf32>
    %324 = arith.addf %322, %323 : vector<16x128xf32>
    %cst_130 = arith.constant 5.000000e-01 : f32
    %325 = vector.broadcast %cst_130 : f32 to vector<16x128xf32>
    %326 = arith.mulf %325, %324 : vector<16x128xf32>
    %327 = arith.index_cast %c4_i32 : i32 to index
    %c0_131 = arith.constant 0 : index
    %c512_132 = arith.constant 512 : index
    %328 = vector.load %arg2[%327, %c0_131, %c512_132] : memref<8x16x640xf32, #tpu.memory_space<vmem>>, vector<1x16x128xf32>
    %329 = vector.shape_cast %328 : vector<1x16x128xf32> to vector<16x128xf32>
    %330 = vector.extract_strided_slice %298 {offsets = [0, 256], sizes = [16, 128], strides = [1, 1]} : vector<16x384xf32> to vector<16x128xf32>
    %331 = arith.addf %329, %330 : vector<16x128xf32>
    %332 = vector.extract_strided_slice %278 {offsets = [0, 512], sizes = [16, 128], strides = [1, 1]} : vector<16x640xf32> to vector<16x128xf32>
    %333 = vector.broadcast %3 : vector<1x128xf32> to vector<16x128xf32>
    %334 = arith.addf %332, %333 : vector<16x128xf32>
    %335 = arith.mulf %319, %334 : vector<16x128xf32>
    %336 = arith.addf %331, %335 : vector<16x128xf32>
    %337 = math.tanh %336 : vector<16x128xf32>
    %338 = arith.subf %272, %337 : vector<16x128xf32>
    %339 = arith.mulf %326, %338 : vector<16x128xf32>
    %340 = arith.addf %337, %339 : vector<16x128xf32>
    %341 = arith.index_cast %c4_i32 : i32 to index
    %c0_133 = arith.constant 0 : index
    %c0_134 = arith.constant 0 : index
    %342 = vector.load %arg8[%341, %c0_133, %c0_134] : memref<8x16x128xf32, #tpu.memory_space<vmem>>, vector<1x16x128xf32>
    %343 = vector.shape_cast %342 : vector<1x16x128xf32> to vector<16x128xf32>
    %344 = vector.shape_cast %340 : vector<16x128xf32> to vector<1x16x128xf32>
    tpu.vector_store %arg8[%341, %c0_133, %c0_134], %344 {strides = array<i32>} : memref<8x16x128xf32, #tpu.memory_space<vmem>>, vector<1x16x128xf32>,
    %c5_i32 = arith.constant 5 : i32
    %c0_135 = arith.constant 0 : index
    %c0_136 = arith.constant 0 : index
    %345 = vector.load %arg5[%c0_135, %c0_136] : memref<128x640xf32, #tpu.memory_space<vmem>>, vector<128x640xf32>
    %cst_137 = arith.constant dense<0.000000e+00> : vector<16x640xf32>
    %346 = tpu.matmul %340, %345, %cst_137 {dimension_numbers = #tpu.dot_dimension_numbers<[1], [0], [0], [1], [0, 0, 1, 1], [], []>} : vector<16x128xf32>, vector<128x640xf32>, vector<16x640xf32> -> vector<16x640xf32>
    %347 = arith.index_cast %c5_i32 : i32 to index
    %c0_138 = arith.constant 0 : index
    %c0_139 = arith.constant 0 : index
    %348 = vector.load %arg2[%347, %c0_138, %c0_139] : memref<8x16x640xf32, #tpu.memory_space<vmem>>, vector<1x16x128xf32>
    %349 = vector.shape_cast %348 : vector<1x16x128xf32> to vector<16x128xf32>
    %350 = vector.extract_strided_slice %346 {offsets = [0, 0], sizes = [16, 128], strides = [1, 1]} : vector<16x640xf32> to vector<16x128xf32>
    %351 = arith.addf %349, %350 : vector<16x128xf32>
    %352 = arith.index_cast %c5_i32 : i32 to index
    %c0_140 = arith.constant 0 : index
    %c128_141 = arith.constant 128 : index
    %353 = vector.load %arg2[%352, %c0_140, %c128_141] : memref<8x16x640xf32, #tpu.memory_space<vmem>>, vector<1x16x128xf32>
    %354 = vector.shape_cast %353 : vector<1x16x128xf32> to vector<16x128xf32>
    %355 = vector.extract_strided_slice %346 {offsets = [0, 128], sizes = [16, 128], strides = [1, 1]} : vector<16x640xf32> to vector<16x128xf32>
    %356 = arith.addf %354, %355 : vector<16x128xf32>
    %cst_142 = arith.constant 5.000000e-01 : f32
    %357 = vector.broadcast %cst_142 : f32 to vector<16x128xf32>
    %358 = arith.mulf %357, %356 : vector<16x128xf32>
    %359 = math.exp %358 : vector<16x128xf32>
    %360 = arith.index_cast %c5_i32 : i32 to index
    %c0_143 = arith.constant 0 : index
    %c0_144 = arith.constant 0 : index
    %361 = vector.load %arg3[%360, %c0_143, %c0_144] : memref<8x16x128xf32, #tpu.memory_space<vmem>>, vector<1x16x128xf32>
    %362 = vector.shape_cast %361 : vector<1x16x128xf32> to vector<16x128xf32>
    %363 = arith.mulf %362, %359 : vector<16x128xf32>
    %364 = arith.addf %351, %363 : vector<16x128xf32>
    %c0_145 = arith.constant 0 : index
    %c0_146 = arith.constant 0 : index
    %365 = vector.load %arg6[%c0_145, %c0_146] : memref<128x384xf32, #tpu.memory_space<vmem>>, vector<128x384xf32>
    %cst_147 = arith.constant dense<0.000000e+00> : vector<16x384xf32>
    %366 = tpu.matmul %364, %365, %cst_147 {dimension_numbers = #tpu.dot_dimension_numbers<[1], [0], [0], [1], [0, 0, 1, 1], [], []>} : vector<16x128xf32>, vector<128x384xf32>, vector<16x384xf32> -> vector<16x384xf32>
    %367 = arith.index_cast %c5_i32 : i32 to index
    %c0_148 = arith.constant 0 : index
    %c256_149 = arith.constant 256 : index
    %368 = vector.load %arg2[%367, %c0_148, %c256_149] : memref<8x16x640xf32, #tpu.memory_space<vmem>>, vector<1x16x128xf32>
    %369 = vector.shape_cast %368 : vector<1x16x128xf32> to vector<16x128xf32>
    %370 = vector.extract_strided_slice %346 {offsets = [0, 256], sizes = [16, 128], strides = [1, 1]} : vector<16x640xf32> to vector<16x128xf32>
    %371 = arith.addf %369, %370 : vector<16x128xf32>
    %372 = vector.extract_strided_slice %366 {offsets = [0, 0], sizes = [16, 128], strides = [1, 1]} : vector<16x384xf32> to vector<16x128xf32>
    %373 = arith.addf %371, %372 : vector<16x128xf32>
    %374 = arith.index_cast %c5_i32 : i32 to index
    %c0_150 = arith.constant 0 : index
    %c384_151 = arith.constant 384 : index
    %375 = vector.load %arg2[%374, %c0_150, %c384_151] : memref<8x16x640xf32, #tpu.memory_space<vmem>>, vector<1x16x128xf32>
    %376 = vector.shape_cast %375 : vector<1x16x128xf32> to vector<16x128xf32>
    %377 = vector.extract_strided_slice %346 {offsets = [0, 384], sizes = [16, 128], strides = [1, 1]} : vector<16x640xf32> to vector<16x128xf32>
    %378 = arith.addf %376, %377 : vector<16x128xf32>
    %379 = vector.extract_strided_slice %366 {offsets = [0, 128], sizes = [16, 128], strides = [1, 1]} : vector<16x384xf32> to vector<16x128xf32>
    %380 = arith.addf %378, %379 : vector<16x128xf32>
    %cst_152 = arith.constant 5.000000e-01 : f32
    %381 = vector.broadcast %cst_152 : f32 to vector<16x128xf32>
    %382 = arith.mulf %381, %373 : vector<16x128xf32>
    %383 = math.tanh %382 : vector<16x128xf32>
    %cst_153 = arith.constant 1.000000e+00 : f32
    %384 = vector.broadcast %cst_153 : f32 to vector<16x128xf32>
    %385 = arith.addf %383, %384 : vector<16x128xf32>
    %cst_154 = arith.constant 5.000000e-01 : f32
    %386 = vector.broadcast %cst_154 : f32 to vector<16x128xf32>
    %387 = arith.mulf %386, %385 : vector<16x128xf32>
    %cst_155 = arith.constant 5.000000e-01 : f32
    %388 = vector.broadcast %cst_155 : f32 to vector<16x128xf32>
    %389 = arith.mulf %388, %380 : vector<16x128xf32>
    %390 = math.tanh %389 : vector<16x128xf32>
    %cst_156 = arith.constant 1.000000e+00 : f32
    %391 = vector.broadcast %cst_156 : f32 to vector<16x128xf32>
    %392 = arith.addf %390, %391 : vector<16x128xf32>
    %cst_157 = arith.constant 5.000000e-01 : f32
    %393 = vector.broadcast %cst_157 : f32 to vector<16x128xf32>
    %394 = arith.mulf %393, %392 : vector<16x128xf32>
    %395 = arith.index_cast %c5_i32 : i32 to index
    %c0_158 = arith.constant 0 : index
    %c512_159 = arith.constant 512 : index
    %396 = vector.load %arg2[%395, %c0_158, %c512_159] : memref<8x16x640xf32, #tpu.memory_space<vmem>>, vector<1x16x128xf32>
    %397 = vector.shape_cast %396 : vector<1x16x128xf32> to vector<16x128xf32>
    %398 = vector.extract_strided_slice %366 {offsets = [0, 256], sizes = [16, 128], strides = [1, 1]} : vector<16x384xf32> to vector<16x128xf32>
    %399 = arith.addf %397, %398 : vector<16x128xf32>
    %400 = vector.extract_strided_slice %346 {offsets = [0, 512], sizes = [16, 128], strides = [1, 1]} : vector<16x640xf32> to vector<16x128xf32>
    %401 = vector.broadcast %3 : vector<1x128xf32> to vector<16x128xf32>
    %402 = arith.addf %400, %401 : vector<16x128xf32>
    %403 = arith.mulf %387, %402 : vector<16x128xf32>
    %404 = arith.addf %399, %403 : vector<16x128xf32>
    %405 = math.tanh %404 : vector<16x128xf32>
    %406 = arith.subf %340, %405 : vector<16x128xf32>
    %407 = arith.mulf %394, %406 : vector<16x128xf32>
    %408 = arith.addf %405, %407 : vector<16x128xf32>
    %409 = arith.index_cast %c5_i32 : i32 to index
    %c0_160 = arith.constant 0 : index
    %c0_161 = arith.constant 0 : index
    %410 = vector.load %arg8[%409, %c0_160, %c0_161] : memref<8x16x128xf32, #tpu.memory_space<vmem>>, vector<1x16x128xf32>
    %411 = vector.shape_cast %410 : vector<1x16x128xf32> to vector<16x128xf32>
    %412 = vector.shape_cast %408 : vector<16x128xf32> to vector<1x16x128xf32>
    tpu.vector_store %arg8[%409, %c0_160, %c0_161], %412 {strides = array<i32>} : memref<8x16x128xf32, #tpu.memory_space<vmem>>, vector<1x16x128xf32>,
    %c6_i32 = arith.constant 6 : i32
    %c0_162 = arith.constant 0 : index
    %c0_163 = arith.constant 0 : index
    %413 = vector.load %arg5[%c0_162, %c0_163] : memref<128x640xf32, #tpu.memory_space<vmem>>, vector<128x640xf32>
    %cst_164 = arith.constant dense<0.000000e+00> : vector<16x640xf32>
    %414 = tpu.matmul %408, %413, %cst_164 {dimension_numbers = #tpu.dot_dimension_numbers<[1], [0], [0], [1], [0, 0, 1, 1], [], []>} : vector<16x128xf32>, vector<128x640xf32>, vector<16x640xf32> -> vector<16x640xf32>
    %415 = arith.index_cast %c6_i32 : i32 to index
    %c0_165 = arith.constant 0 : index
    %c0_166 = arith.constant 0 : index
    %416 = vector.load %arg2[%415, %c0_165, %c0_166] : memref<8x16x640xf32, #tpu.memory_space<vmem>>, vector<1x16x128xf32>
    %417 = vector.shape_cast %416 : vector<1x16x128xf32> to vector<16x128xf32>
    %418 = vector.extract_strided_slice %414 {offsets = [0, 0], sizes = [16, 128], strides = [1, 1]} : vector<16x640xf32> to vector<16x128xf32>
    %419 = arith.addf %417, %418 : vector<16x128xf32>
    %420 = arith.index_cast %c6_i32 : i32 to index
    %c0_167 = arith.constant 0 : index
    %c128_168 = arith.constant 128 : index
    %421 = vector.load %arg2[%420, %c0_167, %c128_168] : memref<8x16x640xf32, #tpu.memory_space<vmem>>, vector<1x16x128xf32>
    %422 = vector.shape_cast %421 : vector<1x16x128xf32> to vector<16x128xf32>
    %423 = vector.extract_strided_slice %414 {offsets = [0, 128], sizes = [16, 128], strides = [1, 1]} : vector<16x640xf32> to vector<16x128xf32>
    %424 = arith.addf %422, %423 : vector<16x128xf32>
    %cst_169 = arith.constant 5.000000e-01 : f32
    %425 = vector.broadcast %cst_169 : f32 to vector<16x128xf32>
    %426 = arith.mulf %425, %424 : vector<16x128xf32>
    %427 = math.exp %426 : vector<16x128xf32>
    %428 = arith.index_cast %c6_i32 : i32 to index
    %c0_170 = arith.constant 0 : index
    %c0_171 = arith.constant 0 : index
    %429 = vector.load %arg3[%428, %c0_170, %c0_171] : memref<8x16x128xf32, #tpu.memory_space<vmem>>, vector<1x16x128xf32>
    %430 = vector.shape_cast %429 : vector<1x16x128xf32> to vector<16x128xf32>
    %431 = arith.mulf %430, %427 : vector<16x128xf32>
    %432 = arith.addf %419, %431 : vector<16x128xf32>
    %c0_172 = arith.constant 0 : index
    %c0_173 = arith.constant 0 : index
    %433 = vector.load %arg6[%c0_172, %c0_173] : memref<128x384xf32, #tpu.memory_space<vmem>>, vector<128x384xf32>
    %cst_174 = arith.constant dense<0.000000e+00> : vector<16x384xf32>
    %434 = tpu.matmul %432, %433, %cst_174 {dimension_numbers = #tpu.dot_dimension_numbers<[1], [0], [0], [1], [0, 0, 1, 1], [], []>} : vector<16x128xf32>, vector<128x384xf32>, vector<16x384xf32> -> vector<16x384xf32>
    %435 = arith.index_cast %c6_i32 : i32 to index
    %c0_175 = arith.constant 0 : index
    %c256_176 = arith.constant 256 : index
    %436 = vector.load %arg2[%435, %c0_175, %c256_176] : memref<8x16x640xf32, #tpu.memory_space<vmem>>, vector<1x16x128xf32>
    %437 = vector.shape_cast %436 : vector<1x16x128xf32> to vector<16x128xf32>
    %438 = vector.extract_strided_slice %414 {offsets = [0, 256], sizes = [16, 128], strides = [1, 1]} : vector<16x640xf32> to vector<16x128xf32>
    %439 = arith.addf %437, %438 : vector<16x128xf32>
    %440 = vector.extract_strided_slice %434 {offsets = [0, 0], sizes = [16, 128], strides = [1, 1]} : vector<16x384xf32> to vector<16x128xf32>
    %441 = arith.addf %439, %440 : vector<16x128xf32>
    %442 = arith.index_cast %c6_i32 : i32 to index
    %c0_177 = arith.constant 0 : index
    %c384_178 = arith.constant 384 : index
    %443 = vector.load %arg2[%442, %c0_177, %c384_178] : memref<8x16x640xf32, #tpu.memory_space<vmem>>, vector<1x16x128xf32>
    %444 = vector.shape_cast %443 : vector<1x16x128xf32> to vector<16x128xf32>
    %445 = vector.extract_strided_slice %414 {offsets = [0, 384], sizes = [16, 128], strides = [1, 1]} : vector<16x640xf32> to vector<16x128xf32>
    %446 = arith.addf %444, %445 : vector<16x128xf32>
    %447 = vector.extract_strided_slice %434 {offsets = [0, 128], sizes = [16, 128], strides = [1, 1]} : vector<16x384xf32> to vector<16x128xf32>
    %448 = arith.addf %446, %447 : vector<16x128xf32>
    %cst_179 = arith.constant 5.000000e-01 : f32
    %449 = vector.broadcast %cst_179 : f32 to vector<16x128xf32>
    %450 = arith.mulf %449, %441 : vector<16x128xf32>
    %451 = math.tanh %450 : vector<16x128xf32>
    %cst_180 = arith.constant 1.000000e+00 : f32
    %452 = vector.broadcast %cst_180 : f32 to vector<16x128xf32>
    %453 = arith.addf %451, %452 : vector<16x128xf32>
    %cst_181 = arith.constant 5.000000e-01 : f32
    %454 = vector.broadcast %cst_181 : f32 to vector<16x128xf32>
    %455 = arith.mulf %454, %453 : vector<16x128xf32>
    %cst_182 = arith.constant 5.000000e-01 : f32
    %456 = vector.broadcast %cst_182 : f32 to vector<16x128xf32>
    %457 = arith.mulf %456, %448 : vector<16x128xf32>
    %458 = math.tanh %457 : vector<16x128xf32>
    %cst_183 = arith.constant 1.000000e+00 : f32
    %459 = vector.broadcast %cst_183 : f32 to vector<16x128xf32>
    %460 = arith.addf %458, %459 : vector<16x128xf32>
    %cst_184 = arith.constant 5.000000e-01 : f32
    %461 = vector.broadcast %cst_184 : f32 to vector<16x128xf32>
    %462 = arith.mulf %461, %460 : vector<16x128xf32>
    %463 = arith.index_cast %c6_i32 : i32 to index
    %c0_185 = arith.constant 0 : index
    %c512_186 = arith.constant 512 : index
    %464 = vector.load %arg2[%463, %c0_185, %c512_186] : memref<8x16x640xf32, #tpu.memory_space<vmem>>, vector<1x16x128xf32>
    %465 = vector.shape_cast %464 : vector<1x16x128xf32> to vector<16x128xf32>
    %466 = vector.extract_strided_slice %434 {offsets = [0, 256], sizes = [16, 128], strides = [1, 1]} : vector<16x384xf32> to vector<16x128xf32>
    %467 = arith.addf %465, %466 : vector<16x128xf32>
    %468 = vector.extract_strided_slice %414 {offsets = [0, 512], sizes = [16, 128], strides = [1, 1]} : vector<16x640xf32> to vector<16x128xf32>
    %469 = vector.broadcast %3 : vector<1x128xf32> to vector<16x128xf32>
    %470 = arith.addf %468, %469 : vector<16x128xf32>
    %471 = arith.mulf %455, %470 : vector<16x128xf32>
    %472 = arith.addf %467, %471 : vector<16x128xf32>
    %473 = math.tanh %472 : vector<16x128xf32>
    %474 = arith.subf %408, %473 : vector<16x128xf32>
    %475 = arith.mulf %462, %474 : vector<16x128xf32>
    %476 = arith.addf %473, %475 : vector<16x128xf32>
    %477 = arith.index_cast %c6_i32 : i32 to index
    %c0_187 = arith.constant 0 : index
    %c0_188 = arith.constant 0 : index
    %478 = vector.load %arg8[%477, %c0_187, %c0_188] : memref<8x16x128xf32, #tpu.memory_space<vmem>>, vector<1x16x128xf32>
    %479 = vector.shape_cast %478 : vector<1x16x128xf32> to vector<16x128xf32>
    %480 = vector.shape_cast %476 : vector<16x128xf32> to vector<1x16x128xf32>
    tpu.vector_store %arg8[%477, %c0_187, %c0_188], %480 {strides = array<i32>} : memref<8x16x128xf32, #tpu.memory_space<vmem>>, vector<1x16x128xf32>,
    %c7_i32 = arith.constant 7 : i32
    %c0_189 = arith.constant 0 : index
    %c0_190 = arith.constant 0 : index
    %481 = vector.load %arg5[%c0_189, %c0_190] : memref<128x640xf32, #tpu.memory_space<vmem>>, vector<128x640xf32>
    %cst_191 = arith.constant dense<0.000000e+00> : vector<16x640xf32>
    %482 = tpu.matmul %476, %481, %cst_191 {dimension_numbers = #tpu.dot_dimension_numbers<[1], [0], [0], [1], [0, 0, 1, 1], [], []>} : vector<16x128xf32>, vector<128x640xf32>, vector<16x640xf32> -> vector<16x640xf32>
    %483 = arith.index_cast %c7_i32 : i32 to index
    %c0_192 = arith.constant 0 : index
    %c0_193 = arith.constant 0 : index
    %484 = vector.load %arg2[%483, %c0_192, %c0_193] : memref<8x16x640xf32, #tpu.memory_space<vmem>>, vector<1x16x128xf32>
    %485 = vector.shape_cast %484 : vector<1x16x128xf32> to vector<16x128xf32>
    %486 = vector.extract_strided_slice %482 {offsets = [0, 0], sizes = [16, 128], strides = [1, 1]} : vector<16x640xf32> to vector<16x128xf32>
    %487 = arith.addf %485, %486 : vector<16x128xf32>
    %488 = arith.index_cast %c7_i32 : i32 to index
    %c0_194 = arith.constant 0 : index
    %c128_195 = arith.constant 128 : index
    %489 = vector.load %arg2[%488, %c0_194, %c128_195] : memref<8x16x640xf32, #tpu.memory_space<vmem>>, vector<1x16x128xf32>
    %490 = vector.shape_cast %489 : vector<1x16x128xf32> to vector<16x128xf32>
    %491 = vector.extract_strided_slice %482 {offsets = [0, 128], sizes = [16, 128], strides = [1, 1]} : vector<16x640xf32> to vector<16x128xf32>
    %492 = arith.addf %490, %491 : vector<16x128xf32>
    %cst_196 = arith.constant 5.000000e-01 : f32
    %493 = vector.broadcast %cst_196 : f32 to vector<16x128xf32>
    %494 = arith.mulf %493, %492 : vector<16x128xf32>
    %495 = math.exp %494 : vector<16x128xf32>
    %496 = arith.index_cast %c7_i32 : i32 to index
    %c0_197 = arith.constant 0 : index
    %c0_198 = arith.constant 0 : index
    %497 = vector.load %arg3[%496, %c0_197, %c0_198] : memref<8x16x128xf32, #tpu.memory_space<vmem>>, vector<1x16x128xf32>
    %498 = vector.shape_cast %497 : vector<1x16x128xf32> to vector<16x128xf32>
    %499 = arith.mulf %498, %495 : vector<16x128xf32>
    %500 = arith.addf %487, %499 : vector<16x128xf32>
    %c0_199 = arith.constant 0 : index
    %c0_200 = arith.constant 0 : index
    %501 = vector.load %arg6[%c0_199, %c0_200] : memref<128x384xf32, #tpu.memory_space<vmem>>, vector<128x384xf32>
    %cst_201 = arith.constant dense<0.000000e+00> : vector<16x384xf32>
    %502 = tpu.matmul %500, %501, %cst_201 {dimension_numbers = #tpu.dot_dimension_numbers<[1], [0], [0], [1], [0, 0, 1, 1], [], []>} : vector<16x128xf32>, vector<128x384xf32>, vector<16x384xf32> -> vector<16x384xf32>
    %503 = arith.index_cast %c7_i32 : i32 to index
    %c0_202 = arith.constant 0 : index
    %c256_203 = arith.constant 256 : index
    %504 = vector.load %arg2[%503, %c0_202, %c256_203] : memref<8x16x640xf32, #tpu.memory_space<vmem>>, vector<1x16x128xf32>
    %505 = vector.shape_cast %504 : vector<1x16x128xf32> to vector<16x128xf32>
    %506 = vector.extract_strided_slice %482 {offsets = [0, 256], sizes = [16, 128], strides = [1, 1]} : vector<16x640xf32> to vector<16x128xf32>
    %507 = arith.addf %505, %506 : vector<16x128xf32>
    %508 = vector.extract_strided_slice %502 {offsets = [0, 0], sizes = [16, 128], strides = [1, 1]} : vector<16x384xf32> to vector<16x128xf32>
    %509 = arith.addf %507, %508 : vector<16x128xf32>
    %510 = arith.index_cast %c7_i32 : i32 to index
    %c0_204 = arith.constant 0 : index
    %c384_205 = arith.constant 384 : index
    %511 = vector.load %arg2[%510, %c0_204, %c384_205] : memref<8x16x640xf32, #tpu.memory_space<vmem>>, vector<1x16x128xf32>
    %512 = vector.shape_cast %511 : vector<1x16x128xf32> to vector<16x128xf32>
    %513 = vector.extract_strided_slice %482 {offsets = [0, 384], sizes = [16, 128], strides = [1, 1]} : vector<16x640xf32> to vector<16x128xf32>
    %514 = arith.addf %512, %513 : vector<16x128xf32>
    %515 = vector.extract_strided_slice %502 {offsets = [0, 128], sizes = [16, 128], strides = [1, 1]} : vector<16x384xf32> to vector<16x128xf32>
    %516 = arith.addf %514, %515 : vector<16x128xf32>
    %cst_206 = arith.constant 5.000000e-01 : f32
    %517 = vector.broadcast %cst_206 : f32 to vector<16x128xf32>
    %518 = arith.mulf %517, %509 : vector<16x128xf32>
    %519 = math.tanh %518 : vector<16x128xf32>
    %cst_207 = arith.constant 1.000000e+00 : f32
    %520 = vector.broadcast %cst_207 : f32 to vector<16x128xf32>
    %521 = arith.addf %519, %520 : vector<16x128xf32>
    %cst_208 = arith.constant 5.000000e-01 : f32
    %522 = vector.broadcast %cst_208 : f32 to vector<16x128xf32>
    %523 = arith.mulf %522, %521 : vector<16x128xf32>
    %cst_209 = arith.constant 5.000000e-01 : f32
    %524 = vector.broadcast %cst_209 : f32 to vector<16x128xf32>
    %525 = arith.mulf %524, %516 : vector<16x128xf32>
    %526 = math.tanh %525 : vector<16x128xf32>
    %cst_210 = arith.constant 1.000000e+00 : f32
    %527 = vector.broadcast %cst_210 : f32 to vector<16x128xf32>
    %528 = arith.addf %526, %527 : vector<16x128xf32>
    %cst_211 = arith.constant 5.000000e-01 : f32
    %529 = vector.broadcast %cst_211 : f32 to vector<16x128xf32>
    %530 = arith.mulf %529, %528 : vector<16x128xf32>
    %531 = arith.index_cast %c7_i32 : i32 to index
    %c0_212 = arith.constant 0 : index
    %c512_213 = arith.constant 512 : index
    %532 = vector.load %arg2[%531, %c0_212, %c512_213] : memref<8x16x640xf32, #tpu.memory_space<vmem>>, vector<1x16x128xf32>
    %533 = vector.shape_cast %532 : vector<1x16x128xf32> to vector<16x128xf32>
    %534 = vector.extract_strided_slice %502 {offsets = [0, 256], sizes = [16, 128], strides = [1, 1]} : vector<16x384xf32> to vector<16x128xf32>
    %535 = arith.addf %533, %534 : vector<16x128xf32>
    %536 = vector.extract_strided_slice %482 {offsets = [0, 512], sizes = [16, 128], strides = [1, 1]} : vector<16x640xf32> to vector<16x128xf32>
    %537 = vector.broadcast %3 : vector<1x128xf32> to vector<16x128xf32>
    %538 = arith.addf %536, %537 : vector<16x128xf32>
    %539 = arith.mulf %523, %538 : vector<16x128xf32>
    %540 = arith.addf %535, %539 : vector<16x128xf32>
    %541 = math.tanh %540 : vector<16x128xf32>
    %542 = arith.subf %476, %541 : vector<16x128xf32>
    %543 = arith.mulf %530, %542 : vector<16x128xf32>
    %544 = arith.addf %541, %543 : vector<16x128xf32>
    %545 = arith.index_cast %c7_i32 : i32 to index
    %c0_214 = arith.constant 0 : index
    %c0_215 = arith.constant 0 : index
    %546 = vector.load %arg8[%545, %c0_214, %c0_215] : memref<8x16x128xf32, #tpu.memory_space<vmem>>, vector<1x16x128xf32>
    %547 = vector.shape_cast %546 : vector<1x16x128xf32> to vector<16x128xf32>
    %548 = vector.shape_cast %544 : vector<16x128xf32> to vector<1x16x128xf32>
    tpu.vector_store %arg8[%545, %c0_214, %c0_215], %548 {strides = array<i32>} : memref<8x16x128xf32, #tpu.memory_space<vmem>>, vector<1x16x128xf32>,
    %c8_i32 = arith.constant 8 : i32
    %c0_216 = arith.constant 0 : index
    %c0_217 = arith.constant 0 : index
    %549 = vector.load %arg9[%c0_216, %c0_217] : memref<16x128xf32, #tpu.memory_space<vmem>>, vector<16x128xf32>
    tpu.vector_store %arg9[%c0_216, %c0_217], %544 {strides = array<i32>} : memref<16x128xf32, #tpu.memory_space<vmem>>, vector<16x128xf32>,
    return
  }
  func.func @transform_0(%arg0: i32, %arg1: i32) -> (i32, i32, i32) {
    %c0_i32 = arith.constant 0 : i32
    %c0_i32_0 = arith.constant 0 : i32
    return %arg1, %arg0, %c0_i32 : i32, i32, i32
  }
  func.func @transform_1(%arg0: i32, %arg1: i32) -> (i32, i32, i32) {
    %c0_i32 = arith.constant 0 : i32
    %c0_i32_0 = arith.constant 0 : i32
    return %arg1, %arg0, %c0_i32 : i32, i32, i32
  }
  func.func @transform_2(%arg0: i32, %arg1: i32) -> (i32, i32) {
    %c0_i32 = arith.constant 0 : i32
    %c0_i32_0 = arith.constant 0 : i32
    return %arg0, %c0_i32 : i32, i32
  }
  func.func @transform_3(%arg0: i32, %arg1: i32) -> (i32, i32) {
    %c0_i32 = arith.constant 0 : i32
    %c0_i32_0 = arith.constant 0 : i32
    %c0_i32_1 = arith.constant 0 : i32
    return %c0_i32, %c0_i32_0 : i32, i32
  }
  func.func @transform_4(%arg0: i32, %arg1: i32) -> (i32, i32) {
    %c0_i32 = arith.constant 0 : i32
    %c0_i32_0 = arith.constant 0 : i32
    %c0_i32_1 = arith.constant 0 : i32
    return %c0_i32, %c0_i32_0 : i32, i32
  }
  func.func @transform_5(%arg0: i32, %arg1: i32) -> (i32, i32) {
    %c0_i32 = arith.constant 0 : i32
    %c0_i32_0 = arith.constant 0 : i32
    %c0_i32_1 = arith.constant 0 : i32
    return %c0_i32, %c0_i32_0 : i32, i32
  }
  func.func @transform_6(%arg0: i32, %arg1: i32) -> (i32, i32, i32) {
    %c0_i32 = arith.constant 0 : i32
    %c0_i32_0 = arith.constant 0 : i32
    return %arg1, %arg0, %c0_i32 : i32, i32, i32
  }
}

</mosaic_0001>

<llo_original>
// kernel: stochastic_gru_forward.1
$region0: #{stochastic_gru_forward.1}
  #allocation0 [shape = 'u32[]', space=smem, size = 0x4, offset = 0x4, fixed_abs, tag = 'smem constant byte address 0x4 - core index']
  #allocation1 [shape = 'u32[144,128]{1,0:T(1,128)}', space=vmem, size = 0x12000, scoped, tag = 'internal scratch']
  #allocation2 [shape = 'f32[16,128]{1,0:T(8,128)}', space=vmem, size = 0x2000, scoped, tag = 'scratch operand']
  %s0 = inlined_call_operand.vmem [shape: f32[16,16,640], index: 0, kind: input, shape index: {}]
  %s1 = inlined_call_operand.vmem [shape: f32[16,16,128], index: 1, kind: input, shape index: {}]
  %s2 = inlined_call_operand.vmem [shape: f32[16,128], index: 2, kind: input, shape index: {}]
  %s3 = inlined_call_operand.vmem [shape: f32[128,640], index: 3, kind: input, shape index: {}]
  %s4 = inlined_call_operand.vmem [shape: f32[128,384], index: 4, kind: input, shape index: {}]
  %s5 = inlined_call_operand.vmem [shape: f32[1,128], index: 5, kind: input, shape index: {}]
  %s6 = inlined_call_operand.hbm [shape: f32[16,16,128], index: 6, kind: output, shape index: {}]
  %s7 = sld [smem:[#allocation0]]
  $region61: #{stochastic_gru_forward.1} parent=0
    _
  %s9 = ssub.s32 1, %s7
  %s10 = scalar_select 0, %s9, %s7
  $region1: #{stochastic_gru_forward.1} parent=0
    #allocation3 [shape = 'u8[131072]{0}', space=vmem, size = 0x20000, scoped, tag = 'output window, operand 0']
    #allocation4 [shape = 's32[2]{0}', space=sflag, size = 0x8, scoped, tag = 'scoped memory for stochastic_gru_forward.1']
    %11 = vsyncpa [#allocation4], 0
    %s12 = scalar_lea.sflag [#allocation4], 1
    %13 = vsyncpa %s12, 0
    loop: start=0, step=1, limit=4
    $region2: #{stochastic_gru_forward.1} parent=1 // loop_pre_header
      _
    $region3: #{stochastic_gru_forward.1} parent=1 // loop_header
      %s15 = sphi 0, %s19
      %p16 = scmp.ge.s32.totalorder %s15, 4
      %s22 = sphi 0, %s34
      %s23 = sphi 0, %s30
      %s24 = sphi 0, %s22
      %s25 = sphi 0, %s23
      %s26 = sphi 0, %s24
      %s27 = sphi 0, %s25
      %s39 = sphi 0, %s41
      %s42 = sphi 0, %s39
      %s43 = sphi 0, %s42
      %s59 = sphi 0, %s43
      %s67 = sphi 0, %s69
      %s70 = sphi 0, %s67
      %s71 = sphi 0, %s70
      %s87 = sphi 0, %s71
      %s93 = sphi 0, %s95
      %s96 = sphi 0, %s93
      %s97 = sphi 0, %s96
      %s113 = sphi 0, %s97
      %s117 = sphi 0, %s117
      %s119 = sphi 0, %s117
      %s120 = sphi 0, %s119
      %s134 = sphi 0, %s120
      %s138 = sphi 0, %s138
      %s140 = sphi 0, %s138
      %s141 = sphi 0, %s140
      %s155 = sphi 0, %s141
      %s159 = sphi 0, %s159
      %s161 = sphi 0, %s159
      %s162 = sphi 0, %s161
      %s176 = sphi 0, %s162
      %s184 = sphi 0, %s186
      %s187 = sphi 0, %s184
      %s188 = sphi 0, %s187
      %s204 = sphi 0, %s188
    $region4: #{stochastic_gru_forward.1} parent=1 // loop_header_branch
      %18 = sbr.rel (%p16) target = $region8
    $region5: #{stochastic_gru_forward.1} parent=1 // loop_body
      %s20 = ssub.s32 %s15, 1
      %s21 = ssub.s32 %s15, 2
      %s28 = sadd.s32 1, %s23
      %p29 = scmp.ge.s32.totalorder %s28, 2
      %s30 = scalar_select %p29, 0, %s28
      %s31 = sadd.s32 1, %s22
      %s32 = scalar_select %p29, %s31, %s22
      %p33 = scmp.ge.s32.totalorder %s32, 1
      %s34 = scalar_select %p33, 0, %s32
      %s35 = ssub.s32 %s23, %s30
      %s36 = ssub.s32 %s22, %s34
      %s37 = sor.u32 %s35, %s36
      %p38 = scmp.eq.s32.totalorder %s37, 0
      %s40 = sadd.s32 %s39, 1
      %s41 = scalar_select %p38, %s39, %s40
      %p44 = pneg %p38
      %p45 = scmp.eq.s32.totalorder %s15, 1
      %p46 = por %p44, %p45
      %p47 = scmp.ne.s32.totalorder %s39, %s42
      %p48 = scmp.eq.s32.totalorder %s15, 0
      %p49 = por %p47, %p48
      %p50 = scmp.ne.s32.totalorder %s39, %s42
      %p51 = scmp.eq.s32.totalorder %s20, 1
      %p52 = por %p50, %p51
      %p53 = scmp.ne.s32.totalorder %s42, %s43
      %p54 = scmp.eq.s32.totalorder %s20, 0
      %p55 = por %p53, %p54
      %p56 = scmp.ne.s32.totalorder %s42, %s43
      %p57 = scmp.eq.s32.totalorder %s21, 1
      %p58 = por %p56, %p57
      %p60 = scmp.ne.s32.totalorder %s43, %s59
      %p61 = scmp.eq.s32.totalorder %s21, 0
      %p62 = por %p60, %p61
      %s63 = ssub.s32 %s23, %s30
      %s64 = ssub.s32 %s22, %s34
      %s65 = sor.u32 %s63, %s64
      %p66 = scmp.eq.s32.totalorder %s65, 0
      %s68 = sadd.s32 %s67, 1
      %s69 = scalar_select %p66, %s67, %s68
      %p72 = pneg %p66
      %p73 = scmp.eq.s32.totalorder %s15, 1
      %p74 = por %p72, %p73
      %p75 = scmp.ne.s32.totalorder %s67, %s70
      %p76 = scmp.eq.s32.totalorder %s15, 0
      %p77 = por %p75, %p76
      %p78 = scmp.ne.s32.totalorder %s67, %s70
      %p79 = scmp.eq.s32.totalorder %s20, 1
      %p80 = por %p78, %p79
      %p81 = scmp.ne.s32.totalorder %s70, %s71
      %p82 = scmp.eq.s32.totalorder %s20, 0
      %p83 = por %p81, %p82
      %p84 = scmp.ne.s32.totalorder %s70, %s71
      %p85 = scmp.eq.s32.totalorder %s21, 1
      %p86 = por %p84, %p85
      %p88 = scmp.ne.s32.totalorder %s71, %s87
      %p89 = scmp.eq.s32.totalorder %s21, 0
      %p90 = por %p88, %p89
      %s91 = ssub.s32 %s22, %s34
      %p92 = scmp.eq.s32.totalorder %s91, 0
      %s94 = sadd.s32 %s93, 1
      %s95 = scalar_select %p92, %s93, %s94
      %p98 = pneg %p92
      %p99 = scmp.eq.s32.totalorder %s15, 1
      %p100 = por %p98, %p99
      %p101 = scmp.ne.s32.totalorder %s93, %s96
      %p102 = scmp.eq.s32.totalorder %s15, 0
      %p103 = por %p101, %p102
      %p104 = scmp.ne.s32.totalorder %s93, %s96
      %p105 = scmp.eq.s32.totalorder %s20, 1
      %p106 = por %p104, %p105
      %p107 = scmp.ne.s32.totalorder %s96, %s97
      %p108 = scmp.eq.s32.totalorder %s20, 0
      %p109 = por %p107, %p108
      %p110 = scmp.ne.s32.totalorder %s96, %s97
      %p111 = scmp.eq.s32.totalorder %s21, 1
      %p112 = por %p110, %p111
      %p114 = scmp.ne.s32.totalorder %s97, %s113
      %p115 = scmp.eq.s32.totalorder %s21, 0
      %p116 = por %p114, %p115
      %s118 = sadd.s32 %s117, 1
      %p121 = scmp.eq.s32.totalorder %s15, 1
      %p122 = scmp.ne.s32.totalorder %s117, %s119
      %p123 = scmp.eq.s32.totalorder %s15, 0
      %p124 = por %p122, %p123
      %p125 = scmp.ne.s32.totalorder %s117, %s119
      %p126 = scmp.eq.s32.totalorder %s20, 1
      %p127 = por %p125, %p126
      %p128 = scmp.ne.s32.totalorder %s119, %s120
      %p129 = scmp.eq.s32.totalorder %s20, 0
      %p130 = por %p128, %p129
      %p131 = scmp.ne.s32.totalorder %s119, %s120
      %p132 = scmp.eq.s32.totalorder %s21, 1
      %p133 = por %p131, %p132
      %p135 = scmp.ne.s32.totalorder %s120, %s134
      %p136 = scmp.eq.s32.totalorder %s21, 0
      %p137 = por %p135, %p136
      %s139 = sadd.s32 %s138, 1
      %p142 = scmp.eq.s32.totalorder %s15, 1
      %p143 = scmp.ne.s32.totalorder %s138, %s140
      %p144 = scmp.eq.s32.totalorder %s15, 0
      %p145 = por %p143, %p144
      %p146 = scmp.ne.s32.totalorder %s138, %s140
      %p147 = scmp.eq.s32.totalorder %s20, 1
      %p148 = por %p146, %p147
      %p149 = scmp.ne.s32.totalorder %s140, %s141
      %p150 = scmp.eq.s32.totalorder %s20, 0
      %p151 = por %p149, %p150
      %p152 = scmp.ne.s32.totalorder %s140, %s141
      %p153 = scmp.eq.s32.totalorder %s21, 1
      %p154 = por %p152, %p153
      %p156 = scmp.ne.s32.totalorder %s141, %s155
      %p157 = scmp.eq.s32.totalorder %s21, 0
      %p158 = por %p156, %p157
      %s160 = sadd.s32 %s159, 1
      %p163 = scmp.eq.s32.totalorder %s15, 1
      %p164 = scmp.ne.s32.totalorder %s159, %s161
      %p165 = scmp.eq.s32.totalorder %s15, 0
      %p166 = por %p164, %p165
      %p167 = scmp.ne.s32.totalorder %s159, %s161
      %p168 = scmp.eq.s32.totalorder %s20, 1
      %p169 = por %p167, %p168
      %p170 = scmp.ne.s32.totalorder %s161, %s162
      %p171 = scmp.eq.s32.totalorder %s20, 0
      %p172 = por %p170, %p171
      %p173 = scmp.ne.s32.totalorder %s161, %s162
      %p174 = scmp.eq.s32.totalorder %s21, 1
      %p175 = por %p173, %p174
      %p177 = scmp.ne.s32.totalorder %s162, %s176
      %p178 = scmp.eq.s32.totalorder %s21, 0
      %p179 = por %p177, %p178
      %s180 = ssub.s32 %s23, %s30
      %s181 = ssub.s32 %s22, %s34
      %s182 = sor.u32 %s180, %s181
      %p183 = scmp.eq.s32.totalorder %s182, 0
      %s185 = sadd.s32 %s184, 1
      %s186 = scalar_select %p183, %s184, %s185
      %p189 = pneg %p183
      %p190 = scmp.eq.s32.totalorder %s15, 1
      %p191 = por %p189, %p190
      %p192 = scmp.ne.s32.totalorder %s184, %s187
      %p193 = scmp.eq.s32.totalorder %s15, 0
      %p194 = por %p192, %p193
      %p195 = scmp.ne.s32.totalorder %s184, %s187
      %p196 = scmp.eq.s32.totalorder %s20, 1
      %p197 = por %p195, %p196
      %p198 = scmp.ne.s32.totalorder %s187, %s188
      %p199 = scmp.eq.s32.totalorder %s20, 0
      %p200 = por %p198, %p199
      %p201 = scmp.ne.s32.totalorder %s187, %s188
      %p202 = scmp.eq.s32.totalorder %s21, 1
      %p203 = por %p201, %p202
      %p205 = scmp.ne.s32.totalorder %s188, %s204
      %p206 = scmp.eq.s32.totalorder %s21, 0
      %p207 = por %p205, %p206
      %p208 = scmp.le.s32.totalorder 1, %s15
      %p209 = scmp.lt.s32.totalorder %s15, 3
      %p210 = pnand %p208, %p209
      %p211 = pneg %p210
      // Predicated region
      $region9: #{stochastic_gru_forward.1} parent=5 // pred_check
        _
      $region10: #{stochastic_gru_forward.1} parent=5 // pred_check_branch
        %213 = sbr.rel (%p210) target = $region12
      $region11: #{stochastic_gru_forward.1} parent=5 // pred_region
        %s214 = ssub.s32 %s15, 1
        // Predicated region
        $region13: #{stochastic_gru_forward.1} parent=11 // pred_check
          %p215 = pneg %p109
        $region14: #{stochastic_gru_forward.1} parent=11 // pred_check_branch
          %217 = sbr.rel (%p215) target = $region16
        $region15: #{stochastic_gru_forward.1} parent=11 // pred_region
          %s218 = smul.u32 2, %s24
          %p219 = scmp.lt.s32.totalorder %s218, 1
          %s220 = scalar_select %p219, %s218, 1
          %s221 = smul.addr %s220, 8
          %s222 = scalar_lea.vmem %s2, %s221
          %s223 = smul.u32 2, %s24
        $region16: #{stochastic_gru_forward.1} parent=11 // pred_fallthru
          _
        // Predicated region
        $region17: #{stochastic_gru_forward.1} parent=11 // pred_check
          %p224 = pneg %p130
        $region18: #{stochastic_gru_forward.1} parent=11 // pred_check_branch
          %226 = sbr.rel (%p224) target = $region20
        $region19: #{stochastic_gru_forward.1} parent=11 // pred_region
          _
        $region20: #{stochastic_gru_forward.1} parent=11 // pred_fallthru
          _
        // Predicated region
        $region21: #{stochastic_gru_forward.1} parent=11 // pred_check
          %p227 = pneg %p151
        $region22: #{stochastic_gru_forward.1} parent=11 // pred_check_branch
          %229 = sbr.rel (%p227) target = $region24
        $region23: #{stochastic_gru_forward.1} parent=11 // pred_region
          _
        $region24: #{stochastic_gru_forward.1} parent=11 // pred_fallthru
          _
        // Predicated region
        $region25: #{stochastic_gru_forward.1} parent=11 // pred_check
          %p230 = pneg %p172
        $region26: #{stochastic_gru_forward.1} parent=11 // pred_check_branch
          %232 = sbr.rel (%p230) target = $region28
        $region27: #{stochastic_gru_forward.1} parent=11 // pred_region
          _
        $region28: #{stochastic_gru_forward.1} parent=11 // pred_fallthru
          _
      $region12: #{stochastic_gru_forward.1} parent=5 // pred_fallthru
        _
      %p233 = scmp.lt.s32.totalorder %s15, 2
      // Predicated region
      $region29: #{stochastic_gru_forward.1} parent=5 // pred_check
        %p234 = pneg %p233
      $region30: #{stochastic_gru_forward.1} parent=5 // pred_check_branch
        %236 = sbr.rel (%p234) target = $region32
      $region31: #{stochastic_gru_forward.1} parent=5 // pred_region
        // Predicated region
        $region33: #{stochastic_gru_forward.1} parent=31 // pred_check
          %p237 = pneg %p49
        $region34: #{stochastic_gru_forward.1} parent=31 // pred_check_branch
          %239 = sbr.rel (%p237) target = $region36
        $region35: #{stochastic_gru_forward.1} parent=31 // pred_region
          %s240 = smul.u32 8, %s23
          %s241 = smul.u32 2, %s22
          %p242 = scmp.lt.s32.totalorder %s240, 15
          %s243 = scalar_select %p242, %s240, 15
          %p244 = scmp.lt.s32.totalorder %s241, 1
          %s245 = scalar_select %p244, %s241, 1
          %s246 = smul.addr %s245, 5
          %s247 = smul.addr %s243, 10
          %s248 = sadd.s32 %s246, %s247
          %s249 = smul.addr %s248, 8
          %s250 = scalar_lea.vmem %s0, %s249
          %s251 = smul.u32 8, %s23
          %s252 = smul.u32 2, %s22
        $region36: #{stochastic_gru_forward.1} parent=31 // pred_fallthru
          _
        // Predicated region
        $region37: #{stochastic_gru_forward.1} parent=31 // pred_check
          %p253 = pneg %p77
        $region38: #{stochastic_gru_forward.1} parent=31 // pred_check_branch
          %255 = sbr.rel (%p253) target = $region40
        $region39: #{stochastic_gru_forward.1} parent=31 // pred_region
          %s256 = smul.u32 8, %s23
          %s257 = smul.u32 2, %s22
          %p258 = scmp.lt.s32.totalorder %s256, 15
          %s259 = scalar_select %p258, %s256, 15
          %p260 = scmp.lt.s32.totalorder %s257, 1
          %s261 = scalar_select %p260, %s257, 1
          %s262 = smul.addr %s259, 2
          %s263 = sadd.s32 %s261, %s262
          %s264 = smul.addr %s263, 8
          %s265 = scalar_lea.vmem %s1, %s264
          %s266 = smul.u32 8, %s23
          %s267 = smul.u32 2, %s22
        $region40: #{stochastic_gru_forward.1} parent=31 // pred_fallthru
          _
      $region32: #{stochastic_gru_forward.1} parent=5 // pred_fallthru
        _
      %p268 = scmp.le.s32.totalorder 1, %s15
      %p269 = scmp.lt.s32.totalorder %s15, 3
      %p270 = pnand %p268, %p269
      %p271 = pneg %p270
      // Predicated region
      $region41: #{stochastic_gru_forward.1} parent=5 // pred_check
        _
      $region42: #{stochastic_gru_forward.1} parent=5 // pred_check_branch
        %273 = sbr.rel (%p270) target = $region44
      $region43: #{stochastic_gru_forward.1} parent=5 // pred_region
        %s274 = ssub.s32 %s15, 1
        %s275 = smul.u32 8, %s25
        %s276 = smul.u32 2, %s24
        %p277 = scmp.lt.s32.totalorder %s275, 15
        %s278 = scalar_select %p277, %s275, 15
        %p279 = scmp.lt.s32.totalorder %s276, 1
        %s280 = scalar_select %p279, %s276, 1
        %s281 = smul.addr %s280, 5
        %s282 = smul.addr %s278, 10
        %s283 = sadd.s32 %s281, %s282
        %s284 = smul.addr %s283, 8
        %s285 = scalar_lea.vmem %s0, %s284
        %p286 = pneg %p55
        %p287 = pneg %p52
        %s288 = smul.u32 8, %s25
        %s289 = smul.u32 2, %s24
        %p290 = scmp.lt.s32.totalorder %s288, 15
        %s291 = scalar_select %p290, %s288, 15
        %p292 = scmp.lt.s32.totalorder %s289, 1
        %s293 = scalar_select %p292, %s289, 1
        %s294 = smul.addr %s291, 2
        %s295 = sadd.s32 %s293, %s294
        %s296 = smul.addr %s295, 8
        %s297 = scalar_lea.vmem %s1, %s296
        %p298 = pneg %p83
        %p299 = pneg %p80
        %s300 = smul.u32 2, %s24
        %p301 = scmp.lt.s32.totalorder %s300, 1
        %s302 = scalar_select %p301, %s300, 1
        %s303 = smul.addr %s302, 8
        %s304 = scalar_lea.vmem %s2, %s303
        %p305 = pneg %p109
        %p306 = pneg %p106
        %p307 = pneg %p130
        %p308 = pneg %p127
        %p309 = pneg %p151
        %p310 = pneg %p148
        %p311 = pneg %p172
        %p312 = pneg %p169
        %p313 = pneg %p200
        %p314 = pneg %p197
        %s315 = sand.u32 %s187, 1
        %s316 = scalar_lea.sflag [#allocation4], %s315
        %s317 = sand.u32 %s187, 1
        %s318 = smul.addr %s317, 128
        %s319 = scalar_lea.vmem [#allocation3], %s318
        %s320 = smul.u32 8, %s25
        %s321 = smul.u32 2, %s24
        %p322 = scmp.lt.s32.totalorder %s320, 15
        %s323 = scalar_select %p322, %s320, 15
        %p324 = scmp.lt.s32.totalorder %s321, 1
        %s325 = scalar_select %p324, %s321, 1
        %s326 = smul.addr %s325, 5
        %s327 = smul.addr %s323, 10
        %s328 = sadd.s32 %s326, %s327
        %s329 = smul.addr %s328, 8
        %s330 = scalar_lea.vmem %s0, %s329
        %s331 = smul.u32 8, %s25
        %s332 = smul.u32 2, %s24
        %s333 = smul.u32 8, %s25
        %s334 = smul.u32 2, %s24
        %p335 = scmp.lt.s32.totalorder %s333, 15
        %s336 = scalar_select %p335, %s333, 15
        %p337 = scmp.lt.s32.totalorder %s334, 1
        %s338 = scalar_select %p337, %s334, 1
        %s339 = smul.addr %s336, 2
        %s340 = sadd.s32 %s338, %s339
        %s341 = smul.addr %s340, 8
        %s342 = scalar_lea.vmem %s1, %s341
        %s343 = smul.u32 8, %s25
        %s344 = smul.u32 2, %s24
        %s345 = smul.u32 2, %s24
        %p346 = scmp.lt.s32.totalorder %s345, 1
        %s347 = scalar_select %p346, %s345, 1
        %s348 = smul.addr %s347, 8
        %s349 = scalar_lea.vmem %s2, %s348
        %s350 = smul.u32 2, %s24
        %s351 = smul.u32 8, %s25
        %s352 = smul.u32 2, %s24
        %p353 = scmp.eq.s32.totalorder %s25, 0
        // Predicated region
        $region45: #{stochastic_gru_forward.1} parent=43 // pred_check
          %p354 = pneg %p353
        $region46: #{stochastic_gru_forward.1} parent=43 // pred_check_branch
          %356 = sbr.rel (%p354) target = $region48
        $region47: #{stochastic_gru_forward.1} parent=43 // pred_region
          %v357 = vld [vmem:[%s349] sm:$0xff]
          %v358 = vld [vmem:[%s349 + $0x8] sm:$0xff]
          %359 = vst [vmem:[#allocation2] sm:$0xff] %v357
          %360 = vst [vmem:[#allocation2 + $0x8] sm:$0xff] %v358
        $region48: #{stochastic_gru_forward.1} parent=43 // pred_fallthru
          _
        %v361 = vld [vmem:[%s5] sm:$0x1]
        %v362 = vld [vmem:[#allocation2] sm:$0xff]
        %v363 = vld [vmem:[#allocation2 + $0x8] sm:$0xff]
        %v364 = vld [vmem:[%s3] sm:$0xff]
        %v365 = vld [vmem:[%s3 + $0x8] sm:$0xff]
        %v366 = vld [vmem:[%s3 + $0x10] sm:$0xff]
        %v367 = vld [vmem:[%s3 + $0x18] sm:$0xff]
        %v368 = vld [vmem:[%s3 + $0x20] sm:$0xff]
        %v369 = vld [vmem:[%s3 + $0x28] sm:$0xff]
        %v370 = vld [vmem:[%s3 + $0x30] sm:$0xff]
        %v371 = vld [vmem:[%s3 + $0x38] sm:$0xff]
        %v372 = vld [vmem:[%s3 + $0x40] sm:$0xff]
        %v373 = vld [vmem:[%s3 + $0x48] sm:$0xff]
        %v374 = vld [vmem:[%s3 + $0x50] sm:$0xff]
        %v375 = vld [vmem:[%s3 + $0x58] sm:$0xff]
        %v376 = vld [vmem:[%s3 + $0x60] sm:$0xff]
        %v377 = vld [vmem:[%s3 + $0x68] sm:$0xff]
        %v378 = vld [vmem:[%s3 + $0x70] sm:$0xff]
        %v379 = vld [vmem:[%s3 + $0x78] sm:$0xff]
        %v380 = vld [vmem:[%s3 + $0x80] sm:$0xff]
        %v381 = vld [vmem:[%s3 + $0x88] sm:$0xff]
        %v382 = vld [vmem:[%s3 + $0x90] sm:$0xff]
        %v383 = vld [vmem:[%s3 + $0x98] sm:$0xff]
        %v384 = vld [vmem:[%s3 + $0xa0] sm:$0xff]
        %v385 = vld [vmem:[%s3 + $0xa8] sm:$0xff]
        %v386 = vld [vmem:[%s3 + $0xb0] sm:$0xff]
        %v387 = vld [vmem:[%s3 + $0xb8] sm:$0xff]
        %v388 = vld [vmem:[%s3 + $0xc0] sm:$0xff]
        %v389 = vld [vmem:[%s3 + $0xc8] sm:$0xff]
        %v390 = vld [vmem:[%s3 + $0xd0] sm:$0xff]
        %v391 = vld [vmem:[%s3 + $0xd8] sm:$0xff]
        %v392 = vld [vmem:[%s3 + $0xe0] sm:$0xff]
        %v393 = vld [vmem:[%s3 + $0xe8] sm:$0xff]
        %v394 = vld [vmem:[%s3 + $0xf0] sm:$0xff]
        %v395 = vld [vmem:[%s3 + $0xf8] sm:$0xff]
        %v396 = vld [vmem:[%s3 + $0x100] sm:$0xff]
        %v397 = vld [vmem:[%s3 + $0x108] sm:$0xff]
        %v398 = vld [vmem:[%s3 + $0x110] sm:$0xff]
        %v399 = vld [vmem:[%s3 + $0x118] sm:$0xff]
        %v400 = vld [vmem:[%s3 + $0x120] sm:$0xff]
        %v401 = vld [vmem:[%s3 + $0x128] sm:$0xff]
        %v402 = vld [vmem:[%s3 + $0x130] sm:$0xff]
        %v403 = vld [vmem:[%s3 + $0x138] sm:$0xff]
        %v404 = vld [vmem:[%s3 + $0x140] sm:$0xff]
        %v405 = vld [vmem:[%s3 + $0x148] sm:$0xff]
        %v406 = vld [vmem:[%s3 + $0x150] sm:$0xff]
        %v407 = vld [vmem:[%s3 + $0x158] sm:$0xff]
        %v408 = vld [vmem:[%s3 + $0x160] sm:$0xff]
        %v409 = vld [vmem:[%s3 + $0x168] sm:$0xff]
        %v410 = vld [vmem:[%s3 + $0x170] sm:$0xff]
        %v411 = vld [vmem:[%s3 + $0x178] sm:$0xff]
        %v412 = vld [vmem:[%s3 + $0x180] sm:$0xff]
        %v413 = vld [vmem:[%s3 + $0x188] sm:$0xff]
        %v414 = vld [vmem:[%s3 + $0x190] sm:$0xff]
        %v415 = vld [vmem:[%s3 + $0x198] sm:$0xff]
        %v416 = vld [vmem:[%s3 + $0x1a0] sm:$0xff]
        %v417 = vld [vmem:[%s3 + $0x1a8] sm:$0xff]
        %v418 = vld [vmem:[%s3 + $0x1b0] sm:$0xff]
        %v419 = vld [vmem:[%s3 + $0x1b8] sm:$0xff]
        %v420 = vld [vmem:[%s3 + $0x1c0] sm:$0xff]
        %v421 = vld [vmem:[%s3 + $0x1c8] sm:$0xff]
        %v422 = vld [vmem:[%s3 + $0x1d0] sm:$0xff]
        %v423 = vld [vmem:[%s3 + $0x1d8] sm:$0xff]
        %v424 = vld [vmem:[%s3 + $0x1e0] sm:$0xff]
        %v425 = vld [vmem:[%s3 + $0x1e8] sm:$0xff]
        %v426 = vld [vmem:[%s3 + $0x1f0] sm:$0xff]
        %v427 = vld [vmem:[%s3 + $0x1f8] sm:$0xff]
        %v428 = vld [vmem:[%s3 + $0x200] sm:$0xff]
        %v429 = vld [vmem:[%s3 + $0x208] sm:$0xff]
        %v430 = vld [vmem:[%s3 + $0x210] sm:$0xff]
        %v431 = vld [vmem:[%s3 + $0x218] sm:$0xff]
        %v432 = vld [vmem:[%s3 + $0x220] sm:$0xff]
        %v433 = vld [vmem:[%s3 + $0x228] sm:$0xff]
        %v434 = vld [vmem:[%s3 + $0x230] sm:$0xff]
        %v435 = vld [vmem:[%s3 + $0x238] sm:$0xff]
        %v436 = vld [vmem:[%s3 + $0x240] sm:$0xff]
        %v437 = vld [vmem:[%s3 + $0x248] sm:$0xff]
        %v438 = vld [vmem:[%s3 + $0x250] sm:$0xff]
        %v439 = vld [vmem:[%s3 + $0x258] sm:$0xff]
        %v440 = vld [vmem:[%s3 + $0x260] sm:$0xff]
        %v441 = vld [vmem:[%s3 + $0x268] sm:$0xff]
        %v442 = vld [vmem:[%s3 + $0x270] sm:$0xff]
        %v443 = vld [vmem:[%s3 + $0x278] sm:$0xff]
        %444 = vmatprep.subr.mxu0 %v365
        %445 = vmatpush1.msra.mxu0 %v364
        %446 = vmatprep.subr.mxu0 %v370
        %447 = vmatpush1.msra.mxu0 %v369
        %448 = vmatprep.subr.mxu0 %v375
        %449 = vmatpush1.msra.mxu0 %v374
        %450 = vmatprep.subr.mxu0 %v380
        %451 = vmatpush1.msra.mxu0 %v379
        %452 = vmatprep.subr.mxu0 %v385
        %453 = vmatpush1.msra.mxu0 %v384
        %454 = vmatprep.subr.mxu0 %v390
        %455 = vmatpush1.msra.mxu0 %v389
        %456 = vmatprep.subr.mxu0 %v395
        %457 = vmatpush1.msra.mxu0 %v394
        %458 = vmatprep.subr.mxu0 %v400
        %459 = vmatpush1.msra.mxu0 %v399
        %460 = vmatprep.subr.mxu0 %v405
        %461 = vmatpush1.msra.mxu0 %v404
        %462 = vmatprep.subr.mxu0 %v410
        %463 = vmatpush1.msra.mxu0 %v409
        %464 = vmatprep.subr.mxu0 %v415
        %465 = vmatpush1.msra.mxu0 %v414
        %466 = vmatprep.subr.mxu0 %v420
        %467 = vmatpush1.msra.mxu0 %v419
        %468 = vmatprep.subr.mxu0 %v425
        %469 = vmatpush1.msra.mxu0 %v424
        %470 = vmatprep.subr.mxu0 %v430
        %471 = vmatpush1.msra.mxu0 %v429
        %472 = vmatprep.subr.mxu0 %v435
        %473 = vmatpush1.msra.mxu0 %v434
        %474 = vmatprep.subr.mxu0 %v440
        %475 = vmatpush1.msra.mxu0 %v439
        %476 = vmatprep.subr.mxu0 0.0
        %477 = vmatpush1.msra.mxu0 0.0
        %478 = vmatprep.subr.mxu0 0.0
        %479 = vmatpush1.msra.mxu0 0.0
        %480 = vmatprep.subr.mxu0 0.0
        %481 = vmatpush1.msra.mxu0 0.0
        %482 = vmatprep.subr.mxu0 0.0
        %483 = vmatpush1.msra.mxu0 0.0
        %484 = vmatprep.subr.mxu0 0.0
        %485 = vmatpush1.msra.mxu0 0.0
        %486 = vmatprep.subr.mxu0 0.0
        %487 = vmatpush1.msra.mxu0 0.0
        %488 = vmatprep.subr.mxu0 0.0
        %489 = vmatpush1.msra.mxu0 0.0
        %490 = vmatprep.subr.mxu0 0.0
        %491 = vmatpush1.msra.mxu0 0.0
        %492 = vmatprep.subr.mxu0 0.0
        %493 = vmatpush1.msra.mxu0 0.0
        %494 = vmatprep.subr.mxu0 0.0
        %495 = vmatpush1.msra.mxu0 0.0
        %496 = vmatprep.subr.mxu0 0.0
        %497 = vmatpush1.msra.mxu0 0.0
        %498 = vmatprep.subr.mxu0 0.0
        %499 = vmatpush1.msra.mxu0 0.0
        %500 = vmatprep.subr.mxu0 0.0
        %501 = vmatpush1.msra.mxu0 0.0
        %502 = vmatprep.subr.mxu0 0.0
        %503 = vmatpush1.msra.mxu0 0.0
        %504 = vmatprep.subr.mxu0 0.0
        %505 = vmatpush1.msra.mxu0 0.0
        %506 = vmatprep.subr.mxu0 0.0
        %507 = vmatpush1.msra.mxu0 0.0
        %508 = vmatprep.mubr.f32.mxu0 0.0
        %509 = vmatmul.mubr.f32.gmra.mrb[0].mxu0 %v362
        %v510 = vpop.f32.mrb[0].mxu0
        %v511 = vadd.f32 0.0, %v510
        %v512 = vpop.f32.mrb[0].mxu0
        %v513 = vadd.f32 0.0, %v512
        %514 = vmatprep.mubr.f32.mxu0 0.0
        %515 = vmatmul.mubr.f32.gmra.mrb[0].mxu0 %v363
        %v516 = vpop.f32.mrb[0].mxu0
        %v517 = vadd.f32 0.0, %v516
        %v518 = vpop.f32.mrb[0].mxu0
        %v519 = vadd.f32 0.0, %v518
        %520 = vdwg.mxu0
        %521 = vmatprep.subr.mxu0 %v367
        %522 = vmatpush1.msra.mxu0 %v366
        %523 = vmatprep.subr.mxu0 %v372
        %524 = vmatpush1.msra.mxu0 %v371
        %525 = vmatprep.subr.mxu0 %v377
        %526 = vmatpush1.msra.mxu0 %v376
        %527 = vmatprep.subr.mxu0 %v382
        %528 = vmatpush1.msra.mxu0 %v381
        %529 = vmatprep.subr.mxu0 %v387
        %530 = vmatpush1.msra.mxu0 %v386
        %531 = vmatprep.subr.mxu0 %v392
        %532 = vmatpush1.msra.mxu0 %v391
        %533 = vmatprep.subr.mxu0 %v397
        %534 = vmatpush1.msra.mxu0 %v396
        %535 = vmatprep.subr.mxu0 %v402
        %536 = vmatpush1.msra.mxu0 %v401
        %537 = vmatprep.subr.mxu0 %v407
        %538 = vmatpush1.msra.mxu0 %v406
        %539 = vmatprep.subr.mxu0 %v412
        %540 = vmatpush1.msra.mxu0 %v411
        %541 = vmatprep.subr.mxu0 %v417
        %542 = vmatpush1.msra.mxu0 %v416
        %543 = vmatprep.subr.mxu0 %v422
        %544 = vmatpush1.msra.mxu0 %v421
        %545 = vmatprep.subr.mxu0 %v427
        %546 = vmatpush1.msra.mxu0 %v426
        %547 = vmatprep.subr.mxu0 %v432
        %548 = vmatpush1.msra.mxu0 %v431
        %549 = vmatprep.subr.mxu0 %v437
        %550 = vmatpush1.msra.mxu0 %v436
        %551 = vmatprep.subr.mxu0 %v442
        %552 = vmatpush1.msra.mxu0 %v441
        %553 = vmatprep.subr.mxu0 0.0
        %554 = vmatpush1.msra.mxu0 0.0
        %555 = vmatprep.subr.mxu0 0.0
        %556 = vmatpush1.msra.mxu0 0.0
        %557 = vmatprep.subr.mxu0 0.0
        %558 = vmatpush1.msra.mxu0 0.0
        %559 = vmatprep.subr.mxu0 0.0
        %560 = vmatpush1.msra.mxu0 0.0
        %561 = vmatprep.subr.mxu0 0.0
        %562 = vmatpush1.msra.mxu0 0.0
        %563 = vmatprep.subr.mxu0 0.0
        %564 = vmatpush1.msra.mxu0 0.0
        %565 = vmatprep.subr.mxu0 0.0
        %566 = vmatpush1.msra.mxu0 0.0
        %567 = vmatprep.subr.mxu0 0.0
        %568 = vmatpush1.msra.mxu0 0.0
        %569 = vmatprep.subr.mxu0 0.0
        %570 = vmatpush1.msra.mxu0 0.0
        %571 = vmatprep.subr.mxu0 0.0
        %572 = vmatpush1.msra.mxu0 0.0
        %573 = vmatprep.subr.mxu0 0.0
        %574 = vmatpush1.msra.mxu0 0.0
        %575 = vmatprep.subr.mxu0 0.0
        %576 = vmatpush1.msra.mxu0 0.0
        %577 = vmatprep.subr.mxu0 0.0
        %578 = vmatpush1.msra.mxu0 0.0
        %579 = vmatprep.subr.mxu0 0.0
        %580 = vmatpush1.msra.mxu0 0.0
        %581 = vmatprep.subr.mxu0 0.0
        %582 = vmatpush1.msra.mxu0 0.0
        %583 = vmatprep.subr.mxu0 0.0
        %584 = vmatpush1.msra.mxu0 0.0
        %585 = vmatprep.mubr.f32.mxu0 0.0
        %586 = vmatmul.mubr.f32.gmra.mrb[0].mxu0 %v362
        %v587 = vpop.f32.mrb[0].mxu0
        %v588 = vadd.f32 0.0, %v587
        %v589 = vpop.f32.mrb[0].mxu0
        %v590 = vadd.f32 0.0, %v589
        %591 = vmatprep.mubr.f32.mxu0 0.0
        %592 = vmatmul.mubr.f32.gmra.mrb[0].mxu0 %v363
        %v593 = vpop.f32.mrb[0].mxu0
        %v594 = vadd.f32 0.0, %v593
        %v595 = vpop.f32.mrb[0].mxu0
        %v596 = vadd.f32 0.0, %v595
        %597 = vdwg.mxu0
        %598 = vmatprep.subr.mxu0 0.0
        %599 = vmatpush1.msra.mxu0 %v368
        %600 = vmatprep.subr.mxu0 0.0
        %601 = vmatpush1.msra.mxu0 %v373
        %602 = vmatprep.subr.mxu0 0.0
        %603 = vmatpush1.msra.mxu0 %v378
        %604 = vmatprep.subr.mxu0 0.0
        %605 = vmatpush1.msra.mxu0 %v383
        %606 = vmatprep.subr.mxu0 0.0
        %607 = vmatpush1.msra.mxu0 %v388
        %608 = vmatprep.subr.mxu0 0.0
        %609 = vmatpush1.msra.mxu0 %v393
        %610 = vmatprep.subr.mxu0 0.0
        %611 = vmatpush1.msra.mxu0 %v398
        %612 = vmatprep.subr.mxu0 0.0
        %613 = vmatpush1.msra.mxu0 %v403
        %614 = vmatprep.subr.mxu0 0.0
        %615 = vmatpush1.msra.mxu0 %v408
        %616 = vmatprep.subr.mxu0 0.0
        %617 = vmatpush1.msra.mxu0 %v413
        %618 = vmatprep.subr.mxu0 0.0
        %619 = vmatpush1.msra.mxu0 %v418
        %620 = vmatprep.subr.mxu0 0.0
        %621 = vmatpush1.msra.mxu0 %v423
        %622 = vmatprep.subr.mxu0 0.0
        %623 = vmatpush1.msra.mxu0 %v428
        %624 = vmatprep.subr.mxu0 0.0
        %625 = vmatpush1.msra.mxu0 %v433
        %626 = vmatprep.subr.mxu0 0.0
        %627 = vmatpush1.msra.mxu0 %v438
        %628 = vmatprep.subr.mxu0 0.0
        %629 = vmatpush1.msra.mxu0 %v443
        %630 = vmatprep.subr.mxu0 0.0
        %631 = vmatpush1.msra.mxu0 0.0
        %632 = vmatprep.subr.mxu0 0.0
        %633 = vmatpush1.msra.mxu0 0.0
        %634 = vmatprep.subr.mxu0 0.0
        %635 = vmatpush1.msra.mxu0 0.0
        %636 = vmatprep.subr.mxu0 0.0
        %637 = vmatpush1.msra.mxu0 0.0
        %638 = vmatprep.subr.mxu0 0.0
        %639 = vmatpush1.msra.mxu0 0.0
        %640 = vmatprep.subr.mxu0 0.0
        %641 = vmatpush1.msra.mxu0 0.0
        %642 = vmatprep.subr.mxu0 0.0
        %643 = vmatpush1.msra.mxu0 0.0
        %644 = vmatprep.subr.mxu0 0.0
        %645 = vmatpush1.msra.mxu0 0.0
        %646 = vmatprep.subr.mxu0 0.0
        %647 = vmatpush1.msra.mxu0 0.0
        %648 = vmatprep.subr.mxu0 0.0
        %649 = vmatpush1.msra.mxu0 0.0
        %650 = vmatprep.subr.mxu0 0.0
        %651 = vmatpush1.msra.mxu0 0.0
        %652 = vmatprep.subr.mxu0 0.0
        %653 = vmatpush1.msra.mxu0 0.0
        %654 = vmatprep.subr.mxu0 0.0
        %655 = vmatpush1.msra.mxu0 0.0
        %656 = vmatprep.subr.mxu0 0.0
        %657 = vmatpush1.msra.mxu0 0.0
        %658 = vmatprep.subr.mxu0 0.0
        %659 = vmatpush1.msra.mxu0 0.0
        %660 = vmatprep.subr.mxu0 0.0
        %661 = vmatpush1.msra.mxu0 0.0
        %662 = vmatprep.mubr.f32.mxu0 0.0
        %663 = vmatmul.mubr.f32.gmra.mrb[0].mxu0 %v362
        %v664 = vpop.f32.mrb[0].mxu0
        %v665 = vadd.f32 0.0, %v664
        %v666 = vpop.f32.mrb[0].mxu0
        %667 = vmatprep.mubr.f32.mxu0 0.0
        %668 = vmatmul.mubr.f32.gmra.mrb[0].mxu0 %v363
        %v669 = vpop.f32.mrb[0].mxu0
        %v670 = vadd.f32 0.0, %v669
        %v671 = vpop.f32.mrb[0].mxu0
        %672 = vdwg.mxu0
        %v673 = vld [vmem:[%s330] sm:$0xff]
        %v674 = vld [vmem:[%s330 + $0x28] sm:$0xff]
        %v675 = vadd.f32 %v673, %v511
        %v676 = vadd.f32 %v674, %v517
        %v677 = vld [vmem:[%s330 + $0x8] sm:$0xff]
        %v678 = vld [vmem:[%s330 + $0x30] sm:$0xff]
        %v679 = vadd.f32 %v677, %v513
        %v680 = vadd.f32 %v678, %v519
        %v681 = vmul.f32 %v679, 0.5
        %v682 = vmul.f32 %v680, 0.5
        %v683 = vmul.f32 %v681, 1.442695
        %v684 = vpow.pop %v683
        %v685 = vmul.f32 %v682, 1.442695
        %v686 = vpow.pop %v685
        %v687 = vld [vmem:[%s342] sm:$0xff]
        %v688 = vld [vmem:[%s342 + $0x8] sm:$0xff]
        %v689 = vmul.f32 %v687, %v684
        %v690 = vmul.f32 %v688, %v686
        %v691 = vadd.f32 %v675, %v689
        %v692 = vadd.f32 %v676, %v690
        %v693 = vld [vmem:[%s4] sm:$0xff]
        %v694 = vld [vmem:[%s4 + $0x8] sm:$0xff]
        %v695 = vld [vmem:[%s4 + $0x10] sm:$0xff]
        %v696 = vld [vmem:[%s4 + $0x18] sm:$0xff]
        %v697 = vld [vmem:[%s4 + $0x20] sm:$0xff]
        %v698 = vld [vmem:[%s4 + $0x28] sm:$0xff]
        %v699 = vld [vmem:[%s4 + $0x30] sm:$0xff]
        %v700 = vld [vmem:[%s4 + $0x38] sm:$0xff]
        %v701 = vld [vmem:[%s4 + $0x40] sm:$0xff]
        %v702 = vld [vmem:[%s4 + $0x48] sm:$0xff]
        %v703 = vld [vmem:[%s4 + $0x50] sm:$0xff]
        %v704 = vld [vmem:[%s4 + $0x58] sm:$0xff]
        %v705 = vld [vmem:[%s4 + $0x60] sm:$0xff]
        %v706 = vld [vmem:[%s4 + $0x68] sm:$0xff]
        %v707 = vld [vmem:[%s4 + $0x70] sm:$0xff]
        %v708 = vld [vmem:[%s4 + $0x78] sm:$0xff]
        %v709 = vld [vmem:[%s4 + $0x80] sm:$0xff]
        %v710 = vld [vmem:[%s4 + $0x88] sm:$0xff]
        %v711 = vld [vmem:[%s4 + $0x90] sm:$0xff]
        %v712 = vld [vmem:[%s4 + $0x98] sm:$0xff]
        %v713 = vld [vmem:[%s4 + $0xa0] sm:$0xff]
        %v714 = vld [vmem:[%s4 + $0xa8] sm:$0xff]
        %v715 = vld [vmem:[%s4 + $0xb0] sm:$0xff]
        %v716 = vld [vmem:[%s4 + $0xb8] sm:$0xff]
        %v717 = vld [vmem:[%s4 + $0xc0] sm:$0xff]
        %v718 = vld [vmem:[%s4 + $0xc8] sm:$0xff]
        %v719 = vld [vmem:[%s4 + $0xd0] sm:$0xff]
        %v720 = vld [vmem:[%s4 + $0xd8] sm:$0xff]
        %v721 = vld [vmem:[%s4 + $0xe0] sm:$0xff]
        %v722 = vld [vmem:[%s4 + $0xe8] sm:$0xff]
        %v723 = vld [vmem:[%s4 + $0xf0] sm:$0xff]
        %v724 = vld [vmem:[%s4 + $0xf8] sm:$0xff]
        %v725 = vld [vmem:[%s4 + $0x100] sm:$0xff]
        %v726 = vld [vmem:[%s4 + $0x108] sm:$0xff]
        %v727 = vld [vmem:[%s4 + $0x110] sm:$0xff]
        %v728 = vld [vmem:[%s4 + $0x118] sm:$0xff]
        %v729 = vld [vmem:[%s4 + $0x120] sm:$0xff]
        %v730 = vld [vmem:[%s4 + $0x128] sm:$0xff]
        %v731 = vld [vmem:[%s4 + $0x130] sm:$0xff]
        %v732 = vld [vmem:[%s4 + $0x138] sm:$0xff]
        %v733 = vld [vmem:[%s4 + $0x140] sm:$0xff]
        %v734 = vld [vmem:[%s4 + $0x148] sm:$0xff]
        %v735 = vld [vmem:[%s4 + $0x150] sm:$0xff]
        %v736 = vld [vmem:[%s4 + $0x158] sm:$0xff]
        %v737 = vld [vmem:[%s4 + $0x160] sm:$0xff]
        %v738 = vld [vmem:[%s4 + $0x168] sm:$0xff]
        %v739 = vld [vmem:[%s4 + $0x170] sm:$0xff]
        %v740 = vld [vmem:[%s4 + $0x178] sm:$0xff]
        %741 = vmatprep.subr.mxu0 %v694
        %742 = vmatpush1.msra.mxu0 %v693
        %743 = vmatprep.subr.mxu0 %v697
        %744 = vmatpush1.msra.mxu0 %v696
        %745 = vmatprep.subr.mxu0 %v700
        %746 = vmatpush1.msra.mxu0 %v699
        %747 = vmatprep.subr.mxu0 %v703
        %748 = vmatpush1.msra.mxu0 %v702
        %749 = vmatprep.subr.mxu0 %v706
        %750 = vmatpush1.msra.mxu0 %v705
        %751 = vmatprep.subr.mxu0 %v709
        %752 = vmatpush1.msra.mxu0 %v708
        %753 = vmatprep.subr.mxu0 %v712
        %754 = vmatpush1.msra.mxu0 %v711
        %755 = vmatprep.subr.mxu0 %v715
        %756 = vmatpush1.msra.mxu0 %v714
        %757 = vmatprep.subr.mxu0 %v718
        %758 = vmatpush1.msra.mxu0 %v717
        %759 = vmatprep.subr.mxu0 %v721
        %760 = vmatpush1.msra.mxu0 %v720
        %761 = vmatprep.subr.mxu0 %v724
        %762 = vmatpush1.msra.mxu0 %v723
        %763 = vmatprep.subr.mxu0 %v727
        %764 = vmatpush1.msra.mxu0 %v726
        %765 = vmatprep.subr.mxu0 %v730
        %766 = vmatpush1.msra.mxu0 %v729
        %767 = vmatprep.subr.mxu0 %v733
        %768 = vmatpush1.msra.mxu0 %v732
        %769 = vmatprep.subr.mxu0 %v736
        %770 = vmatpush1.msra.mxu0 %v735
        %771 = vmatprep.subr.mxu0 %v739
        %772 = vmatpush1.msra.mxu0 %v738
        %773 = vmatprep.subr.mxu0 0.0
        %774 = vmatpush1.msra.mxu0 0.0
        %775 = vmatprep.subr.mxu0 0.0
        %776 = vmatpush1.msra.mxu0 0.0
        %777 = vmatprep.subr.mxu0 0.0
        %778 = vmatpush1.msra.mxu0 0.0
        %779 = vmatprep.subr.mxu0 0.0
        %780 = vmatpush1.msra.mxu0 0.0
        %781 = vmatprep.subr.mxu0 0.0
        %782 = vmatpush1.msra.mxu0 0.0
        %783 = vmatprep.subr.mxu0 0.0
        %784 = vmatpush1.msra.mxu0 0.0
        %785 = vmatprep.subr.mxu0 0.0
        %786 = vmatpush1.msra.mxu0 0.0
        %787 = vmatprep.subr.mxu0 0.0
        %788 = vmatpush1.msra.mxu0 0.0
        %789 = vmatprep.subr.mxu0 0.0
        %790 = vmatpush1.msra.mxu0 0.0
        %791 = vmatprep.subr.mxu0 0.0
        %792 = vmatpush1.msra.mxu0 0.0
        %793 = vmatprep.subr.mxu0 0.0
        %794 = vmatpush1.msra.mxu0 0.0
        %795 = vmatprep.subr.mxu0 0.0
        %796 = vmatpush1.msra.mxu0 0.0
        %797 = vmatprep.subr.mxu0 0.0
        %798 = vmatpush1.msra.mxu0 0.0
        %799 = vmatprep.subr.mxu0 0.0
        %800 = vmatpush1.msra.mxu0 0.0
        %801 = vmatprep.subr.mxu0 0.0
        %802 = vmatpush1.msra.mxu0 0.0
        %803 = vmatprep.subr.mxu0 0.0
        %804 = vmatpush1.msra.mxu0 0.0
        %805 = vmatprep.mubr.f32.mxu0 0.0
        %806 = vmatmul.mubr.f32.gmra.mrb[0].mxu0 %v691
        %v807 = vpop.f32.mrb[0].mxu0
        %v808 = vadd.f32 0.0, %v807
        %v809 = vpop.f32.mrb[0].mxu0
        %v810 = vadd.f32 0.0, %v809
        %811 = vmatprep.mubr.f32.mxu0 0.0
        %812 = vmatmul.mubr.f32.gmra.mrb[0].mxu0 %v692
        %v813 = vpop.f32.mrb[0].mxu0
        %v814 = vadd.f32 0.0, %v813
        %v815 = vpop.f32.mrb[0].mxu0
        %v816 = vadd.f32 0.0, %v815
        %817 = vdwg.mxu0
        %818 = vmatprep.subr.mxu0 0.0
        %819 = vmatpush1.msra.mxu0 %v695
        %820 = vmatprep.subr.mxu0 0.0
        %821 = vmatpush1.msra.mxu0 %v698
        %822 = vmatprep.subr.mxu0 0.0
        %823 = vmatpush1.msra.mxu0 %v701
        %824 = vmatprep.subr.mxu0 0.0
        %825 = vmatpush1.msra.mxu0 %v704
        %826 = vmatprep.subr.mxu0 0.0
        %827 = vmatpush1.msra.mxu0 %v707
        %828 = vmatprep.subr.mxu0 0.0
        %829 = vmatpush1.msra.mxu0 %v710
        %830 = vmatprep.subr.mxu0 0.0
        %831 = vmatpush1.msra.mxu0 %v713
        %832 = vmatprep.subr.mxu0 0.0
        %833 = vmatpush1.msra.mxu0 %v716
        %834 = vmatprep.subr.mxu0 0.0
        %835 = vmatpush1.msra.mxu0 %v719
        %836 = vmatprep.subr.mxu0 0.0
        %837 = vmatpush1.msra.mxu0 %v722
        %838 = vmatprep.subr.mxu0 0.0
        %839 = vmatpush1.msra.mxu0 %v725
        %840 = vmatprep.subr.mxu0 0.0
        %841 = vmatpush1.msra.mxu0 %v728
        %842 = vmatprep.subr.mxu0 0.0
        %843 = vmatpush1.msra.mxu0 %v731
        %844 = vmatprep.subr.mxu0 0.0
        %845 = vmatpush1.msra.mxu0 %v734
        %846 = vmatprep.subr.mxu0 0.0
        %847 = vmatpush1.msra.mxu0 %v737
        %848 = vmatprep.subr.mxu0 0.0
        %849 = vmatpush1.msra.mxu0 %v740
        %850 = vmatprep.subr.mxu0 0.0
        %851 = vmatpush1.msra.mxu0 0.0
        %852 = vmatprep.subr.mxu0 0.0
        %853 = vmatpush1.msra.mxu0 0.0
        %854 = vmatprep.subr.mxu0 0.0
        %855 = vmatpush1.msra.mxu0 0.0
        %856 = vmatprep.subr.mxu0 0.0
        %857 = vmatpush1.msra.mxu0 0.0
        %858 = vmatprep.subr.mxu0 0.0
        %859 = vmatpush1.msra.mxu0 0.0
        %860 = vmatprep.subr.mxu0 0.0
        %861 = vmatpush1.msra.mxu0 0.0
        %862 = vmatprep.subr.mxu0 0.0
        %863 = vmatpush1.msra.mxu0 0.0
        %864 = vmatprep.subr.mxu0 0.0
        %865 = vmatpush1.msra.mxu0 0.0
        %866 = vmatprep.subr.mxu0 0.0
        %867 = vmatpush1.msra.mxu0 0.0
        %868 = vmatprep.subr.mxu0 0.0
        %869 = vmatpush1.msra.mxu0 0.0
        %870 = vmatprep.subr.mxu0 0.0
        %871 = vmatpush1.msra.mxu0 0.0
        %872 = vmatprep.subr.mxu0 0.0
        %873 = vmatpush1.msra.mxu0 0.0
        %874 = vmatprep.subr.mxu0 0.0
        %875 = vmatpush1.msra.mxu0 0.0
        %876 = vmatprep.subr.mxu0 0.0
        %877 = vmatpush1.msra.mxu0 0.0
        %878 = vmatprep.subr.mxu0 0.0
        %879 = vmatpush1.msra.mxu0 0.0
        %880 = vmatprep.subr.mxu0 0.0
        %881 = vmatpush1.msra.mxu0 0.0
        %882 = vmatprep.mubr.f32.mxu0 0.0
        %883 = vmatmul.mubr.f32.gmra.mrb[0].mxu0 %v691
        %v884 = vpop.f32.mrb[0].mxu0
        %v885 = vadd.f32 0.0, %v884
        %v886 = vpop.f32.mrb[0].mxu0
        %887 = vmatprep.mubr.f32.mxu0 0.0
        %888 = vmatmul.mubr.f32.gmra.mrb[0].mxu0 %v692
        %v889 = vpop.f32.mrb[0].mxu0
        %v890 = vadd.f32 0.0, %v889
        %v891 = vpop.f32.mrb[0].mxu0
        %892 = vdwg.mxu0
        %v893 = vld [vmem:[%s330 + $0x10] sm:$0xff]
        %v894 = vld [vmem:[%s330 + $0x38] sm:$0xff]
        %v895 = vadd.f32 %v893, %v588
        %v896 = vadd.f32 %v894, %v594
        %v897 = vadd.f32 %v895, %v808
        %v898 = vadd.f32 %v896, %v814
        %v899 = vld [vmem:[%s330 + $0x18] sm:$0xff]
        %v900 = vld [vmem:[%s330 + $0x40] sm:$0xff]
        %v901 = vadd.f32 %v899, %v590
        %v902 = vadd.f32 %v900, %v596
        %v903 = vadd.f32 %v901, %v810
        %v904 = vadd.f32 %v902, %v816
        %v905 = vmul.f32 %v897, 0.5
        %v906 = vmul.f32 %v898, 0.5
        %v907 = vtanh.pop %v905
        %v908 = vtanh.pop %v906
        %v909 = vadd.f32 %v907, 1.0
        %v910 = vadd.f32 %v908, 1.0
        %v911 = vmul.f32 %v909, 0.5
        %v912 = vmul.f32 %v910, 0.5
        %v913 = vmul.f32 %v903, 0.5
        %v914 = vmul.f32 %v904, 0.5
        %v915 = vtanh.pop %v913
        %v916 = vtanh.pop %v914
        %v917 = vadd.f32 %v915, 1.0
        %v918 = vadd.f32 %v916, 1.0
        %v919 = vmul.f32 %v917, 0.5
        %v920 = vmul.f32 %v918, 0.5
        %v921 = vld [vmem:[%s330 + $0x20] sm:$0xff]
        %v922 = vld [vmem:[%s330 + $0x48] sm:$0xff]
        %v923 = vadd.f32 %v921, %v885
        %v924 = vadd.f32 %v922, %v890
        %v926 = vlaneseq
        %v927 = vshrl.u32 %v926, 7
        %v928 = vsub.s32 0, %v927
        %v929 = vrot.slane %v361, %v928
        %v931 = vadd.f32 %v665, %v929
        %v932 = vadd.f32 %v670, %v929
        %v933 = vmul.f32 %v911, %v931
        %v934 = vmul.f32 %v912, %v932
        %v935 = vadd.f32 %v923, %v933
        %v936 = vadd.f32 %v924, %v934
        %v937 = vtanh.pop %v935
        %v938 = vtanh.pop %v936
        %v939 = vsub.f32 %v362, %v937
        %v940 = vsub.f32 %v363, %v938
        %v941 = vmul.f32 %v919, %v939
        %v942 = vmul.f32 %v920, %v940
        %v943 = vadd.f32 %v937, %v941
        %v944 = vadd.f32 %v938, %v942
        %945 = vst [vmem:[%s319] sm:$0xff] %v943
        %946 = vst [vmem:[%s319 + $0x8] sm:$0xff] %v944
        %v947 = vld [vmem:[%s3] sm:$0xff]
        %v948 = vld [vmem:[%s3 + $0x8] sm:$0xff]
        %v949 = vld [vmem:[%s3 + $0x10] sm:$0xff]
        %v950 = vld [vmem:[%s3 + $0x18] sm:$0xff]
        %v951 = vld [vmem:[%s3 + $0x20] sm:$0xff]
        %v952 = vld [vmem:[%s3 + $0x28] sm:$0xff]
        %v953 = vld [vmem:[%s3 + $0x30] sm:$0xff]
        %v954 = vld [vmem:[%s3 + $0x38] sm:$0xff]
        %v955 = vld [vmem:[%s3 + $0x40] sm:$0xff]
        %v956 = vld [vmem:[%s3 + $0x48] sm:$0xff]
        %v957 = vld [vmem:[%s3 + $0x50] sm:$0xff]
        %v958 = vld [vmem:[%s3 + $0x58] sm:$0xff]
        %v959 = vld [vmem:[%s3 + $0x60] sm:$0xff]
        %v960 = vld [vmem:[%s3 + $0x68] sm:$0xff]
        %v961 = vld [vmem:[%s3 + $0x70] sm:$0xff]
        %v962 = vld [vmem:[%s3 + $0x78] sm:$0xff]
        %v963 = vld [vmem:[%s3 + $0x80] sm:$0xff]
        %v964 = vld [vmem:[%s3 + $0x88] sm:$0xff]
        %v965 = vld [vmem:[%s3 + $0x90] sm:$0xff]
        %v966 = vld [vmem:[%s3 + $0x98] sm:$0xff]
        %v967 = vld [vmem:[%s3 + $0xa0] sm:$0xff]
        %v968 = vld [vmem:[%s3 + $0xa8] sm:$0xff]
        %v969 = vld [vmem:[%s3 + $0xb0] sm:$0xff]
        %v970 = vld [vmem:[%s3 + $0xb8] sm:$0xff]
        %v971 = vld [vmem:[%s3 + $0xc0] sm:$0xff]
        %v972 = vld [vmem:[%s3 + $0xc8] sm:$0xff]
        %v973 = vld [vmem:[%s3 + $0xd0] sm:$0xff]
        %v974 = vld [vmem:[%s3 + $0xd8] sm:$0xff]
        %v975 = vld [vmem:[%s3 + $0xe0] sm:$0xff]
        %v976 = vld [vmem:[%s3 + $0xe8] sm:$0xff]
        %v977 = vld [vmem:[%s3 + $0xf0] sm:$0xff]
        %v978 = vld [vmem:[%s3 + $0xf8] sm:$0xff]
        %v979 = vld [vmem:[%s3 + $0x100] sm:$0xff]
        %v980 = vld [vmem:[%s3 + $0x108] sm:$0xff]
        %v981 = vld [vmem:[%s3 + $0x110] sm:$0xff]
        %v982 = vld [vmem:[%s3 + $0x118] sm:$0xff]
        %v983 = vld [vmem:[%s3 + $0x120] sm:$0xff]
        %v984 = vld [vmem:[%s3 + $0x128] sm:$0xff]
        %v985 = vld [vmem:[%s3 + $0x130] sm:$0xff]
        %v986 = vld [vmem:[%s3 + $0x138] sm:$0xff]
        %v987 = vld [vmem:[%s3 + $0x140] sm:$0xff]
        %v988 = vld [vmem:[%s3 + $0x148] sm:$0xff]
        %v989 = vld [vmem:[%s3 + $0x150] sm:$0xff]
        %v990 = vld [vmem:[%s3 + $0x158] sm:$0xff]
        %v991 = vld [vmem:[%s3 + $0x160] sm:$0xff]
        %v992 = vld [vmem:[%s3 + $0x168] sm:$0xff]
        %v993 = vld [vmem:[%s3 + $0x170] sm:$0xff]
        %v994 = vld [vmem:[%s3 + $0x178] sm:$0xff]
        %v995 = vld [vmem:[%s3 + $0x180] sm:$0xff]
        %v996 = vld [vmem:[%s3 + $0x188] sm:$0xff]
        %v997 = vld [vmem:[%s3 + $0x190] sm:$0xff]
        %v998 = vld [vmem:[%s3 + $0x198] sm:$0xff]
        %v999 = vld [vmem:[%s3 + $0x1a0] sm:$0xff]
        %v1000 = vld [vmem:[%s3 + $0x1a8] sm:$0xff]
        %v1001 = vld [vmem:[%s3 + $0x1b0] sm:$0xff]
        %v1002 = vld [vmem:[%s3 + $0x1b8] sm:$0xff]
        %v1003 = vld [vmem:[%s3 + $0x1c0] sm:$0xff]
        %v1004 = vld [vmem:[%s3 + $0x1c8] sm:$0xff]
        %v1005 = vld [vmem:[%s3 + $0x1d0] sm:$0xff]
        %v1006 = vld [vmem:[%s3 + $0x1d8] sm:$0xff]
        %v1007 = vld [vmem:[%s3 + $0x1e0] sm:$0xff]
        %v1008 = vld [vmem:[%s3 + $0x1e8] sm:$0xff]
        %v1009 = vld [vmem:[%s3 + $0x1f0] sm:$0xff]
        %v1010 = vld [vmem:[%s3 + $0x1f8] sm:$0xff]
        %v1011 = vld [vmem:[%s3 + $0x200] sm:$0xff]
        %v1012 = vld [vmem:[%s3 + $0x208] sm:$0xff]
        %v1013 = vld [vmem:[%s3 + $0x210] sm:$0xff]
        %v1014 = vld [vmem:[%s3 + $0x218] sm:$0xff]
        %v1015 = vld [vmem:[%s3 + $0x220] sm:$0xff]
        %v1016 = vld [vmem:[%s3 + $0x228] sm:$0xff]
        %v1017 = vld [vmem:[%s3 + $0x230] sm:$0xff]
        %v1018 = vld [vmem:[%s3 + $0x238] sm:$0xff]
        %v1019 = vld [vmem:[%s3 + $0x240] sm:$0xff]
        %v1020 = vld [vmem:[%s3 + $0x248] sm:$0xff]
        %v1021 = vld [vmem:[%s3 + $0x250] sm:$0xff]
        %v1022 = vld [vmem:[%s3 + $0x258] sm:$0xff]
        %v1023 = vld [vmem:[%s3 + $0x260] sm:$0xff]
        %v1024 = vld [vmem:[%s3 + $0x268] sm:$0xff]
        %v1025 = vld [vmem:[%s3 + $0x270] sm:$0xff]
        %v1026 = vld [vmem:[%s3 + $0x278] sm:$0xff]
        %1027 = vmatprep.subr.mxu0 %v948
        %1028 = vmatpush1.msra.mxu0 %v947
        %1029 = vmatprep.subr.mxu0 %v953
        %1030 = vmatpush1.msra.mxu0 %v952
        %1031 = vmatprep.subr.mxu0 %v958
        %1032 = vmatpush1.msra.mxu0 %v957
        %1033 = vmatprep.subr.mxu0 %v963
        %1034 = vmatpush1.msra.mxu0 %v962
        %1035 = vmatprep.subr.mxu0 %v968
        %1036 = vmatpush1.msra.mxu0 %v967
        %1037 = vmatprep.subr.mxu0 %v973
        %1038 = vmatpush1.msra.mxu0 %v972
        %1039 = vmatprep.subr.mxu0 %v978
        %1040 = vmatpush1.msra.mxu0 %v977
        %1041 = vmatprep.subr.mxu0 %v983
        %1042 = vmatpush1.msra.mxu0 %v982
        %1043 = vmatprep.subr.mxu0 %v988
        %1044 = vmatpush1.msra.mxu0 %v987
        %1045 = vmatprep.subr.mxu0 %v993
        %1046 = vmatpush1.msra.mxu0 %v992
        %1047 = vmatprep.subr.mxu0 %v998
        %1048 = vmatpush1.msra.mxu0 %v997
        %1049 = vmatprep.subr.mxu0 %v1003
        %1050 = vmatpush1.msra.mxu0 %v1002
        %1051 = vmatprep.subr.mxu0 %v1008
        %1052 = vmatpush1.msra.mxu0 %v1007
        %1053 = vmatprep.subr.mxu0 %v1013
        %1054 = vmatpush1.msra.mxu0 %v1012
        %1055 = vmatprep.subr.mxu0 %v1018
        %1056 = vmatpush1.msra.mxu0 %v1017
        %1057 = vmatprep.subr.mxu0 %v1023
        %1058 = vmatpush1.msra.mxu0 %v1022
        %1059 = vmatprep.subr.mxu0 0.0
        %1060 = vmatpush1.msra.mxu0 0.0
        %1061 = vmatprep.subr.mxu0 0.0
        %1062 = vmatpush1.msra.mxu0 0.0
        %1063 = vmatprep.subr.mxu0 0.0
        %1064 = vmatpush1.msra.mxu0 0.0
        %1065 = vmatprep.subr.mxu0 0.0
        %1066 = vmatpush1.msra.mxu0 0.0
        %1067 = vmatprep.subr.mxu0 0.0
        %1068 = vmatpush1.msra.mxu0 0.0
        %1069 = vmatprep.subr.mxu0 0.0
        %1070 = vmatpush1.msra.mxu0 0.0
        %1071 = vmatprep.subr.mxu0 0.0
        %1072 = vmatpush1.msra.mxu0 0.0
        %1073 = vmatprep.subr.mxu0 0.0
        %1074 = vmatpush1.msra.mxu0 0.0
        %1075 = vmatprep.subr.mxu0 0.0
        %1076 = vmatpush1.msra.mxu0 0.0
        %1077 = vmatprep.subr.mxu0 0.0
        %1078 = vmatpush1.msra.mxu0 0.0
        %1079 = vmatprep.subr.mxu0 0.0
        %1080 = vmatpush1.msra.mxu0 0.0
        %1081 = vmatprep.subr.mxu0 0.0
        %1082 = vmatpush1.msra.mxu0 0.0
        %1083 = vmatprep.subr.mxu0 0.0
        %1084 = vmatpush1.msra.mxu0 0.0
        %1085 = vmatprep.subr.mxu0 0.0
        %1086 = vmatpush1.msra.mxu0 0.0
        %1087 = vmatprep.subr.mxu0 0.0
        %1088 = vmatpush1.msra.mxu0 0.0
        %1089 = vmatprep.subr.mxu0 0.0
        %1090 = vmatpush1.msra.mxu0 0.0
        %1091 = vmatprep.mubr.f32.mxu0 0.0
        %1092 = vmatmul.mubr.f32.gmra.mrb[0].mxu0 %v943
        %v1093 = vpop.f32.mrb[0].mxu0
        %v1094 = vadd.f32 0.0, %v1093
        %v1095 = vpop.f32.mrb[0].mxu0
        %v1096 = vadd.f32 0.0, %v1095
        %1097 = vmatprep.mubr.f32.mxu0 0.0
        %1098 = vmatmul.mubr.f32.gmra.mrb[0].mxu0 %v944
        %v1099 = vpop.f32.mrb[0].mxu0
        %v1100 = vadd.f32 0.0, %v1099
        %v1101 = vpop.f32.mrb[0].mxu0
        %v1102 = vadd.f32 0.0, %v1101
        %1103 = vdwg.mxu0
        %1104 = vmatprep.subr.mxu0 %v950
        %1105 = vmatpush1.msra.mxu0 %v949
        %1106 = vmatprep.subr.mxu0 %v955
        %1107 = vmatpush1.msra.mxu0 %v954
        %1108 = vmatprep.subr.mxu0 %v960
        %1109 = vmatpush1.msra.mxu0 %v959
        %1110 = vmatprep.subr.mxu0 %v965
        %1111 = vmatpush1.msra.mxu0 %v964
        %1112 = vmatprep.subr.mxu0 %v970
        %1113 = vmatpush1.msra.mxu0 %v969
        %1114 = vmatprep.subr.mxu0 %v975
        %1115 = vmatpush1.msra.mxu0 %v974
        %1116 = vmatprep.subr.mxu0 %v980
        %1117 = vmatpush1.msra.mxu0 %v979
        %1118 = vmatprep.subr.mxu0 %v985
        %1119 = vmatpush1.msra.mxu0 %v984
        %1120 = vmatprep.subr.mxu0 %v990
        %1121 = vmatpush1.msra.mxu0 %v989
        %1122 = vmatprep.subr.mxu0 %v995
        %1123 = vmatpush1.msra.mxu0 %v994
        %1124 = vmatprep.subr.mxu0 %v1000
        %1125 = vmatpush1.msra.mxu0 %v999
        %1126 = vmatprep.subr.mxu0 %v1005
        %1127 = vmatpush1.msra.mxu0 %v1004
        %1128 = vmatprep.subr.mxu0 %v1010
        %1129 = vmatpush1.msra.mxu0 %v1009
        %1130 = vmatprep.subr.mxu0 %v1015
        %1131 = vmatpush1.msra.mxu0 %v1014
        %1132 = vmatprep.subr.mxu0 %v1020
        %1133 = vmatpush1.msra.mxu0 %v1019
        %1134 = vmatprep.subr.mxu0 %v1025
        %1135 = vmatpush1.msra.mxu0 %v1024
        %1136 = vmatprep.subr.mxu0 0.0
        %1137 = vmatpush1.msra.mxu0 0.0
        %1138 = vmatprep.subr.mxu0 0.0
        %1139 = vmatpush1.msra.mxu0 0.0
        %1140 = vmatprep.subr.mxu0 0.0
        %1141 = vmatpush1.msra.mxu0 0.0
        %1142 = vmatprep.subr.mxu0 0.0
        %1143 = vmatpush1.msra.mxu0 0.0
        %1144 = vmatprep.subr.mxu0 0.0
        %1145 = vmatpush1.msra.mxu0 0.0
        %1146 = vmatprep.subr.mxu0 0.0
        %1147 = vmatpush1.msra.mxu0 0.0
        %1148 = vmatprep.subr.mxu0 0.0
        %1149 = vmatpush1.msra.mxu0 0.0
        %1150 = vmatprep.subr.mxu0 0.0
        %1151 = vmatpush1.msra.mxu0 0.0
        %1152 = vmatprep.subr.mxu0 0.0
        %1153 = vmatpush1.msra.mxu0 0.0
        %1154 = vmatprep.subr.mxu0 0.0
        %1155 = vmatpush1.msra.mxu0 0.0
        %1156 = vmatprep.subr.mxu0 0.0
        %1157 = vmatpush1.msra.mxu0 0.0
        %1158 = vmatprep.subr.mxu0 0.0
        %1159 = vmatpush1.msra.mxu0 0.0
        %1160 = vmatprep.subr.mxu0 0.0
        %1161 = vmatpush1.msra.mxu0 0.0
        %1162 = vmatprep.subr.mxu0 0.0
        %1163 = vmatpush1.msra.mxu0 0.0
        %1164 = vmatprep.subr.mxu0 0.0
        %1165 = vmatpush1.msra.mxu0 0.0
        %1166 = vmatprep.subr.mxu0 0.0
        %1167 = vmatpush1.msra.mxu0 0.0
        %1168 = vmatprep.mubr.f32.mxu0 0.0
        %1169 = vmatmul.mubr.f32.gmra.mrb[0].mxu0 %v943
        %v1170 = vpop.f32.mrb[0].mxu0
        %v1171 = vadd.f32 0.0, %v1170
        %v1172 = vpop.f32.mrb[0].mxu0
        %v1173 = vadd.f32 0.0, %v1172
        %1174 = vmatprep.mubr.f32.mxu0 0.0
        %1175 = vmatmul.mubr.f32.gmra.mrb[0].mxu0 %v944
        %v1176 = vpop.f32.mrb[0].mxu0
        %v1177 = vadd.f32 0.0, %v1176
        %v1178 = vpop.f32.mrb[0].mxu0
        %v1179 = vadd.f32 0.0, %v1178
        %1180 = vdwg.mxu0
        %1181 = vmatprep.subr.mxu0 0.0
        %1182 = vmatpush1.msra.mxu0 %v951
        %1183 = vmatprep.subr.mxu0 0.0
        %1184 = vmatpush1.msra.mxu0 %v956
        %1185 = vmatprep.subr.mxu0 0.0
        %1186 = vmatpush1.msra.mxu0 %v961
        %1187 = vmatprep.subr.mxu0 0.0
        %1188 = vmatpush1.msra.mxu0 %v966
        %1189 = vmatprep.subr.mxu0 0.0
        %1190 = vmatpush1.msra.mxu0 %v971
        %1191 = vmatprep.subr.mxu0 0.0
        %1192 = vmatpush1.msra.mxu0 %v976
        %1193 = vmatprep.subr.mxu0 0.0
        %1194 = vmatpush1.msra.mxu0 %v981
        %1195 = vmatprep.subr.mxu0 0.0
        %1196 = vmatpush1.msra.mxu0 %v986
        %1197 = vmatprep.subr.mxu0 0.0
        %1198 = vmatpush1.msra.mxu0 %v991
        %1199 = vmatprep.subr.mxu0 0.0
        %1200 = vmatpush1.msra.mxu0 %v996
        %1201 = vmatprep.subr.mxu0 0.0
        %1202 = vmatpush1.msra.mxu0 %v1001
        %1203 = vmatprep.subr.mxu0 0.0
        %1204 = vmatpush1.msra.mxu0 %v1006
        %1205 = vmatprep.subr.mxu0 0.0
        %1206 = vmatpush1.msra.mxu0 %v1011
        %1207 = vmatprep.subr.mxu0 0.0
        %1208 = vmatpush1.msra.mxu0 %v1016
        %1209 = vmatprep.subr.mxu0 0.0
        %1210 = vmatpush1.msra.mxu0 %v1021
        %1211 = vmatprep.subr.mxu0 0.0
        %1212 = vmatpush1.msra.mxu0 %v1026
        %1213 = vmatprep.subr.mxu0 0.0
        %1214 = vmatpush1.msra.mxu0 0.0
        %1215 = vmatprep.subr.mxu0 0.0
        %1216 = vmatpush1.msra.mxu0 0.0
        %1217 = vmatprep.subr.mxu0 0.0
        %1218 = vmatpush1.msra.mxu0 0.0
        %1219 = vmatprep.subr.mxu0 0.0
        %1220 = vmatpush1.msra.mxu0 0.0
        %1221 = vmatprep.subr.mxu0 0.0
        %1222 = vmatpush1.msra.mxu0 0.0
        %1223 = vmatprep.subr.mxu0 0.0
        %1224 = vmatpush1.msra.mxu0 0.0
        %1225 = vmatprep.subr.mxu0 0.0
        %1226 = vmatpush1.msra.mxu0 0.0
        %1227 = vmatprep.subr.mxu0 0.0
        %1228 = vmatpush1.msra.mxu0 0.0
        %1229 = vmatprep.subr.mxu0 0.0
        %1230 = vmatpush1.msra.mxu0 0.0
        %1231 = vmatprep.subr.mxu0 0.0
        %1232 = vmatpush1.msra.mxu0 0.0
        %1233 = vmatprep.subr.mxu0 0.0
        %1234 = vmatpush1.msra.mxu0 0.0
        %1235 = vmatprep.subr.mxu0 0.0
        %1236 = vmatpush1.msra.mxu0 0.0
        %1237 = vmatprep.subr.mxu0 0.0
        %1238 = vmatpush1.msra.mxu0 0.0
        %1239 = vmatprep.subr.mxu0 0.0
        %1240 = vmatpush1.msra.mxu0 0.0
        %1241 = vmatprep.subr.mxu0 0.0
        %1242 = vmatpush1.msra.mxu0 0.0
        %1243 = vmatprep.subr.mxu0 0.0
        %1244 = vmatpush1.msra.mxu0 0.0
        %1245 = vmatprep.mubr.f32.mxu0 0.0
        %1246 = vmatmul.mubr.f32.gmra.mrb[0].mxu0 %v943
        %v1247 = vpop.f32.mrb[0].mxu0
        %v1248 = vadd.f32 0.0, %v1247
        %v1249 = vpop.f32.mrb[0].mxu0
        %1250 = vmatprep.mubr.f32.mxu0 0.0
        %1251 = vmatmul.mubr.f32.gmra.mrb[0].mxu0 %v944
        %v1252 = vpop.f32.mrb[0].mxu0
        %v1253 = vadd.f32 0.0, %v1252
        %v1254 = vpop.f32.mrb[0].mxu0
        %1255 = vdwg.mxu0
        %s1256 = scalar_lea.vmem %s330, 80
        %v1257 = vld [vmem:[%s1256] sm:$0xff]
        %v1258 = vld [vmem:[%s1256 + $0x28] sm:$0xff]
        %v1259 = vadd.f32 %v1257, %v1094
        %v1260 = vadd.f32 %v1258, %v1100
        %v1261 = vld [vmem:[%s1256 + $0x8] sm:$0xff]
        %v1262 = vld [vmem:[%s1256 + $0x30] sm:$0xff]
        %v1263 = vadd.f32 %v1261, %v1096
        %v1264 = vadd.f32 %v1262, %v1102
        %v1265 = vmul.f32 %v1263, 0.5
        %v1266 = vmul.f32 %v1264, 0.5
        %v1267 = vmul.f32 %v1265, 1.442695
        %v1268 = vpow.pop %v1267
        %v1269 = vmul.f32 %v1266, 1.442695
        %v1270 = vpow.pop %v1269
        %s1271 = scalar_lea.vmem %s342, 16
        %v1272 = vld [vmem:[%s1271] sm:$0xff]
        %v1273 = vld [vmem:[%s1271 + $0x8] sm:$0xff]
        %v1274 = vmul.f32 %v1272, %v1268
        %v1275 = vmul.f32 %v1273, %v1270
        %v1276 = vadd.f32 %v1259, %v1274
        %v1277 = vadd.f32 %v1260, %v1275
        %v1278 = vld [vmem:[%s4] sm:$0xff]
        %v1279 = vld [vmem:[%s4 + $0x8] sm:$0xff]
        %v1280 = vld [vmem:[%s4 + $0x10] sm:$0xff]
        %v1281 = vld [vmem:[%s4 + $0x18] sm:$0xff]
        %v1282 = vld [vmem:[%s4 + $0x20] sm:$0xff]
        %v1283 = vld [vmem:[%s4 + $0x28] sm:$0xff]
        %v1284 = vld [vmem:[%s4 + $0x30] sm:$0xff]
        %v1285 = vld [vmem:[%s4 + $0x38] sm:$0xff]
        %v1286 = vld [vmem:[%s4 + $0x40] sm:$0xff]
        %v1287 = vld [vmem:[%s4 + $0x48] sm:$0xff]
        %v1288 = vld [vmem:[%s4 + $0x50] sm:$0xff]
        %v1289 = vld [vmem:[%s4 + $0x58] sm:$0xff]
        %v1290 = vld [vmem:[%s4 + $0x60] sm:$0xff]
        %v1291 = vld [vmem:[%s4 + $0x68] sm:$0xff]
        %v1292 = vld [vmem:[%s4 + $0x70] sm:$0xff]
        %v1293 = vld [vmem:[%s4 + $0x78] sm:$0xff]
        %v1294 = vld [vmem:[%s4 + $0x80] sm:$0xff]
        %v1295 = vld [vmem:[%s4 + $0x88] sm:$0xff]
        %v1296 = vld [vmem:[%s4 + $0x90] sm:$0xff]
        %v1297 = vld [vmem:[%s4 + $0x98] sm:$0xff]
        %v1298 = vld [vmem:[%s4 + $0xa0] sm:$0xff]
        %v1299 = vld [vmem:[%s4 + $0xa8] sm:$0xff]
        %v1300 = vld [vmem:[%s4 + $0xb0] sm:$0xff]
        %v1301 = vld [vmem:[%s4 + $0xb8] sm:$0xff]
        %v1302 = vld [vmem:[%s4 + $0xc0] sm:$0xff]
        %v1303 = vld [vmem:[%s4 + $0xc8] sm:$0xff]
        %v1304 = vld [vmem:[%s4 + $0xd0] sm:$0xff]
        %v1305 = vld [vmem:[%s4 + $0xd8] sm:$0xff]
        %v1306 = vld [vmem:[%s4 + $0xe0] sm:$0xff]
        %v1307 = vld [vmem:[%s4 + $0xe8] sm:$0xff]
        %v1308 = vld [vmem:[%s4 + $0xf0] sm:$0xff]
        %v1309 = vld [vmem:[%s4 + $0xf8] sm:$0xff]
        %v1310 = vld [vmem:[%s4 + $0x100] sm:$0xff]
        %v1311 = vld [vmem:[%s4 + $0x108] sm:$0xff]
        %v1312 = vld [vmem:[%s4 + $0x110] sm:$0xff]
        %v1313 = vld [vmem:[%s4 + $0x118] sm:$0xff]
        %v1314 = vld [vmem:[%s4 + $0x120] sm:$0xff]
        %v1315 = vld [vmem:[%s4 + $0x128] sm:$0xff]
        %v1316 = vld [vmem:[%s4 + $0x130] sm:$0xff]
        %v1317 = vld [vmem:[%s4 + $0x138] sm:$0xff]
        %v1318 = vld [vmem:[%s4 + $0x140] sm:$0xff]
        %v1319 = vld [vmem:[%s4 + $0x148] sm:$0xff]
        %v1320 = vld [vmem:[%s4 + $0x150] sm:$0xff]
        %v1321 = vld [vmem:[%s4 + $0x158] sm:$0xff]
        %v1322 = vld [vmem:[%s4 + $0x160] sm:$0xff]
        %v1323 = vld [vmem:[%s4 + $0x168] sm:$0xff]
        %v1324 = vld [vmem:[%s4 + $0x170] sm:$0xff]
        %v1325 = vld [vmem:[%s4 + $0x178] sm:$0xff]
        %1326 = vmatprep.subr.mxu0 %v1279
        %1327 = vmatpush1.msra.mxu0 %v1278
        %1328 = vmatprep.subr.mxu0 %v1282
        %1329 = vmatpush1.msra.mxu0 %v1281
        %1330 = vmatprep.subr.mxu0 %v1285
        %1331 = vmatpush1.msra.mxu0 %v1284
        %1332 = vmatprep.subr.mxu0 %v1288
        %1333 = vmatpush1.msra.mxu0 %v1287
        %1334 = vmatprep.subr.mxu0 %v1291
        %1335 = vmatpush1.msra.mxu0 %v1290
        %1336 = vmatprep.subr.mxu0 %v1294
        %1337 = vmatpush1.msra.mxu0 %v1293
        %1338 = vmatprep.subr.mxu0 %v1297
        %1339 = vmatpush1.msra.mxu0 %v1296
        %1340 = vmatprep.subr.mxu0 %v1300
        %1341 = vmatpush1.msra.mxu0 %v1299
        %1342 = vmatprep.subr.mxu0 %v1303
        %1343 = vmatpush1.msra.mxu0 %v1302
        %1344 = vmatprep.subr.mxu0 %v1306
        %1345 = vmatpush1.msra.mxu0 %v1305
        %1346 = vmatprep.subr.mxu0 %v1309
        %1347 = vmatpush1.msra.mxu0 %v1308
        %1348 = vmatprep.subr.mxu0 %v1312
        %1349 = vmatpush1.msra.mxu0 %v1311
        %1350 = vmatprep.subr.mxu0 %v1315
        %1351 = vmatpush1.msra.mxu0 %v1314
        %1352 = vmatprep.subr.mxu0 %v1318
        %1353 = vmatpush1.msra.mxu0 %v1317
        %1354 = vmatprep.subr.mxu0 %v1321
        %1355 = vmatpush1.msra.mxu0 %v1320
        %1356 = vmatprep.subr.mxu0 %v1324
        %1357 = vmatpush1.msra.mxu0 %v1323
        %1358 = vmatprep.subr.mxu0 0.0
        %1359 = vmatpush1.msra.mxu0 0.0
        %1360 = vmatprep.subr.mxu0 0.0
        %1361 = vmatpush1.msra.mxu0 0.0
        %1362 = vmatprep.subr.mxu0 0.0
        %1363 = vmatpush1.msra.mxu0 0.0
        %1364 = vmatprep.subr.mxu0 0.0
        %1365 = vmatpush1.msra.mxu0 0.0
        %1366 = vmatprep.subr.mxu0 0.0
        %1367 = vmatpush1.msra.mxu0 0.0
        %1368 = vmatprep.subr.mxu0 0.0
        %1369 = vmatpush1.msra.mxu0 0.0
        %1370 = vmatprep.subr.mxu0 0.0
        %1371 = vmatpush1.msra.mxu0 0.0
        %1372 = vmatprep.subr.mxu0 0.0
        %1373 = vmatpush1.msra.mxu0 0.0
        %1374 = vmatprep.subr.mxu0 0.0
        %1375 = vmatpush1.msra.mxu0 0.0
        %1376 = vmatprep.subr.mxu0 0.0
        %1377 = vmatpush1.msra.mxu0 0.0
        %1378 = vmatprep.subr.mxu0 0.0
        %1379 = vmatpush1.msra.mxu0 0.0
        %1380 = vmatprep.subr.mxu0 0.0
        %1381 = vmatpush1.msra.mxu0 0.0
        %1382 = vmatprep.subr.mxu0 0.0
        %1383 = vmatpush1.msra.mxu0 0.0
        %1384 = vmatprep.subr.mxu0 0.0
        %1385 = vmatpush1.msra.mxu0 0.0
        %1386 = vmatprep.subr.mxu0 0.0
        %1387 = vmatpush1.msra.mxu0 0.0
        %1388 = vmatprep.subr.mxu0 0.0
        %1389 = vmatpush1.msra.mxu0 0.0
        %1390 = vmatprep.mubr.f32.mxu0 0.0
        %1391 = vmatmul.mubr.f32.gmra.mrb[0].mxu0 %v1276
        %v1392 = vpop.f32.mrb[0].mxu0
        %v1393 = vadd.f32 0.0, %v1392
        %v1394 = vpop.f32.mrb[0].mxu0
        %v1395 = vadd.f32 0.0, %v1394
        %1396 = vmatprep.mubr.f32.mxu0 0.0
        %1397 = vmatmul.mubr.f32.gmra.mrb[0].mxu0 %v1277
        %v1398 = vpop.f32.mrb[0].mxu0
        %v1399 = vadd.f32 0.0, %v1398
        %v1400 = vpop.f32.mrb[0].mxu0
        %v1401 = vadd.f32 0.0, %v1400
        %1402 = vdwg.mxu0
        %1403 = vmatprep.subr.mxu0 0.0
        %1404 = vmatpush1.msra.mxu0 %v1280
        %1405 = vmatprep.subr.mxu0 0.0
        %1406 = vmatpush1.msra.mxu0 %v1283
        %1407 = vmatprep.subr.mxu0 0.0
        %1408 = vmatpush1.msra.mxu0 %v1286
        %1409 = vmatprep.subr.mxu0 0.0
        %1410 = vmatpush1.msra.mxu0 %v1289
        %1411 = vmatprep.subr.mxu0 0.0
        %1412 = vmatpush1.msra.mxu0 %v1292
        %1413 = vmatprep.subr.mxu0 0.0
        %1414 = vmatpush1.msra.mxu0 %v1295
        %1415 = vmatprep.subr.mxu0 0.0
        %1416 = vmatpush1.msra.mxu0 %v1298
        %1417 = vmatprep.subr.mxu0 0.0
        %1418 = vmatpush1.msra.mxu0 %v1301
        %1419 = vmatprep.subr.mxu0 0.0
        %1420 = vmatpush1.msra.mxu0 %v1304
        %1421 = vmatprep.subr.mxu0 0.0
        %1422 = vmatpush1.msra.mxu0 %v1307
        %1423 = vmatprep.subr.mxu0 0.0
        %1424 = vmatpush1.msra.mxu0 %v1310
        %1425 = vmatprep.subr.mxu0 0.0
        %1426 = vmatpush1.msra.mxu0 %v1313
        %1427 = vmatprep.subr.mxu0 0.0
        %1428 = vmatpush1.msra.mxu0 %v1316
        %1429 = vmatprep.subr.mxu0 0.0
        %1430 = vmatpush1.msra.mxu0 %v1319
        %1431 = vmatprep.subr.mxu0 0.0
        %1432 = vmatpush1.msra.mxu0 %v1322
        %1433 = vmatprep.subr.mxu0 0.0
        %1434 = vmatpush1.msra.mxu0 %v1325
        %1435 = vmatprep.subr.mxu0 0.0
        %1436 = vmatpush1.msra.mxu0 0.0
        %1437 = vmatprep.subr.mxu0 0.0
        %1438 = vmatpush1.msra.mxu0 0.0
        %1439 = vmatprep.subr.mxu0 0.0
        %1440 = vmatpush1.msra.mxu0 0.0
        %1441 = vmatprep.subr.mxu0 0.0
        %1442 = vmatpush1.msra.mxu0 0.0
        %1443 = vmatprep.subr.mxu0 0.0
        %1444 = vmatpush1.msra.mxu0 0.0
        %1445 = vmatprep.subr.mxu0 0.0
        %1446 = vmatpush1.msra.mxu0 0.0
        %1447 = vmatprep.subr.mxu0 0.0
        %1448 = vmatpush1.msra.mxu0 0.0
        %1449 = vmatprep.subr.mxu0 0.0
        %1450 = vmatpush1.msra.mxu0 0.0
        %1451 = vmatprep.subr.mxu0 0.0
        %1452 = vmatpush1.msra.mxu0 0.0
        %1453 = vmatprep.subr.mxu0 0.0
        %1454 = vmatpush1.msra.mxu0 0.0
        %1455 = vmatprep.subr.mxu0 0.0
        %1456 = vmatpush1.msra.mxu0 0.0
        %1457 = vmatprep.subr.mxu0 0.0
        %1458 = vmatpush1.msra.mxu0 0.0
        %1459 = vmatprep.subr.mxu0 0.0
        %1460 = vmatpush1.msra.mxu0 0.0
        %1461 = vmatprep.subr.mxu0 0.0
        %1462 = vmatpush1.msra.mxu0 0.0
        %1463 = vmatprep.subr.mxu0 0.0
        %1464 = vmatpush1.msra.mxu0 0.0
        %1465 = vmatprep.subr.mxu0 0.0
        %1466 = vmatpush1.msra.mxu0 0.0
        %1467 = vmatprep.mubr.f32.mxu0 0.0
        %1468 = vmatmul.mubr.f32.gmra.mrb[0].mxu0 %v1276
        %v1469 = vpop.f32.mrb[0].mxu0
        %v1470 = vadd.f32 0.0, %v1469
        %v1471 = vpop.f32.mrb[0].mxu0
        %1472 = vmatprep.mubr.f32.mxu0 0.0
        %1473 = vmatmul.mubr.f32.gmra.mrb[0].mxu0 %v1277
        %v1474 = vpop.f32.mrb[0].mxu0
        %v1475 = vadd.f32 0.0, %v1474
        %v1476 = vpop.f32.mrb[0].mxu0
        %1477 = vdwg.mxu0
        %v1478 = vld [vmem:[%s1256 + $0x10] sm:$0xff]
        %v1479 = vld [vmem:[%s1256 + $0x38] sm:$0xff]
        %v1480 = vadd.f32 %v1478, %v1171
        %v1481 = vadd.f32 %v1479, %v1177
        %v1482 = vadd.f32 %v1480, %v1393
        %v1483 = vadd.f32 %v1481, %v1399
        %v1484 = vld [vmem:[%s1256 + $0x18] sm:$0xff]
        %v1485 = vld [vmem:[%s1256 + $0x40] sm:$0xff]
        %v1486 = vadd.f32 %v1484, %v1173
        %v1487 = vadd.f32 %v1485, %v1179
        %v1488 = vadd.f32 %v1486, %v1395
        %v1489 = vadd.f32 %v1487, %v1401
        %v1490 = vmul.f32 %v1482, 0.5
        %v1491 = vmul.f32 %v1483, 0.5
        %v1492 = vtanh.pop %v1490
        %v1493 = vtanh.pop %v1491
        %v1494 = vadd.f32 %v1492, 1.0
        %v1495 = vadd.f32 %v1493, 1.0
        %v1496 = vmul.f32 %v1494, 0.5
        %v1497 = vmul.f32 %v1495, 0.5
        %v1498 = vmul.f32 %v1488, 0.5
        %v1499 = vmul.f32 %v1489, 0.5
        %v1500 = vtanh.pop %v1498
        %v1501 = vtanh.pop %v1499
        %v1502 = vadd.f32 %v1500, 1.0
        %v1503 = vadd.f32 %v1501, 1.0
        %v1504 = vmul.f32 %v1502, 0.5
        %v1505 = vmul.f32 %v1503, 0.5
        %v1506 = vld [vmem:[%s1256 + $0x20] sm:$0xff]
        %v1507 = vld [vmem:[%s1256 + $0x48] sm:$0xff]
        %v1508 = vadd.f32 %v1506, %v1470
        %v1509 = vadd.f32 %v1507, %v1475
        %v1510 = vadd.f32 %v1248, %v929
        %v1511 = vadd.f32 %v1253, %v929
        %v1512 = vmul.f32 %v1496, %v1510
        %v1513 = vmul.f32 %v1497, %v1511
        %v1514 = vadd.f32 %v1508, %v1512
        %v1515 = vadd.f32 %v1509, %v1513
        %v1516 = vtanh.pop %v1514
        %v1517 = vtanh.pop %v1515
        %v1518 = vsub.f32 %v943, %v1516
        %v1519 = vsub.f32 %v944, %v1517
        %v1520 = vmul.f32 %v1504, %v1518
        %v1521 = vmul.f32 %v1505, %v1519
        %v1522 = vadd.f32 %v1516, %v1520
        %v1523 = vadd.f32 %v1517, %v1521
        %s1524 = scalar_lea.vmem %s319, 16 [#allocation3]
        %1525 = vst [vmem:[%s1524] sm:$0xff] %v1522
        %1526 = vst [vmem:[%s1524 + $0x8] sm:$0xff] %v1523
        %v1527 = vld [vmem:[%s3] sm:$0xff]
        %v1528 = vld [vmem:[%s3 + $0x8] sm:$0xff]
        %v1529 = vld [vmem:[%s3 + $0x10] sm:$0xff]
        %v1530 = vld [vmem:[%s3 + $0x18] sm:$0xff]
        %v1531 = vld [vmem:[%s3 + $0x20] sm:$0xff]
        %v1532 = vld [vmem:[%s3 + $0x28] sm:$0xff]
        %v1533 = vld [vmem:[%s3 + $0x30] sm:$0xff]
        %v1534 = vld [vmem:[%s3 + $0x38] sm:$0xff]
        %v1535 = vld [vmem:[%s3 + $0x40] sm:$0xff]
        %v1536 = vld [vmem:[%s3 + $0x48] sm:$0xff]
        %v1537 = vld [vmem:[%s3 + $0x50] sm:$0xff]
        %v1538 = vld [vmem:[%s3 + $0x58] sm:$0xff]
        %v1539 = vld [vmem:[%s3 + $0x60] sm:$0xff]
        %v1540 = vld [vmem:[%s3 + $0x68] sm:$0xff]
        %v1541 = vld [vmem:[%s3 + $0x70] sm:$0xff]
        %v1542 = vld [vmem:[%s3 + $0x78] sm:$0xff]
        %v1543 = vld [vmem:[%s3 + $0x80] sm:$0xff]
        %v1544 = vld [vmem:[%s3 + $0x88] sm:$0xff]
        %v1545 = vld [vmem:[%s3 + $0x90] sm:$0xff]
        %v1546 = vld [vmem:[%s3 + $0x98] sm:$0xff]
        %v1547 = vld [vmem:[%s3 + $0xa0] sm:$0xff]
        %v1548 = vld [vmem:[%s3 + $0xa8] sm:$0xff]
        %v1549 = vld [vmem:[%s3 + $0xb0] sm:$0xff]
        %v1550 = vld [vmem:[%s3 + $0xb8] sm:$0xff]
        %v1551 = vld [vmem:[%s3 + $0xc0] sm:$0xff]
        %v1552 = vld [vmem:[%s3 + $0xc8] sm:$0xff]
        %v1553 = vld [vmem:[%s3 + $0xd0] sm:$0xff]
        %v1554 = vld [vmem:[%s3 + $0xd8] sm:$0xff]
        %v1555 = vld [vmem:[%s3 + $0xe0] sm:$0xff]
        %v1556 = vld [vmem:[%s3 + $0xe8] sm:$0xff]
        %v1557 = vld [vmem:[%s3 + $0xf0] sm:$0xff]
        %v1558 = vld [vmem:[%s3 + $0xf8] sm:$0xff]
        %v1559 = vld [vmem:[%s3 + $0x100] sm:$0xff]
        %v1560 = vld [vmem:[%s3 + $0x108] sm:$0xff]
        %v1561 = vld [vmem:[%s3 + $0x110] sm:$0xff]
        %v1562 = vld [vmem:[%s3 + $0x118] sm:$0xff]
        %v1563 = vld [vmem:[%s3 + $0x120] sm:$0xff]
        %v1564 = vld [vmem:[%s3 + $0x128] sm:$0xff]
        %v1565 = vld [vmem:[%s3 + $0x130] sm:$0xff]
        %v1566 = vld [vmem:[%s3 + $0x138] sm:$0xff]
        %v1567 = vld [vmem:[%s3 + $0x140] sm:$0xff]
        %v1568 = vld [vmem:[%s3 + $0x148] sm:$0xff]
        %v1569 = vld [vmem:[%s3 + $0x150] sm:$0xff]
        %v1570 = vld [vmem:[%s3 + $0x158] sm:$0xff]
        %v1571 = vld [vmem:[%s3 + $0x160] sm:$0xff]
        %v1572 = vld [vmem:[%s3 + $0x168] sm:$0xff]
        %v1573 = vld [vmem:[%s3 + $0x170] sm:$0xff]
        %v1574 = vld [vmem:[%s3 + $0x178] sm:$0xff]
        %v1575 = vld [vmem:[%s3 + $0x180] sm:$0xff]
        %v1576 = vld [vmem:[%s3 + $0x188] sm:$0xff]
        %v1577 = vld [vmem:[%s3 + $0x190] sm:$0xff]
        %v1578 = vld [vmem:[%s3 + $0x198] sm:$0xff]
        %v1579 = vld [vmem:[%s3 + $0x1a0] sm:$0xff]
        %v1580 = vld [vmem:[%s3 + $0x1a8] sm:$0xff]
        %v1581 = vld [vmem:[%s3 + $0x1b0] sm:$0xff]
        %v1582 = vld [vmem:[%s3 + $0x1b8] sm:$0xff]
        %v1583 = vld [vmem:[%s3 + $0x1c0] sm:$0xff]
        %v1584 = vld [vmem:[%s3 + $0x1c8] sm:$0xff]
        %v1585 = vld [vmem:[%s3 + $0x1d0] sm:$0xff]
        %v1586 = vld [vmem:[%s3 + $0x1d8] sm:$0xff]
        %v1587 = vld [vmem:[%s3 + $0x1e0] sm:$0xff]
        %v1588 = vld [vmem:[%s3 + $0x1e8] sm:$0xff]
        %v1589 = vld [vmem:[%s3 + $0x1f0] sm:$0xff]
        %v1590 = vld [vmem:[%s3 + $0x1f8] sm:$0xff]
        %v1591 = vld [vmem:[%s3 + $0x200] sm:$0xff]
        %v1592 = vld [vmem:[%s3 + $0x208] sm:$0xff]
        %v1593 = vld [vmem:[%s3 + $0x210] sm:$0xff]
        %v1594 = vld [vmem:[%s3 + $0x218] sm:$0xff]
        %v1595 = vld [vmem:[%s3 + $0x220] sm:$0xff]
        %v1596 = vld [vmem:[%s3 + $0x228] sm:$0xff]
        %v1597 = vld [vmem:[%s3 + $0x230] sm:$0xff]
        %v1598 = vld [vmem:[%s3 + $0x238] sm:$0xff]
        %v1599 = vld [vmem:[%s3 + $0x240] sm:$0xff]
        %v1600 = vld [vmem:[%s3 + $0x248] sm:$0xff]
        %v1601 = vld [vmem:[%s3 + $0x250] sm:$0xff]
        %v1602 = vld [vmem:[%s3 + $0x258] sm:$0xff]
        %v1603 = vld [vmem:[%s3 + $0x260] sm:$0xff]
        %v1604 = vld [vmem:[%s3 + $0x268] sm:$0xff]
        %v1605 = vld [vmem:[%s3 + $0x270] sm:$0xff]
        %v1606 = vld [vmem:[%s3 + $0x278] sm:$0xff]
        %1607 = vmatprep.subr.mxu0 %v1528
        %1608 = vmatpush1.msra.mxu0 %v1527
        %1609 = vmatprep.subr.mxu0 %v1533
        %1610 = vmatpush1.msra.mxu0 %v1532
        %1611 = vmatprep.subr.mxu0 %v1538
        %1612 = vmatpush1.msra.mxu0 %v1537
        %1613 = vmatprep.subr.mxu0 %v1543
        %1614 = vmatpush1.msra.mxu0 %v1542
        %1615 = vmatprep.subr.mxu0 %v1548
        %1616 = vmatpush1.msra.mxu0 %v1547
        %1617 = vmatprep.subr.mxu0 %v1553
        %1618 = vmatpush1.msra.mxu0 %v1552
        %1619 = vmatprep.subr.mxu0 %v1558
        %1620 = vmatpush1.msra.mxu0 %v1557
        %1621 = vmatprep.subr.mxu0 %v1563
        %1622 = vmatpush1.msra.mxu0 %v1562
        %1623 = vmatprep.subr.mxu0 %v1568
        %1624 = vmatpush1.msra.mxu0 %v1567
        %1625 = vmatprep.subr.mxu0 %v1573
        %1626 = vmatpush1.msra.mxu0 %v1572
        %1627 = vmatprep.subr.mxu0 %v1578
        %1628 = vmatpush1.msra.mxu0 %v1577
        %1629 = vmatprep.subr.mxu0 %v1583
        %1630 = vmatpush1.msra.mxu0 %v1582
        %1631 = vmatprep.subr.mxu0 %v1588
        %1632 = vmatpush1.msra.mxu0 %v1587
        %1633 = vmatprep.subr.mxu0 %v1593
        %1634 = vmatpush1.msra.mxu0 %v1592
        %1635 = vmatprep.subr.mxu0 %v1598
        %1636 = vmatpush1.msra.mxu0 %v1597
        %1637 = vmatprep.subr.mxu0 %v1603
        %1638 = vmatpush1.msra.mxu0 %v1602
        %1639 = vmatprep.subr.mxu0 0.0
        %1640 = vmatpush1.msra.mxu0 0.0
        %1641 = vmatprep.subr.mxu0 0.0
        %1642 = vmatpush1.msra.mxu0 0.0
        %1643 = vmatprep.subr.mxu0 0.0
        %1644 = vmatpush1.msra.mxu0 0.0
        %1645 = vmatprep.subr.mxu0 0.0
        %1646 = vmatpush1.msra.mxu0 0.0
        %1647 = vmatprep.subr.mxu0 0.0
        %1648 = vmatpush1.msra.mxu0 0.0
        %1649 = vmatprep.subr.mxu0 0.0
        %1650 = vmatpush1.msra.mxu0 0.0
        %1651 = vmatprep.subr.mxu0 0.0
        %1652 = vmatpush1.msra.mxu0 0.0
        %1653 = vmatprep.subr.mxu0 0.0
        %1654 = vmatpush1.msra.mxu0 0.0
        %1655 = vmatprep.subr.mxu0 0.0
        %1656 = vmatpush1.msra.mxu0 0.0
        %1657 = vmatprep.subr.mxu0 0.0
        %1658 = vmatpush1.msra.mxu0 0.0
        %1659 = vmatprep.subr.mxu0 0.0
        %1660 = vmatpush1.msra.mxu0 0.0
        %1661 = vmatprep.subr.mxu0 0.0
        %1662 = vmatpush1.msra.mxu0 0.0
        %1663 = vmatprep.subr.mxu0 0.0
        %1664 = vmatpush1.msra.mxu0 0.0
        %1665 = vmatprep.subr.mxu0 0.0
        %1666 = vmatpush1.msra.mxu0 0.0
        %1667 = vmatprep.subr.mxu0 0.0
        %1668 = vmatpush1.msra.mxu0 0.0
        %1669 = vmatprep.subr.mxu0 0.0
        %1670 = vmatpush1.msra.mxu0 0.0
        %1671 = vmatprep.mubr.f32.mxu0 0.0
        %1672 = vmatmul.mubr.f32.gmra.mrb[0].mxu0 %v1522
        %v1673 = vpop.f32.mrb[0].mxu0
        %v1674 = vadd.f32 0.0, %v1673
        %v1675 = vpop.f32.mrb[0].mxu0
        %v1676 = vadd.f32 0.0, %v1675
        %1677 = vmatprep.mubr.f32.mxu0 0.0
        %1678 = vmatmul.mubr.f32.gmra.mrb[0].mxu0 %v1523
        %v1679 = vpop.f32.mrb[0].mxu0
        %v1680 = vadd.f32 0.0, %v1679
        %v1681 = vpop.f32.mrb[0].mxu0
        %v1682 = vadd.f32 0.0, %v1681
        %1683 = vdwg.mxu0
        %1684 = vmatprep.subr.mxu0 %v1530
        %1685 = vmatpush1.msra.mxu0 %v1529
        %1686 = vmatprep.subr.mxu0 %v1535
        %1687 = vmatpush1.msra.mxu0 %v1534
        %1688 = vmatprep.subr.mxu0 %v1540
        %1689 = vmatpush1.msra.mxu0 %v1539
        %1690 = vmatprep.subr.mxu0 %v1545
        %1691 = vmatpush1.msra.mxu0 %v1544
        %1692 = vmatprep.subr.mxu0 %v1550
        %1693 = vmatpush1.msra.mxu0 %v1549
        %1694 = vmatprep.subr.mxu0 %v1555
        %1695 = vmatpush1.msra.mxu0 %v1554
        %1696 = vmatprep.subr.mxu0 %v1560
        %1697 = vmatpush1.msra.mxu0 %v1559
        %1698 = vmatprep.subr.mxu0 %v1565
        %1699 = vmatpush1.msra.mxu0 %v1564
        %1700 = vmatprep.subr.mxu0 %v1570
        %1701 = vmatpush1.msra.mxu0 %v1569
        %1702 = vmatprep.subr.mxu0 %v1575
        %1703 = vmatpush1.msra.mxu0 %v1574
        %1704 = vmatprep.subr.mxu0 %v1580
        %1705 = vmatpush1.msra.mxu0 %v1579
        %1706 = vmatprep.subr.mxu0 %v1585
        %1707 = vmatpush1.msra.mxu0 %v1584
        %1708 = vmatprep.subr.mxu0 %v1590
        %1709 = vmatpush1.msra.mxu0 %v1589
        %1710 = vmatprep.subr.mxu0 %v1595
        %1711 = vmatpush1.msra.mxu0 %v1594
        %1712 = vmatprep.subr.mxu0 %v1600
        %1713 = vmatpush1.msra.mxu0 %v1599
        %1714 = vmatprep.subr.mxu0 %v1605
        %1715 = vmatpush1.msra.mxu0 %v1604
        %1716 = vmatprep.subr.mxu0 0.0
        %1717 = vmatpush1.msra.mxu0 0.0
        %1718 = vmatprep.subr.mxu0 0.0
        %1719 = vmatpush1.msra.mxu0 0.0
        %1720 = vmatprep.subr.mxu0 0.0
        %1721 = vmatpush1.msra.mxu0 0.0
        %1722 = vmatprep.subr.mxu0 0.0
        %1723 = vmatpush1.msra.mxu0 0.0
        %1724 = vmatprep.subr.mxu0 0.0
        %1725 = vmatpush1.msra.mxu0 0.0
        %1726 = vmatprep.subr.mxu0 0.0
        %1727 = vmatpush1.msra.mxu0 0.0
        %1728 = vmatprep.subr.mxu0 0.0
        %1729 = vmatpush1.msra.mxu0 0.0
        %1730 = vmatprep.subr.mxu0 0.0
        %1731 = vmatpush1.msra.mxu0 0.0
        %1732 = vmatprep.subr.mxu0 0.0
        %1733 = vmatpush1.msra.mxu0 0.0
        %1734 = vmatprep.subr.mxu0 0.0
        %1735 = vmatpush1.msra.mxu0 0.0
        %1736 = vmatprep.subr.mxu0 0.0
        %1737 = vmatpush1.msra.mxu0 0.0
        %1738 = vmatprep.subr.mxu0 0.0
        %1739 = vmatpush1.msra.mxu0 0.0
        %1740 = vmatprep.subr.mxu0 0.0
        %1741 = vmatpush1.msra.mxu0 0.0
        %1742 = vmatprep.subr.mxu0 0.0
        %1743 = vmatpush1.msra.mxu0 0.0
        %1744 = vmatprep.subr.mxu0 0.0
        %1745 = vmatpush1.msra.mxu0 0.0
        %1746 = vmatprep.subr.mxu0 0.0
        %1747 = vmatpush1.msra.mxu0 0.0
        %1748 = vmatprep.mubr.f32.mxu0 0.0
        %1749 = vmatmul.mubr.f32.gmra.mrb[0].mxu0 %v1522
        %v1750 = vpop.f32.mrb[0].mxu0
        %v1751 = vadd.f32 0.0, %v1750
        %v1752 = vpop.f32.mrb[0].mxu0
        %v1753 = vadd.f32 0.0, %v1752
        %1754 = vmatprep.mubr.f32.mxu0 0.0
        %1755 = vmatmul.mubr.f32.gmra.mrb[0].mxu0 %v1523
        %v1756 = vpop.f32.mrb[0].mxu0
        %v1757 = vadd.f32 0.0, %v1756
        %v1758 = vpop.f32.mrb[0].mxu0
        %v1759 = vadd.f32 0.0, %v1758
        %1760 = vdwg.mxu0
        %1761 = vmatprep.subr.mxu0 0.0
        %1762 = vmatpush1.msra.mxu0 %v1531
        %1763 = vmatprep.subr.mxu0 0.0
        %1764 = vmatpush1.msra.mxu0 %v1536
        %1765 = vmatprep.subr.mxu0 0.0
        %1766 = vmatpush1.msra.mxu0 %v1541
        %1767 = vmatprep.subr.mxu0 0.0
        %1768 = vmatpush1.msra.mxu0 %v1546
        %1769 = vmatprep.subr.mxu0 0.0
        %1770 = vmatpush1.msra.mxu0 %v1551
        %1771 = vmatprep.subr.mxu0 0.0
        %1772 = vmatpush1.msra.mxu0 %v1556
        %1773 = vmatprep.subr.mxu0 0.0
        %1774 = vmatpush1.msra.mxu0 %v1561
        %1775 = vmatprep.subr.mxu0 0.0
        %1776 = vmatpush1.msra.mxu0 %v1566
        %1777 = vmatprep.subr.mxu0 0.0
        %1778 = vmatpush1.msra.mxu0 %v1571
        %1779 = vmatprep.subr.mxu0 0.0
        %1780 = vmatpush1.msra.mxu0 %v1576
        %1781 = vmatprep.subr.mxu0 0.0
        %1782 = vmatpush1.msra.mxu0 %v1581
        %1783 = vmatprep.subr.mxu0 0.0
        %1784 = vmatpush1.msra.mxu0 %v1586
        %1785 = vmatprep.subr.mxu0 0.0
        %1786 = vmatpush1.msra.mxu0 %v1591
        %1787 = vmatprep.subr.mxu0 0.0
        %1788 = vmatpush1.msra.mxu0 %v1596
        %1789 = vmatprep.subr.mxu0 0.0
        %1790 = vmatpush1.msra.mxu0 %v1601
        %1791 = vmatprep.subr.mxu0 0.0
        %1792 = vmatpush1.msra.mxu0 %v1606
        %1793 = vmatprep.subr.mxu0 0.0
        %1794 = vmatpush1.msra.mxu0 0.0
        %1795 = vmatprep.subr.mxu0 0.0
        %1796 = vmatpush1.msra.mxu0 0.0
        %1797 = vmatprep.subr.mxu0 0.0
        %1798 = vmatpush1.msra.mxu0 0.0
        %1799 = vmatprep.subr.mxu0 0.0
        %1800 = vmatpush1.msra.mxu0 0.0
        %1801 = vmatprep.subr.mxu0 0.0
        %1802 = vmatpush1.msra.mxu0 0.0
        %1803 = vmatprep.subr.mxu0 0.0
        %1804 = vmatpush1.msra.mxu0 0.0
        %1805 = vmatprep.subr.mxu0 0.0
        %1806 = vmatpush1.msra.mxu0 0.0
        %1807 = vmatprep.subr.mxu0 0.0
        %1808 = vmatpush1.msra.mxu0 0.0
        %1809 = vmatprep.subr.mxu0 0.0
        %1810 = vmatpush1.msra.mxu0 0.0
        %1811 = vmatprep.subr.mxu0 0.0
        %1812 = vmatpush1.msra.mxu0 0.0
        %1813 = vmatprep.subr.mxu0 0.0
        %1814 = vmatpush1.msra.mxu0 0.0
        %1815 = vmatprep.subr.mxu0 0.0
        %1816 = vmatpush1.msra.mxu0 0.0
        %1817 = vmatprep.subr.mxu0 0.0
        %1818 = vmatpush1.msra.mxu0 0.0
        %1819 = vmatprep.subr.mxu0 0.0
        %1820 = vmatpush1.msra.mxu0 0.0
        %1821 = vmatprep.subr.mxu0 0.0
        %1822 = vmatpush1.msra.mxu0 0.0
        %1823 = vmatprep.subr.mxu0 0.0
        %1824 = vmatpush1.msra.mxu0 0.0
        %1825 = vmatprep.mubr.f32.mxu0 0.0
        %1826 = vmatmul.mubr.f32.gmra.mrb[0].mxu0 %v1522
        %v1827 = vpop.f32.mrb[0].mxu0
        %v1828 = vadd.f32 0.0, %v1827
        %v1829 = vpop.f32.mrb[0].mxu0
        %1830 = vmatprep.mubr.f32.mxu0 0.0
        %1831 = vmatmul.mubr.f32.gmra.mrb[0].mxu0 %v1523
        %v1832 = vpop.f32.mrb[0].mxu0
        %v1833 = vadd.f32 0.0, %v1832
        %v1834 = vpop.f32.mrb[0].mxu0
        %1835 = vdwg.mxu0
        %s1836 = scalar_lea.vmem %s330, 160
        %v1837 = vld [vmem:[%s1836] sm:$0xff]
        %v1838 = vld [vmem:[%s1836 + $0x28] sm:$0xff]
        %v1839 = vadd.f32 %v1837, %v1674
        %v1840 = vadd.f32 %v1838, %v1680
        %v1841 = vld [vmem:[%s1836 + $0x8] sm:$0xff]
        %v1842 = vld [vmem:[%s1836 + $0x30] sm:$0xff]
        %v1843 = vadd.f32 %v1841, %v1676
        %v1844 = vadd.f32 %v1842, %v1682
        %v1845 = vmul.f32 %v1843, 0.5
        %v1846 = vmul.f32 %v1844, 0.5
        %v1847 = vmul.f32 %v1845, 1.442695
        %v1848 = vpow.pop %v1847
        %v1849 = vmul.f32 %v1846, 1.442695
        %v1850 = vpow.pop %v1849
        %s1851 = scalar_lea.vmem %s342, 32
        %v1852 = vld [vmem:[%s1851] sm:$0xff]
        %v1853 = vld [vmem:[%s1851 + $0x8] sm:$0xff]
        %v1854 = vmul.f32 %v1852, %v1848
        %v1855 = vmul.f32 %v1853, %v1850
        %v1856 = vadd.f32 %v1839, %v1854
        %v1857 = vadd.f32 %v1840, %v1855
        %v1858 = vld [vmem:[%s4] sm:$0xff]
        %v1859 = vld [vmem:[%s4 + $0x8] sm:$0xff]
        %v1860 = vld [vmem:[%s4 + $0x10] sm:$0xff]
        %v1861 = vld [vmem:[%s4 + $0x18] sm:$0xff]
        %v1862 = vld [vmem:[%s4 + $0x20] sm:$0xff]
        %v1863 = vld [vmem:[%s4 + $0x28] sm:$0xff]
        %v1864 = vld [vmem:[%s4 + $0x30] sm:$0xff]
        %v1865 = vld [vmem:[%s4 + $0x38] sm:$0xff]
        %v1866 = vld [vmem:[%s4 + $0x40] sm:$0xff]
        %v1867 = vld [vmem:[%s4 + $0x48] sm:$0xff]
        %v1868 = vld [vmem:[%s4 + $0x50] sm:$0xff]
        %v1869 = vld [vmem:[%s4 + $0x58] sm:$0xff]
        %v1870 = vld [vmem:[%s4 + $0x60] sm:$0xff]
        %v1871 = vld [vmem:[%s4 + $0x68] sm:$0xff]
        %v1872 = vld [vmem:[%s4 + $0x70] sm:$0xff]
        %v1873 = vld [vmem:[%s4 + $0x78] sm:$0xff]
        %v1874 = vld [vmem:[%s4 + $0x80] sm:$0xff]
        %v1875 = vld [vmem:[%s4 + $0x88] sm:$0xff]
        %v1876 = vld [vmem:[%s4 + $0x90] sm:$0xff]
        %v1877 = vld [vmem:[%s4 + $0x98] sm:$0xff]
        %v1878 = vld [vmem:[%s4 + $0xa0] sm:$0xff]
        %v1879 = vld [vmem:[%s4 + $0xa8] sm:$0xff]
        %v1880 = vld [vmem:[%s4 + $0xb0] sm:$0xff]
        %v1881 = vld [vmem:[%s4 + $0xb8] sm:$0xff]
        %v1882 = vld [vmem:[%s4 + $0xc0] sm:$0xff]
        %v1883 = vld [vmem:[%s4 + $0xc8] sm:$0xff]
        %v1884 = vld [vmem:[%s4 + $0xd0] sm:$0xff]
        %v1885 = vld [vmem:[%s4 + $0xd8] sm:$0xff]
        %v1886 = vld [vmem:[%s4 + $0xe0] sm:$0xff]
        %v1887 = vld [vmem:[%s4 + $0xe8] sm:$0xff]
        %v1888 = vld [vmem:[%s4 + $0xf0] sm:$0xff]
        %v1889 = vld [vmem:[%s4 + $0xf8] sm:$0xff]
        %v1890 = vld [vmem:[%s4 + $0x100] sm:$0xff]
        %v1891 = vld [vmem:[%s4 + $0x108] sm:$0xff]
        %v1892 = vld [vmem:[%s4 + $0x110] sm:$0xff]
        %v1893 = vld [vmem:[%s4 + $0x118] sm:$0xff]
        %v1894 = vld [vmem:[%s4 + $0x120] sm:$0xff]
        %v1895 = vld [vmem:[%s4 + $0x128] sm:$0xff]
        %v1896 = vld [vmem:[%s4 + $0x130] sm:$0xff]
        %v1897 = vld [vmem:[%s4 + $0x138] sm:$0xff]
        %v1898 = vld [vmem:[%s4 + $0x140] sm:$0xff]
        %v1899 = vld [vmem:[%s4 + $0x148] sm:$0xff]
        %v1900 = vld [vmem:[%s4 + $0x150] sm:$0xff]
        %v1901 = vld [vmem:[%s4 + $0x158] sm:$0xff]
        %v1902 = vld [vmem:[%s4 + $0x160] sm:$0xff]
        %v1903 = vld [vmem:[%s4 + $0x168] sm:$0xff]
        %v1904 = vld [vmem:[%s4 + $0x170] sm:$0xff]
        %v1905 = vld [vmem:[%s4 + $0x178] sm:$0xff]
        %1906 = vmatprep.subr.mxu0 %v1859
        %1907 = vmatpush1.msra.mxu0 %v1858
        %1908 = vmatprep.subr.mxu0 %v1862
        %1909 = vmatpush1.msra.mxu0 %v1861
        %1910 = vmatprep.subr.mxu0 %v1865
        %1911 = vmatpush1.msra.mxu0 %v1864
        %1912 = vmatprep.subr.mxu0 %v1868
        %1913 = vmatpush1.msra.mxu0 %v1867
        %1914 = vmatprep.subr.mxu0 %v1871
        %1915 = vmatpush1.msra.mxu0 %v1870
        %1916 = vmatprep.subr.mxu0 %v1874
        %1917 = vmatpush1.msra.mxu0 %v1873
        %1918 = vmatprep.subr.mxu0 %v1877
        %1919 = vmatpush1.msra.mxu0 %v1876
        %1920 = vmatprep.subr.mxu0 %v1880
        %1921 = vmatpush1.msra.mxu0 %v1879
        %1922 = vmatprep.subr.mxu0 %v1883
        %1923 = vmatpush1.msra.mxu0 %v1882
        %1924 = vmatprep.subr.mxu0 %v1886
        %1925 = vmatpush1.msra.mxu0 %v1885
        %1926 = vmatprep.subr.mxu0 %v1889
        %1927 = vmatpush1.msra.mxu0 %v1888
        %1928 = vmatprep.subr.mxu0 %v1892
        %1929 = vmatpush1.msra.mxu0 %v1891
        %1930 = vmatprep.subr.mxu0 %v1895
        %1931 = vmatpush1.msra.mxu0 %v1894
        %1932 = vmatprep.subr.mxu0 %v1898
        %1933 = vmatpush1.msra.mxu0 %v1897
        %1934 = vmatprep.subr.mxu0 %v1901
        %1935 = vmatpush1.msra.mxu0 %v1900
        %1936 = vmatprep.subr.mxu0 %v1904
        %1937 = vmatpush1.msra.mxu0 %v1903
        %1938 = vmatprep.subr.mxu0 0.0
        %1939 = vmatpush1.msra.mxu0 0.0
        %1940 = vmatprep.subr.mxu0 0.0
        %1941 = vmatpush1.msra.mxu0 0.0
        %1942 = vmatprep.subr.mxu0 0.0
        %1943 = vmatpush1.msra.mxu0 0.0
        %1944 = vmatprep.subr.mxu0 0.0
        %1945 = vmatpush1.msra.mxu0 0.0
        %1946 = vmatprep.subr.mxu0 0.0
        %1947 = vmatpush1.msra.mxu0 0.0
        %1948 = vmatprep.subr.mxu0 0.0
        %1949 = vmatpush1.msra.mxu0 0.0
        %1950 = vmatprep.subr.mxu0 0.0
        %1951 = vmatpush1.msra.mxu0 0.0
        %1952 = vmatprep.subr.mxu0 0.0
        %1953 = vmatpush1.msra.mxu0 0.0
        %1954 = vmatprep.subr.mxu0 0.0
        %1955 = vmatpush1.msra.mxu0 0.0
        %1956 = vmatprep.subr.mxu0 0.0
        %1957 = vmatpush1.msra.mxu0 0.0
        %1958 = vmatprep.subr.mxu0 0.0
        %1959 = vmatpush1.msra.mxu0 0.0
        %1960 = vmatprep.subr.mxu0 0.0
        %1961 = vmatpush1.msra.mxu0 0.0
        %1962 = vmatprep.subr.mxu0 0.0
        %1963 = vmatpush1.msra.mxu0 0.0
        %1964 = vmatprep.subr.mxu0 0.0
        %1965 = vmatpush1.msra.mxu0 0.0
        %1966 = vmatprep.subr.mxu0 0.0
        %1967 = vmatpush1.msra.mxu0 0.0
        %1968 = vmatprep.subr.mxu0 0.0
        %1969 = vmatpush1.msra.mxu0 0.0
        %1970 = vmatprep.mubr.f32.mxu0 0.0
        %1971 = vmatmul.mubr.f32.gmra.mrb[0].mxu0 %v1856
        %v1972 = vpop.f32.mrb[0].mxu0
        %v1973 = vadd.f32 0.0, %v1972
        %v1974 = vpop.f32.mrb[0].mxu0
        %v1975 = vadd.f32 0.0, %v1974
        %1976 = vmatprep.mubr.f32.mxu0 0.0
        %1977 = vmatmul.mubr.f32.gmra.mrb[0].mxu0 %v1857
        %v1978 = vpop.f32.mrb[0].mxu0
        %v1979 = vadd.f32 0.0, %v1978
        %v1980 = vpop.f32.mrb[0].mxu0
        %v1981 = vadd.f32 0.0, %v1980
        %1982 = vdwg.mxu0
        %1983 = vmatprep.subr.mxu0 0.0
        %1984 = vmatpush1.msra.mxu0 %v1860
        %1985 = vmatprep.subr.mxu0 0.0
        %1986 = vmatpush1.msra.mxu0 %v1863
        %1987 = vmatprep.subr.mxu0 0.0
        %1988 = vmatpush1.msra.mxu0 %v1866
        %1989 = vmatprep.subr.mxu0 0.0
        %1990 = vmatpush1.msra.mxu0 %v1869
        %1991 = vmatprep.subr.mxu0 0.0
        %1992 = vmatpush1.msra.mxu0 %v1872
        %1993 = vmatprep.subr.mxu0 0.0
        %1994 = vmatpush1.msra.mxu0 %v1875
        %1995 = vmatprep.subr.mxu0 0.0
        %1996 = vmatpush1.msra.mxu0 %v1878
        %1997 = vmatprep.subr.mxu0 0.0
        %1998 = vmatpush1.msra.mxu0 %v1881
        %1999 = vmatprep.subr.mxu0 0.0
        %2000 = vmatpush1.msra.mxu0 %v1884
        %2001 = vmatprep.subr.mxu0 0.0
        %2002 = vmatpush1.msra.mxu0 %v1887
        %2003 = vmatprep.subr.mxu0 0.0
        %2004 = vmatpush1.msra.mxu0 %v1890
        %2005 = vmatprep.subr.mxu0 0.0
        %2006 = vmatpush1.msra.mxu0 %v1893
        %2007 = vmatprep.subr.mxu0 0.0
        %2008 = vmatpush1.msra.mxu0 %v1896
        %2009 = vmatprep.subr.mxu0 0.0
        %2010 = vmatpush1.msra.mxu0 %v1899
        %2011 = vmatprep.subr.mxu0 0.0
        %2012 = vmatpush1.msra.mxu0 %v1902
        %2013 = vmatprep.subr.mxu0 0.0
        %2014 = vmatpush1.msra.mxu0 %v1905
        %2015 = vmatprep.subr.mxu0 0.0
        %2016 = vmatpush1.msra.mxu0 0.0
        %2017 = vmatprep.subr.mxu0 0.0
        %2018 = vmatpush1.msra.mxu0 0.0
        %2019 = vmatprep.subr.mxu0 0.0
        %2020 = vmatpush1.msra.mxu0 0.0
        %2021 = vmatprep.subr.mxu0 0.0
        %2022 = vmatpush1.msra.mxu0 0.0
        %2023 = vmatprep.subr.mxu0 0.0
        %2024 = vmatpush1.msra.mxu0 0.0
        %2025 = vmatprep.subr.mxu0 0.0
        %2026 = vmatpush1.msra.mxu0 0.0
        %2027 = vmatprep.subr.mxu0 0.0
        %2028 = vmatpush1.msra.mxu0 0.0
        %2029 = vmatprep.subr.mxu0 0.0
        %2030 = vmatpush1.msra.mxu0 0.0
        %2031 = vmatprep.subr.mxu0 0.0
        %2032 = vmatpush1.msra.mxu0 0.0
        %2033 = vmatprep.subr.mxu0 0.0
        %2034 = vmatpush1.msra.mxu0 0.0
        %2035 = vmatprep.subr.mxu0 0.0
        %2036 = vmatpush1.msra.mxu0 0.0
        %2037 = vmatprep.subr.mxu0 0.0
        %2038 = vmatpush1.msra.mxu0 0.0
        %2039 = vmatprep.subr.mxu0 0.0
        %2040 = vmatpush1.msra.mxu0 0.0
        %2041 = vmatprep.subr.mxu0 0.0
        %2042 = vmatpush1.msra.mxu0 0.0
        %2043 = vmatprep.subr.mxu0 0.0
        %2044 = vmatpush1.msra.mxu0 0.0
        %2045 = vmatprep.subr.mxu0 0.0
        %2046 = vmatpush1.msra.mxu0 0.0
        %2047 = vmatprep.mubr.f32.mxu0 0.0
        %2048 = vmatmul.mubr.f32.gmra.mrb[0].mxu0 %v1856
        %v2049 = vpop.f32.mrb[0].mxu0
        %v2050 = vadd.f32 0.0, %v2049
        %v2051 = vpop.f32.mrb[0].mxu0
        %2052 = vmatprep.mubr.f32.mxu0 0.0
        %2053 = vmatmul.mubr.f32.gmra.mrb[0].mxu0 %v1857
        %v2054 = vpop.f32.mrb[0].mxu0
        %v2055 = vadd.f32 0.0, %v2054
        %v2056 = vpop.f32.mrb[0].mxu0
        %2057 = vdwg.mxu0
        %v2058 = vld [vmem:[%s1836 + $0x10] sm:$0xff]
        %v2059 = vld [vmem:[%s1836 + $0x38] sm:$0xff]
        %v2060 = vadd.f32 %v2058, %v1751
        %v2061 = vadd.f32 %v2059, %v1757
        %v2062 = vadd.f32 %v2060, %v1973
        %v2063 = vadd.f32 %v2061, %v1979
        %v2064 = vld [vmem:[%s1836 + $0x18] sm:$0xff]
        %v2065 = vld [vmem:[%s1836 + $0x40] sm:$0xff]
        %v2066 = vadd.f32 %v2064, %v1753
        %v2067 = vadd.f32 %v2065, %v1759
        %v2068 = vadd.f32 %v2066, %v1975
        %v2069 = vadd.f32 %v2067, %v1981
        %v2070 = vmul.f32 %v2062, 0.5
        %v2071 = vmul.f32 %v2063, 0.5
        %v2072 = vtanh.pop %v2070
        %v2073 = vtanh.pop %v2071
        %v2074 = vadd.f32 %v2072, 1.0
        %v2075 = vadd.f32 %v2073, 1.0
        %v2076 = vmul.f32 %v2074, 0.5
        %v2077 = vmul.f32 %v2075, 0.5
        %v2078 = vmul.f32 %v2068, 0.5
        %v2079 = vmul.f32 %v2069, 0.5
        %v2080 = vtanh.pop %v2078
        %v2081 = vtanh.pop %v2079
        %v2082 = vadd.f32 %v2080, 1.0
        %v2083 = vadd.f32 %v2081, 1.0
        %v2084 = vmul.f32 %v2082, 0.5
        %v2085 = vmul.f32 %v2083, 0.5
        %v2086 = vld [vmem:[%s1836 + $0x20] sm:$0xff]
        %v2087 = vld [vmem:[%s1836 + $0x48] sm:$0xff]
        %v2088 = vadd.f32 %v2086, %v2050
        %v2089 = vadd.f32 %v2087, %v2055
        %v2090 = vadd.f32 %v1828, %v929
        %v2091 = vadd.f32 %v1833, %v929
        %v2092 = vmul.f32 %v2076, %v2090
        %v2093 = vmul.f32 %v2077, %v2091
        %v2094 = vadd.f32 %v2088, %v2092
        %v2095 = vadd.f32 %v2089, %v2093
        %v2096 = vtanh.pop %v2094
        %v2097 = vtanh.pop %v2095
        %v2098 = vsub.f32 %v1522, %v2096
        %v2099 = vsub.f32 %v1523, %v2097
        %v2100 = vmul.f32 %v2084, %v2098
        %v2101 = vmul.f32 %v2085, %v2099
        %v2102 = vadd.f32 %v2096, %v2100
        %v2103 = vadd.f32 %v2097, %v2101
        %s2104 = scalar_lea.vmem %s319, 32 [#allocation3]
        %2105 = vst [vmem:[%s2104] sm:$0xff] %v2102
        %2106 = vst [vmem:[%s2104 + $0x8] sm:$0xff] %v2103
        %v2107 = vld [vmem:[%s3] sm:$0xff]
        %v2108 = vld [vmem:[%s3 + $0x8] sm:$0xff]
        %v2109 = vld [vmem:[%s3 + $0x10] sm:$0xff]
        %v2110 = vld [vmem:[%s3 + $0x18] sm:$0xff]
        %v2111 = vld [vmem:[%s3 + $0x20] sm:$0xff]
        %v2112 = vld [vmem:[%s3 + $0x28] sm:$0xff]
        %v2113 = vld [vmem:[%s3 + $0x30] sm:$0xff]
        %v2114 = vld [vmem:[%s3 + $0x38] sm:$0xff]
        %v2115 = vld [vmem:[%s3 + $0x40] sm:$0xff]
        %v2116 = vld [vmem:[%s3 + $0x48] sm:$0xff]
        %v2117 = vld [vmem:[%s3 + $0x50] sm:$0xff]
        %v2118 = vld [vmem:[%s3 + $0x58] sm:$0xff]
        %v2119 = vld [vmem:[%s3 + $0x60] sm:$0xff]
        %v2120 = vld [vmem:[%s3 + $0x68] sm:$0xff]
        %v2121 = vld [vmem:[%s3 + $0x70] sm:$0xff]
        %v2122 = vld [vmem:[%s3 + $0x78] sm:$0xff]
        %v2123 = vld [vmem:[%s3 + $0x80] sm:$0xff]
        %v2124 = vld [vmem:[%s3 + $0x88] sm:$0xff]
        %v2125 = vld [vmem:[%s3 + $0x90] sm:$0xff]
        %v2126 = vld [vmem:[%s3 + $0x98] sm:$0xff]
        %v2127 = vld [vmem:[%s3 + $0xa0] sm:$0xff]
        %v2128 = vld [vmem:[%s3 + $0xa8] sm:$0xff]
        %v2129 = vld [vmem:[%s3 + $0xb0] sm:$0xff]
        %v2130 = vld [vmem:[%s3 + $0xb8] sm:$0xff]
        %v2131 = vld [vmem:[%s3 + $0xc0] sm:$0xff]
        %v2132 = vld [vmem:[%s3 + $0xc8] sm:$0xff]
        %v2133 = vld [vmem:[%s3 + $0xd0] sm:$0xff]
        %v2134 = vld [vmem:[%s3 + $0xd8] sm:$0xff]
        %v2135 = vld [vmem:[%s3 + $0xe0] sm:$0xff]
        %v2136 = vld [vmem:[%s3 + $0xe8] sm:$0xff]
        %v2137 = vld [vmem:[%s3 + $0xf0] sm:$0xff]
        %v2138 = vld [vmem:[%s3 + $0xf8] sm:$0xff]
        %v2139 = vld [vmem:[%s3 + $0x100] sm:$0xff]
        %v2140 = vld [vmem:[%s3 + $0x108] sm:$0xff]
        %v2141 = vld [vmem:[%s3 + $0x110] sm:$0xff]
        %v2142 = vld [vmem:[%s3 + $0x118] sm:$0xff]
        %v2143 = vld [vmem:[%s3 + $0x120] sm:$0xff]
        %v2144 = vld [vmem:[%s3 + $0x128] sm:$0xff]
        %v2145 = vld [vmem:[%s3 + $0x130] sm:$0xff]
        %v2146 = vld [vmem:[%s3 + $0x138] sm:$0xff]
        %v2147 = vld [vmem:[%s3 + $0x140] sm:$0xff]
        %v2148 = vld [vmem:[%s3 + $0x148] sm:$0xff]
        %v2149 = vld [vmem:[%s3 + $0x150] sm:$0xff]
        %v2150 = vld [vmem:[%s3 + $0x158] sm:$0xff]
        %v2151 = vld [vmem:[%s3 + $0x160] sm:$0xff]
        %v2152 = vld [vmem:[%s3 + $0x168] sm:$0xff]
        %v2153 = vld [vmem:[%s3 + $0x170] sm:$0xff]
        %v2154 = vld [vmem:[%s3 + $0x178] sm:$0xff]
        %v2155 = vld [vmem:[%s3 + $0x180] sm:$0xff]
        %v2156 = vld [vmem:[%s3 + $0x188] sm:$0xff]
        %v2157 = vld [vmem:[%s3 + $0x190] sm:$0xff]
        %v2158 = vld [vmem:[%s3 + $0x198] sm:$0xff]
        %v2159 = vld [vmem:[%s3 + $0x1a0] sm:$0xff]
        %v2160 = vld [vmem:[%s3 + $0x1a8] sm:$0xff]
        %v2161 = vld [vmem:[%s3 + $0x1b0] sm:$0xff]
        %v2162 = vld [vmem:[%s3 + $0x1b8] sm:$0xff]
        %v2163 = vld [vmem:[%s3 + $0x1c0] sm:$0xff]
        %v2164 = vld [vmem:[%s3 + $0x1c8] sm:$0xff]
        %v2165 = vld [vmem:[%s3 + $0x1d0] sm:$0xff]
        %v2166 = vld [vmem:[%s3 + $0x1d8] sm:$0xff]
        %v2167 = vld [vmem:[%s3 + $0x1e0] sm:$0xff]
        %v2168 = vld [vmem:[%s3 + $0x1e8] sm:$0xff]
        %v2169 = vld [vmem:[%s3 + $0x1f0] sm:$0xff]
        %v2170 = vld [vmem:[%s3 + $0x1f8] sm:$0xff]
        %v2171 = vld [vmem:[%s3 + $0x200] sm:$0xff]
        %v2172 = vld [vmem:[%s3 + $0x208] sm:$0xff]
        %v2173 = vld [vmem:[%s3 + $0x210] sm:$0xff]
        %v2174 = vld [vmem:[%s3 + $0x218] sm:$0xff]
        %v2175 = vld [vmem:[%s3 + $0x220] sm:$0xff]
        %v2176 = vld [vmem:[%s3 + $0x228] sm:$0xff]
        %v2177 = vld [vmem:[%s3 + $0x230] sm:$0xff]
        %v2178 = vld [vmem:[%s3 + $0x238] sm:$0xff]
        %v2179 = vld [vmem:[%s3 + $0x240] sm:$0xff]
        %v2180 = vld [vmem:[%s3 + $0x248] sm:$0xff]
        %v2181 = vld [vmem:[%s3 + $0x250] sm:$0xff]
        %v2182 = vld [vmem:[%s3 + $0x258] sm:$0xff]
        %v2183 = vld [vmem:[%s3 + $0x260] sm:$0xff]
        %v2184 = vld [vmem:[%s3 + $0x268] sm:$0xff]
        %v2185 = vld [vmem:[%s3 + $0x270] sm:$0xff]
        %v2186 = vld [vmem:[%s3 + $0x278] sm:$0xff]
        %2187 = vmatprep.subr.mxu0 %v2108
        %2188 = vmatpush1.msra.mxu0 %v2107
        %2189 = vmatprep.subr.mxu0 %v2113
        %2190 = vmatpush1.msra.mxu0 %v2112
        %2191 = vmatprep.subr.mxu0 %v2118
        %2192 = vmatpush1.msra.mxu0 %v2117
        %2193 = vmatprep.subr.mxu0 %v2123
        %2194 = vmatpush1.msra.mxu0 %v2122
        %2195 = vmatprep.subr.mxu0 %v2128
        %2196 = vmatpush1.msra.mxu0 %v2127
        %2197 = vmatprep.subr.mxu0 %v2133
        %2198 = vmatpush1.msra.mxu0 %v2132
        %2199 = vmatprep.subr.mxu0 %v2138
        %2200 = vmatpush1.msra.mxu0 %v2137
        %2201 = vmatprep.subr.mxu0 %v2143
        %2202 = vmatpush1.msra.mxu0 %v2142
        %2203 = vmatprep.subr.mxu0 %v2148
        %2204 = vmatpush1.msra.mxu0 %v2147
        %2205 = vmatprep.subr.mxu0 %v2153
        %2206 = vmatpush1.msra.mxu0 %v2152
        %2207 = vmatprep.subr.mxu0 %v2158
        %2208 = vmatpush1.msra.mxu0 %v2157
        %2209 = vmatprep.subr.mxu0 %v2163
        %2210 = vmatpush1.msra.mxu0 %v2162
        %2211 = vmatprep.subr.mxu0 %v2168
        %2212 = vmatpush1.msra.mxu0 %v2167
        %2213 = vmatprep.subr.mxu0 %v2173
        %2214 = vmatpush1.msra.mxu0 %v2172
        %2215 = vmatprep.subr.mxu0 %v2178
        %2216 = vmatpush1.msra.mxu0 %v2177
        %2217 = vmatprep.subr.mxu0 %v2183
        %2218 = vmatpush1.msra.mxu0 %v2182
        %2219 = vmatprep.subr.mxu0 0.0
        %2220 = vmatpush1.msra.mxu0 0.0
        %2221 = vmatprep.subr.mxu0 0.0
        %2222 = vmatpush1.msra.mxu0 0.0
        %2223 = vmatprep.subr.mxu0 0.0
        %2224 = vmatpush1.msra.mxu0 0.0
        %2225 = vmatprep.subr.mxu0 0.0
        %2226 = vmatpush1.msra.mxu0 0.0
        %2227 = vmatprep.subr.mxu0 0.0
        %2228 = vmatpush1.msra.mxu0 0.0
        %2229 = vmatprep.subr.mxu0 0.0
        %2230 = vmatpush1.msra.mxu0 0.0
        %2231 = vmatprep.subr.mxu0 0.0
        %2232 = vmatpush1.msra.mxu0 0.0
        %2233 = vmatprep.subr.mxu0 0.0
        %2234 = vmatpush1.msra.mxu0 0.0
        %2235 = vmatprep.subr.mxu0 0.0
        %2236 = vmatpush1.msra.mxu0 0.0
        %2237 = vmatprep.subr.mxu0 0.0
        %2238 = vmatpush1.msra.mxu0 0.0
        %2239 = vmatprep.subr.mxu0 0.0
        %2240 = vmatpush1.msra.mxu0 0.0
        %2241 = vmatprep.subr.mxu0 0.0
        %2242 = vmatpush1.msra.mxu0 0.0
        %2243 = vmatprep.subr.mxu0 0.0
        %2244 = vmatpush1.msra.mxu0 0.0
        %2245 = vmatprep.subr.mxu0 0.0
        %2246 = vmatpush1.msra.mxu0 0.0
        %2247 = vmatprep.subr.mxu0 0.0
        %2248 = vmatpush1.msra.mxu0 0.0
        %2249 = vmatprep.subr.mxu0 0.0
        %2250 = vmatpush1.msra.mxu0 0.0
        %2251 = vmatprep.mubr.f32.mxu0 0.0
        %2252 = vmatmul.mubr.f32.gmra.mrb[0].mxu0 %v2102
        %v2253 = vpop.f32.mrb[0].mxu0
        %v2254 = vadd.f32 0.0, %v2253
        %v2255 = vpop.f32.mrb[0].mxu0
        %v2256 = vadd.f32 0.0, %v2255
        %2257 = vmatprep.mubr.f32.mxu0 0.0
        %2258 = vmatmul.mubr.f32.gmra.mrb[0].mxu0 %v2103
        %v2259 = vpop.f32.mrb[0].mxu0
        %v2260 = vadd.f32 0.0, %v2259
        %v2261 = vpop.f32.mrb[0].mxu0
        %v2262 = vadd.f32 0.0, %v2261
        %2263 = vdwg.mxu0
        %2264 = vmatprep.subr.mxu0 %v2110
        %2265 = vmatpush1.msra.mxu0 %v2109
        %2266 = vmatprep.subr.mxu0 %v2115
        %2267 = vmatpush1.msra.mxu0 %v2114
        %2268 = vmatprep.subr.mxu0 %v2120
        %2269 = vmatpush1.msra.mxu0 %v2119
        %2270 = vmatprep.subr.mxu0 %v2125
        %2271 = vmatpush1.msra.mxu0 %v2124
        %2272 = vmatprep.subr.mxu0 %v2130
        %2273 = vmatpush1.msra.mxu0 %v2129
        %2274 = vmatprep.subr.mxu0 %v2135
        %2275 = vmatpush1.msra.mxu0 %v2134
        %2276 = vmatprep.subr.mxu0 %v2140
        %2277 = vmatpush1.msra.mxu0 %v2139
        %2278 = vmatprep.subr.mxu0 %v2145
        %2279 = vmatpush1.msra.mxu0 %v2144
        %2280 = vmatprep.subr.mxu0 %v2150
        %2281 = vmatpush1.msra.mxu0 %v2149
        %2282 = vmatprep.subr.mxu0 %v2155
        %2283 = vmatpush1.msra.mxu0 %v2154
        %2284 = vmatprep.subr.mxu0 %v2160
        %2285 = vmatpush1.msra.mxu0 %v2159
        %2286 = vmatprep.subr.mxu0 %v2165
        %2287 = vmatpush1.msra.mxu0 %v2164
        %2288 = vmatprep.subr.mxu0 %v2170
        %2289 = vmatpush1.msra.mxu0 %v2169
        %2290 = vmatprep.subr.mxu0 %v2175
        %2291 = vmatpush1.msra.mxu0 %v2174
        %2292 = vmatprep.subr.mxu0 %v2180
        %2293 = vmatpush1.msra.mxu0 %v2179
        %2294 = vmatprep.subr.mxu0 %v2185
        %2295 = vmatpush1.msra.mxu0 %v2184
        %2296 = vmatprep.subr.mxu0 0.0
        %2297 = vmatpush1.msra.mxu0 0.0
        %2298 = vmatprep.subr.mxu0 0.0
        %2299 = vmatpush1.msra.mxu0 0.0
        %2300 = vmatprep.subr.mxu0 0.0
        %2301 = vmatpush1.msra.mxu0 0.0
        %2302 = vmatprep.subr.mxu0 0.0
        %2303 = vmatpush1.msra.mxu0 0.0
        %2304 = vmatprep.subr.mxu0 0.0
        %2305 = vmatpush1.msra.mxu0 0.0
        %2306 = vmatprep.subr.mxu0 0.0
        %2307 = vmatpush1.msra.mxu0 0.0
        %2308 = vmatprep.subr.mxu0 0.0
        %2309 = vmatpush1.msra.mxu0 0.0
        %2310 = vmatprep.subr.mxu0 0.0
        %2311 = vmatpush1.msra.mxu0 0.0
        %2312 = vmatprep.subr.mxu0 0.0
        %2313 = vmatpush1.msra.mxu0 0.0
        %2314 = vmatprep.subr.mxu0 0.0
        %2315 = vmatpush1.msra.mxu0 0.0
        %2316 = vmatprep.subr.mxu0 0.0
        %2317 = vmatpush1.msra.mxu0 0.0
        %2318 = vmatprep.subr.mxu0 0.0
        %2319 = vmatpush1.msra.mxu0 0.0
        %2320 = vmatprep.subr.mxu0 0.0
        %2321 = vmatpush1.msra.mxu0 0.0
        %2322 = vmatprep.subr.mxu0 0.0
        %2323 = vmatpush1.msra.mxu0 0.0
        %2324 = vmatprep.subr.mxu0 0.0
        %2325 = vmatpush1.msra.mxu0 0.0
        %2326 = vmatprep.subr.mxu0 0.0
        %2327 = vmatpush1.msra.mxu0 0.0
        %2328 = vmatprep.mubr.f32.mxu0 0.0
        %2329 = vmatmul.mubr.f32.gmra.mrb[0].mxu0 %v2102
        %v2330 = vpop.f32.mrb[0].mxu0
        %v2331 = vadd.f32 0.0, %v2330
        %v2332 = vpop.f32.mrb[0].mxu0
        %v2333 = vadd.f32 0.0, %v2332
        %2334 = vmatprep.mubr.f32.mxu0 0.0
        %2335 = vmatmul.mubr.f32.gmra.mrb[0].mxu0 %v2103
        %v2336 = vpop.f32.mrb[0].mxu0
        %v2337 = vadd.f32 0.0, %v2336
        %v2338 = vpop.f32.mrb[0].mxu0
        %v2339 = vadd.f32 0.0, %v2338
        %2340 = vdwg.mxu0
        %2341 = vmatprep.subr.mxu0 0.0
        %2342 = vmatpush1.msra.mxu0 %v2111
        %2343 = vmatprep.subr.mxu0 0.0
        %2344 = vmatpush1.msra.mxu0 %v2116
        %2345 = vmatprep.subr.mxu0 0.0
        %2346 = vmatpush1.msra.mxu0 %v2121
        %2347 = vmatprep.subr.mxu0 0.0
        %2348 = vmatpush1.msra.mxu0 %v2126
        %2349 = vmatprep.subr.mxu0 0.0
        %2350 = vmatpush1.msra.mxu0 %v2131
        %2351 = vmatprep.subr.mxu0 0.0
        %2352 = vmatpush1.msra.mxu0 %v2136
        %2353 = vmatprep.subr.mxu0 0.0
        %2354 = vmatpush1.msra.mxu0 %v2141
        %2355 = vmatprep.subr.mxu0 0.0
        %2356 = vmatpush1.msra.mxu0 %v2146
        %2357 = vmatprep.subr.mxu0 0.0
        %2358 = vmatpush1.msra.mxu0 %v2151
        %2359 = vmatprep.subr.mxu0 0.0
        %2360 = vmatpush1.msra.mxu0 %v2156
        %2361 = vmatprep.subr.mxu0 0.0
        %2362 = vmatpush1.msra.mxu0 %v2161
        %2363 = vmatprep.subr.mxu0 0.0
        %2364 = vmatpush1.msra.mxu0 %v2166
        %2365 = vmatprep.subr.mxu0 0.0
        %2366 = vmatpush1.msra.mxu0 %v2171
        %2367 = vmatprep.subr.mxu0 0.0
        %2368 = vmatpush1.msra.mxu0 %v2176
        %2369 = vmatprep.subr.mxu0 0.0
        %2370 = vmatpush1.msra.mxu0 %v2181
        %2371 = vmatprep.subr.mxu0 0.0
        %2372 = vmatpush1.msra.mxu0 %v2186
        %2373 = vmatprep.subr.mxu0 0.0
        %2374 = vmatpush1.msra.mxu0 0.0
        %2375 = vmatprep.subr.mxu0 0.0
        %2376 = vmatpush1.msra.mxu0 0.0
        %2377 = vmatprep.subr.mxu0 0.0
        %2378 = vmatpush1.msra.mxu0 0.0
        %2379 = vmatprep.subr.mxu0 0.0
        %2380 = vmatpush1.msra.mxu0 0.0
        %2381 = vmatprep.subr.mxu0 0.0
        %2382 = vmatpush1.msra.mxu0 0.0
        %2383 = vmatprep.subr.mxu0 0.0
        %2384 = vmatpush1.msra.mxu0 0.0
        %2385 = vmatprep.subr.mxu0 0.0
        %2386 = vmatpush1.msra.mxu0 0.0
        %2387 = vmatprep.subr.mxu0 0.0
        %2388 = vmatpush1.msra.mxu0 0.0
        %2389 = vmatprep.subr.mxu0 0.0
        %2390 = vmatpush1.msra.mxu0 0.0
        %2391 = vmatprep.subr.mxu0 0.0
        %2392 = vmatpush1.msra.mxu0 0.0
        %2393 = vmatprep.subr.mxu0 0.0
        %2394 = vmatpush1.msra.mxu0 0.0
        %2395 = vmatprep.subr.mxu0 0.0
        %2396 = vmatpush1.msra.mxu0 0.0
        %2397 = vmatprep.subr.mxu0 0.0
        %2398 = vmatpush1.msra.mxu0 0.0
        %2399 = vmatprep.subr.mxu0 0.0
        %2400 = vmatpush1.msra.mxu0 0.0
        %2401 = vmatprep.subr.mxu0 0.0
        %2402 = vmatpush1.msra.mxu0 0.0
        %2403 = vmatprep.subr.mxu0 0.0
        %2404 = vmatpush1.msra.mxu0 0.0
        %2405 = vmatprep.mubr.f32.mxu0 0.0
        %2406 = vmatmul.mubr.f32.gmra.mrb[0].mxu0 %v2102
        %v2407 = vpop.f32.mrb[0].mxu0
        %v2408 = vadd.f32 0.0, %v2407
        %v2409 = vpop.f32.mrb[0].mxu0
        %2410 = vmatprep.mubr.f32.mxu0 0.0
        %2411 = vmatmul.mubr.f32.gmra.mrb[0].mxu0 %v2103
        %v2412 = vpop.f32.mrb[0].mxu0
        %v2413 = vadd.f32 0.0, %v2412
        %v2414 = vpop.f32.mrb[0].mxu0
        %2415 = vdwg.mxu0
        %s2416 = scalar_lea.vmem %s330, 240
        %v2417 = vld [vmem:[%s2416] sm:$0xff]
        %v2418 = vld [vmem:[%s2416 + $0x28] sm:$0xff]
        %v2419 = vadd.f32 %v2417, %v2254
        %v2420 = vadd.f32 %v2418, %v2260
        %v2421 = vld [vmem:[%s2416 + $0x8] sm:$0xff]
        %v2422 = vld [vmem:[%s2416 + $0x30] sm:$0xff]
        %v2423 = vadd.f32 %v2421, %v2256
        %v2424 = vadd.f32 %v2422, %v2262
        %v2425 = vmul.f32 %v2423, 0.5
        %v2426 = vmul.f32 %v2424, 0.5
        %v2427 = vmul.f32 %v2425, 1.442695
        %v2428 = vpow.pop %v2427
        %v2429 = vmul.f32 %v2426, 1.442695
        %v2430 = vpow.pop %v2429
        %s2431 = scalar_lea.vmem %s342, 48
        %v2432 = vld [vmem:[%s2431] sm:$0xff]
        %v2433 = vld [vmem:[%s2431 + $0x8] sm:$0xff]
        %v2434 = vmul.f32 %v2432, %v2428
        %v2435 = vmul.f32 %v2433, %v2430
        %v2436 = vadd.f32 %v2419, %v2434
        %v2437 = vadd.f32 %v2420, %v2435
        %v2438 = vld [vmem:[%s4] sm:$0xff]
        %v2439 = vld [vmem:[%s4 + $0x8] sm:$0xff]
        %v2440 = vld [vmem:[%s4 + $0x10] sm:$0xff]
        %v2441 = vld [vmem:[%s4 + $0x18] sm:$0xff]
        %v2442 = vld [vmem:[%s4 + $0x20] sm:$0xff]
        %v2443 = vld [vmem:[%s4 + $0x28] sm:$0xff]
        %v2444 = vld [vmem:[%s4 + $0x30] sm:$0xff]
        %v2445 = vld [vmem:[%s4 + $0x38] sm:$0xff]
        %v2446 = vld [vmem:[%s4 + $0x40] sm:$0xff]
        %v2447 = vld [vmem:[%s4 + $0x48] sm:$0xff]
        %v2448 = vld [vmem:[%s4 + $0x50] sm:$0xff]
        %v2449 = vld [vmem:[%s4 + $0x58] sm:$0xff]
        %v2450 = vld [vmem:[%s4 + $0x60] sm:$0xff]
        %v2451 = vld [vmem:[%s4 + $0x68] sm:$0xff]
        %v2452 = vld [vmem:[%s4 + $0x70] sm:$0xff]
        %v2453 = vld [vmem:[%s4 + $0x78] sm:$0xff]
        %v2454 = vld [vmem:[%s4 + $0x80] sm:$0xff]
        %v2455 = vld [vmem:[%s4 + $0x88] sm:$0xff]
        %v2456 = vld [vmem:[%s4 + $0x90] sm:$0xff]
        %v2457 = vld [vmem:[%s4 + $0x98] sm:$0xff]
        %v2458 = vld [vmem:[%s4 + $0xa0] sm:$0xff]
        %v2459 = vld [vmem:[%s4 + $0xa8] sm:$0xff]
        %v2460 = vld [vmem:[%s4 + $0xb0] sm:$0xff]
        %v2461 = vld [vmem:[%s4 + $0xb8] sm:$0xff]
        %v2462 = vld [vmem:[%s4 + $0xc0] sm:$0xff]
        %v2463 = vld [vmem:[%s4 + $0xc8] sm:$0xff]
        %v2464 = vld [vmem:[%s4 + $0xd0] sm:$0xff]
        %v2465 = vld [vmem:[%s4 + $0xd8] sm:$0xff]
        %v2466 = vld [vmem:[%s4 + $0xe0] sm:$0xff]
        %v2467 = vld [vmem:[%s4 + $0xe8] sm:$0xff]
        %v2468 = vld [vmem:[%s4 + $0xf0] sm:$0xff]
        %v2469 = vld [vmem:[%s4 + $0xf8] sm:$0xff]
        %v2470 = vld [vmem:[%s4 + $0x100] sm:$0xff]
        %v2471 = vld [vmem:[%s4 + $0x108] sm:$0xff]
        %v2472 = vld [vmem:[%s4 + $0x110] sm:$0xff]
        %v2473 = vld [vmem:[%s4 + $0x118] sm:$0xff]
        %v2474 = vld [vmem:[%s4 + $0x120] sm:$0xff]
        %v2475 = vld [vmem:[%s4 + $0x128] sm:$0xff]
        %v2476 = vld [vmem:[%s4 + $0x130] sm:$0xff]
        %v2477 = vld [vmem:[%s4 + $0x138] sm:$0xff]
        %v2478 = vld [vmem:[%s4 + $0x140] sm:$0xff]
        %v2479 = vld [vmem:[%s4 + $0x148] sm:$0xff]
        %v2480 = vld [vmem:[%s4 + $0x150] sm:$0xff]
        %v2481 = vld [vmem:[%s4 + $0x158] sm:$0xff]
        %v2482 = vld [vmem:[%s4 + $0x160] sm:$0xff]
        %v2483 = vld [vmem:[%s4 + $0x168] sm:$0xff]
        %v2484 = vld [vmem:[%s4 + $0x170] sm:$0xff]
        %v2485 = vld [vmem:[%s4 + $0x178] sm:$0xff]
        %2486 = vmatprep.subr.mxu0 %v2439
        %2487 = vmatpush1.msra.mxu0 %v2438
        %2488 = vmatprep.subr.mxu0 %v2442
        %2489 = vmatpush1.msra.mxu0 %v2441
        %2490 = vmatprep.subr.mxu0 %v2445
        %2491 = vmatpush1.msra.mxu0 %v2444
        %2492 = vmatprep.subr.mxu0 %v2448
        %2493 = vmatpush1.msra.mxu0 %v2447
        %2494 = vmatprep.subr.mxu0 %v2451
        %2495 = vmatpush1.msra.mxu0 %v2450
        %2496 = vmatprep.subr.mxu0 %v2454
        %2497 = vmatpush1.msra.mxu0 %v2453
        %2498 = vmatprep.subr.mxu0 %v2457
        %2499 = vmatpush1.msra.mxu0 %v2456
        %2500 = vmatprep.subr.mxu0 %v2460
        %2501 = vmatpush1.msra.mxu0 %v2459
        %2502 = vmatprep.subr.mxu0 %v2463
        %2503 = vmatpush1.msra.mxu0 %v2462
        %2504 = vmatprep.subr.mxu0 %v2466
        %2505 = vmatpush1.msra.mxu0 %v2465
        %2506 = vmatprep.subr.mxu0 %v2469
        %2507 = vmatpush1.msra.mxu0 %v2468
        %2508 = vmatprep.subr.mxu0 %v2472
        %2509 = vmatpush1.msra.mxu0 %v2471
        %2510 = vmatprep.subr.mxu0 %v2475
        %2511 = vmatpush1.msra.mxu0 %v2474
        %2512 = vmatprep.subr.mxu0 %v2478
        %2513 = vmatpush1.msra.mxu0 %v2477
        %2514 = vmatprep.subr.mxu0 %v2481
        %2515 = vmatpush1.msra.mxu0 %v2480
        %2516 = vmatprep.subr.mxu0 %v2484
        %2517 = vmatpush1.msra.mxu0 %v2483
        %2518 = vmatprep.subr.mxu0 0.0
        %2519 = vmatpush1.msra.mxu0 0.0
        %2520 = vmatprep.subr.mxu0 0.0
        %2521 = vmatpush1.msra.mxu0 0.0
        %2522 = vmatprep.subr.mxu0 0.0
        %2523 = vmatpush1.msra.mxu0 0.0
        %2524 = vmatprep.subr.mxu0 0.0
        %2525 = vmatpush1.msra.mxu0 0.0
        %2526 = vmatprep.subr.mxu0 0.0
        %2527 = vmatpush1.msra.mxu0 0.0
        %2528 = vmatprep.subr.mxu0 0.0
        %2529 = vmatpush1.msra.mxu0 0.0
        %2530 = vmatprep.subr.mxu0 0.0
        %2531 = vmatpush1.msra.mxu0 0.0
        %2532 = vmatprep.subr.mxu0 0.0
        %2533 = vmatpush1.msra.mxu0 0.0
        %2534 = vmatprep.subr.mxu0 0.0
        %2535 = vmatpush1.msra.mxu0 0.0
        %2536 = vmatprep.subr.mxu0 0.0
        %2537 = vmatpush1.msra.mxu0 0.0
        %2538 = vmatprep.subr.mxu0 0.0
        %2539 = vmatpush1.msra.mxu0 0.0
        %2540 = vmatprep.subr.mxu0 0.0
        %2541 = vmatpush1.msra.mxu0 0.0
        %2542 = vmatprep.subr.mxu0 0.0
        %2543 = vmatpush1.msra.mxu0 0.0
        %2544 = vmatprep.subr.mxu0 0.0
        %2545 = vmatpush1.msra.mxu0 0.0
        %2546 = vmatprep.subr.mxu0 0.0
        %2547 = vmatpush1.msra.mxu0 0.0
        %2548 = vmatprep.subr.mxu0 0.0
        %2549 = vmatpush1.msra.mxu0 0.0
        %2550 = vmatprep.mubr.f32.mxu0 0.0
        %2551 = vmatmul.mubr.f32.gmra.mrb[0].mxu0 %v2436
        %v2552 = vpop.f32.mrb[0].mxu0
        %v2553 = vadd.f32 0.0, %v2552
        %v2554 = vpop.f32.mrb[0].mxu0
        %v2555 = vadd.f32 0.0, %v2554
        %2556 = vmatprep.mubr.f32.mxu0 0.0
        %2557 = vmatmul.mubr.f32.gmra.mrb[0].mxu0 %v2437
        %v2558 = vpop.f32.mrb[0].mxu0
        %v2559 = vadd.f32 0.0, %v2558
        %v2560 = vpop.f32.mrb[0].mxu0
        %v2561 = vadd.f32 0.0, %v2560
        %2562 = vdwg.mxu0
        %2563 = vmatprep.subr.mxu0 0.0
        %2564 = vmatpush1.msra.mxu0 %v2440
        %2565 = vmatprep.subr.mxu0 0.0
        %2566 = vmatpush1.msra.mxu0 %v2443
        %2567 = vmatprep.subr.mxu0 0.0
        %2568 = vmatpush1.msra.mxu0 %v2446
        %2569 = vmatprep.subr.mxu0 0.0
        %2570 = vmatpush1.msra.mxu0 %v2449
        %2571 = vmatprep.subr.mxu0 0.0
        %2572 = vmatpush1.msra.mxu0 %v2452
        %2573 = vmatprep.subr.mxu0 0.0
        %2574 = vmatpush1.msra.mxu0 %v2455
        %2575 = vmatprep.subr.mxu0 0.0
        %2576 = vmatpush1.msra.mxu0 %v2458
        %2577 = vmatprep.subr.mxu0 0.0
        %2578 = vmatpush1.msra.mxu0 %v2461
        %2579 = vmatprep.subr.mxu0 0.0
        %2580 = vmatpush1.msra.mxu0 %v2464
        %2581 = vmatprep.subr.mxu0 0.0
        %2582 = vmatpush1.msra.mxu0 %v2467
        %2583 = vmatprep.subr.mxu0 0.0
        %2584 = vmatpush1.msra.mxu0 %v2470
        %2585 = vmatprep.subr.mxu0 0.0
        %2586 = vmatpush1.msra.mxu0 %v2473
        %2587 = vmatprep.subr.mxu0 0.0
        %2588 = vmatpush1.msra.mxu0 %v2476
        %2589 = vmatprep.subr.mxu0 0.0
        %2590 = vmatpush1.msra.mxu0 %v2479
        %2591 = vmatprep.subr.mxu0 0.0
        %2592 = vmatpush1.msra.mxu0 %v2482
        %2593 = vmatprep.subr.mxu0 0.0
        %2594 = vmatpush1.msra.mxu0 %v2485
        %2595 = vmatprep.subr.mxu0 0.0
        %2596 = vmatpush1.msra.mxu0 0.0
        %2597 = vmatprep.subr.mxu0 0.0
        %2598 = vmatpush1.msra.mxu0 0.0
        %2599 = vmatprep.subr.mxu0 0.0
        %2600 = vmatpush1.msra.mxu0 0.0
        %2601 = vmatprep.subr.mxu0 0.0
        %2602 = vmatpush1.msra.mxu0 0.0
        %2603 = vmatprep.subr.mxu0 0.0
        %2604 = vmatpush1.msra.mxu0 0.0
        %2605 = vmatprep.subr.mxu0 0.0
        %2606 = vmatpush1.msra.mxu0 0.0
        %2607 = vmatprep.subr.mxu0 0.0
        %2608 = vmatpush1.msra.mxu0 0.0
        %2609 = vmatprep.subr.mxu0 0.0
        %2610 = vmatpush1.msra.mxu0 0.0
        %2611 = vmatprep.subr.mxu0 0.0
        %2612 = vmatpush1.msra.mxu0 0.0
        %2613 = vmatprep.subr.mxu0 0.0
        %2614 = vmatpush1.msra.mxu0 0.0
        %2615 = vmatprep.subr.mxu0 0.0
        %2616 = vmatpush1.msra.mxu0 0.0
        %2617 = vmatprep.subr.mxu0 0.0
        %2618 = vmatpush1.msra.mxu0 0.0
        %2619 = vmatprep.subr.mxu0 0.0
        %2620 = vmatpush1.msra.mxu0 0.0
        %2621 = vmatprep.subr.mxu0 0.0
        %2622 = vmatpush1.msra.mxu0 0.0
        %2623 = vmatprep.subr.mxu0 0.0
        %2624 = vmatpush1.msra.mxu0 0.0
        %2625 = vmatprep.subr.mxu0 0.0
        %2626 = vmatpush1.msra.mxu0 0.0
        %2627 = vmatprep.mubr.f32.mxu0 0.0
        %2628 = vmatmul.mubr.f32.gmra.mrb[0].mxu0 %v2436
        %v2629 = vpop.f32.mrb[0].mxu0
        %v2630 = vadd.f32 0.0, %v2629
        %v2631 = vpop.f32.mrb[0].mxu0
        %2632 = vmatprep.mubr.f32.mxu0 0.0
        %2633 = vmatmul.mubr.f32.gmra.mrb[0].mxu0 %v2437
        %v2634 = vpop.f32.mrb[0].mxu0
        %v2635 = vadd.f32 0.0, %v2634
        %v2636 = vpop.f32.mrb[0].mxu0
        %2637 = vdwg.mxu0
        %v2638 = vld [vmem:[%s2416 + $0x10] sm:$0xff]
        %v2639 = vld [vmem:[%s2416 + $0x38] sm:$0xff]
        %v2640 = vadd.f32 %v2638, %v2331
        %v2641 = vadd.f32 %v2639, %v2337
        %v2642 = vadd.f32 %v2640, %v2553
        %v2643 = vadd.f32 %v2641, %v2559
        %v2644 = vld [vmem:[%s2416 + $0x18] sm:$0xff]
        %v2645 = vld [vmem:[%s2416 + $0x40] sm:$0xff]
        %v2646 = vadd.f32 %v2644, %v2333
        %v2647 = vadd.f32 %v2645, %v2339
        %v2648 = vadd.f32 %v2646, %v2555
        %v2649 = vadd.f32 %v2647, %v2561
        %v2650 = vmul.f32 %v2642, 0.5
        %v2651 = vmul.f32 %v2643, 0.5
        %v2652 = vtanh.pop %v2650
        %v2653 = vtanh.pop %v2651
        %v2654 = vadd.f32 %v2652, 1.0
        %v2655 = vadd.f32 %v2653, 1.0
        %v2656 = vmul.f32 %v2654, 0.5
        %v2657 = vmul.f32 %v2655, 0.5
        %v2658 = vmul.f32 %v2648, 0.5
        %v2659 = vmul.f32 %v2649, 0.5
        %v2660 = vtanh.pop %v2658
        %v2661 = vtanh.pop %v2659
        %v2662 = vadd.f32 %v2660, 1.0
        %v2663 = vadd.f32 %v2661, 1.0
        %v2664 = vmul.f32 %v2662, 0.5
        %v2665 = vmul.f32 %v2663, 0.5
        %v2666 = vld [vmem:[%s2416 + $0x20] sm:$0xff]
        %v2667 = vld [vmem:[%s2416 + $0x48] sm:$0xff]
        %v2668 = vadd.f32 %v2666, %v2630
        %v2669 = vadd.f32 %v2667, %v2635
        %v2670 = vadd.f32 %v2408, %v929
        %v2671 = vadd.f32 %v2413, %v929
        %v2672 = vmul.f32 %v2656, %v2670
        %v2673 = vmul.f32 %v2657, %v2671
        %v2674 = vadd.f32 %v2668, %v2672
        %v2675 = vadd.f32 %v2669, %v2673
        %v2676 = vtanh.pop %v2674
        %v2677 = vtanh.pop %v2675
        %v2678 = vsub.f32 %v2102, %v2676
        %v2679 = vsub.f32 %v2103, %v2677
        %v2680 = vmul.f32 %v2664, %v2678
        %v2681 = vmul.f32 %v2665, %v2679
        %v2682 = vadd.f32 %v2676, %v2680
        %v2683 = vadd.f32 %v2677, %v2681
        %s2684 = scalar_lea.vmem %s319, 48 [#allocation3]
        %2685 = vst [vmem:[%s2684] sm:$0xff] %v2682
        %2686 = vst [vmem:[%s2684 + $0x8] sm:$0xff] %v2683
        %v2687 = vld [vmem:[%s3] sm:$0xff]
        %v2688 = vld [vmem:[%s3 + $0x8] sm:$0xff]
        %v2689 = vld [vmem:[%s3 + $0x10] sm:$0xff]
        %v2690 = vld [vmem:[%s3 + $0x18] sm:$0xff]
        %v2691 = vld [vmem:[%s3 + $0x20] sm:$0xff]
        %v2692 = vld [vmem:[%s3 + $0x28] sm:$0xff]
        %v2693 = vld [vmem:[%s3 + $0x30] sm:$0xff]
        %v2694 = vld [vmem:[%s3 + $0x38] sm:$0xff]
        %v2695 = vld [vmem:[%s3 + $0x40] sm:$0xff]
        %v2696 = vld [vmem:[%s3 + $0x48] sm:$0xff]
        %v2697 = vld [vmem:[%s3 + $0x50] sm:$0xff]
        %v2698 = vld [vmem:[%s3 + $0x58] sm:$0xff]
        %v2699 = vld [vmem:[%s3 + $0x60] sm:$0xff]
        %v2700 = vld [vmem:[%s3 + $0x68] sm:$0xff]
        %v2701 = vld [vmem:[%s3 + $0x70] sm:$0xff]
        %v2702 = vld [vmem:[%s3 + $0x78] sm:$0xff]
        %v2703 = vld [vmem:[%s3 + $0x80] sm:$0xff]
        %v2704 = vld [vmem:[%s3 + $0x88] sm:$0xff]
        %v2705 = vld [vmem:[%s3 + $0x90] sm:$0xff]
        %v2706 = vld [vmem:[%s3 + $0x98] sm:$0xff]
        %v2707 = vld [vmem:[%s3 + $0xa0] sm:$0xff]
        %v2708 = vld [vmem:[%s3 + $0xa8] sm:$0xff]
        %v2709 = vld [vmem:[%s3 + $0xb0] sm:$0xff]
        %v2710 = vld [vmem:[%s3 + $0xb8] sm:$0xff]
        %v2711 = vld [vmem:[%s3 + $0xc0] sm:$0xff]
        %v2712 = vld [vmem:[%s3 + $0xc8] sm:$0xff]
        %v2713 = vld [vmem:[%s3 + $0xd0] sm:$0xff]
        %v2714 = vld [vmem:[%s3 + $0xd8] sm:$0xff]
        %v2715 = vld [vmem:[%s3 + $0xe0] sm:$0xff]
        %v2716 = vld [vmem:[%s3 + $0xe8] sm:$0xff]
        %v2717 = vld [vmem:[%s3 + $0xf0] sm:$0xff]
        %v2718 = vld [vmem:[%s3 + $0xf8] sm:$0xff]
        %v2719 = vld [vmem:[%s3 + $0x100] sm:$0xff]
        %v2720 = vld [vmem:[%s3 + $0x108] sm:$0xff]
        %v2721 = vld [vmem:[%s3 + $0x110] sm:$0xff]
        %v2722 = vld [vmem:[%s3 + $0x118] sm:$0xff]
        %v2723 = vld [vmem:[%s3 + $0x120] sm:$0xff]
        %v2724 = vld [vmem:[%s3 + $0x128] sm:$0xff]
        %v2725 = vld [vmem:[%s3 + $0x130] sm:$0xff]
        %v2726 = vld [vmem:[%s3 + $0x138] sm:$0xff]
        %v2727 = vld [vmem:[%s3 + $0x140] sm:$0xff]
        %v2728 = vld [vmem:[%s3 + $0x148] sm:$0xff]
        %v2729 = vld [vmem:[%s3 + $0x150] sm:$0xff]
        %v2730 = vld [vmem:[%s3 + $0x158] sm:$0xff]
        %v2731 = vld [vmem:[%s3 + $0x160] sm:$0xff]
        %v2732 = vld [vmem:[%s3 + $0x168] sm:$0xff]
        %v2733 = vld [vmem:[%s3 + $0x170] sm:$0xff]
        %v2734 = vld [vmem:[%s3 + $0x178] sm:$0xff]
        %v2735 = vld [vmem:[%s3 + $0x180] sm:$0xff]
        %v2736 = vld [vmem:[%s3 + $0x188] sm:$0xff]
        %v2737 = vld [vmem:[%s3 + $0x190] sm:$0xff]
        %v2738 = vld [vmem:[%s3 + $0x198] sm:$0xff]
        %v2739 = vld [vmem:[%s3 + $0x1a0] sm:$0xff]
        %v2740 = vld [vmem:[%s3 + $0x1a8] sm:$0xff]
        %v2741 = vld [vmem:[%s3 + $0x1b0] sm:$0xff]
        %v2742 = vld [vmem:[%s3 + $0x1b8] sm:$0xff]
        %v2743 = vld [vmem:[%s3 + $0x1c0] sm:$0xff]
        %v2744 = vld [vmem:[%s3 + $0x1c8] sm:$0xff]
        %v2745 = vld [vmem:[%s3 + $0x1d0] sm:$0xff]
        %v2746 = vld [vmem:[%s3 + $0x1d8] sm:$0xff]
        %v2747 = vld [vmem:[%s3 + $0x1e0] sm:$0xff]
        %v2748 = vld [vmem:[%s3 + $0x1e8] sm:$0xff]
        %v2749 = vld [vmem:[%s3 + $0x1f0] sm:$0xff]
        %v2750 = vld [vmem:[%s3 + $0x1f8] sm:$0xff]
        %v2751 = vld [vmem:[%s3 + $0x200] sm:$0xff]
        %v2752 = vld [vmem:[%s3 + $0x208] sm:$0xff]
        %v2753 = vld [vmem:[%s3 + $0x210] sm:$0xff]
        %v2754 = vld [vmem:[%s3 + $0x218] sm:$0xff]
        %v2755 = vld [vmem:[%s3 + $0x220] sm:$0xff]
        %v2756 = vld [vmem:[%s3 + $0x228] sm:$0xff]
        %v2757 = vld [vmem:[%s3 + $0x230] sm:$0xff]
        %v2758 = vld [vmem:[%s3 + $0x238] sm:$0xff]
        %v2759 = vld [vmem:[%s3 + $0x240] sm:$0xff]
        %v2760 = vld [vmem:[%s3 + $0x248] sm:$0xff]
        %v2761 = vld [vmem:[%s3 + $0x250] sm:$0xff]
        %v2762 = vld [vmem:[%s3 + $0x258] sm:$0xff]
        %v2763 = vld [vmem:[%s3 + $0x260] sm:$0xff]
        %v2764 = vld [vmem:[%s3 + $0x268] sm:$0xff]
        %v2765 = vld [vmem:[%s3 + $0x270] sm:$0xff]
        %v2766 = vld [vmem:[%s3 + $0x278] sm:$0xff]
        %2767 = vmatprep.subr.mxu0 %v2688
        %2768 = vmatpush1.msra.mxu0 %v2687
        %2769 = vmatprep.subr.mxu0 %v2693
        %2770 = vmatpush1.msra.mxu0 %v2692
        %2771 = vmatprep.subr.mxu0 %v2698
        %2772 = vmatpush1.msra.mxu0 %v2697
        %2773 = vmatprep.subr.mxu0 %v2703
        %2774 = vmatpush1.msra.mxu0 %v2702
        %2775 = vmatprep.subr.mxu0 %v2708
        %2776 = vmatpush1.msra.mxu0 %v2707
        %2777 = vmatprep.subr.mxu0 %v2713
        %2778 = vmatpush1.msra.mxu0 %v2712
        %2779 = vmatprep.subr.mxu0 %v2718
        %2780 = vmatpush1.msra.mxu0 %v2717
        %2781 = vmatprep.subr.mxu0 %v2723
        %2782 = vmatpush1.msra.mxu0 %v2722
        %2783 = vmatprep.subr.mxu0 %v2728
        %2784 = vmatpush1.msra.mxu0 %v2727
        %2785 = vmatprep.subr.mxu0 %v2733
        %2786 = vmatpush1.msra.mxu0 %v2732
        %2787 = vmatprep.subr.mxu0 %v2738
        %2788 = vmatpush1.msra.mxu0 %v2737
        %2789 = vmatprep.subr.mxu0 %v2743
        %2790 = vmatpush1.msra.mxu0 %v2742
        %2791 = vmatprep.subr.mxu0 %v2748
        %2792 = vmatpush1.msra.mxu0 %v2747
        %2793 = vmatprep.subr.mxu0 %v2753
        %2794 = vmatpush1.msra.mxu0 %v2752
        %2795 = vmatprep.subr.mxu0 %v2758
        %2796 = vmatpush1.msra.mxu0 %v2757
        %2797 = vmatprep.subr.mxu0 %v2763
        %2798 = vmatpush1.msra.mxu0 %v2762
        %2799 = vmatprep.subr.mxu0 0.0
        %2800 = vmatpush1.msra.mxu0 0.0
        %2801 = vmatprep.subr.mxu0 0.0
        %2802 = vmatpush1.msra.mxu0 0.0
        %2803 = vmatprep.subr.mxu0 0.0
        %2804 = vmatpush1.msra.mxu0 0.0
        %2805 = vmatprep.subr.mxu0 0.0
        %2806 = vmatpush1.msra.mxu0 0.0
        %2807 = vmatprep.subr.mxu0 0.0
        %2808 = vmatpush1.msra.mxu0 0.0
        %2809 = vmatprep.subr.mxu0 0.0
        %2810 = vmatpush1.msra.mxu0 0.0
        %2811 = vmatprep.subr.mxu0 0.0
        %2812 = vmatpush1.msra.mxu0 0.0
        %2813 = vmatprep.subr.mxu0 0.0
        %2814 = vmatpush1.msra.mxu0 0.0
        %2815 = vmatprep.subr.mxu0 0.0
        %2816 = vmatpush1.msra.mxu0 0.0
        %2817 = vmatprep.subr.mxu0 0.0
        %2818 = vmatpush1.msra.mxu0 0.0
        %2819 = vmatprep.subr.mxu0 0.0
        %2820 = vmatpush1.msra.mxu0 0.0
        %2821 = vmatprep.subr.mxu0 0.0
        %2822 = vmatpush1.msra.mxu0 0.0
        %2823 = vmatprep.subr.mxu0 0.0
        %2824 = vmatpush1.msra.mxu0 0.0
        %2825 = vmatprep.subr.mxu0 0.0
        %2826 = vmatpush1.msra.mxu0 0.0
        %2827 = vmatprep.subr.mxu0 0.0
        %2828 = vmatpush1.msra.mxu0 0.0
        %2829 = vmatprep.subr.mxu0 0.0
        %2830 = vmatpush1.msra.mxu0 0.0
        %2831 = vmatprep.mubr.f32.mxu0 0.0
        %2832 = vmatmul.mubr.f32.gmra.mrb[0].mxu0 %v2682
        %v2833 = vpop.f32.mrb[0].mxu0
        %v2834 = vadd.f32 0.0, %v2833
        %v2835 = vpop.f32.mrb[0].mxu0
        %v2836 = vadd.f32 0.0, %v2835
        %2837 = vmatprep.mubr.f32.mxu0 0.0
        %2838 = vmatmul.mubr.f32.gmra.mrb[0].mxu0 %v2683
        %v2839 = vpop.f32.mrb[0].mxu0
        %v2840 = vadd.f32 0.0, %v2839
        %v2841 = vpop.f32.mrb[0].mxu0
        %v2842 = vadd.f32 0.0, %v2841
        %2843 = vdwg.mxu0
        %2844 = vmatprep.subr.mxu0 %v2690
        %2845 = vmatpush1.msra.mxu0 %v2689
        %2846 = vmatprep.subr.mxu0 %v2695
        %2847 = vmatpush1.msra.mxu0 %v2694
        %2848 = vmatprep.subr.mxu0 %v2700
        %2849 = vmatpush1.msra.mxu0 %v2699
        %2850 = vmatprep.subr.mxu0 %v2705
        %2851 = vmatpush1.msra.mxu0 %v2704
        %2852 = vmatprep.subr.mxu0 %v2710
        %2853 = vmatpush1.msra.mxu0 %v2709
        %2854 = vmatprep.subr.mxu0 %v2715
        %2855 = vmatpush1.msra.mxu0 %v2714
        %2856 = vmatprep.subr.mxu0 %v2720
        %2857 = vmatpush1.msra.mxu0 %v2719
        %2858 = vmatprep.subr.mxu0 %v2725
        %2859 = vmatpush1.msra.mxu0 %v2724
        %2860 = vmatprep.subr.mxu0 %v2730
        %2861 = vmatpush1.msra.mxu0 %v2729
        %2862 = vmatprep.subr.mxu0 %v2735
        %2863 = vmatpush1.msra.mxu0 %v2734
        %2864 = vmatprep.subr.mxu0 %v2740
        %2865 = vmatpush1.msra.mxu0 %v2739
        %2866 = vmatprep.subr.mxu0 %v2745
        %2867 = vmatpush1.msra.mxu0 %v2744
        %2868 = vmatprep.subr.mxu0 %v2750
        %2869 = vmatpush1.msra.mxu0 %v2749
        %2870 = vmatprep.subr.mxu0 %v2755
        %2871 = vmatpush1.msra.mxu0 %v2754
        %2872 = vmatprep.subr.mxu0 %v2760
        %2873 = vmatpush1.msra.mxu0 %v2759
        %2874 = vmatprep.subr.mxu0 %v2765
        %2875 = vmatpush1.msra.mxu0 %v2764
        %2876 = vmatprep.subr.mxu0 0.0
        %2877 = vmatpush1.msra.mxu0 0.0
        %2878 = vmatprep.subr.mxu0 0.0
        %2879 = vmatpush1.msra.mxu0 0.0
        %2880 = vmatprep.subr.mxu0 0.0
        %2881 = vmatpush1.msra.mxu0 0.0
        %2882 = vmatprep.subr.mxu0 0.0
        %2883 = vmatpush1.msra.mxu0 0.0
        %2884 = vmatprep.subr.mxu0 0.0
        %2885 = vmatpush1.msra.mxu0 0.0
        %2886 = vmatprep.subr.mxu0 0.0
        %2887 = vmatpush1.msra.mxu0 0.0
        %2888 = vmatprep.subr.mxu0 0.0
        %2889 = vmatpush1.msra.mxu0 0.0
        %2890 = vmatprep.subr.mxu0 0.0
        %2891 = vmatpush1.msra.mxu0 0.0
        %2892 = vmatprep.subr.mxu0 0.0
        %2893 = vmatpush1.msra.mxu0 0.0
        %2894 = vmatprep.subr.mxu0 0.0
        %2895 = vmatpush1.msra.mxu0 0.0
        %2896 = vmatprep.subr.mxu0 0.0
        %2897 = vmatpush1.msra.mxu0 0.0
        %2898 = vmatprep.subr.mxu0 0.0
        %2899 = vmatpush1.msra.mxu0 0.0
        %2900 = vmatprep.subr.mxu0 0.0
        %2901 = vmatpush1.msra.mxu0 0.0
        %2902 = vmatprep.subr.mxu0 0.0
        %2903 = vmatpush1.msra.mxu0 0.0
        %2904 = vmatprep.subr.mxu0 0.0
        %2905 = vmatpush1.msra.mxu0 0.0
        %2906 = vmatprep.subr.mxu0 0.0
        %2907 = vmatpush1.msra.mxu0 0.0
        %2908 = vmatprep.mubr.f32.mxu0 0.0
        %2909 = vmatmul.mubr.f32.gmra.mrb[0].mxu0 %v2682
        %v2910 = vpop.f32.mrb[0].mxu0
        %v2911 = vadd.f32 0.0, %v2910
        %v2912 = vpop.f32.mrb[0].mxu0
        %v2913 = vadd.f32 0.0, %v2912
        %2914 = vmatprep.mubr.f32.mxu0 0.0
        %2915 = vmatmul.mubr.f32.gmra.mrb[0].mxu0 %v2683
        %v2916 = vpop.f32.mrb[0].mxu0
        %v2917 = vadd.f32 0.0, %v2916
        %v2918 = vpop.f32.mrb[0].mxu0
        %v2919 = vadd.f32 0.0, %v2918
        %2920 = vdwg.mxu0
        %2921 = vmatprep.subr.mxu0 0.0
        %2922 = vmatpush1.msra.mxu0 %v2691
        %2923 = vmatprep.subr.mxu0 0.0
        %2924 = vmatpush1.msra.mxu0 %v2696
        %2925 = vmatprep.subr.mxu0 0.0
        %2926 = vmatpush1.msra.mxu0 %v2701
        %2927 = vmatprep.subr.mxu0 0.0
        %2928 = vmatpush1.msra.mxu0 %v2706
        %2929 = vmatprep.subr.mxu0 0.0
        %2930 = vmatpush1.msra.mxu0 %v2711
        %2931 = vmatprep.subr.mxu0 0.0
        %2932 = vmatpush1.msra.mxu0 %v2716
        %2933 = vmatprep.subr.mxu0 0.0
        %2934 = vmatpush1.msra.mxu0 %v2721
        %2935 = vmatprep.subr.mxu0 0.0
        %2936 = vmatpush1.msra.mxu0 %v2726
        %2937 = vmatprep.subr.mxu0 0.0
        %2938 = vmatpush1.msra.mxu0 %v2731
        %2939 = vmatprep.subr.mxu0 0.0
        %2940 = vmatpush1.msra.mxu0 %v2736
        %2941 = vmatprep.subr.mxu0 0.0
        %2942 = vmatpush1.msra.mxu0 %v2741
        %2943 = vmatprep.subr.mxu0 0.0
        %2944 = vmatpush1.msra.mxu0 %v2746
        %2945 = vmatprep.subr.mxu0 0.0
        %2946 = vmatpush1.msra.mxu0 %v2751
        %2947 = vmatprep.subr.mxu0 0.0
        %2948 = vmatpush1.msra.mxu0 %v2756
        %2949 = vmatprep.subr.mxu0 0.0
        %2950 = vmatpush1.msra.mxu0 %v2761
        %2951 = vmatprep.subr.mxu0 0.0
        %2952 = vmatpush1.msra.mxu0 %v2766
        %2953 = vmatprep.subr.mxu0 0.0
        %2954 = vmatpush1.msra.mxu0 0.0
        %2955 = vmatprep.subr.mxu0 0.0
        %2956 = vmatpush1.msra.mxu0 0.0
        %2957 = vmatprep.subr.mxu0 0.0
        %2958 = vmatpush1.msra.mxu0 0.0
        %2959 = vmatprep.subr.mxu0 0.0
        %2960 = vmatpush1.msra.mxu0 0.0
        %2961 = vmatprep.subr.mxu0 0.0
        %2962 = vmatpush1.msra.mxu0 0.0
        %2963 = vmatprep.subr.mxu0 0.0
        %2964 = vmatpush1.msra.mxu0 0.0
        %2965 = vmatprep.subr.mxu0 0.0
        %2966 = vmatpush1.msra.mxu0 0.0
        %2967 = vmatprep.subr.mxu0 0.0
        %2968 = vmatpush1.msra.mxu0 0.0
        %2969 = vmatprep.subr.mxu0 0.0
        %2970 = vmatpush1.msra.mxu0 0.0
        %2971 = vmatprep.subr.mxu0 0.0
        %2972 = vmatpush1.msra.mxu0 0.0
        %2973 = vmatprep.subr.mxu0 0.0
        %2974 = vmatpush1.msra.mxu0 0.0
        %2975 = vmatprep.subr.mxu0 0.0
        %2976 = vmatpush1.msra.mxu0 0.0
        %2977 = vmatprep.subr.mxu0 0.0
        %2978 = vmatpush1.msra.mxu0 0.0
        %2979 = vmatprep.subr.mxu0 0.0
        %2980 = vmatpush1.msra.mxu0 0.0
        %2981 = vmatprep.subr.mxu0 0.0
        %2982 = vmatpush1.msra.mxu0 0.0
        %2983 = vmatprep.subr.mxu0 0.0
        %2984 = vmatpush1.msra.mxu0 0.0
        %2985 = vmatprep.mubr.f32.mxu0 0.0
        %2986 = vmatmul.mubr.f32.gmra.mrb[0].mxu0 %v2682
        %v2987 = vpop.f32.mrb[0].mxu0
        %v2988 = vadd.f32 0.0, %v2987
        %v2989 = vpop.f32.mrb[0].mxu0
        %2990 = vmatprep.mubr.f32.mxu0 0.0
        %2991 = vmatmul.mubr.f32.gmra.mrb[0].mxu0 %v2683
        %v2992 = vpop.f32.mrb[0].mxu0
        %v2993 = vadd.f32 0.0, %v2992
        %v2994 = vpop.f32.mrb[0].mxu0
        %2995 = vdwg.mxu0
        %s2996 = scalar_lea.vmem %s330, 320
        %v2997 = vld [vmem:[%s2996] sm:$0xff]
        %v2998 = vld [vmem:[%s2996 + $0x28] sm:$0xff]
        %v2999 = vadd.f32 %v2997, %v2834
        %v3000 = vadd.f32 %v2998, %v2840
        %v3001 = vld [vmem:[%s2996 + $0x8] sm:$0xff]
        %v3002 = vld [vmem:[%s2996 + $0x30] sm:$0xff]
        %v3003 = vadd.f32 %v3001, %v2836
        %v3004 = vadd.f32 %v3002, %v2842
        %v3005 = vmul.f32 %v3003, 0.5
        %v3006 = vmul.f32 %v3004, 0.5
        %v3007 = vmul.f32 %v3005, 1.442695
        %v3008 = vpow.pop %v3007
        %v3009 = vmul.f32 %v3006, 1.442695
        %v3010 = vpow.pop %v3009
        %s3011 = scalar_lea.vmem %s342, 64
        %v3012 = vld [vmem:[%s3011] sm:$0xff]
        %v3013 = vld [vmem:[%s3011 + $0x8] sm:$0xff]
        %v3014 = vmul.f32 %v3012, %v3008
        %v3015 = vmul.f32 %v3013, %v3010
        %v3016 = vadd.f32 %v2999, %v3014
        %v3017 = vadd.f32 %v3000, %v3015
        %v3018 = vld [vmem:[%s4] sm:$0xff]
        %v3019 = vld [vmem:[%s4 + $0x8] sm:$0xff]
        %v3020 = vld [vmem:[%s4 + $0x10] sm:$0xff]
        %v3021 = vld [vmem:[%s4 + $0x18] sm:$0xff]
        %v3022 = vld [vmem:[%s4 + $0x20] sm:$0xff]
        %v3023 = vld [vmem:[%s4 + $0x28] sm:$0xff]
        %v3024 = vld [vmem:[%s4 + $0x30] sm:$0xff]
        %v3025 = vld [vmem:[%s4 + $0x38] sm:$0xff]
        %v3026 = vld [vmem:[%s4 + $0x40] sm:$0xff]
        %v3027 = vld [vmem:[%s4 + $0x48] sm:$0xff]
        %v3028 = vld [vmem:[%s4 + $0x50] sm:$0xff]
        %v3029 = vld [vmem:[%s4 + $0x58] sm:$0xff]
        %v3030 = vld [vmem:[%s4 + $0x60] sm:$0xff]
        %v3031 = vld [vmem:[%s4 + $0x68] sm:$0xff]
        %v3032 = vld [vmem:[%s4 + $0x70] sm:$0xff]
        %v3033 = vld [vmem:[%s4 + $0x78] sm:$0xff]
        %v3034 = vld [vmem:[%s4 + $0x80] sm:$0xff]
        %v3035 = vld [vmem:[%s4 + $0x88] sm:$0xff]
        %v3036 = vld [vmem:[%s4 + $0x90] sm:$0xff]
        %v3037 = vld [vmem:[%s4 + $0x98] sm:$0xff]
        %v3038 = vld [vmem:[%s4 + $0xa0] sm:$0xff]
        %v3039 = vld [vmem:[%s4 + $0xa8] sm:$0xff]
        %v3040 = vld [vmem:[%s4 + $0xb0] sm:$0xff]
        %v3041 = vld [vmem:[%s4 + $0xb8] sm:$0xff]
        %v3042 = vld [vmem:[%s4 + $0xc0] sm:$0xff]
        %v3043 = vld [vmem:[%s4 + $0xc8] sm:$0xff]
        %v3044 = vld [vmem:[%s4 + $0xd0] sm:$0xff]
        %v3045 = vld [vmem:[%s4 + $0xd8] sm:$0xff]
        %v3046 = vld [vmem:[%s4 + $0xe0] sm:$0xff]
        %v3047 = vld [vmem:[%s4 + $0xe8] sm:$0xff]
        %v3048 = vld [vmem:[%s4 + $0xf0] sm:$0xff]
        %v3049 = vld [vmem:[%s4 + $0xf8] sm:$0xff]
        %v3050 = vld [vmem:[%s4 + $0x100] sm:$0xff]
        %v3051 = vld [vmem:[%s4 + $0x108] sm:$0xff]
        %v3052 = vld [vmem:[%s4 + $0x110] sm:$0xff]
        %v3053 = vld [vmem:[%s4 + $0x118] sm:$0xff]
        %v3054 = vld [vmem:[%s4 + $0x120] sm:$0xff]
        %v3055 = vld [vmem:[%s4 + $0x128] sm:$0xff]
        %v3056 = vld [vmem:[%s4 + $0x130] sm:$0xff]
        %v3057 = vld [vmem:[%s4 + $0x138] sm:$0xff]
        %v3058 = vld [vmem:[%s4 + $0x140] sm:$0xff]
        %v3059 = vld [vmem:[%s4 + $0x148] sm:$0xff]
        %v3060 = vld [vmem:[%s4 + $0x150] sm:$0xff]
        %v3061 = vld [vmem:[%s4 + $0x158] sm:$0xff]
        %v3062 = vld [vmem:[%s4 + $0x160] sm:$0xff]
        %v3063 = vld [vmem:[%s4 + $0x168] sm:$0xff]
        %v3064 = vld [vmem:[%s4 + $0x170] sm:$0xff]
        %v3065 = vld [vmem:[%s4 + $0x178] sm:$0xff]
        %3066 = vmatprep.subr.mxu0 %v3019
        %3067 = vmatpush1.msra.mxu0 %v3018
        %3068 = vmatprep.subr.mxu0 %v3022
        %3069 = vmatpush1.msra.mxu0 %v3021
        %3070 = vmatprep.subr.mxu0 %v3025
        %3071 = vmatpush1.msra.mxu0 %v3024
        %3072 = vmatprep.subr.mxu0 %v3028
        %3073 = vmatpush1.msra.mxu0 %v3027
        %3074 = vmatprep.subr.mxu0 %v3031
        %3075 = vmatpush1.msra.mxu0 %v3030
        %3076 = vmatprep.subr.mxu0 %v3034
        %3077 = vmatpush1.msra.mxu0 %v3033
        %3078 = vmatprep.subr.mxu0 %v3037
        %3079 = vmatpush1.msra.mxu0 %v3036
        %3080 = vmatprep.subr.mxu0 %v3040
        %3081 = vmatpush1.msra.mxu0 %v3039
        %3082 = vmatprep.subr.mxu0 %v3043
        %3083 = vmatpush1.msra.mxu0 %v3042
        %3084 = vmatprep.subr.mxu0 %v3046
        %3085 = vmatpush1.msra.mxu0 %v3045
        %3086 = vmatprep.subr.mxu0 %v3049
        %3087 = vmatpush1.msra.mxu0 %v3048
        %3088 = vmatprep.subr.mxu0 %v3052
        %3089 = vmatpush1.msra.mxu0 %v3051
        %3090 = vmatprep.subr.mxu0 %v3055
        %3091 = vmatpush1.msra.mxu0 %v3054
        %3092 = vmatprep.subr.mxu0 %v3058
        %3093 = vmatpush1.msra.mxu0 %v3057
        %3094 = vmatprep.subr.mxu0 %v3061
        %3095 = vmatpush1.msra.mxu0 %v3060
        %3096 = vmatprep.subr.mxu0 %v3064
        %3097 = vmatpush1.msra.mxu0 %v3063
        %3098 = vmatprep.subr.mxu0 0.0
        %3099 = vmatpush1.msra.mxu0 0.0
        %3100 = vmatprep.subr.mxu0 0.0
        %3101 = vmatpush1.msra.mxu0 0.0
        %3102 = vmatprep.subr.mxu0 0.0
        %3103 = vmatpush1.msra.mxu0 0.0
        %3104 = vmatprep.subr.mxu0 0.0
        %3105 = vmatpush1.msra.mxu0 0.0
        %3106 = vmatprep.subr.mxu0 0.0
        %3107 = vmatpush1.msra.mxu0 0.0
        %3108 = vmatprep.subr.mxu0 0.0
        %3109 = vmatpush1.msra.mxu0 0.0
        %3110 = vmatprep.subr.mxu0 0.0
        %3111 = vmatpush1.msra.mxu0 0.0
        %3112 = vmatprep.subr.mxu0 0.0
        %3113 = vmatpush1.msra.mxu0 0.0
        %3114 = vmatprep.subr.mxu0 0.0
        %3115 = vmatpush1.msra.mxu0 0.0
        %3116 = vmatprep.subr.mxu0 0.0
        %3117 = vmatpush1.msra.mxu0 0.0
        %3118 = vmatprep.subr.mxu0 0.0
        %3119 = vmatpush1.msra.mxu0 0.0
        %3120 = vmatprep.subr.mxu0 0.0
        %3121 = vmatpush1.msra.mxu0 0.0
        %3122 = vmatprep.subr.mxu0 0.0
        %3123 = vmatpush1.msra.mxu0 0.0
        %3124 = vmatprep.subr.mxu0 0.0
        %3125 = vmatpush1.msra.mxu0 0.0
        %3126 = vmatprep.subr.mxu0 0.0
        %3127 = vmatpush1.msra.mxu0 0.0
        %3128 = vmatprep.subr.mxu0 0.0
        %3129 = vmatpush1.msra.mxu0 0.0
        %3130 = vmatprep.mubr.f32.mxu0 0.0
        %3131 = vmatmul.mubr.f32.gmra.mrb[0].mxu0 %v3016
        %v3132 = vpop.f32.mrb[0].mxu0
        %v3133 = vadd.f32 0.0, %v3132
        %v3134 = vpop.f32.mrb[0].mxu0
        %v3135 = vadd.f32 0.0, %v3134
        %3136 = vmatprep.mubr.f32.mxu0 0.0
        %3137 = vmatmul.mubr.f32.gmra.mrb[0].mxu0 %v3017
        %v3138 = vpop.f32.mrb[0].mxu0
        %v3139 = vadd.f32 0.0, %v3138
        %v3140 = vpop.f32.mrb[0].mxu0
        %v3141 = vadd.f32 0.0, %v3140
        %3142 = vdwg.mxu0
        %3143 = vmatprep.subr.mxu0 0.0
        %3144 = vmatpush1.msra.mxu0 %v3020
        %3145 = vmatprep.subr.mxu0 0.0
        %3146 = vmatpush1.msra.mxu0 %v3023
        %3147 = vmatprep.subr.mxu0 0.0
        %3148 = vmatpush1.msra.mxu0 %v3026
        %3149 = vmatprep.subr.mxu0 0.0
        %3150 = vmatpush1.msra.mxu0 %v3029
        %3151 = vmatprep.subr.mxu0 0.0
        %3152 = vmatpush1.msra.mxu0 %v3032
        %3153 = vmatprep.subr.mxu0 0.0
        %3154 = vmatpush1.msra.mxu0 %v3035
        %3155 = vmatprep.subr.mxu0 0.0
        %3156 = vmatpush1.msra.mxu0 %v3038
        %3157 = vmatprep.subr.mxu0 0.0
        %3158 = vmatpush1.msra.mxu0 %v3041
        %3159 = vmatprep.subr.mxu0 0.0
        %3160 = vmatpush1.msra.mxu0 %v3044
        %3161 = vmatprep.subr.mxu0 0.0
        %3162 = vmatpush1.msra.mxu0 %v3047
        %3163 = vmatprep.subr.mxu0 0.0
        %3164 = vmatpush1.msra.mxu0 %v3050
        %3165 = vmatprep.subr.mxu0 0.0
        %3166 = vmatpush1.msra.mxu0 %v3053
        %3167 = vmatprep.subr.mxu0 0.0
        %3168 = vmatpush1.msra.mxu0 %v3056
        %3169 = vmatprep.subr.mxu0 0.0
        %3170 = vmatpush1.msra.mxu0 %v3059
        %3171 = vmatprep.subr.mxu0 0.0
        %3172 = vmatpush1.msra.mxu0 %v3062
        %3173 = vmatprep.subr.mxu0 0.0
        %3174 = vmatpush1.msra.mxu0 %v3065
        %3175 = vmatprep.subr.mxu0 0.0
        %3176 = vmatpush1.msra.mxu0 0.0
        %3177 = vmatprep.subr.mxu0 0.0
        %3178 = vmatpush1.msra.mxu0 0.0
        %3179 = vmatprep.subr.mxu0 0.0
        %3180 = vmatpush1.msra.mxu0 0.0
        %3181 = vmatprep.subr.mxu0 0.0
        %3182 = vmatpush1.msra.mxu0 0.0
        %3183 = vmatprep.subr.mxu0 0.0
        %3184 = vmatpush1.msra.mxu0 0.0
        %3185 = vmatprep.subr.mxu0 0.0
        %3186 = vmatpush1.msra.mxu0 0.0
        %3187 = vmatprep.subr.mxu0 0.0
        %3188 = vmatpush1.msra.mxu0 0.0
        %3189 = vmatprep.subr.mxu0 0.0
        %3190 = vmatpush1.msra.mxu0 0.0
        %3191 = vmatprep.subr.mxu0 0.0
        %3192 = vmatpush1.msra.mxu0 0.0
        %3193 = vmatprep.subr.mxu0 0.0
        %3194 = vmatpush1.msra.mxu0 0.0
        %3195 = vmatprep.subr.mxu0 0.0
        %3196 = vmatpush1.msra.mxu0 0.0
        %3197 = vmatprep.subr.mxu0 0.0
        %3198 = vmatpush1.msra.mxu0 0.0
        %3199 = vmatprep.subr.mxu0 0.0
        %3200 = vmatpush1.msra.mxu0 0.0
        %3201 = vmatprep.subr.mxu0 0.0
        %3202 = vmatpush1.msra.mxu0 0.0
        %3203 = vmatprep.subr.mxu0 0.0
        %3204 = vmatpush1.msra.mxu0 0.0
        %3205 = vmatprep.subr.mxu0 0.0
        %3206 = vmatpush1.msra.mxu0 0.0
        %3207 = vmatprep.mubr.f32.mxu0 0.0
        %3208 = vmatmul.mubr.f32.gmra.mrb[0].mxu0 %v3016
        %v3209 = vpop.f32.mrb[0].mxu0
        %v3210 = vadd.f32 0.0, %v3209
        %v3211 = vpop.f32.mrb[0].mxu0
        %3212 = vmatprep.mubr.f32.mxu0 0.0
        %3213 = vmatmul.mubr.f32.gmra.mrb[0].mxu0 %v3017
        %v3214 = vpop.f32.mrb[0].mxu0
        %v3215 = vadd.f32 0.0, %v3214
        %v3216 = vpop.f32.mrb[0].mxu0
        %3217 = vdwg.mxu0
        %v3218 = vld [vmem:[%s2996 + $0x10] sm:$0xff]
        %v3219 = vld [vmem:[%s2996 + $0x38] sm:$0xff]
        %v3220 = vadd.f32 %v3218, %v2911
        %v3221 = vadd.f32 %v3219, %v2917
        %v3222 = vadd.f32 %v3220, %v3133
        %v3223 = vadd.f32 %v3221, %v3139
        %v3224 = vld [vmem:[%s2996 + $0x18] sm:$0xff]
        %v3225 = vld [vmem:[%s2996 + $0x40] sm:$0xff]
        %v3226 = vadd.f32 %v3224, %v2913
        %v3227 = vadd.f32 %v3225, %v2919
        %v3228 = vadd.f32 %v3226, %v3135
        %v3229 = vadd.f32 %v3227, %v3141
        %v3230 = vmul.f32 %v3222, 0.5
        %v3231 = vmul.f32 %v3223, 0.5
        %v3232 = vtanh.pop %v3230
        %v3233 = vtanh.pop %v3231
        %v3234 = vadd.f32 %v3232, 1.0
        %v3235 = vadd.f32 %v3233, 1.0
        %v3236 = vmul.f32 %v3234, 0.5
        %v3237 = vmul.f32 %v3235, 0.5
        %v3238 = vmul.f32 %v3228, 0.5
        %v3239 = vmul.f32 %v3229, 0.5
        %v3240 = vtanh.pop %v3238
        %v3241 = vtanh.pop %v3239
        %v3242 = vadd.f32 %v3240, 1.0
        %v3243 = vadd.f32 %v3241, 1.0
        %v3244 = vmul.f32 %v3242, 0.5
        %v3245 = vmul.f32 %v3243, 0.5
        %v3246 = vld [vmem:[%s2996 + $0x20] sm:$0xff]
        %v3247 = vld [vmem:[%s2996 + $0x48] sm:$0xff]
        %v3248 = vadd.f32 %v3246, %v3210
        %v3249 = vadd.f32 %v3247, %v3215
        %v3250 = vadd.f32 %v2988, %v929
        %v3251 = vadd.f32 %v2993, %v929
        %v3252 = vmul.f32 %v3236, %v3250
        %v3253 = vmul.f32 %v3237, %v3251
        %v3254 = vadd.f32 %v3248, %v3252
        %v3255 = vadd.f32 %v3249, %v3253
        %v3256 = vtanh.pop %v3254
        %v3257 = vtanh.pop %v3255
        %v3258 = vsub.f32 %v2682, %v3256
        %v3259 = vsub.f32 %v2683, %v3257
        %v3260 = vmul.f32 %v3244, %v3258
        %v3261 = vmul.f32 %v3245, %v3259
        %v3262 = vadd.f32 %v3256, %v3260
        %v3263 = vadd.f32 %v3257, %v3261
        %s3264 = scalar_lea.vmem %s319, 64 [#allocation3]
        %3265 = vst [vmem:[%s3264] sm:$0xff] %v3262
        %3266 = vst [vmem:[%s3264 + $0x8] sm:$0xff] %v3263
        %v3267 = vld [vmem:[%s3] sm:$0xff]
        %v3268 = vld [vmem:[%s3 + $0x8] sm:$0xff]
        %v3269 = vld [vmem:[%s3 + $0x10] sm:$0xff]
        %v3270 = vld [vmem:[%s3 + $0x18] sm:$0xff]
        %v3271 = vld [vmem:[%s3 + $0x20] sm:$0xff]
        %v3272 = vld [vmem:[%s3 + $0x28] sm:$0xff]
        %v3273 = vld [vmem:[%s3 + $0x30] sm:$0xff]
        %v3274 = vld [vmem:[%s3 + $0x38] sm:$0xff]
        %v3275 = vld [vmem:[%s3 + $0x40] sm:$0xff]
        %v3276 = vld [vmem:[%s3 + $0x48] sm:$0xff]
        %v3277 = vld [vmem:[%s3 + $0x50] sm:$0xff]
        %v3278 = vld [vmem:[%s3 + $0x58] sm:$0xff]
        %v3279 = vld [vmem:[%s3 + $0x60] sm:$0xff]
        %v3280 = vld [vmem:[%s3 + $0x68] sm:$0xff]
        %v3281 = vld [vmem:[%s3 + $0x70] sm:$0xff]
        %v3282 = vld [vmem:[%s3 + $0x78] sm:$0xff]
        %v3283 = vld [vmem:[%s3 + $0x80] sm:$0xff]
        %v3284 = vld [vmem:[%s3 + $0x88] sm:$0xff]
        %v3285 = vld [vmem:[%s3 + $0x90] sm:$0xff]
        %v3286 = vld [vmem:[%s3 + $0x98] sm:$0xff]
        %v3287 = vld [vmem:[%s3 + $0xa0] sm:$0xff]
        %v3288 = vld [vmem:[%s3 + $0xa8] sm:$0xff]
        %v3289 = vld [vmem:[%s3 + $0xb0] sm:$0xff]
        %v3290 = vld [vmem:[%s3 + $0xb8] sm:$0xff]
        %v3291 = vld [vmem:[%s3 + $0xc0] sm:$0xff]
        %v3292 = vld [vmem:[%s3 + $0xc8] sm:$0xff]
        %v3293 = vld [vmem:[%s3 + $0xd0] sm:$0xff]
        %v3294 = vld [vmem:[%s3 + $0xd8] sm:$0xff]
        %v3295 = vld [vmem:[%s3 + $0xe0] sm:$0xff]
        %v3296 = vld [vmem:[%s3 + $0xe8] sm:$0xff]
        %v3297 = vld [vmem:[%s3 + $0xf0] sm:$0xff]
        %v3298 = vld [vmem:[%s3 + $0xf8] sm:$0xff]
        %v3299 = vld [vmem:[%s3 + $0x100] sm:$0xff]
        %v3300 = vld [vmem:[%s3 + $0x108] sm:$0xff]
        %v3301 = vld [vmem:[%s3 + $0x110] sm:$0xff]
        %v3302 = vld [vmem:[%s3 + $0x118] sm:$0xff]
        %v3303 = vld [vmem:[%s3 + $0x120] sm:$0xff]
        %v3304 = vld [vmem:[%s3 + $0x128] sm:$0xff]
        %v3305 = vld [vmem:[%s3 + $0x130] sm:$0xff]
        %v3306 = vld [vmem:[%s3 + $0x138] sm:$0xff]
        %v3307 = vld [vmem:[%s3 + $0x140] sm:$0xff]
        %v3308 = vld [vmem:[%s3 + $0x148] sm:$0xff]
        %v3309 = vld [vmem:[%s3 + $0x150] sm:$0xff]
        %v3310 = vld [vmem:[%s3 + $0x158] sm:$0xff]
        %v3311 = vld [vmem:[%s3 + $0x160] sm:$0xff]
        %v3312 = vld [vmem:[%s3 + $0x168] sm:$0xff]
        %v3313 = vld [vmem:[%s3 + $0x170] sm:$0xff]
        %v3314 = vld [vmem:[%s3 + $0x178] sm:$0xff]
        %v3315 = vld [vmem:[%s3 + $0x180] sm:$0xff]
        %v3316 = vld [vmem:[%s3 + $0x188] sm:$0xff]
        %v3317 = vld [vmem:[%s3 + $0x190] sm:$0xff]
        %v3318 = vld [vmem:[%s3 + $0x198] sm:$0xff]
        %v3319 = vld [vmem:[%s3 + $0x1a0] sm:$0xff]
        %v3320 = vld [vmem:[%s3 + $0x1a8] sm:$0xff]
        %v3321 = vld [vmem:[%s3 + $0x1b0] sm:$0xff]
        %v3322 = vld [vmem:[%s3 + $0x1b8] sm:$0xff]
        %v3323 = vld [vmem:[%s3 + $0x1c0] sm:$0xff]
        %v3324 = vld [vmem:[%s3 + $0x1c8] sm:$0xff]
        %v3325 = vld [vmem:[%s3 + $0x1d0] sm:$0xff]
        %v3326 = vld [vmem:[%s3 + $0x1d8] sm:$0xff]
        %v3327 = vld [vmem:[%s3 + $0x1e0] sm:$0xff]
        %v3328 = vld [vmem:[%s3 + $0x1e8] sm:$0xff]
        %v3329 = vld [vmem:[%s3 + $0x1f0] sm:$0xff]
        %v3330 = vld [vmem:[%s3 + $0x1f8] sm:$0xff]
        %v3331 = vld [vmem:[%s3 + $0x200] sm:$0xff]
        %v3332 = vld [vmem:[%s3 + $0x208] sm:$0xff]
        %v3333 = vld [vmem:[%s3 + $0x210] sm:$0xff]
        %v3334 = vld [vmem:[%s3 + $0x218] sm:$0xff]
        %v3335 = vld [vmem:[%s3 + $0x220] sm:$0xff]
        %v3336 = vld [vmem:[%s3 + $0x228] sm:$0xff]
        %v3337 = vld [vmem:[%s3 + $0x230] sm:$0xff]
        %v3338 = vld [vmem:[%s3 + $0x238] sm:$0xff]
        %v3339 = vld [vmem:[%s3 + $0x240] sm:$0xff]
        %v3340 = vld [vmem:[%s3 + $0x248] sm:$0xff]
        %v3341 = vld [vmem:[%s3 + $0x250] sm:$0xff]
        %v3342 = vld [vmem:[%s3 + $0x258] sm:$0xff]
        %v3343 = vld [vmem:[%s3 + $0x260] sm:$0xff]
        %v3344 = vld [vmem:[%s3 + $0x268] sm:$0xff]
        %v3345 = vld [vmem:[%s3 + $0x270] sm:$0xff]
        %v3346 = vld [vmem:[%s3 + $0x278] sm:$0xff]
        %3347 = vmatprep.subr.mxu0 %v3268
        %3348 = vmatpush1.msra.mxu0 %v3267
        %3349 = vmatprep.subr.mxu0 %v3273
        %3350 = vmatpush1.msra.mxu0 %v3272
        %3351 = vmatprep.subr.mxu0 %v3278
        %3352 = vmatpush1.msra.mxu0 %v3277
        %3353 = vmatprep.subr.mxu0 %v3283
        %3354 = vmatpush1.msra.mxu0 %v3282
        %3355 = vmatprep.subr.mxu0 %v3288
        %3356 = vmatpush1.msra.mxu0 %v3287
        %3357 = vmatprep.subr.mxu0 %v3293
        %3358 = vmatpush1.msra.mxu0 %v3292
        %3359 = vmatprep.subr.mxu0 %v3298
        %3360 = vmatpush1.msra.mxu0 %v3297
        %3361 = vmatprep.subr.mxu0 %v3303
        %3362 = vmatpush1.msra.mxu0 %v3302
        %3363 = vmatprep.subr.mxu0 %v3308
        %3364 = vmatpush1.msra.mxu0 %v3307
        %3365 = vmatprep.subr.mxu0 %v3313
        %3366 = vmatpush1.msra.mxu0 %v3312
        %3367 = vmatprep.subr.mxu0 %v3318
        %3368 = vmatpush1.msra.mxu0 %v3317
        %3369 = vmatprep.subr.mxu0 %v3323
        %3370 = vmatpush1.msra.mxu0 %v3322
        %3371 = vmatprep.subr.mxu0 %v3328
        %3372 = vmatpush1.msra.mxu0 %v3327
        %3373 = vmatprep.subr.mxu0 %v3333
        %3374 = vmatpush1.msra.mxu0 %v3332
        %3375 = vmatprep.subr.mxu0 %v3338
        %3376 = vmatpush1.msra.mxu0 %v3337
        %3377 = vmatprep.subr.mxu0 %v3343
        %3378 = vmatpush1.msra.mxu0 %v3342
        %3379 = vmatprep.subr.mxu0 0.0
        %3380 = vmatpush1.msra.mxu0 0.0
        %3381 = vmatprep.subr.mxu0 0.0
        %3382 = vmatpush1.msra.mxu0 0.0
        %3383 = vmatprep.subr.mxu0 0.0
        %3384 = vmatpush1.msra.mxu0 0.0
        %3385 = vmatprep.subr.mxu0 0.0
        %3386 = vmatpush1.msra.mxu0 0.0
        %3387 = vmatprep.subr.mxu0 0.0
        %3388 = vmatpush1.msra.mxu0 0.0
        %3389 = vmatprep.subr.mxu0 0.0
        %3390 = vmatpush1.msra.mxu0 0.0
        %3391 = vmatprep.subr.mxu0 0.0
        %3392 = vmatpush1.msra.mxu0 0.0
        %3393 = vmatprep.subr.mxu0 0.0
        %3394 = vmatpush1.msra.mxu0 0.0
        %3395 = vmatprep.subr.mxu0 0.0
        %3396 = vmatpush1.msra.mxu0 0.0
        %3397 = vmatprep.subr.mxu0 0.0
        %3398 = vmatpush1.msra.mxu0 0.0
        %3399 = vmatprep.subr.mxu0 0.0
        %3400 = vmatpush1.msra.mxu0 0.0
        %3401 = vmatprep.subr.mxu0 0.0
        %3402 = vmatpush1.msra.mxu0 0.0
        %3403 = vmatprep.subr.mxu0 0.0
        %3404 = vmatpush1.msra.mxu0 0.0
        %3405 = vmatprep.subr.mxu0 0.0
        %3406 = vmatpush1.msra.mxu0 0.0
        %3407 = vmatprep.subr.mxu0 0.0
        %3408 = vmatpush1.msra.mxu0 0.0
        %3409 = vmatprep.subr.mxu0 0.0
        %3410 = vmatpush1.msra.mxu0 0.0
        %3411 = vmatprep.mubr.f32.mxu0 0.0
        %3412 = vmatmul.mubr.f32.gmra.mrb[0].mxu0 %v3262
        %v3413 = vpop.f32.mrb[0].mxu0
        %v3414 = vadd.f32 0.0, %v3413
        %v3415 = vpop.f32.mrb[0].mxu0
        %v3416 = vadd.f32 0.0, %v3415
        %3417 = vmatprep.mubr.f32.mxu0 0.0
        %3418 = vmatmul.mubr.f32.gmra.mrb[0].mxu0 %v3263
        %v3419 = vpop.f32.mrb[0].mxu0
        %v3420 = vadd.f32 0.0, %v3419
        %v3421 = vpop.f32.mrb[0].mxu0
        %v3422 = vadd.f32 0.0, %v3421
        %3423 = vdwg.mxu0
        %3424 = vmatprep.subr.mxu0 %v3270
        %3425 = vmatpush1.msra.mxu0 %v3269
        %3426 = vmatprep.subr.mxu0 %v3275
        %3427 = vmatpush1.msra.mxu0 %v3274
        %3428 = vmatprep.subr.mxu0 %v3280
        %3429 = vmatpush1.msra.mxu0 %v3279
        %3430 = vmatprep.subr.mxu0 %v3285
        %3431 = vmatpush1.msra.mxu0 %v3284
        %3432 = vmatprep.subr.mxu0 %v3290
        %3433 = vmatpush1.msra.mxu0 %v3289
        %3434 = vmatprep.subr.mxu0 %v3295
        %3435 = vmatpush1.msra.mxu0 %v3294
        %3436 = vmatprep.subr.mxu0 %v3300
        %3437 = vmatpush1.msra.mxu0 %v3299
        %3438 = vmatprep.subr.mxu0 %v3305
        %3439 = vmatpush1.msra.mxu0 %v3304
        %3440 = vmatprep.subr.mxu0 %v3310
        %3441 = vmatpush1.msra.mxu0 %v3309
        %3442 = vmatprep.subr.mxu0 %v3315
        %3443 = vmatpush1.msra.mxu0 %v3314
        %3444 = vmatprep.subr.mxu0 %v3320
        %3445 = vmatpush1.msra.mxu0 %v3319
        %3446 = vmatprep.subr.mxu0 %v3325
        %3447 = vmatpush1.msra.mxu0 %v3324
        %3448 = vmatprep.subr.mxu0 %v3330
        %3449 = vmatpush1.msra.mxu0 %v3329
        %3450 = vmatprep.subr.mxu0 %v3335
        %3451 = vmatpush1.msra.mxu0 %v3334
        %3452 = vmatprep.subr.mxu0 %v3340
        %3453 = vmatpush1.msra.mxu0 %v3339
        %3454 = vmatprep.subr.mxu0 %v3345
        %3455 = vmatpush1.msra.mxu0 %v3344
        %3456 = vmatprep.subr.mxu0 0.0
        %3457 = vmatpush1.msra.mxu0 0.0
        %3458 = vmatprep.subr.mxu0 0.0
        %3459 = vmatpush1.msra.mxu0 0.0
        %3460 = vmatprep.subr.mxu0 0.0
        %3461 = vmatpush1.msra.mxu0 0.0
        %3462 = vmatprep.subr.mxu0 0.0
        %3463 = vmatpush1.msra.mxu0 0.0
        %3464 = vmatprep.subr.mxu0 0.0
        %3465 = vmatpush1.msra.mxu0 0.0
        %3466 = vmatprep.subr.mxu0 0.0
        %3467 = vmatpush1.msra.mxu0 0.0
        %3468 = vmatprep.subr.mxu0 0.0
        %3469 = vmatpush1.msra.mxu0 0.0
        %3470 = vmatprep.subr.mxu0 0.0
        %3471 = vmatpush1.msra.mxu0 0.0
        %3472 = vmatprep.subr.mxu0 0.0
        %3473 = vmatpush1.msra.mxu0 0.0
        %3474 = vmatprep.subr.mxu0 0.0
        %3475 = vmatpush1.msra.mxu0 0.0
        %3476 = vmatprep.subr.mxu0 0.0
        %3477 = vmatpush1.msra.mxu0 0.0
        %3478 = vmatprep.subr.mxu0 0.0
        %3479 = vmatpush1.msra.mxu0 0.0
        %3480 = vmatprep.subr.mxu0 0.0
        %3481 = vmatpush1.msra.mxu0 0.0
        %3482 = vmatprep.subr.mxu0 0.0
        %3483 = vmatpush1.msra.mxu0 0.0
        %3484 = vmatprep.subr.mxu0 0.0
        %3485 = vmatpush1.msra.mxu0 0.0
        %3486 = vmatprep.subr.mxu0 0.0
        %3487 = vmatpush1.msra.mxu0 0.0
        %3488 = vmatprep.mubr.f32.mxu0 0.0
        %3489 = vmatmul.mubr.f32.gmra.mrb[0].mxu0 %v3262
        %v3490 = vpop.f32.mrb[0].mxu0
        %v3491 = vadd.f32 0.0, %v3490
        %v3492 = vpop.f32.mrb[0].mxu0
        %v3493 = vadd.f32 0.0, %v3492
        %3494 = vmatprep.mubr.f32.mxu0 0.0
        %3495 = vmatmul.mubr.f32.gmra.mrb[0].mxu0 %v3263
        %v3496 = vpop.f32.mrb[0].mxu0
        %v3497 = vadd.f32 0.0, %v3496
        %v3498 = vpop.f32.mrb[0].mxu0
        %v3499 = vadd.f32 0.0, %v3498
        %3500 = vdwg.mxu0
        %3501 = vmatprep.subr.mxu0 0.0
        %3502 = vmatpush1.msra.mxu0 %v3271
        %3503 = vmatprep.subr.mxu0 0.0
        %3504 = vmatpush1.msra.mxu0 %v3276
        %3505 = vmatprep.subr.mxu0 0.0
        %3506 = vmatpush1.msra.mxu0 %v3281
        %3507 = vmatprep.subr.mxu0 0.0
        %3508 = vmatpush1.msra.mxu0 %v3286
        %3509 = vmatprep.subr.mxu0 0.0
        %3510 = vmatpush1.msra.mxu0 %v3291
        %3511 = vmatprep.subr.mxu0 0.0
        %3512 = vmatpush1.msra.mxu0 %v3296
        %3513 = vmatprep.subr.mxu0 0.0
        %3514 = vmatpush1.msra.mxu0 %v3301
        %3515 = vmatprep.subr.mxu0 0.0
        %3516 = vmatpush1.msra.mxu0 %v3306
        %3517 = vmatprep.subr.mxu0 0.0
        %3518 = vmatpush1.msra.mxu0 %v3311
        %3519 = vmatprep.subr.mxu0 0.0
        %3520 = vmatpush1.msra.mxu0 %v3316
        %3521 = vmatprep.subr.mxu0 0.0
        %3522 = vmatpush1.msra.mxu0 %v3321
        %3523 = vmatprep.subr.mxu0 0.0
        %3524 = vmatpush1.msra.mxu0 %v3326
        %3525 = vmatprep.subr.mxu0 0.0
        %3526 = vmatpush1.msra.mxu0 %v3331
        %3527 = vmatprep.subr.mxu0 0.0
        %3528 = vmatpush1.msra.mxu0 %v3336
        %3529 = vmatprep.subr.mxu0 0.0
        %3530 = vmatpush1.msra.mxu0 %v3341
        %3531 = vmatprep.subr.mxu0 0.0
        %3532 = vmatpush1.msra.mxu0 %v3346
        %3533 = vmatprep.subr.mxu0 0.0
        %3534 = vmatpush1.msra.mxu0 0.0
        %3535 = vmatprep.subr.mxu0 0.0
        %3536 = vmatpush1.msra.mxu0 0.0
        %3537 = vmatprep.subr.mxu0 0.0
        %3538 = vmatpush1.msra.mxu0 0.0
        %3539 = vmatprep.subr.mxu0 0.0
        %3540 = vmatpush1.msra.mxu0 0.0
        %3541 = vmatprep.subr.mxu0 0.0
        %3542 = vmatpush1.msra.mxu0 0.0
        %3543 = vmatprep.subr.mxu0 0.0
        %3544 = vmatpush1.msra.mxu0 0.0
        %3545 = vmatprep.subr.mxu0 0.0
        %3546 = vmatpush1.msra.mxu0 0.0
        %3547 = vmatprep.subr.mxu0 0.0
        %3548 = vmatpush1.msra.mxu0 0.0
        %3549 = vmatprep.subr.mxu0 0.0
        %3550 = vmatpush1.msra.mxu0 0.0
        %3551 = vmatprep.subr.mxu0 0.0
        %3552 = vmatpush1.msra.mxu0 0.0
        %3553 = vmatprep.subr.mxu0 0.0
        %3554 = vmatpush1.msra.mxu0 0.0
        %3555 = vmatprep.subr.mxu0 0.0
        %3556 = vmatpush1.msra.mxu0 0.0
        %3557 = vmatprep.subr.mxu0 0.0
        %3558 = vmatpush1.msra.mxu0 0.0
        %3559 = vmatprep.subr.mxu0 0.0
        %3560 = vmatpush1.msra.mxu0 0.0
        %3561 = vmatprep.subr.mxu0 0.0
        %3562 = vmatpush1.msra.mxu0 0.0
        %3563 = vmatprep.subr.mxu0 0.0
        %3564 = vmatpush1.msra.mxu0 0.0
        %3565 = vmatprep.mubr.f32.mxu0 0.0
        %3566 = vmatmul.mubr.f32.gmra.mrb[0].mxu0 %v3262
        %v3567 = vpop.f32.mrb[0].mxu0
        %v3568 = vadd.f32 0.0, %v3567
        %v3569 = vpop.f32.mrb[0].mxu0
        %3570 = vmatprep.mubr.f32.mxu0 0.0
        %3571 = vmatmul.mubr.f32.gmra.mrb[0].mxu0 %v3263
        %v3572 = vpop.f32.mrb[0].mxu0
        %v3573 = vadd.f32 0.0, %v3572
        %v3574 = vpop.f32.mrb[0].mxu0
        %3575 = vdwg.mxu0
        %s3576 = scalar_lea.vmem %s330, 400
        %v3577 = vld [vmem:[%s3576] sm:$0xff]
        %v3578 = vld [vmem:[%s3576 + $0x28] sm:$0xff]
        %v3579 = vadd.f32 %v3577, %v3414
        %v3580 = vadd.f32 %v3578, %v3420
        %v3581 = vld [vmem:[%s3576 + $0x8] sm:$0xff]
        %v3582 = vld [vmem:[%s3576 + $0x30] sm:$0xff]
        %v3583 = vadd.f32 %v3581, %v3416
        %v3584 = vadd.f32 %v3582, %v3422
        %v3585 = vmul.f32 %v3583, 0.5
        %v3586 = vmul.f32 %v3584, 0.5
        %v3587 = vmul.f32 %v3585, 1.442695
        %v3588 = vpow.pop %v3587
        %v3589 = vmul.f32 %v3586, 1.442695
        %v3590 = vpow.pop %v3589
        %s3591 = scalar_lea.vmem %s342, 80
        %v3592 = vld [vmem:[%s3591] sm:$0xff]
        %v3593 = vld [vmem:[%s3591 + $0x8] sm:$0xff]
        %v3594 = vmul.f32 %v3592, %v3588
        %v3595 = vmul.f32 %v3593, %v3590
        %v3596 = vadd.f32 %v3579, %v3594
        %v3597 = vadd.f32 %v3580, %v3595
        %v3598 = vld [vmem:[%s4] sm:$0xff]
        %v3599 = vld [vmem:[%s4 + $0x8] sm:$0xff]
        %v3600 = vld [vmem:[%s4 + $0x10] sm:$0xff]
        %v3601 = vld [vmem:[%s4 + $0x18] sm:$0xff]
        %v3602 = vld [vmem:[%s4 + $0x20] sm:$0xff]
        %v3603 = vld [vmem:[%s4 + $0x28] sm:$0xff]
        %v3604 = vld [vmem:[%s4 + $0x30] sm:$0xff]
        %v3605 = vld [vmem:[%s4 + $0x38] sm:$0xff]
        %v3606 = vld [vmem:[%s4 + $0x40] sm:$0xff]
        %v3607 = vld [vmem:[%s4 + $0x48] sm:$0xff]
        %v3608 = vld [vmem:[%s4 + $0x50] sm:$0xff]
        %v3609 = vld [vmem:[%s4 + $0x58] sm:$0xff]
        %v3610 = vld [vmem:[%s4 + $0x60] sm:$0xff]
        %v3611 = vld [vmem:[%s4 + $0x68] sm:$0xff]
        %v3612 = vld [vmem:[%s4 + $0x70] sm:$0xff]
        %v3613 = vld [vmem:[%s4 + $0x78] sm:$0xff]
        %v3614 = vld [vmem:[%s4 + $0x80] sm:$0xff]
        %v3615 = vld [vmem:[%s4 + $0x88] sm:$0xff]
        %v3616 = vld [vmem:[%s4 + $0x90] sm:$0xff]
        %v3617 = vld [vmem:[%s4 + $0x98] sm:$0xff]
        %v3618 = vld [vmem:[%s4 + $0xa0] sm:$0xff]
        %v3619 = vld [vmem:[%s4 + $0xa8] sm:$0xff]
        %v3620 = vld [vmem:[%s4 + $0xb0] sm:$0xff]
        %v3621 = vld [vmem:[%s4 + $0xb8] sm:$0xff]
        %v3622 = vld [vmem:[%s4 + $0xc0] sm:$0xff]
        %v3623 = vld [vmem:[%s4 + $0xc8] sm:$0xff]
        %v3624 = vld [vmem:[%s4 + $0xd0] sm:$0xff]
        %v3625 = vld [vmem:[%s4 + $0xd8] sm:$0xff]
        %v3626 = vld [vmem:[%s4 + $0xe0] sm:$0xff]
        %v3627 = vld [vmem:[%s4 + $0xe8] sm:$0xff]
        %v3628 = vld [vmem:[%s4 + $0xf0] sm:$0xff]
        %v3629 = vld [vmem:[%s4 + $0xf8] sm:$0xff]
        %v3630 = vld [vmem:[%s4 + $0x100] sm:$0xff]
        %v3631 = vld [vmem:[%s4 + $0x108] sm:$0xff]
        %v3632 = vld [vmem:[%s4 + $0x110] sm:$0xff]
        %v3633 = vld [vmem:[%s4 + $0x118] sm:$0xff]
        %v3634 = vld [vmem:[%s4 + $0x120] sm:$0xff]
        %v3635 = vld [vmem:[%s4 + $0x128] sm:$0xff]
        %v3636 = vld [vmem:[%s4 + $0x130] sm:$0xff]
        %v3637 = vld [vmem:[%s4 + $0x138] sm:$0xff]
        %v3638 = vld [vmem:[%s4 + $0x140] sm:$0xff]
        %v3639 = vld [vmem:[%s4 + $0x148] sm:$0xff]
        %v3640 = vld [vmem:[%s4 + $0x150] sm:$0xff]
        %v3641 = vld [vmem:[%s4 + $0x158] sm:$0xff]
        %v3642 = vld [vmem:[%s4 + $0x160] sm:$0xff]
        %v3643 = vld [vmem:[%s4 + $0x168] sm:$0xff]
        %v3644 = vld [vmem:[%s4 + $0x170] sm:$0xff]
        %v3645 = vld [vmem:[%s4 + $0x178] sm:$0xff]
        %3646 = vmatprep.subr.mxu0 %v3599
        %3647 = vmatpush1.msra.mxu0 %v3598
        %3648 = vmatprep.subr.mxu0 %v3602
        %3649 = vmatpush1.msra.mxu0 %v3601
        %3650 = vmatprep.subr.mxu0 %v3605
        %3651 = vmatpush1.msra.mxu0 %v3604
        %3652 = vmatprep.subr.mxu0 %v3608
        %3653 = vmatpush1.msra.mxu0 %v3607
        %3654 = vmatprep.subr.mxu0 %v3611
        %3655 = vmatpush1.msra.mxu0 %v3610
        %3656 = vmatprep.subr.mxu0 %v3614
        %3657 = vmatpush1.msra.mxu0 %v3613
        %3658 = vmatprep.subr.mxu0 %v3617
        %3659 = vmatpush1.msra.mxu0 %v3616
        %3660 = vmatprep.subr.mxu0 %v3620
        %3661 = vmatpush1.msra.mxu0 %v3619
        %3662 = vmatprep.subr.mxu0 %v3623
        %3663 = vmatpush1.msra.mxu0 %v3622
        %3664 = vmatprep.subr.mxu0 %v3626
        %3665 = vmatpush1.msra.mxu0 %v3625
        %3666 = vmatprep.subr.mxu0 %v3629
        %3667 = vmatpush1.msra.mxu0 %v3628
        %3668 = vmatprep.subr.mxu0 %v3632
        %3669 = vmatpush1.msra.mxu0 %v3631
        %3670 = vmatprep.subr.mxu0 %v3635
        %3671 = vmatpush1.msra.mxu0 %v3634
        %3672 = vmatprep.subr.mxu0 %v3638
        %3673 = vmatpush1.msra.mxu0 %v3637
        %3674 = vmatprep.subr.mxu0 %v3641
        %3675 = vmatpush1.msra.mxu0 %v3640
        %3676 = vmatprep.subr.mxu0 %v3644
        %3677 = vmatpush1.msra.mxu0 %v3643
        %3678 = vmatprep.subr.mxu0 0.0
        %3679 = vmatpush1.msra.mxu0 0.0
        %3680 = vmatprep.subr.mxu0 0.0
        %3681 = vmatpush1.msra.mxu0 0.0
        %3682 = vmatprep.subr.mxu0 0.0
        %3683 = vmatpush1.msra.mxu0 0.0
        %3684 = vmatprep.subr.mxu0 0.0
        %3685 = vmatpush1.msra.mxu0 0.0
        %3686 = vmatprep.subr.mxu0 0.0
        %3687 = vmatpush1.msra.mxu0 0.0
        %3688 = vmatprep.subr.mxu0 0.0
        %3689 = vmatpush1.msra.mxu0 0.0
        %3690 = vmatprep.subr.mxu0 0.0
        %3691 = vmatpush1.msra.mxu0 0.0
        %3692 = vmatprep.subr.mxu0 0.0
        %3693 = vmatpush1.msra.mxu0 0.0
        %3694 = vmatprep.subr.mxu0 0.0
        %3695 = vmatpush1.msra.mxu0 0.0
        %3696 = vmatprep.subr.mxu0 0.0
        %3697 = vmatpush1.msra.mxu0 0.0
        %3698 = vmatprep.subr.mxu0 0.0
        %3699 = vmatpush1.msra.mxu0 0.0
        %3700 = vmatprep.subr.mxu0 0.0
        %3701 = vmatpush1.msra.mxu0 0.0
        %3702 = vmatprep.subr.mxu0 0.0
        %3703 = vmatpush1.msra.mxu0 0.0
        %3704 = vmatprep.subr.mxu0 0.0
        %3705 = vmatpush1.msra.mxu0 0.0
        %3706 = vmatprep.subr.mxu0 0.0
        %3707 = vmatpush1.msra.mxu0 0.0
        %3708 = vmatprep.subr.mxu0 0.0
        %3709 = vmatpush1.msra.mxu0 0.0
        %3710 = vmatprep.mubr.f32.mxu0 0.0
        %3711 = vmatmul.mubr.f32.gmra.mrb[0].mxu0 %v3596
        %v3712 = vpop.f32.mrb[0].mxu0
        %v3713 = vadd.f32 0.0, %v3712
        %v3714 = vpop.f32.mrb[0].mxu0
        %v3715 = vadd.f32 0.0, %v3714
        %3716 = vmatprep.mubr.f32.mxu0 0.0
        %3717 = vmatmul.mubr.f32.gmra.mrb[0].mxu0 %v3597
        %v3718 = vpop.f32.mrb[0].mxu0
        %v3719 = vadd.f32 0.0, %v3718
        %v3720 = vpop.f32.mrb[0].mxu0
        %v3721 = vadd.f32 0.0, %v3720
        %3722 = vdwg.mxu0
        %3723 = vmatprep.subr.mxu0 0.0
        %3724 = vmatpush1.msra.mxu0 %v3600
        %3725 = vmatprep.subr.mxu0 0.0
        %3726 = vmatpush1.msra.mxu0 %v3603
        %3727 = vmatprep.subr.mxu0 0.0
        %3728 = vmatpush1.msra.mxu0 %v3606
        %3729 = vmatprep.subr.mxu0 0.0
        %3730 = vmatpush1.msra.mxu0 %v3609
        %3731 = vmatprep.subr.mxu0 0.0
        %3732 = vmatpush1.msra.mxu0 %v3612
        %3733 = vmatprep.subr.mxu0 0.0
        %3734 = vmatpush1.msra.mxu0 %v3615
        %3735 = vmatprep.subr.mxu0 0.0
        %3736 = vmatpush1.msra.mxu0 %v3618
        %3737 = vmatprep.subr.mxu0 0.0
        %3738 = vmatpush1.msra.mxu0 %v3621
        %3739 = vmatprep.subr.mxu0 0.0
        %3740 = vmatpush1.msra.mxu0 %v3624
        %3741 = vmatprep.subr.mxu0 0.0
        %3742 = vmatpush1.msra.mxu0 %v3627
        %3743 = vmatprep.subr.mxu0 0.0
        %3744 = vmatpush1.msra.mxu0 %v3630
        %3745 = vmatprep.subr.mxu0 0.0
        %3746 = vmatpush1.msra.mxu0 %v3633
        %3747 = vmatprep.subr.mxu0 0.0
        %3748 = vmatpush1.msra.mxu0 %v3636
        %3749 = vmatprep.subr.mxu0 0.0
        %3750 = vmatpush1.msra.mxu0 %v3639
        %3751 = vmatprep.subr.mxu0 0.0
        %3752 = vmatpush1.msra.mxu0 %v3642
        %3753 = vmatprep.subr.mxu0 0.0
        %3754 = vmatpush1.msra.mxu0 %v3645
        %3755 = vmatprep.subr.mxu0 0.0
        %3756 = vmatpush1.msra.mxu0 0.0
        %3757 = vmatprep.subr.mxu0 0.0
        %3758 = vmatpush1.msra.mxu0 0.0
        %3759 = vmatprep.subr.mxu0 0.0
        %3760 = vmatpush1.msra.mxu0 0.0
        %3761 = vmatprep.subr.mxu0 0.0
        %3762 = vmatpush1.msra.mxu0 0.0
        %3763 = vmatprep.subr.mxu0 0.0
        %3764 = vmatpush1.msra.mxu0 0.0
        %3765 = vmatprep.subr.mxu0 0.0
        %3766 = vmatpush1.msra.mxu0 0.0
        %3767 = vmatprep.subr.mxu0 0.0
        %3768 = vmatpush1.msra.mxu0 0.0
        %3769 = vmatprep.subr.mxu0 0.0
        %3770 = vmatpush1.msra.mxu0 0.0
        %3771 = vmatprep.subr.mxu0 0.0
        %3772 = vmatpush1.msra.mxu0 0.0
        %3773 = vmatprep.subr.mxu0 0.0
        %3774 = vmatpush1.msra.mxu0 0.0
        %3775 = vmatprep.subr.mxu0 0.0
        %3776 = vmatpush1.msra.mxu0 0.0
        %3777 = vmatprep.subr.mxu0 0.0
        %3778 = vmatpush1.msra.mxu0 0.0
        %3779 = vmatprep.subr.mxu0 0.0
        %3780 = vmatpush1.msra.mxu0 0.0
        %3781 = vmatprep.subr.mxu0 0.0
        %3782 = vmatpush1.msra.mxu0 0.0
        %3783 = vmatprep.subr.mxu0 0.0
        %3784 = vmatpush1.msra.mxu0 0.0
        %3785 = vmatprep.subr.mxu0 0.0
        %3786 = vmatpush1.msra.mxu0 0.0
        %3787 = vmatprep.mubr.f32.mxu0 0.0
        %3788 = vmatmul.mubr.f32.gmra.mrb[0].mxu0 %v3596
        %v3789 = vpop.f32.mrb[0].mxu0
        %v3790 = vadd.f32 0.0, %v3789
        %v3791 = vpop.f32.mrb[0].mxu0
        %3792 = vmatprep.mubr.f32.mxu0 0.0
        %3793 = vmatmul.mubr.f32.gmra.mrb[0].mxu0 %v3597
        %v3794 = vpop.f32.mrb[0].mxu0
        %v3795 = vadd.f32 0.0, %v3794
        %v3796 = vpop.f32.mrb[0].mxu0
        %3797 = vdwg.mxu0
        %v3798 = vld [vmem:[%s3576 + $0x10] sm:$0xff]
        %v3799 = vld [vmem:[%s3576 + $0x38] sm:$0xff]
        %v3800 = vadd.f32 %v3798, %v3491
        %v3801 = vadd.f32 %v3799, %v3497
        %v3802 = vadd.f32 %v3800, %v3713
        %v3803 = vadd.f32 %v3801, %v3719
        %v3804 = vld [vmem:[%s3576 + $0x18] sm:$0xff]
        %v3805 = vld [vmem:[%s3576 + $0x40] sm:$0xff]
        %v3806 = vadd.f32 %v3804, %v3493
        %v3807 = vadd.f32 %v3805, %v3499
        %v3808 = vadd.f32 %v3806, %v3715
        %v3809 = vadd.f32 %v3807, %v3721
        %v3810 = vmul.f32 %v3802, 0.5
        %v3811 = vmul.f32 %v3803, 0.5
        %v3812 = vtanh.pop %v3810
        %v3813 = vtanh.pop %v3811
        %v3814 = vadd.f32 %v3812, 1.0
        %v3815 = vadd.f32 %v3813, 1.0
        %v3816 = vmul.f32 %v3814, 0.5
        %v3817 = vmul.f32 %v3815, 0.5
        %v3818 = vmul.f32 %v3808, 0.5
        %v3819 = vmul.f32 %v3809, 0.5
        %v3820 = vtanh.pop %v3818
        %v3821 = vtanh.pop %v3819
        %v3822 = vadd.f32 %v3820, 1.0
        %v3823 = vadd.f32 %v3821, 1.0
        %v3824 = vmul.f32 %v3822, 0.5
        %v3825 = vmul.f32 %v3823, 0.5
        %v3826 = vld [vmem:[%s3576 + $0x20] sm:$0xff]
        %v3827 = vld [vmem:[%s3576 + $0x48] sm:$0xff]
        %v3828 = vadd.f32 %v3826, %v3790
        %v3829 = vadd.f32 %v3827, %v3795
        %v3830 = vadd.f32 %v3568, %v929
        %v3831 = vadd.f32 %v3573, %v929
        %v3832 = vmul.f32 %v3816, %v3830
        %v3833 = vmul.f32 %v3817, %v3831
        %v3834 = vadd.f32 %v3828, %v3832
        %v3835 = vadd.f32 %v3829, %v3833
        %v3836 = vtanh.pop %v3834
        %v3837 = vtanh.pop %v3835
        %v3838 = vsub.f32 %v3262, %v3836
        %v3839 = vsub.f32 %v3263, %v3837
        %v3840 = vmul.f32 %v3824, %v3838
        %v3841 = vmul.f32 %v3825, %v3839
        %v3842 = vadd.f32 %v3836, %v3840
        %v3843 = vadd.f32 %v3837, %v3841
        %s3844 = scalar_lea.vmem %s319, 80 [#allocation3]
        %3845 = vst [vmem:[%s3844] sm:$0xff] %v3842
        %3846 = vst [vmem:[%s3844 + $0x8] sm:$0xff] %v3843
        %v3847 = vld [vmem:[%s3] sm:$0xff]
        %v3848 = vld [vmem:[%s3 + $0x8] sm:$0xff]
        %v3849 = vld [vmem:[%s3 + $0x10] sm:$0xff]
        %v3850 = vld [vmem:[%s3 + $0x18] sm:$0xff]
        %v3851 = vld [vmem:[%s3 + $0x20] sm:$0xff]
        %v3852 = vld [vmem:[%s3 + $0x28] sm:$0xff]
        %v3853 = vld [vmem:[%s3 + $0x30] sm:$0xff]
        %v3854 = vld [vmem:[%s3 + $0x38] sm:$0xff]
        %v3855 = vld [vmem:[%s3 + $0x40] sm:$0xff]
        %v3856 = vld [vmem:[%s3 + $0x48] sm:$0xff]
        %v3857 = vld [vmem:[%s3 + $0x50] sm:$0xff]
        %v3858 = vld [vmem:[%s3 + $0x58] sm:$0xff]
        %v3859 = vld [vmem:[%s3 + $0x60] sm:$0xff]
        %v3860 = vld [vmem:[%s3 + $0x68] sm:$0xff]
        %v3861 = vld [vmem:[%s3 + $0x70] sm:$0xff]
        %v3862 = vld [vmem:[%s3 + $0x78] sm:$0xff]
        %v3863 = vld [vmem:[%s3 + $0x80] sm:$0xff]
        %v3864 = vld [vmem:[%s3 + $0x88] sm:$0xff]
        %v3865 = vld [vmem:[%s3 + $0x90] sm:$0xff]
        %v3866 = vld [vmem:[%s3 + $0x98] sm:$0xff]
        %v3867 = vld [vmem:[%s3 + $0xa0] sm:$0xff]
        %v3868 = vld [vmem:[%s3 + $0xa8] sm:$0xff]
        %v3869 = vld [vmem:[%s3 + $0xb0] sm:$0xff]
        %v3870 = vld [vmem:[%s3 + $0xb8] sm:$0xff]
        %v3871 = vld [vmem:[%s3 + $0xc0] sm:$0xff]
        %v3872 = vld [vmem:[%s3 + $0xc8] sm:$0xff]
        %v3873 = vld [vmem:[%s3 + $0xd0] sm:$0xff]
        %v3874 = vld [vmem:[%s3 + $0xd8] sm:$0xff]
        %v3875 = vld [vmem:[%s3 + $0xe0] sm:$0xff]
        %v3876 = vld [vmem:[%s3 + $0xe8] sm:$0xff]
        %v3877 = vld [vmem:[%s3 + $0xf0] sm:$0xff]
        %v3878 = vld [vmem:[%s3 + $0xf8] sm:$0xff]
        %v3879 = vld [vmem:[%s3 + $0x100] sm:$0xff]
        %v3880 = vld [vmem:[%s3 + $0x108] sm:$0xff]
        %v3881 = vld [vmem:[%s3 + $0x110] sm:$0xff]
        %v3882 = vld [vmem:[%s3 + $0x118] sm:$0xff]
        %v3883 = vld [vmem:[%s3 + $0x120] sm:$0xff]
        %v3884 = vld [vmem:[%s3 + $0x128] sm:$0xff]
        %v3885 = vld [vmem:[%s3 + $0x130] sm:$0xff]
        %v3886 = vld [vmem:[%s3 + $0x138] sm:$0xff]
        %v3887 = vld [vmem:[%s3 + $0x140] sm:$0xff]
        %v3888 = vld [vmem:[%s3 + $0x148] sm:$0xff]
        %v3889 = vld [vmem:[%s3 + $0x150] sm:$0xff]
        %v3890 = vld [vmem:[%s3 + $0x158] sm:$0xff]
        %v3891 = vld [vmem:[%s3 + $0x160] sm:$0xff]
        %v3892 = vld [vmem:[%s3 + $0x168] sm:$0xff]
        %v3893 = vld [vmem:[%s3 + $0x170] sm:$0xff]
        %v3894 = vld [vmem:[%s3 + $0x178] sm:$0xff]
        %v3895 = vld [vmem:[%s3 + $0x180] sm:$0xff]
        %v3896 = vld [vmem:[%s3 + $0x188] sm:$0xff]
        %v3897 = vld [vmem:[%s3 + $0x190] sm:$0xff]
        %v3898 = vld [vmem:[%s3 + $0x198] sm:$0xff]
        %v3899 = vld [vmem:[%s3 + $0x1a0] sm:$0xff]
        %v3900 = vld [vmem:[%s3 + $0x1a8] sm:$0xff]
        %v3901 = vld [vmem:[%s3 + $0x1b0] sm:$0xff]
        %v3902 = vld [vmem:[%s3 + $0x1b8] sm:$0xff]
        %v3903 = vld [vmem:[%s3 + $0x1c0] sm:$0xff]
        %v3904 = vld [vmem:[%s3 + $0x1c8] sm:$0xff]
        %v3905 = vld [vmem:[%s3 + $0x1d0] sm:$0xff]
        %v3906 = vld [vmem:[%s3 + $0x1d8] sm:$0xff]
        %v3907 = vld [vmem:[%s3 + $0x1e0] sm:$0xff]
        %v3908 = vld [vmem:[%s3 + $0x1e8] sm:$0xff]
        %v3909 = vld [vmem:[%s3 + $0x1f0] sm:$0xff]
        %v3910 = vld [vmem:[%s3 + $0x1f8] sm:$0xff]
        %v3911 = vld [vmem:[%s3 + $0x200] sm:$0xff]
        %v3912 = vld [vmem:[%s3 + $0x208] sm:$0xff]
        %v3913 = vld [vmem:[%s3 + $0x210] sm:$0xff]
        %v3914 = vld [vmem:[%s3 + $0x218] sm:$0xff]
        %v3915 = vld [vmem:[%s3 + $0x220] sm:$0xff]
        %v3916 = vld [vmem:[%s3 + $0x228] sm:$0xff]
        %v3917 = vld [vmem:[%s3 + $0x230] sm:$0xff]
        %v3918 = vld [vmem:[%s3 + $0x238] sm:$0xff]
        %v3919 = vld [vmem:[%s3 + $0x240] sm:$0xff]
        %v3920 = vld [vmem:[%s3 + $0x248] sm:$0xff]
        %v3921 = vld [vmem:[%s3 + $0x250] sm:$0xff]
        %v3922 = vld [vmem:[%s3 + $0x258] sm:$0xff]
        %v3923 = vld [vmem:[%s3 + $0x260] sm:$0xff]
        %v3924 = vld [vmem:[%s3 + $0x268] sm:$0xff]
        %v3925 = vld [vmem:[%s3 + $0x270] sm:$0xff]
        %v3926 = vld [vmem:[%s3 + $0x278] sm:$0xff]
        %3927 = vmatprep.subr.mxu0 %v3848
        %3928 = vmatpush1.msra.mxu0 %v3847
        %3929 = vmatprep.subr.mxu0 %v3853
        %3930 = vmatpush1.msra.mxu0 %v3852
        %3931 = vmatprep.subr.mxu0 %v3858
        %3932 = vmatpush1.msra.mxu0 %v3857
        %3933 = vmatprep.subr.mxu0 %v3863
        %3934 = vmatpush1.msra.mxu0 %v3862
        %3935 = vmatprep.subr.mxu0 %v3868
        %3936 = vmatpush1.msra.mxu0 %v3867
        %3937 = vmatprep.subr.mxu0 %v3873
        %3938 = vmatpush1.msra.mxu0 %v3872
        %3939 = vmatprep.subr.mxu0 %v3878
        %3940 = vmatpush1.msra.mxu0 %v3877
        %3941 = vmatprep.subr.mxu0 %v3883
        %3942 = vmatpush1.msra.mxu0 %v3882
        %3943 = vmatprep.subr.mxu0 %v3888
        %3944 = vmatpush1.msra.mxu0 %v3887
        %3945 = vmatprep.subr.mxu0 %v3893
        %3946 = vmatpush1.msra.mxu0 %v3892
        %3947 = vmatprep.subr.mxu0 %v3898
        %3948 = vmatpush1.msra.mxu0 %v3897
        %3949 = vmatprep.subr.mxu0 %v3903
        %3950 = vmatpush1.msra.mxu0 %v3902
        %3951 = vmatprep.subr.mxu0 %v3908
        %3952 = vmatpush1.msra.mxu0 %v3907
        %3953 = vmatprep.subr.mxu0 %v3913
        %3954 = vmatpush1.msra.mxu0 %v3912
        %3955 = vmatprep.subr.mxu0 %v3918
        %3956 = vmatpush1.msra.mxu0 %v3917
        %3957 = vmatprep.subr.mxu0 %v3923
        %3958 = vmatpush1.msra.mxu0 %v3922
        %3959 = vmatprep.subr.mxu0 0.0
        %3960 = vmatpush1.msra.mxu0 0.0
        %3961 = vmatprep.subr.mxu0 0.0
        %3962 = vmatpush1.msra.mxu0 0.0
        %3963 = vmatprep.subr.mxu0 0.0
        %3964 = vmatpush1.msra.mxu0 0.0
        %3965 = vmatprep.subr.mxu0 0.0
        %3966 = vmatpush1.msra.mxu0 0.0
        %3967 = vmatprep.subr.mxu0 0.0
        %3968 = vmatpush1.msra.mxu0 0.0
        %3969 = vmatprep.subr.mxu0 0.0
        %3970 = vmatpush1.msra.mxu0 0.0
        %3971 = vmatprep.subr.mxu0 0.0
        %3972 = vmatpush1.msra.mxu0 0.0
        %3973 = vmatprep.subr.mxu0 0.0
        %3974 = vmatpush1.msra.mxu0 0.0
        %3975 = vmatprep.subr.mxu0 0.0
        %3976 = vmatpush1.msra.mxu0 0.0
        %3977 = vmatprep.subr.mxu0 0.0
        %3978 = vmatpush1.msra.mxu0 0.0
        %3979 = vmatprep.subr.mxu0 0.0
        %3980 = vmatpush1.msra.mxu0 0.0
        %3981 = vmatprep.subr.mxu0 0.0
        %3982 = vmatpush1.msra.mxu0 0.0
        %3983 = vmatprep.subr.mxu0 0.0
        %3984 = vmatpush1.msra.mxu0 0.0
        %3985 = vmatprep.subr.mxu0 0.0
        %3986 = vmatpush1.msra.mxu0 0.0
        %3987 = vmatprep.subr.mxu0 0.0
        %3988 = vmatpush1.msra.mxu0 0.0
        %3989 = vmatprep.subr.mxu0 0.0
        %3990 = vmatpush1.msra.mxu0 0.0
        %3991 = vmatprep.mubr.f32.mxu0 0.0
        %3992 = vmatmul.mubr.f32.gmra.mrb[0].mxu0 %v3842
        %v3993 = vpop.f32.mrb[0].mxu0
        %v3994 = vadd.f32 0.0, %v3993
        %v3995 = vpop.f32.mrb[0].mxu0
        %v3996 = vadd.f32 0.0, %v3995
        %3997 = vmatprep.mubr.f32.mxu0 0.0
        %3998 = vmatmul.mubr.f32.gmra.mrb[0].mxu0 %v3843
        %v3999 = vpop.f32.mrb[0].mxu0
        %v4000 = vadd.f32 0.0, %v3999
        %v4001 = vpop.f32.mrb[0].mxu0
        %v4002 = vadd.f32 0.0, %v4001
        %4003 = vdwg.mxu0
        %4004 = vmatprep.subr.mxu0 %v3850
        %4005 = vmatpush1.msra.mxu0 %v3849
        %4006 = vmatprep.subr.mxu0 %v3855
        %4007 = vmatpush1.msra.mxu0 %v3854
        %4008 = vmatprep.subr.mxu0 %v3860
        %4009 = vmatpush1.msra.mxu0 %v3859
        %4010 = vmatprep.subr.mxu0 %v3865
        %4011 = vmatpush1.msra.mxu0 %v3864
        %4012 = vmatprep.subr.mxu0 %v3870
        %4013 = vmatpush1.msra.mxu0 %v3869
        %4014 = vmatprep.subr.mxu0 %v3875
        %4015 = vmatpush1.msra.mxu0 %v3874
        %4016 = vmatprep.subr.mxu0 %v3880
        %4017 = vmatpush1.msra.mxu0 %v3879
        %4018 = vmatprep.subr.mxu0 %v3885
        %4019 = vmatpush1.msra.mxu0 %v3884
        %4020 = vmatprep.subr.mxu0 %v3890
        %4021 = vmatpush1.msra.mxu0 %v3889
        %4022 = vmatprep.subr.mxu0 %v3895
        %4023 = vmatpush1.msra.mxu0 %v3894
        %4024 = vmatprep.subr.mxu0 %v3900
        %4025 = vmatpush1.msra.mxu0 %v3899
        %4026 = vmatprep.subr.mxu0 %v3905
        %4027 = vmatpush1.msra.mxu0 %v3904
        %4028 = vmatprep.subr.mxu0 %v3910
        %4029 = vmatpush1.msra.mxu0 %v3909
        %4030 = vmatprep.subr.mxu0 %v3915
        %4031 = vmatpush1.msra.mxu0 %v3914
        %4032 = vmatprep.subr.mxu0 %v3920
        %4033 = vmatpush1.msra.mxu0 %v3919
        %4034 = vmatprep.subr.mxu0 %v3925
        %4035 = vmatpush1.msra.mxu0 %v3924
        %4036 = vmatprep.subr.mxu0 0.0
        %4037 = vmatpush1.msra.mxu0 0.0
        %4038 = vmatprep.subr.mxu0 0.0
        %4039 = vmatpush1.msra.mxu0 0.0
        %4040 = vmatprep.subr.mxu0 0.0
        %4041 = vmatpush1.msra.mxu0 0.0
        %4042 = vmatprep.subr.mxu0 0.0
        %4043 = vmatpush1.msra.mxu0 0.0
        %4044 = vmatprep.subr.mxu0 0.0
        %4045 = vmatpush1.msra.mxu0 0.0
        %4046 = vmatprep.subr.mxu0 0.0
        %4047 = vmatpush1.msra.mxu0 0.0
        %4048 = vmatprep.subr.mxu0 0.0
        %4049 = vmatpush1.msra.mxu0 0.0
        %4050 = vmatprep.subr.mxu0 0.0
        %4051 = vmatpush1.msra.mxu0 0.0
        %4052 = vmatprep.subr.mxu0 0.0
        %4053 = vmatpush1.msra.mxu0 0.0
        %4054 = vmatprep.subr.mxu0 0.0
        %4055 = vmatpush1.msra.mxu0 0.0
        %4056 = vmatprep.subr.mxu0 0.0
        %4057 = vmatpush1.msra.mxu0 0.0
        %4058 = vmatprep.subr.mxu0 0.0
        %4059 = vmatpush1.msra.mxu0 0.0
        %4060 = vmatprep.subr.mxu0 0.0
        %4061 = vmatpush1.msra.mxu0 0.0
        %4062 = vmatprep.subr.mxu0 0.0
        %4063 = vmatpush1.msra.mxu0 0.0
        %4064 = vmatprep.subr.mxu0 0.0
        %4065 = vmatpush1.msra.mxu0 0.0
        %4066 = vmatprep.subr.mxu0 0.0
        %4067 = vmatpush1.msra.mxu0 0.0
        %4068 = vmatprep.mubr.f32.mxu0 0.0
        %4069 = vmatmul.mubr.f32.gmra.mrb[0].mxu0 %v3842
        %v4070 = vpop.f32.mrb[0].mxu0
        %v4071 = vadd.f32 0.0, %v4070
        %v4072 = vpop.f32.mrb[0].mxu0
        %v4073 = vadd.f32 0.0, %v4072
        %4074 = vmatprep.mubr.f32.mxu0 0.0
        %4075 = vmatmul.mubr.f32.gmra.mrb[0].mxu0 %v3843
        %v4076 = vpop.f32.mrb[0].mxu0
        %v4077 = vadd.f32 0.0, %v4076
        %v4078 = vpop.f32.mrb[0].mxu0
        %v4079 = vadd.f32 0.0, %v4078
        %4080 = vdwg.mxu0
        %4081 = vmatprep.subr.mxu0 0.0
        %4082 = vmatpush1.msra.mxu0 %v3851
        %4083 = vmatprep.subr.mxu0 0.0
        %4084 = vmatpush1.msra.mxu0 %v3856
        %4085 = vmatprep.subr.mxu0 0.0
        %4086 = vmatpush1.msra.mxu0 %v3861
        %4087 = vmatprep.subr.mxu0 0.0
        %4088 = vmatpush1.msra.mxu0 %v3866
        %4089 = vmatprep.subr.mxu0 0.0
        %4090 = vmatpush1.msra.mxu0 %v3871
        %4091 = vmatprep.subr.mxu0 0.0
        %4092 = vmatpush1.msra.mxu0 %v3876
        %4093 = vmatprep.subr.mxu0 0.0
        %4094 = vmatpush1.msra.mxu0 %v3881
        %4095 = vmatprep.subr.mxu0 0.0
        %4096 = vmatpush1.msra.mxu0 %v3886
        %4097 = vmatprep.subr.mxu0 0.0
        %4098 = vmatpush1.msra.mxu0 %v3891
        %4099 = vmatprep.subr.mxu0 0.0
        %4100 = vmatpush1.msra.mxu0 %v3896
        %4101 = vmatprep.subr.mxu0 0.0
        %4102 = vmatpush1.msra.mxu0 %v3901
        %4103 = vmatprep.subr.mxu0 0.0
        %4104 = vmatpush1.msra.mxu0 %v3906
        %4105 = vmatprep.subr.mxu0 0.0
        %4106 = vmatpush1.msra.mxu0 %v3911
        %4107 = vmatprep.subr.mxu0 0.0
        %4108 = vmatpush1.msra.mxu0 %v3916
        %4109 = vmatprep.subr.mxu0 0.0
        %4110 = vmatpush1.msra.mxu0 %v3921
        %4111 = vmatprep.subr.mxu0 0.0
        %4112 = vmatpush1.msra.mxu0 %v3926
        %4113 = vmatprep.subr.mxu0 0.0
        %4114 = vmatpush1.msra.mxu0 0.0
        %4115 = vmatprep.subr.mxu0 0.0
        %4116 = vmatpush1.msra.mxu0 0.0
        %4117 = vmatprep.subr.mxu0 0.0
        %4118 = vmatpush1.msra.mxu0 0.0
        %4119 = vmatprep.subr.mxu0 0.0
        %4120 = vmatpush1.msra.mxu0 0.0
        %4121 = vmatprep.subr.mxu0 0.0
        %4122 = vmatpush1.msra.mxu0 0.0
        %4123 = vmatprep.subr.mxu0 0.0
        %4124 = vmatpush1.msra.mxu0 0.0
        %4125 = vmatprep.subr.mxu0 0.0
        %4126 = vmatpush1.msra.mxu0 0.0
        %4127 = vmatprep.subr.mxu0 0.0
        %4128 = vmatpush1.msra.mxu0 0.0
        %4129 = vmatprep.subr.mxu0 0.0
        %4130 = vmatpush1.msra.mxu0 0.0
        %4131 = vmatprep.subr.mxu0 0.0
        %4132 = vmatpush1.msra.mxu0 0.0
        %4133 = vmatprep.subr.mxu0 0.0
        %4134 = vmatpush1.msra.mxu0 0.0
        %4135 = vmatprep.subr.mxu0 0.0
        %4136 = vmatpush1.msra.mxu0 0.0
        %4137 = vmatprep.subr.mxu0 0.0
        %4138 = vmatpush1.msra.mxu0 0.0
        %4139 = vmatprep.subr.mxu0 0.0
        %4140 = vmatpush1.msra.mxu0 0.0
        %4141 = vmatprep.subr.mxu0 0.0
        %4142 = vmatpush1.msra.mxu0 0.0
        %4143 = vmatprep.subr.mxu0 0.0
        %4144 = vmatpush1.msra.mxu0 0.0
        %4145 = vmatprep.mubr.f32.mxu0 0.0
        %4146 = vmatmul.mubr.f32.gmra.mrb[0].mxu0 %v3842
        %v4147 = vpop.f32.mrb[0].mxu0
        %v4148 = vadd.f32 0.0, %v4147
        %v4149 = vpop.f32.mrb[0].mxu0
        %4150 = vmatprep.mubr.f32.mxu0 0.0
        %4151 = vmatmul.mubr.f32.gmra.mrb[0].mxu0 %v3843
        %v4152 = vpop.f32.mrb[0].mxu0
        %v4153 = vadd.f32 0.0, %v4152
        %v4154 = vpop.f32.mrb[0].mxu0
        %4155 = vdwg.mxu0
        %s4156 = scalar_lea.vmem %s330, 480
        %v4157 = vld [vmem:[%s4156] sm:$0xff]
        %v4158 = vld [vmem:[%s4156 + $0x28] sm:$0xff]
        %v4159 = vadd.f32 %v4157, %v3994
        %v4160 = vadd.f32 %v4158, %v4000
        %v4161 = vld [vmem:[%s4156 + $0x8] sm:$0xff]
        %v4162 = vld [vmem:[%s4156 + $0x30] sm:$0xff]
        %v4163 = vadd.f32 %v4161, %v3996
        %v4164 = vadd.f32 %v4162, %v4002
        %v4165 = vmul.f32 %v4163, 0.5
        %v4166 = vmul.f32 %v4164, 0.5
        %v4167 = vmul.f32 %v4165, 1.442695
        %v4168 = vpow.pop %v4167
        %v4169 = vmul.f32 %v4166, 1.442695
        %v4170 = vpow.pop %v4169
        %s4171 = scalar_lea.vmem %s342, 96
        %v4172 = vld [vmem:[%s4171] sm:$0xff]
        %v4173 = vld [vmem:[%s4171 + $0x8] sm:$0xff]
        %v4174 = vmul.f32 %v4172, %v4168
        %v4175 = vmul.f32 %v4173, %v4170
        %v4176 = vadd.f32 %v4159, %v4174
        %v4177 = vadd.f32 %v4160, %v4175
        %v4178 = vld [vmem:[%s4] sm:$0xff]
        %v4179 = vld [vmem:[%s4 + $0x8] sm:$0xff]
        %v4180 = vld [vmem:[%s4 + $0x10] sm:$0xff]
        %v4181 = vld [vmem:[%s4 + $0x18] sm:$0xff]
        %v4182 = vld [vmem:[%s4 + $0x20] sm:$0xff]
        %v4183 = vld [vmem:[%s4 + $0x28] sm:$0xff]
        %v4184 = vld [vmem:[%s4 + $0x30] sm:$0xff]
        %v4185 = vld [vmem:[%s4 + $0x38] sm:$0xff]
        %v4186 = vld [vmem:[%s4 + $0x40] sm:$0xff]
        %v4187 = vld [vmem:[%s4 + $0x48] sm:$0xff]
        %v4188 = vld [vmem:[%s4 + $0x50] sm:$0xff]
        %v4189 = vld [vmem:[%s4 + $0x58] sm:$0xff]
        %v4190 = vld [vmem:[%s4 + $0x60] sm:$0xff]
        %v4191 = vld [vmem:[%s4 + $0x68] sm:$0xff]
        %v4192 = vld [vmem:[%s4 + $0x70] sm:$0xff]
        %v4193 = vld [vmem:[%s4 + $0x78] sm:$0xff]
        %v4194 = vld [vmem:[%s4 + $0x80] sm:$0xff]
        %v4195 = vld [vmem:[%s4 + $0x88] sm:$0xff]
        %v4196 = vld [vmem:[%s4 + $0x90] sm:$0xff]
        %v4197 = vld [vmem:[%s4 + $0x98] sm:$0xff]
        %v4198 = vld [vmem:[%s4 + $0xa0] sm:$0xff]
        %v4199 = vld [vmem:[%s4 + $0xa8] sm:$0xff]
        %v4200 = vld [vmem:[%s4 + $0xb0] sm:$0xff]
        %v4201 = vld [vmem:[%s4 + $0xb8] sm:$0xff]
        %v4202 = vld [vmem:[%s4 + $0xc0] sm:$0xff]
        %v4203 = vld [vmem:[%s4 + $0xc8] sm:$0xff]
        %v4204 = vld [vmem:[%s4 + $0xd0] sm:$0xff]
        %v4205 = vld [vmem:[%s4 + $0xd8] sm:$0xff]
        %v4206 = vld [vmem:[%s4 + $0xe0] sm:$0xff]
        %v4207 = vld [vmem:[%s4 + $0xe8] sm:$0xff]
        %v4208 = vld [vmem:[%s4 + $0xf0] sm:$0xff]
        %v4209 = vld [vmem:[%s4 + $0xf8] sm:$0xff]
        %v4210 = vld [vmem:[%s4 + $0x100] sm:$0xff]
        %v4211 = vld [vmem:[%s4 + $0x108] sm:$0xff]
        %v4212 = vld [vmem:[%s4 + $0x110] sm:$0xff]
        %v4213 = vld [vmem:[%s4 + $0x118] sm:$0xff]
        %v4214 = vld [vmem:[%s4 + $0x120] sm:$0xff]
        %v4215 = vld [vmem:[%s4 + $0x128] sm:$0xff]
        %v4216 = vld [vmem:[%s4 + $0x130] sm:$0xff]
        %v4217 = vld [vmem:[%s4 + $0x138] sm:$0xff]
        %v4218 = vld [vmem:[%s4 + $0x140] sm:$0xff]
        %v4219 = vld [vmem:[%s4 + $0x148] sm:$0xff]
        %v4220 = vld [vmem:[%s4 + $0x150] sm:$0xff]
        %v4221 = vld [vmem:[%s4 + $0x158] sm:$0xff]
        %v4222 = vld [vmem:[%s4 + $0x160] sm:$0xff]
        %v4223 = vld [vmem:[%s4 + $0x168] sm:$0xff]
        %v4224 = vld [vmem:[%s4 + $0x170] sm:$0xff]
        %v4225 = vld [vmem:[%s4 + $0x178] sm:$0xff]
        %4226 = vmatprep.subr.mxu0 %v4179
        %4227 = vmatpush1.msra.mxu0 %v4178
        %4228 = vmatprep.subr.mxu0 %v4182
        %4229 = vmatpush1.msra.mxu0 %v4181
        %4230 = vmatprep.subr.mxu0 %v4185
        %4231 = vmatpush1.msra.mxu0 %v4184
        %4232 = vmatprep.subr.mxu0 %v4188
        %4233 = vmatpush1.msra.mxu0 %v4187
        %4234 = vmatprep.subr.mxu0 %v4191
        %4235 = vmatpush1.msra.mxu0 %v4190
        %4236 = vmatprep.subr.mxu0 %v4194
        %4237 = vmatpush1.msra.mxu0 %v4193
        %4238 = vmatprep.subr.mxu0 %v4197
        %4239 = vmatpush1.msra.mxu0 %v4196
        %4240 = vmatprep.subr.mxu0 %v4200
        %4241 = vmatpush1.msra.mxu0 %v4199
        %4242 = vmatprep.subr.mxu0 %v4203
        %4243 = vmatpush1.msra.mxu0 %v4202
        %4244 = vmatprep.subr.mxu0 %v4206
        %4245 = vmatpush1.msra.mxu0 %v4205
        %4246 = vmatprep.subr.mxu0 %v4209
        %4247 = vmatpush1.msra.mxu0 %v4208
        %4248 = vmatprep.subr.mxu0 %v4212
        %4249 = vmatpush1.msra.mxu0 %v4211
        %4250 = vmatprep.subr.mxu0 %v4215
        %4251 = vmatpush1.msra.mxu0 %v4214
        %4252 = vmatprep.subr.mxu0 %v4218
        %4253 = vmatpush1.msra.mxu0 %v4217
        %4254 = vmatprep.subr.mxu0 %v4221
        %4255 = vmatpush1.msra.mxu0 %v4220
        %4256 = vmatprep.subr.mxu0 %v4224
        %4257 = vmatpush1.msra.mxu0 %v4223
        %4258 = vmatprep.subr.mxu0 0.0
        %4259 = vmatpush1.msra.mxu0 0.0
        %4260 = vmatprep.subr.mxu0 0.0
        %4261 = vmatpush1.msra.mxu0 0.0
        %4262 = vmatprep.subr.mxu0 0.0
        %4263 = vmatpush1.msra.mxu0 0.0
        %4264 = vmatprep.subr.mxu0 0.0
        %4265 = vmatpush1.msra.mxu0 0.0
        %4266 = vmatprep.subr.mxu0 0.0
        %4267 = vmatpush1.msra.mxu0 0.0
        %4268 = vmatprep.subr.mxu0 0.0
        %4269 = vmatpush1.msra.mxu0 0.0
        %4270 = vmatprep.subr.mxu0 0.0
        %4271 = vmatpush1.msra.mxu0 0.0
        %4272 = vmatprep.subr.mxu0 0.0
        %4273 = vmatpush1.msra.mxu0 0.0
        %4274 = vmatprep.subr.mxu0 0.0
        %4275 = vmatpush1.msra.mxu0 0.0
        %4276 = vmatprep.subr.mxu0 0.0
        %4277 = vmatpush1.msra.mxu0 0.0
        %4278 = vmatprep.subr.mxu0 0.0
        %4279 = vmatpush1.msra.mxu0 0.0
        %4280 = vmatprep.subr.mxu0 0.0
        %4281 = vmatpush1.msra.mxu0 0.0
        %4282 = vmatprep.subr.mxu0 0.0
        %4283 = vmatpush1.msra.mxu0 0.0
        %4284 = vmatprep.subr.mxu0 0.0
        %4285 = vmatpush1.msra.mxu0 0.0
        %4286 = vmatprep.subr.mxu0 0.0
        %4287 = vmatpush1.msra.mxu0 0.0
        %4288 = vmatprep.subr.mxu0 0.0
        %4289 = vmatpush1.msra.mxu0 0.0
        %4290 = vmatprep.mubr.f32.mxu0 0.0
        %4291 = vmatmul.mubr.f32.gmra.mrb[0].mxu0 %v4176
        %v4292 = vpop.f32.mrb[0].mxu0
        %v4293 = vadd.f32 0.0, %v4292
        %v4294 = vpop.f32.mrb[0].mxu0
        %v4295 = vadd.f32 0.0, %v4294
        %4296 = vmatprep.mubr.f32.mxu0 0.0
        %4297 = vmatmul.mubr.f32.gmra.mrb[0].mxu0 %v4177
        %v4298 = vpop.f32.mrb[0].mxu0
        %v4299 = vadd.f32 0.0, %v4298
        %v4300 = vpop.f32.mrb[0].mxu0
        %v4301 = vadd.f32 0.0, %v4300
        %4302 = vdwg.mxu0
        %4303 = vmatprep.subr.mxu0 0.0
        %4304 = vmatpush1.msra.mxu0 %v4180
        %4305 = vmatprep.subr.mxu0 0.0
        %4306 = vmatpush1.msra.mxu0 %v4183
        %4307 = vmatprep.subr.mxu0 0.0
        %4308 = vmatpush1.msra.mxu0 %v4186
        %4309 = vmatprep.subr.mxu0 0.0
        %4310 = vmatpush1.msra.mxu0 %v4189
        %4311 = vmatprep.subr.mxu0 0.0
        %4312 = vmatpush1.msra.mxu0 %v4192
        %4313 = vmatprep.subr.mxu0 0.0
        %4314 = vmatpush1.msra.mxu0 %v4195
        %4315 = vmatprep.subr.mxu0 0.0
        %4316 = vmatpush1.msra.mxu0 %v4198
        %4317 = vmatprep.subr.mxu0 0.0
        %4318 = vmatpush1.msra.mxu0 %v4201
        %4319 = vmatprep.subr.mxu0 0.0
        %4320 = vmatpush1.msra.mxu0 %v4204
        %4321 = vmatprep.subr.mxu0 0.0
        %4322 = vmatpush1.msra.mxu0 %v4207
        %4323 = vmatprep.subr.mxu0 0.0
        %4324 = vmatpush1.msra.mxu0 %v4210
        %4325 = vmatprep.subr.mxu0 0.0
        %4326 = vmatpush1.msra.mxu0 %v4213
        %4327 = vmatprep.subr.mxu0 0.0
        %4328 = vmatpush1.msra.mxu0 %v4216
        %4329 = vmatprep.subr.mxu0 0.0
        %4330 = vmatpush1.msra.mxu0 %v4219
        %4331 = vmatprep.subr.mxu0 0.0
        %4332 = vmatpush1.msra.mxu0 %v4222
        %4333 = vmatprep.subr.mxu0 0.0
        %4334 = vmatpush1.msra.mxu0 %v4225
        %4335 = vmatprep.subr.mxu0 0.0
        %4336 = vmatpush1.msra.mxu0 0.0
        %4337 = vmatprep.subr.mxu0 0.0
        %4338 = vmatpush1.msra.mxu0 0.0
        %4339 = vmatprep.subr.mxu0 0.0
        %4340 = vmatpush1.msra.mxu0 0.0
        %4341 = vmatprep.subr.mxu0 0.0
        %4342 = vmatpush1.msra.mxu0 0.0
        %4343 = vmatprep.subr.mxu0 0.0
        %4344 = vmatpush1.msra.mxu0 0.0
        %4345 = vmatprep.subr.mxu0 0.0
        %4346 = vmatpush1.msra.mxu0 0.0
        %4347 = vmatprep.subr.mxu0 0.0
        %4348 = vmatpush1.msra.mxu0 0.0
        %4349 = vmatprep.subr.mxu0 0.0
        %4350 = vmatpush1.msra.mxu0 0.0
        %4351 = vmatprep.subr.mxu0 0.0
        %4352 = vmatpush1.msra.mxu0 0.0
        %4353 = vmatprep.subr.mxu0 0.0
        %4354 = vmatpush1.msra.mxu0 0.0
        %4355 = vmatprep.subr.mxu0 0.0
        %4356 = vmatpush1.msra.mxu0 0.0
        %4357 = vmatprep.subr.mxu0 0.0
        %4358 = vmatpush1.msra.mxu0 0.0
        %4359 = vmatprep.subr.mxu0 0.0
        %4360 = vmatpush1.msra.mxu0 0.0
        %4361 = vmatprep.subr.mxu0 0.0
        %4362 = vmatpush1.msra.mxu0 0.0
        %4363 = vmatprep.subr.mxu0 0.0
        %4364 = vmatpush1.msra.mxu0 0.0
        %4365 = vmatprep.subr.mxu0 0.0
        %4366 = vmatpush1.msra.mxu0 0.0
        %4367 = vmatprep.mubr.f32.mxu0 0.0
        %4368 = vmatmul.mubr.f32.gmra.mrb[0].mxu0 %v4176
        %v4369 = vpop.f32.mrb[0].mxu0
        %v4370 = vadd.f32 0.0, %v4369
        %v4371 = vpop.f32.mrb[0].mxu0
        %4372 = vmatprep.mubr.f32.mxu0 0.0
        %4373 = vmatmul.mubr.f32.gmra.mrb[0].mxu0 %v4177
        %v4374 = vpop.f32.mrb[0].mxu0
        %v4375 = vadd.f32 0.0, %v4374
        %v4376 = vpop.f32.mrb[0].mxu0
        %4377 = vdwg.mxu0
        %v4378 = vld [vmem:[%s4156 + $0x10] sm:$0xff]
        %v4379 = vld [vmem:[%s4156 + $0x38] sm:$0xff]
        %v4380 = vadd.f32 %v4378, %v4071
        %v4381 = vadd.f32 %v4379, %v4077
        %v4382 = vadd.f32 %v4380, %v4293
        %v4383 = vadd.f32 %v4381, %v4299
        %v4384 = vld [vmem:[%s4156 + $0x18] sm:$0xff]
        %v4385 = vld [vmem:[%s4156 + $0x40] sm:$0xff]
        %v4386 = vadd.f32 %v4384, %v4073
        %v4387 = vadd.f32 %v4385, %v4079
        %v4388 = vadd.f32 %v4386, %v4295
        %v4389 = vadd.f32 %v4387, %v4301
        %v4390 = vmul.f32 %v4382, 0.5
        %v4391 = vmul.f32 %v4383, 0.5
        %v4392 = vtanh.pop %v4390
        %v4393 = vtanh.pop %v4391
        %v4394 = vadd.f32 %v4392, 1.0
        %v4395 = vadd.f32 %v4393, 1.0
        %v4396 = vmul.f32 %v4394, 0.5
        %v4397 = vmul.f32 %v4395, 0.5
        %v4398 = vmul.f32 %v4388, 0.5
        %v4399 = vmul.f32 %v4389, 0.5
        %v4400 = vtanh.pop %v4398
        %v4401 = vtanh.pop %v4399
        %v4402 = vadd.f32 %v4400, 1.0
        %v4403 = vadd.f32 %v4401, 1.0
        %v4404 = vmul.f32 %v4402, 0.5
        %v4405 = vmul.f32 %v4403, 0.5
        %v4406 = vld [vmem:[%s4156 + $0x20] sm:$0xff]
        %v4407 = vld [vmem:[%s4156 + $0x48] sm:$0xff]
        %v4408 = vadd.f32 %v4406, %v4370
        %v4409 = vadd.f32 %v4407, %v4375
        %v4410 = vadd.f32 %v4148, %v929
        %v4411 = vadd.f32 %v4153, %v929
        %v4412 = vmul.f32 %v4396, %v4410
        %v4413 = vmul.f32 %v4397, %v4411
        %v4414 = vadd.f32 %v4408, %v4412
        %v4415 = vadd.f32 %v4409, %v4413
        %v4416 = vtanh.pop %v4414
        %v4417 = vtanh.pop %v4415
        %v4418 = vsub.f32 %v3842, %v4416
        %v4419 = vsub.f32 %v3843, %v4417
        %v4420 = vmul.f32 %v4404, %v4418
        %v4421 = vmul.f32 %v4405, %v4419
        %v4422 = vadd.f32 %v4416, %v4420
        %v4423 = vadd.f32 %v4417, %v4421
        %s4424 = scalar_lea.vmem %s319, 96 [#allocation3]
        %4425 = vst [vmem:[%s4424] sm:$0xff] %v4422
        %4426 = vst [vmem:[%s4424 + $0x8] sm:$0xff] %v4423
        %v4427 = vld [vmem:[%s3] sm:$0xff]
        %v4428 = vld [vmem:[%s3 + $0x8] sm:$0xff]
        %v4429 = vld [vmem:[%s3 + $0x10] sm:$0xff]
        %v4430 = vld [vmem:[%s3 + $0x18] sm:$0xff]
        %v4431 = vld [vmem:[%s3 + $0x20] sm:$0xff]
        %v4432 = vld [vmem:[%s3 + $0x28] sm:$0xff]
        %v4433 = vld [vmem:[%s3 + $0x30] sm:$0xff]
        %v4434 = vld [vmem:[%s3 + $0x38] sm:$0xff]
        %v4435 = vld [vmem:[%s3 + $0x40] sm:$0xff]
        %v4436 = vld [vmem:[%s3 + $0x48] sm:$0xff]
        %v4437 = vld [vmem:[%s3 + $0x50] sm:$0xff]
        %v4438 = vld [vmem:[%s3 + $0x58] sm:$0xff]
        %v4439 = vld [vmem:[%s3 + $0x60] sm:$0xff]
        %v4440 = vld [vmem:[%s3 + $0x68] sm:$0xff]
        %v4441 = vld [vmem:[%s3 + $0x70] sm:$0xff]
        %v4442 = vld [vmem:[%s3 + $0x78] sm:$0xff]
        %v4443 = vld [vmem:[%s3 + $0x80] sm:$0xff]
        %v4444 = vld [vmem:[%s3 + $0x88] sm:$0xff]
        %v4445 = vld [vmem:[%s3 + $0x90] sm:$0xff]
        %v4446 = vld [vmem:[%s3 + $0x98] sm:$0xff]
        %v4447 = vld [vmem:[%s3 + $0xa0] sm:$0xff]
        %v4448 = vld [vmem:[%s3 + $0xa8] sm:$0xff]
        %v4449 = vld [vmem:[%s3 + $0xb0] sm:$0xff]
        %v4450 = vld [vmem:[%s3 + $0xb8] sm:$0xff]
        %v4451 = vld [vmem:[%s3 + $0xc0] sm:$0xff]
        %v4452 = vld [vmem:[%s3 + $0xc8] sm:$0xff]
        %v4453 = vld [vmem:[%s3 + $0xd0] sm:$0xff]
        %v4454 = vld [vmem:[%s3 + $0xd8] sm:$0xff]
        %v4455 = vld [vmem:[%s3 + $0xe0] sm:$0xff]
        %v4456 = vld [vmem:[%s3 + $0xe8] sm:$0xff]
        %v4457 = vld [vmem:[%s3 + $0xf0] sm:$0xff]
        %v4458 = vld [vmem:[%s3 + $0xf8] sm:$0xff]
        %v4459 = vld [vmem:[%s3 + $0x100] sm:$0xff]
        %v4460 = vld [vmem:[%s3 + $0x108] sm:$0xff]
        %v4461 = vld [vmem:[%s3 + $0x110] sm:$0xff]
        %v4462 = vld [vmem:[%s3 + $0x118] sm:$0xff]
        %v4463 = vld [vmem:[%s3 + $0x120] sm:$0xff]
        %v4464 = vld [vmem:[%s3 + $0x128] sm:$0xff]
        %v4465 = vld [vmem:[%s3 + $0x130] sm:$0xff]
        %v4466 = vld [vmem:[%s3 + $0x138] sm:$0xff]
        %v4467 = vld [vmem:[%s3 + $0x140] sm:$0xff]
        %v4468 = vld [vmem:[%s3 + $0x148] sm:$0xff]
        %v4469 = vld [vmem:[%s3 + $0x150] sm:$0xff]
        %v4470 = vld [vmem:[%s3 + $0x158] sm:$0xff]
        %v4471 = vld [vmem:[%s3 + $0x160] sm:$0xff]
        %v4472 = vld [vmem:[%s3 + $0x168] sm:$0xff]
        %v4473 = vld [vmem:[%s3 + $0x170] sm:$0xff]
        %v4474 = vld [vmem:[%s3 + $0x178] sm:$0xff]
        %v4475 = vld [vmem:[%s3 + $0x180] sm:$0xff]
        %v4476 = vld [vmem:[%s3 + $0x188] sm:$0xff]
        %v4477 = vld [vmem:[%s3 + $0x190] sm:$0xff]
        %v4478 = vld [vmem:[%s3 + $0x198] sm:$0xff]
        %v4479 = vld [vmem:[%s3 + $0x1a0] sm:$0xff]
        %v4480 = vld [vmem:[%s3 + $0x1a8] sm:$0xff]
        %v4481 = vld [vmem:[%s3 + $0x1b0] sm:$0xff]
        %v4482 = vld [vmem:[%s3 + $0x1b8] sm:$0xff]
        %v4483 = vld [vmem:[%s3 + $0x1c0] sm:$0xff]
        %v4484 = vld [vmem:[%s3 + $0x1c8] sm:$0xff]
        %v4485 = vld [vmem:[%s3 + $0x1d0] sm:$0xff]
        %v4486 = vld [vmem:[%s3 + $0x1d8] sm:$0xff]
        %v4487 = vld [vmem:[%s3 + $0x1e0] sm:$0xff]
        %v4488 = vld [vmem:[%s3 + $0x1e8] sm:$0xff]
        %v4489 = vld [vmem:[%s3 + $0x1f0] sm:$0xff]
        %v4490 = vld [vmem:[%s3 + $0x1f8] sm:$0xff]
        %v4491 = vld [vmem:[%s3 + $0x200] sm:$0xff]
        %v4492 = vld [vmem:[%s3 + $0x208] sm:$0xff]
        %v4493 = vld [vmem:[%s3 + $0x210] sm:$0xff]
        %v4494 = vld [vmem:[%s3 + $0x218] sm:$0xff]
        %v4495 = vld [vmem:[%s3 + $0x220] sm:$0xff]
        %v4496 = vld [vmem:[%s3 + $0x228] sm:$0xff]
        %v4497 = vld [vmem:[%s3 + $0x230] sm:$0xff]
        %v4498 = vld [vmem:[%s3 + $0x238] sm:$0xff]
        %v4499 = vld [vmem:[%s3 + $0x240] sm:$0xff]
        %v4500 = vld [vmem:[%s3 + $0x248] sm:$0xff]
        %v4501 = vld [vmem:[%s3 + $0x250] sm:$0xff]
        %v4502 = vld [vmem:[%s3 + $0x258] sm:$0xff]
        %v4503 = vld [vmem:[%s3 + $0x260] sm:$0xff]
        %v4504 = vld [vmem:[%s3 + $0x268] sm:$0xff]
        %v4505 = vld [vmem:[%s3 + $0x270] sm:$0xff]
        %v4506 = vld [vmem:[%s3 + $0x278] sm:$0xff]
        %4507 = vmatprep.subr.mxu0 %v4428
        %4508 = vmatpush1.msra.mxu0 %v4427
        %4509 = vmatprep.subr.mxu0 %v4433
        %4510 = vmatpush1.msra.mxu0 %v4432
        %4511 = vmatprep.subr.mxu0 %v4438
        %4512 = vmatpush1.msra.mxu0 %v4437
        %4513 = vmatprep.subr.mxu0 %v4443
        %4514 = vmatpush1.msra.mxu0 %v4442
        %4515 = vmatprep.subr.mxu0 %v4448
        %4516 = vmatpush1.msra.mxu0 %v4447
        %4517 = vmatprep.subr.mxu0 %v4453
        %4518 = vmatpush1.msra.mxu0 %v4452
        %4519 = vmatprep.subr.mxu0 %v4458
        %4520 = vmatpush1.msra.mxu0 %v4457
        %4521 = vmatprep.subr.mxu0 %v4463
        %4522 = vmatpush1.msra.mxu0 %v4462
        %4523 = vmatprep.subr.mxu0 %v4468
        %4524 = vmatpush1.msra.mxu0 %v4467
        %4525 = vmatprep.subr.mxu0 %v4473
        %4526 = vmatpush1.msra.mxu0 %v4472
        %4527 = vmatprep.subr.mxu0 %v4478
        %4528 = vmatpush1.msra.mxu0 %v4477
        %4529 = vmatprep.subr.mxu0 %v4483
        %4530 = vmatpush1.msra.mxu0 %v4482
        %4531 = vmatprep.subr.mxu0 %v4488
        %4532 = vmatpush1.msra.mxu0 %v4487
        %4533 = vmatprep.subr.mxu0 %v4493
        %4534 = vmatpush1.msra.mxu0 %v4492
        %4535 = vmatprep.subr.mxu0 %v4498
        %4536 = vmatpush1.msra.mxu0 %v4497
        %4537 = vmatprep.subr.mxu0 %v4503
        %4538 = vmatpush1.msra.mxu0 %v4502
        %4539 = vmatprep.subr.mxu0 0.0
        %4540 = vmatpush1.msra.mxu0 0.0
        %4541 = vmatprep.subr.mxu0 0.0
        %4542 = vmatpush1.msra.mxu0 0.0
        %4543 = vmatprep.subr.mxu0 0.0
        %4544 = vmatpush1.msra.mxu0 0.0
        %4545 = vmatprep.subr.mxu0 0.0
        %4546 = vmatpush1.msra.mxu0 0.0
        %4547 = vmatprep.subr.mxu0 0.0
        %4548 = vmatpush1.msra.mxu0 0.0
        %4549 = vmatprep.subr.mxu0 0.0
        %4550 = vmatpush1.msra.mxu0 0.0
        %4551 = vmatprep.subr.mxu0 0.0
        %4552 = vmatpush1.msra.mxu0 0.0
        %4553 = vmatprep.subr.mxu0 0.0
        %4554 = vmatpush1.msra.mxu0 0.0
        %4555 = vmatprep.subr.mxu0 0.0
        %4556 = vmatpush1.msra.mxu0 0.0
        %4557 = vmatprep.subr.mxu0 0.0
        %4558 = vmatpush1.msra.mxu0 0.0
        %4559 = vmatprep.subr.mxu0 0.0
        %4560 = vmatpush1.msra.mxu0 0.0
        %4561 = vmatprep.subr.mxu0 0.0
        %4562 = vmatpush1.msra.mxu0 0.0
        %4563 = vmatprep.subr.mxu0 0.0
        %4564 = vmatpush1.msra.mxu0 0.0
        %4565 = vmatprep.subr.mxu0 0.0
        %4566 = vmatpush1.msra.mxu0 0.0
        %4567 = vmatprep.subr.mxu0 0.0
        %4568 = vmatpush1.msra.mxu0 0.0
        %4569 = vmatprep.subr.mxu0 0.0
        %4570 = vmatpush1.msra.mxu0 0.0
        %4571 = vmatprep.mubr.f32.mxu0 0.0
        %4572 = vmatmul.mubr.f32.gmra.mrb[0].mxu0 %v4422
        %v4573 = vpop.f32.mrb[0].mxu0
        %v4574 = vadd.f32 0.0, %v4573
        %v4575 = vpop.f32.mrb[0].mxu0
        %v4576 = vadd.f32 0.0, %v4575
        %4577 = vmatprep.mubr.f32.mxu0 0.0
        %4578 = vmatmul.mubr.f32.gmra.mrb[0].mxu0 %v4423
        %v4579 = vpop.f32.mrb[0].mxu0
        %v4580 = vadd.f32 0.0, %v4579
        %v4581 = vpop.f32.mrb[0].mxu0
        %v4582 = vadd.f32 0.0, %v4581
        %4583 = vdwg.mxu0
        %4584 = vmatprep.subr.mxu0 %v4430
        %4585 = vmatpush1.msra.mxu0 %v4429
        %4586 = vmatprep.subr.mxu0 %v4435
        %4587 = vmatpush1.msra.mxu0 %v4434
        %4588 = vmatprep.subr.mxu0 %v4440
        %4589 = vmatpush1.msra.mxu0 %v4439
        %4590 = vmatprep.subr.mxu0 %v4445
        %4591 = vmatpush1.msra.mxu0 %v4444
        %4592 = vmatprep.subr.mxu0 %v4450
        %4593 = vmatpush1.msra.mxu0 %v4449
        %4594 = vmatprep.subr.mxu0 %v4455
        %4595 = vmatpush1.msra.mxu0 %v4454
        %4596 = vmatprep.subr.mxu0 %v4460
        %4597 = vmatpush1.msra.mxu0 %v4459
        %4598 = vmatprep.subr.mxu0 %v4465
        %4599 = vmatpush1.msra.mxu0 %v4464
        %4600 = vmatprep.subr.mxu0 %v4470
        %4601 = vmatpush1.msra.mxu0 %v4469
        %4602 = vmatprep.subr.mxu0 %v4475
        %4603 = vmatpush1.msra.mxu0 %v4474
        %4604 = vmatprep.subr.mxu0 %v4480
        %4605 = vmatpush1.msra.mxu0 %v4479
        %4606 = vmatprep.subr.mxu0 %v4485
        %4607 = vmatpush1.msra.mxu0 %v4484
        %4608 = vmatprep.subr.mxu0 %v4490
        %4609 = vmatpush1.msra.mxu0 %v4489
        %4610 = vmatprep.subr.mxu0 %v4495
        %4611 = vmatpush1.msra.mxu0 %v4494
        %4612 = vmatprep.subr.mxu0 %v4500
        %4613 = vmatpush1.msra.mxu0 %v4499
        %4614 = vmatprep.subr.mxu0 %v4505
        %4615 = vmatpush1.msra.mxu0 %v4504
        %4616 = vmatprep.subr.mxu0 0.0
        %4617 = vmatpush1.msra.mxu0 0.0
        %4618 = vmatprep.subr.mxu0 0.0
        %4619 = vmatpush1.msra.mxu0 0.0
        %4620 = vmatprep.subr.mxu0 0.0
        %4621 = vmatpush1.msra.mxu0 0.0
        %4622 = vmatprep.subr.mxu0 0.0
        %4623 = vmatpush1.msra.mxu0 0.0
        %4624 = vmatprep.subr.mxu0 0.0
        %4625 = vmatpush1.msra.mxu0 0.0
        %4626 = vmatprep.subr.mxu0 0.0
        %4627 = vmatpush1.msra.mxu0 0.0
        %4628 = vmatprep.subr.mxu0 0.0
        %4629 = vmatpush1.msra.mxu0 0.0
        %4630 = vmatprep.subr.mxu0 0.0
        %4631 = vmatpush1.msra.mxu0 0.0
        %4632 = vmatprep.subr.mxu0 0.0
        %4633 = vmatpush1.msra.mxu0 0.0
        %4634 = vmatprep.subr.mxu0 0.0
        %4635 = vmatpush1.msra.mxu0 0.0
        %4636 = vmatprep.subr.mxu0 0.0
        %4637 = vmatpush1.msra.mxu0 0.0
        %4638 = vmatprep.subr.mxu0 0.0
        %4639 = vmatpush1.msra.mxu0 0.0
        %4640 = vmatprep.subr.mxu0 0.0
        %4641 = vmatpush1.msra.mxu0 0.0
        %4642 = vmatprep.subr.mxu0 0.0
        %4643 = vmatpush1.msra.mxu0 0.0
        %4644 = vmatprep.subr.mxu0 0.0
        %4645 = vmatpush1.msra.mxu0 0.0
        %4646 = vmatprep.subr.mxu0 0.0
        %4647 = vmatpush1.msra.mxu0 0.0
        %4648 = vmatprep.mubr.f32.mxu0 0.0
        %4649 = vmatmul.mubr.f32.gmra.mrb[0].mxu0 %v4422
        %v4650 = vpop.f32.mrb[0].mxu0
        %v4651 = vadd.f32 0.0, %v4650
        %v4652 = vpop.f32.mrb[0].mxu0
        %v4653 = vadd.f32 0.0, %v4652
        %4654 = vmatprep.mubr.f32.mxu0 0.0
        %4655 = vmatmul.mubr.f32.gmra.mrb[0].mxu0 %v4423
        %v4656 = vpop.f32.mrb[0].mxu0
        %v4657 = vadd.f32 0.0, %v4656
        %v4658 = vpop.f32.mrb[0].mxu0
        %v4659 = vadd.f32 0.0, %v4658
        %4660 = vdwg.mxu0
        %4661 = vmatprep.subr.mxu0 0.0
        %4662 = vmatpush1.msra.mxu0 %v4431
        %4663 = vmatprep.subr.mxu0 0.0
        %4664 = vmatpush1.msra.mxu0 %v4436
        %4665 = vmatprep.subr.mxu0 0.0
        %4666 = vmatpush1.msra.mxu0 %v4441
        %4667 = vmatprep.subr.mxu0 0.0
        %4668 = vmatpush1.msra.mxu0 %v4446
        %4669 = vmatprep.subr.mxu0 0.0
        %4670 = vmatpush1.msra.mxu0 %v4451
        %4671 = vmatprep.subr.mxu0 0.0
        %4672 = vmatpush1.msra.mxu0 %v4456
        %4673 = vmatprep.subr.mxu0 0.0
        %4674 = vmatpush1.msra.mxu0 %v4461
        %4675 = vmatprep.subr.mxu0 0.0
        %4676 = vmatpush1.msra.mxu0 %v4466
        %4677 = vmatprep.subr.mxu0 0.0
        %4678 = vmatpush1.msra.mxu0 %v4471
        %4679 = vmatprep.subr.mxu0 0.0
        %4680 = vmatpush1.msra.mxu0 %v4476
        %4681 = vmatprep.subr.mxu0 0.0
        %4682 = vmatpush1.msra.mxu0 %v4481
        %4683 = vmatprep.subr.mxu0 0.0
        %4684 = vmatpush1.msra.mxu0 %v4486
        %4685 = vmatprep.subr.mxu0 0.0
        %4686 = vmatpush1.msra.mxu0 %v4491
        %4687 = vmatprep.subr.mxu0 0.0
        %4688 = vmatpush1.msra.mxu0 %v4496
        %4689 = vmatprep.subr.mxu0 0.0
        %4690 = vmatpush1.msra.mxu0 %v4501
        %4691 = vmatprep.subr.mxu0 0.0
        %4692 = vmatpush1.msra.mxu0 %v4506
        %4693 = vmatprep.subr.mxu0 0.0
        %4694 = vmatpush1.msra.mxu0 0.0
        %4695 = vmatprep.subr.mxu0 0.0
        %4696 = vmatpush1.msra.mxu0 0.0
        %4697 = vmatprep.subr.mxu0 0.0
        %4698 = vmatpush1.msra.mxu0 0.0
        %4699 = vmatprep.subr.mxu0 0.0
        %4700 = vmatpush1.msra.mxu0 0.0
        %4701 = vmatprep.subr.mxu0 0.0
        %4702 = vmatpush1.msra.mxu0 0.0
        %4703 = vmatprep.subr.mxu0 0.0
        %4704 = vmatpush1.msra.mxu0 0.0
        %4705 = vmatprep.subr.mxu0 0.0
        %4706 = vmatpush1.msra.mxu0 0.0
        %4707 = vmatprep.subr.mxu0 0.0
        %4708 = vmatpush1.msra.mxu0 0.0
        %4709 = vmatprep.subr.mxu0 0.0
        %4710 = vmatpush1.msra.mxu0 0.0
        %4711 = vmatprep.subr.mxu0 0.0
        %4712 = vmatpush1.msra.mxu0 0.0
        %4713 = vmatprep.subr.mxu0 0.0
        %4714 = vmatpush1.msra.mxu0 0.0
        %4715 = vmatprep.subr.mxu0 0.0
        %4716 = vmatpush1.msra.mxu0 0.0
        %4717 = vmatprep.subr.mxu0 0.0
        %4718 = vmatpush1.msra.mxu0 0.0
        %4719 = vmatprep.subr.mxu0 0.0
        %4720 = vmatpush1.msra.mxu0 0.0
        %4721 = vmatprep.subr.mxu0 0.0
        %4722 = vmatpush1.msra.mxu0 0.0
        %4723 = vmatprep.subr.mxu0 0.0
        %4724 = vmatpush1.msra.mxu0 0.0
        %4725 = vmatprep.mubr.f32.mxu0 0.0
        %4726 = vmatmul.mubr.f32.gmra.mrb[0].mxu0 %v4422
        %v4727 = vpop.f32.mrb[0].mxu0
        %v4728 = vadd.f32 0.0, %v4727
        %v4729 = vpop.f32.mrb[0].mxu0
        %4730 = vmatprep.mubr.f32.mxu0 0.0
        %4731 = vmatmul.mubr.f32.gmra.mrb[0].mxu0 %v4423
        %v4732 = vpop.f32.mrb[0].mxu0
        %v4733 = vadd.f32 0.0, %v4732
        %v4734 = vpop.f32.mrb[0].mxu0
        %4735 = vdwg.mxu0
        %s4736 = scalar_lea.vmem %s330, 560
        %v4737 = vld [vmem:[%s4736] sm:$0xff]
        %v4738 = vld [vmem:[%s4736 + $0x28] sm:$0xff]
        %v4739 = vadd.f32 %v4737, %v4574
        %v4740 = vadd.f32 %v4738, %v4580
        %v4741 = vld [vmem:[%s4736 + $0x8] sm:$0xff]
        %v4742 = vld [vmem:[%s4736 + $0x30] sm:$0xff]
        %v4743 = vadd.f32 %v4741, %v4576
        %v4744 = vadd.f32 %v4742, %v4582
        %v4745 = vmul.f32 %v4743, 0.5
        %v4746 = vmul.f32 %v4744, 0.5
        %v4747 = vmul.f32 %v4745, 1.442695
        %v4748 = vpow.pop %v4747
        %v4749 = vmul.f32 %v4746, 1.442695
        %v4750 = vpow.pop %v4749
        %s4751 = scalar_lea.vmem %s342, 112
        %v4752 = vld [vmem:[%s4751] sm:$0xff]
        %v4753 = vld [vmem:[%s4751 + $0x8] sm:$0xff]
        %v4754 = vmul.f32 %v4752, %v4748
        %v4755 = vmul.f32 %v4753, %v4750
        %v4756 = vadd.f32 %v4739, %v4754
        %v4757 = vadd.f32 %v4740, %v4755
        %v4758 = vld [vmem:[%s4] sm:$0xff]
        %v4759 = vld [vmem:[%s4 + $0x8] sm:$0xff]
        %v4760 = vld [vmem:[%s4 + $0x10] sm:$0xff]
        %v4761 = vld [vmem:[%s4 + $0x18] sm:$0xff]
        %v4762 = vld [vmem:[%s4 + $0x20] sm:$0xff]
        %v4763 = vld [vmem:[%s4 + $0x28] sm:$0xff]
        %v4764 = vld [vmem:[%s4 + $0x30] sm:$0xff]
        %v4765 = vld [vmem:[%s4 + $0x38] sm:$0xff]
        %v4766 = vld [vmem:[%s4 + $0x40] sm:$0xff]
        %v4767 = vld [vmem:[%s4 + $0x48] sm:$0xff]
        %v4768 = vld [vmem:[%s4 + $0x50] sm:$0xff]
        %v4769 = vld [vmem:[%s4 + $0x58] sm:$0xff]
        %v4770 = vld [vmem:[%s4 + $0x60] sm:$0xff]
        %v4771 = vld [vmem:[%s4 + $0x68] sm:$0xff]
        %v4772 = vld [vmem:[%s4 + $0x70] sm:$0xff]
        %v4773 = vld [vmem:[%s4 + $0x78] sm:$0xff]
        %v4774 = vld [vmem:[%s4 + $0x80] sm:$0xff]
        %v4775 = vld [vmem:[%s4 + $0x88] sm:$0xff]
        %v4776 = vld [vmem:[%s4 + $0x90] sm:$0xff]
        %v4777 = vld [vmem:[%s4 + $0x98] sm:$0xff]
        %v4778 = vld [vmem:[%s4 + $0xa0] sm:$0xff]
        %v4779 = vld [vmem:[%s4 + $0xa8] sm:$0xff]
        %v4780 = vld [vmem:[%s4 + $0xb0] sm:$0xff]
        %v4781 = vld [vmem:[%s4 + $0xb8] sm:$0xff]
        %v4782 = vld [vmem:[%s4 + $0xc0] sm:$0xff]
        %v4783 = vld [vmem:[%s4 + $0xc8] sm:$0xff]
        %v4784 = vld [vmem:[%s4 + $0xd0] sm:$0xff]
        %v4785 = vld [vmem:[%s4 + $0xd8] sm:$0xff]
        %v4786 = vld [vmem:[%s4 + $0xe0] sm:$0xff]
        %v4787 = vld [vmem:[%s4 + $0xe8] sm:$0xff]
        %v4788 = vld [vmem:[%s4 + $0xf0] sm:$0xff]
        %v4789 = vld [vmem:[%s4 + $0xf8] sm:$0xff]
        %v4790 = vld [vmem:[%s4 + $0x100] sm:$0xff]
        %v4791 = vld [vmem:[%s4 + $0x108] sm:$0xff]
        %v4792 = vld [vmem:[%s4 + $0x110] sm:$0xff]
        %v4793 = vld [vmem:[%s4 + $0x118] sm:$0xff]
        %v4794 = vld [vmem:[%s4 + $0x120] sm:$0xff]
        %v4795 = vld [vmem:[%s4 + $0x128] sm:$0xff]
        %v4796 = vld [vmem:[%s4 + $0x130] sm:$0xff]
        %v4797 = vld [vmem:[%s4 + $0x138] sm:$0xff]
        %v4798 = vld [vmem:[%s4 + $0x140] sm:$0xff]
        %v4799 = vld [vmem:[%s4 + $0x148] sm:$0xff]
        %v4800 = vld [vmem:[%s4 + $0x150] sm:$0xff]
        %v4801 = vld [vmem:[%s4 + $0x158] sm:$0xff]
        %v4802 = vld [vmem:[%s4 + $0x160] sm:$0xff]
        %v4803 = vld [vmem:[%s4 + $0x168] sm:$0xff]
        %v4804 = vld [vmem:[%s4 + $0x170] sm:$0xff]
        %v4805 = vld [vmem:[%s4 + $0x178] sm:$0xff]
        %4806 = vmatprep.subr.mxu0 %v4759
        %4807 = vmatpush1.msra.mxu0 %v4758
        %4808 = vmatprep.subr.mxu0 %v4762
        %4809 = vmatpush1.msra.mxu0 %v4761
        %4810 = vmatprep.subr.mxu0 %v4765
        %4811 = vmatpush1.msra.mxu0 %v4764
        %4812 = vmatprep.subr.mxu0 %v4768
        %4813 = vmatpush1.msra.mxu0 %v4767
        %4814 = vmatprep.subr.mxu0 %v4771
        %4815 = vmatpush1.msra.mxu0 %v4770
        %4816 = vmatprep.subr.mxu0 %v4774
        %4817 = vmatpush1.msra.mxu0 %v4773
        %4818 = vmatprep.subr.mxu0 %v4777
        %4819 = vmatpush1.msra.mxu0 %v4776
        %4820 = vmatprep.subr.mxu0 %v4780
        %4821 = vmatpush1.msra.mxu0 %v4779
        %4822 = vmatprep.subr.mxu0 %v4783
        %4823 = vmatpush1.msra.mxu0 %v4782
        %4824 = vmatprep.subr.mxu0 %v4786
        %4825 = vmatpush1.msra.mxu0 %v4785
        %4826 = vmatprep.subr.mxu0 %v4789
        %4827 = vmatpush1.msra.mxu0 %v4788
        %4828 = vmatprep.subr.mxu0 %v4792
        %4829 = vmatpush1.msra.mxu0 %v4791
        %4830 = vmatprep.subr.mxu0 %v4795
        %4831 = vmatpush1.msra.mxu0 %v4794
        %4832 = vmatprep.subr.mxu0 %v4798
        %4833 = vmatpush1.msra.mxu0 %v4797
        %4834 = vmatprep.subr.mxu0 %v4801
        %4835 = vmatpush1.msra.mxu0 %v4800
        %4836 = vmatprep.subr.mxu0 %v4804
        %4837 = vmatpush1.msra.mxu0 %v4803
        %4838 = vmatprep.subr.mxu0 0.0
        %4839 = vmatpush1.msra.mxu0 0.0
        %4840 = vmatprep.subr.mxu0 0.0
        %4841 = vmatpush1.msra.mxu0 0.0
        %4842 = vmatprep.subr.mxu0 0.0
        %4843 = vmatpush1.msra.mxu0 0.0
        %4844 = vmatprep.subr.mxu0 0.0
        %4845 = vmatpush1.msra.mxu0 0.0
        %4846 = vmatprep.subr.mxu0 0.0
        %4847 = vmatpush1.msra.mxu0 0.0
        %4848 = vmatprep.subr.mxu0 0.0
        %4849 = vmatpush1.msra.mxu0 0.0
        %4850 = vmatprep.subr.mxu0 0.0
        %4851 = vmatpush1.msra.mxu0 0.0
        %4852 = vmatprep.subr.mxu0 0.0
        %4853 = vmatpush1.msra.mxu0 0.0
        %4854 = vmatprep.subr.mxu0 0.0
        %4855 = vmatpush1.msra.mxu0 0.0
        %4856 = vmatprep.subr.mxu0 0.0
        %4857 = vmatpush1.msra.mxu0 0.0
        %4858 = vmatprep.subr.mxu0 0.0
        %4859 = vmatpush1.msra.mxu0 0.0
        %4860 = vmatprep.subr.mxu0 0.0
        %4861 = vmatpush1.msra.mxu0 0.0
        %4862 = vmatprep.subr.mxu0 0.0
        %4863 = vmatpush1.msra.mxu0 0.0
        %4864 = vmatprep.subr.mxu0 0.0
        %4865 = vmatpush1.msra.mxu0 0.0
        %4866 = vmatprep.subr.mxu0 0.0
        %4867 = vmatpush1.msra.mxu0 0.0
        %4868 = vmatprep.subr.mxu0 0.0
        %4869 = vmatpush1.msra.mxu0 0.0
        %4870 = vmatprep.mubr.f32.mxu0 0.0
        %4871 = vmatmul.mubr.f32.gmra.mrb[0].mxu0 %v4756
        %v4872 = vpop.f32.mrb[0].mxu0
        %v4873 = vadd.f32 0.0, %v4872
        %v4874 = vpop.f32.mrb[0].mxu0
        %v4875 = vadd.f32 0.0, %v4874
        %4876 = vmatprep.mubr.f32.mxu0 0.0
        %4877 = vmatmul.mubr.f32.gmra.mrb[0].mxu0 %v4757
        %v4878 = vpop.f32.mrb[0].mxu0
        %v4879 = vadd.f32 0.0, %v4878
        %v4880 = vpop.f32.mrb[0].mxu0
        %v4881 = vadd.f32 0.0, %v4880
        %4882 = vdwg.mxu0
        %4883 = vmatprep.subr.mxu0 0.0
        %4884 = vmatpush1.msra.mxu0 %v4760
        %4885 = vmatprep.subr.mxu0 0.0
        %4886 = vmatpush1.msra.mxu0 %v4763
        %4887 = vmatprep.subr.mxu0 0.0
        %4888 = vmatpush1.msra.mxu0 %v4766
        %4889 = vmatprep.subr.mxu0 0.0
        %4890 = vmatpush1.msra.mxu0 %v4769
        %4891 = vmatprep.subr.mxu0 0.0
        %4892 = vmatpush1.msra.mxu0 %v4772
        %4893 = vmatprep.subr.mxu0 0.0
        %4894 = vmatpush1.msra.mxu0 %v4775
        %4895 = vmatprep.subr.mxu0 0.0
        %4896 = vmatpush1.msra.mxu0 %v4778
        %4897 = vmatprep.subr.mxu0 0.0
        %4898 = vmatpush1.msra.mxu0 %v4781
        %4899 = vmatprep.subr.mxu0 0.0
        %4900 = vmatpush1.msra.mxu0 %v4784
        %4901 = vmatprep.subr.mxu0 0.0
        %4902 = vmatpush1.msra.mxu0 %v4787
        %4903 = vmatprep.subr.mxu0 0.0
        %4904 = vmatpush1.msra.mxu0 %v4790
        %4905 = vmatprep.subr.mxu0 0.0
        %4906 = vmatpush1.msra.mxu0 %v4793
        %4907 = vmatprep.subr.mxu0 0.0
        %4908 = vmatpush1.msra.mxu0 %v4796
        %4909 = vmatprep.subr.mxu0 0.0
        %4910 = vmatpush1.msra.mxu0 %v4799
        %4911 = vmatprep.subr.mxu0 0.0
        %4912 = vmatpush1.msra.mxu0 %v4802
        %4913 = vmatprep.subr.mxu0 0.0
        %4914 = vmatpush1.msra.mxu0 %v4805
        %4915 = vmatprep.subr.mxu0 0.0
        %4916 = vmatpush1.msra.mxu0 0.0
        %4917 = vmatprep.subr.mxu0 0.0
        %4918 = vmatpush1.msra.mxu0 0.0
        %4919 = vmatprep.subr.mxu0 0.0
        %4920 = vmatpush1.msra.mxu0 0.0
        %4921 = vmatprep.subr.mxu0 0.0
        %4922 = vmatpush1.msra.mxu0 0.0
        %4923 = vmatprep.subr.mxu0 0.0
        %4924 = vmatpush1.msra.mxu0 0.0
        %4925 = vmatprep.subr.mxu0 0.0
        %4926 = vmatpush1.msra.mxu0 0.0
        %4927 = vmatprep.subr.mxu0 0.0
        %4928 = vmatpush1.msra.mxu0 0.0
        %4929 = vmatprep.subr.mxu0 0.0
        %4930 = vmatpush1.msra.mxu0 0.0
        %4931 = vmatprep.subr.mxu0 0.0
        %4932 = vmatpush1.msra.mxu0 0.0
        %4933 = vmatprep.subr.mxu0 0.0
        %4934 = vmatpush1.msra.mxu0 0.0
        %4935 = vmatprep.subr.mxu0 0.0
        %4936 = vmatpush1.msra.mxu0 0.0
        %4937 = vmatprep.subr.mxu0 0.0
        %4938 = vmatpush1.msra.mxu0 0.0
        %4939 = vmatprep.subr.mxu0 0.0
        %4940 = vmatpush1.msra.mxu0 0.0
        %4941 = vmatprep.subr.mxu0 0.0
        %4942 = vmatpush1.msra.mxu0 0.0
        %4943 = vmatprep.subr.mxu0 0.0
        %4944 = vmatpush1.msra.mxu0 0.0
        %4945 = vmatprep.subr.mxu0 0.0
        %4946 = vmatpush1.msra.mxu0 0.0
        %4947 = vmatprep.mubr.f32.mxu0 0.0
        %4948 = vmatmul.mubr.f32.gmra.mrb[0].mxu0 %v4756
        %v4949 = vpop.f32.mrb[0].mxu0
        %v4950 = vadd.f32 0.0, %v4949
        %v4951 = vpop.f32.mrb[0].mxu0
        %4952 = vmatprep.mubr.f32.mxu0 0.0
        %4953 = vmatmul.mubr.f32.gmra.mrb[0].mxu0 %v4757
        %v4954 = vpop.f32.mrb[0].mxu0
        %v4955 = vadd.f32 0.0, %v4954
        %v4956 = vpop.f32.mrb[0].mxu0
        %4957 = vdwg.mxu0
        %v4958 = vld [vmem:[%s4736 + $0x10] sm:$0xff]
        %v4959 = vld [vmem:[%s4736 + $0x38] sm:$0xff]
        %v4960 = vadd.f32 %v4958, %v4651
        %v4961 = vadd.f32 %v4959, %v4657
        %v4962 = vadd.f32 %v4960, %v4873
        %v4963 = vadd.f32 %v4961, %v4879
        %v4964 = vld [vmem:[%s4736 + $0x18] sm:$0xff]
        %v4965 = vld [vmem:[%s4736 + $0x40] sm:$0xff]
        %v4966 = vadd.f32 %v4964, %v4653
        %v4967 = vadd.f32 %v4965, %v4659
        %v4968 = vadd.f32 %v4966, %v4875
        %v4969 = vadd.f32 %v4967, %v4881
        %v4970 = vmul.f32 %v4962, 0.5
        %v4971 = vmul.f32 %v4963, 0.5
        %v4972 = vtanh.pop %v4970
        %v4973 = vtanh.pop %v4971
        %v4974 = vadd.f32 %v4972, 1.0
        %v4975 = vadd.f32 %v4973, 1.0
        %v4976 = vmul.f32 %v4974, 0.5
        %v4977 = vmul.f32 %v4975, 0.5
        %v4978 = vmul.f32 %v4968, 0.5
        %v4979 = vmul.f32 %v4969, 0.5
        %v4980 = vtanh.pop %v4978
        %v4981 = vtanh.pop %v4979
        %v4982 = vadd.f32 %v4980, 1.0
        %v4983 = vadd.f32 %v4981, 1.0
        %v4984 = vmul.f32 %v4982, 0.5
        %v4985 = vmul.f32 %v4983, 0.5
        %v4986 = vld [vmem:[%s4736 + $0x20] sm:$0xff]
        %v4987 = vld [vmem:[%s4736 + $0x48] sm:$0xff]
        %v4988 = vadd.f32 %v4986, %v4950
        %v4989 = vadd.f32 %v4987, %v4955
        %v4990 = vadd.f32 %v4728, %v929
        %v4991 = vadd.f32 %v4733, %v929
        %v4992 = vmul.f32 %v4976, %v4990
        %v4993 = vmul.f32 %v4977, %v4991
        %v4994 = vadd.f32 %v4988, %v4992
        %v4995 = vadd.f32 %v4989, %v4993
        %v4996 = vtanh.pop %v4994
        %v4997 = vtanh.pop %v4995
        %v4998 = vsub.f32 %v4422, %v4996
        %v4999 = vsub.f32 %v4423, %v4997
        %v5000 = vmul.f32 %v4984, %v4998
        %v5001 = vmul.f32 %v4985, %v4999
        %v5002 = vadd.f32 %v4996, %v5000
        %v5003 = vadd.f32 %v4997, %v5001
        %s5004 = scalar_lea.vmem %s319, 112 [#allocation3]
        %5005 = vst [vmem:[%s5004] sm:$0xff] %v5002
        %5006 = vst [vmem:[%s5004 + $0x8] sm:$0xff] %v5003
        %5007 = vst [vmem:[#allocation2] sm:$0xff] %v5002
        %5008 = vst [vmem:[#allocation2 + $0x8] sm:$0xff] %v5003
        %s5009 = sand.u32 %s187, 1
        %s5010 = scalar_lea.sflag [#allocation4], %s5009
        %s5011 = sand.u32 %s187, 1
        %s5012 = smul.addr %s5011, 128
        %s5013 = scalar_lea.vmem [#allocation3], %s5012
        // Predicated region
        $region49: #{stochastic_gru_forward.1} parent=43 // pred_check
          %p5014 = pneg %p197
        $region50: #{stochastic_gru_forward.1} parent=43 // pred_check_branch
          %5016 = sbr.rel (%p5014) target = $region52
        $region51: #{stochastic_gru_forward.1} parent=43 // pred_region
          %s5017 = smul.u32 8, %s25
          %s5018 = smul.u32 2, %s24
          %s5020 = ssub.s32 2048, 2048
          %5021 = vsyncadd %s5010, %s5020
          %s5022 = smul.addr %s5017, 2
          %s5023 = sadd.s32 %s5018, %s5022
          %s5024 = smul.addr %s5023, 128
          %s5025 = scalar_lea.hbm %s6, %s5024
          %s5026 = sshll.u32 %s5013, 4
          %s5027 = int_to_ptr.vmem [resolvable:$true] %s5026
          %5032 = dma.vmem_to_hbm [thread:$0]  %s5027, 2048, %s5025, %s5010, 128, 128, 8
        $region52: #{stochastic_gru_forward.1} parent=43 // pred_fallthru
          _
      $region44: #{stochastic_gru_forward.1} parent=5 // pred_fallthru
        _
      %p5033 = scmp.le.s32.totalorder 2, %s15
      // Predicated region
      $region53: #{stochastic_gru_forward.1} parent=5 // pred_check
        %p5034 = pneg %p5033
      $region54: #{stochastic_gru_forward.1} parent=5 // pred_check_branch
        %5036 = sbr.rel (%p5034) target = $region56
      $region55: #{stochastic_gru_forward.1} parent=5 // pred_region
        %s5037 = ssub.s32 %s15, 2
        // Predicated region
        $region57: #{stochastic_gru_forward.1} parent=55 // pred_check
          %p5038 = pneg %p203
        $region58: #{stochastic_gru_forward.1} parent=55 // pred_check_branch
          %5040 = sbr.rel (%p5038) target = $region60
        $region59: #{stochastic_gru_forward.1} parent=55 // pred_region
          %s5041 = sand.u32 %s188, 1
          %s5042 = scalar_lea.sflag [#allocation4], %s5041
          %s5043 = sand.u32 %s188, 1
          %s5044 = smul.addr %s5043, 128
          %s5045 = scalar_lea.vmem [#allocation3], %s5044
          %5046 = dma.done %s5042, 2048
        $region60: #{stochastic_gru_forward.1} parent=55 // pred_fallthru
          _
      $region56: #{stochastic_gru_forward.1} parent=5 // pred_fallthru
        _
    $region6: #{stochastic_gru_forward.1} parent=1 // loop_footer
      %s19 = sadd.s32 1, %s15
    $region7: #{stochastic_gru_forward.1} parent=1 // loop_footer_branch
      %14 = sbr.rel target = $region3
    $region8: #{stochastic_gru_forward.1} parent=1 // loop_exit
      _
    %5047 = vsyncpa [#allocation4], 1
    %s5048 = scalar_lea.sflag [#allocation4], 1
    %5049 = vsyncpa %s5048, 1

</llo_original>
